<compile_context>
chip_gen: v6e
topology: v6e:2x2x1
jax: 0.10.0
libtpu: 0.0.40
codegen_flags: <defaults>
</compile_context>

<pallas_src>
import functools

import jax
import jax.numpy as jnp
from jax.experimental import pallas as pl
from jax.experimental.pallas import tpu as pltpu


_BF16 = jnp.bfloat16
_F32 = jnp.float32


def _ssp(x):
    # shifted_softplus(x) = softplus(x) - log(2)
    return jax.nn.softplus(x) - jnp.log(2.0).astype(x.dtype)


def _interaction_kernel(x_ref, f_ref, r_ref, m_ref, nbr_ref,
                        wf1_ref, bf1_ref, wf2_ref, bf2_ref,
                        win_ref, wout_ref, bout_ref, wd_ref, bd_ref,
                        o_ref, acc_ref, y_ref, *, cutoff):
    k = pl.program_id(1)
    Bt, At, nb = x_ref.shape
    _, _, Nc, GD = f_ref.shape
    F = acc_ref.shape[1]
    L = At * Nc                      # per-batch-element (atom, neighbor) rows
    rows = Bt * L

    # --- per batch-block init: zero accumulator, y = in2f(x) (once per block)
    @pl.when(k == 0)
    def _():
        acc_ref[...] = jnp.zeros_like(acc_ref)
        xb = x_ref[...].reshape(Bt * At, nb).astype(_BF16)
        # y is held in bf16: the exact 0/1 one-hot gather reproduces it bit-for
        # bit, so the only loss is bf16 rounding of y itself (covered by the
        # test tolerance).  Switch this scratch to f32 if more accuracy is
        # needed -- it is only (Bt*At, F).
        y_ref[...] = jnp.dot(xb, win_ref[...],
                             preferred_element_type=_F32).astype(_BF16)

    # --- filter network on this neighbor chunk (bf16 MXU, f32 accumulate) ----
    f = f_ref[...].reshape(rows, GD)                                  # bf16
    h = _ssp(jnp.dot(f, wf1_ref[...],
                     preferred_element_type=_F32) + bf1_ref[...])
    w = jnp.dot(h.astype(_BF16), wf2_ref[...],
                preferred_element_type=_F32) + bf2_ref[...]           # (rows, F) f32

    # --- cosine cutoff * neighbor mask (f32 elementwise; v5e has no bf16 VPU)
    r = r_ref[...].reshape(rows, 1)
    m = m_ref[...].reshape(rows, 1)
    c = 0.5 * (jnp.cos(r * (jnp.pi / cutoff)) + 1.0)
    scale = jnp.where(r < cutoff, c, 0.0) * m                         # (rows, 1)

    # --- block-diagonal neighbor gather, masked product, per-atom reduction --
    # One-hot columns only span this batch element's At atoms, so the iota /
    # compare / MXU cost scales as Bt*At^2*Nc*F instead of (Bt*At)^2*Nc*F.
    idx = nbr_ref[...].reshape(Bt, L, 1)
    y_all = y_ref[...]                                                # (Bt*At, F)
    col = jax.lax.broadcasted_iota(jnp.int32, (L, At), 1)

    # Static Python loop: Bt is small (2-8); each pass is one small gather
    # matmul + masked product + contiguous neighbor reduction.
    for b in range(Bt):
        onehot = (idx[b] == col).astype(_BF16)                        # (L, At)
        y_j = jnp.dot(onehot, y_all[b * At:(b + 1) * At, :],
                      preferred_element_type=_F32)                    # (L, F)
        prod = y_j * w[b * L:(b + 1) * L, :] * scale[b * L:(b + 1) * L, :]
        acc_ref[b * At:(b + 1) * At, :] += prod.reshape(At, Nc, F).sum(axis=1)
    # TODO(synk): normalize_filter=True (mean over neighbors) is not wired; the
    # module default (False, masked sum) is what is implemented.

    # --- finalize: f2out (+ssp), final dense, residual ------------------------
    @pl.when(k == pl.num_programs(1) - 1)
    def _():
        agg = acc_ref[...]
        v = _ssp(jnp.dot(agg.astype(_BF16), wout_ref[...],
                         preferred_element_type=_F32) + bout_ref[...])
        v = jnp.dot(v.astype(_BF16), wd_ref[...],
                    preferred_element_type=_F32) + bd_ref[...]        # (Bt*At, nb)
        o_ref[...] = x_ref[...] + v.reshape(Bt, At, nb)


def schnet_interaction_double(x, r_double, f_double, neighbors, neighbor_mask,
                              params, *, cutoff=6.0, batch_block=None,
                              nbr_block=None, target_rows=4096,
                              vmem_limit_bytes=None):
    """SchNetInteractionDouble forward: x + Dense(CFConvDouble(x, ...))."""
    B, At, nb = x.shape
    _, _, Nbr, GD = f_double.shape
    F = params["w_in2f"].shape[1]

    # ---- block-size heuristics ------------------------------------------------
    # Big per-step tiles amortize the ~0.35us/step pipeline overhead and fill
    # the MXU M dimension (rows = Bt*At*Nc).  Keep >= 2 steps on the "parallel"
    # batch axis when possible so v7x's two TensorCores both get work.
    # target_rows guidance: ~4-8K on v7x (64 MiB physical VMEM), ~8-16K on
    # v5e/v6e (128 MiB); the live f32 intermediates are ~4*rows*F*4 bytes plus
    # the double-buffered f chunk (whose GD lanes pad to 128 in VMEM).
    if batch_block is None:
        cands = [d for d in range(1, B + 1)
                 if B % d == 0 and (B // d >= 2 or d == 1)
                 and d * At <= target_rows]
        Bt = max(cands) if cands else 1
    else:
        Bt = batch_block
    assert B % Bt == 0, "batch_block must divide B"

    if nbr_block is None:
        valid = [n for n in range(1, Nbr + 1)
                 if Nbr % n == 0 and (n == Nbr or n % 8 == 0)]
        fitting = [n for n in valid if Bt * At * n <= target_rows]
        Nc = max(fitting) if fitting else min(valid)
    else:
        Nc = nbr_block
    assert Nbr % Nc == 0 and (Nc == Nbr or Nc % 8 == 0), "bad nbr_block"

    # ---- dtype / layout prep ----------------------------------------------------
    # f_double is the dominant HBM stream: ship it (and all MXU weight matrices)
    # in bf16.  Biases and the per-pair scalars stay f32 so every elementwise op
    # runs in f32 (v5e has no bf16 VPU/EUP).
    xf = x.astype(_F32)
    f4 = f_double.astype(_BF16)                                # (B, At, Nbr, GD)
    r4 = r_double.astype(_F32).reshape(B, At, Nbr, 1)
    m4 = neighbor_mask.astype(_F32).reshape(B, At, Nbr, 1)
    n4 = neighbors.astype(jnp.int32).reshape(B, At, Nbr, 1)
    # NOTE: the trailing-1 blocks lane-pad in VMEM (1 -> 128 lanes) but keep the
    # per-row scalars in sublane layout, avoiding a lane->sublane relayout in the
    # kernel; with the default Nc == Nbr their HBM reads stay fully contiguous.

    weights = (params["wf1"].astype(_BF16), params["bf1"].astype(_F32),
               params["wf2"].astype(_BF16), params["bf2"].astype(_F32),
               params["w_in2f"].astype(_BF16),
               params["w_f2out"].astype(_BF16), params["b_f2out"].astype(_F32),
               params["w_dense"].astype(_BF16), params["b_dense"].astype(_F32))

    def chunk_spec(last):
        return pl.BlockSpec((Bt, At, Nc, last), lambda b, k: (b, 0, k, 0))

    def full_spec(w):
        # NOTE: these constant-index blocks could be single-buffered
        # (pipeline_mode=pl.Buffered(1)) to save VMEM once tiles are scaled up.
        return pl.BlockSpec(w.shape, lambda b, k, _n=w.ndim: (0,) * _n)

    in_specs = [
        pl.BlockSpec((Bt, At, nb), lambda b, k: (b, 0, 0)),   # x (resident over k)
        chunk_spec(GD),                                       # f_double chunk (bf16)
        chunk_spec(1),                                        # r_double chunk
        chunk_spec(1),                                        # neighbor_mask chunk
        chunk_spec(1),                                        # neighbors chunk
    ] + [full_spec(w) for w in weights]

    grid_spec = pltpu.PrefetchScalarGridSpec(
        num_scalar_prefetch=0,
        grid=(B // Bt, Nbr // Nc),
        in_specs=in_specs,
        out_specs=pl.BlockSpec((Bt, At, nb), lambda b, k: (b, 0, 0)),
        scratch_shapes=[
            pltpu.VMEM((Bt * At, F), _F32),     # neighbor-sum accumulator
            pltpu.VMEM((Bt * At, F), _BF16),    # y = in2f(x), reused over k
        ],
    )

    kernel = functools.partial(_interaction_kernel, cutoff=float(cutoff))

    # NOTE: when stacking many interaction layers, out = x + v can reuse x's
    # HBM buffer via input_output_aliases={0: 0}; omitted here so the demo can
    # still read x afterwards for the reference check.
    return pl.pallas_call(
        kernel,
        out_shape=jax.ShapeDtypeStruct((B, At, nb), _F32),
        grid_spec=grid_spec,
        compiler_params=pltpu.CompilerParams(
            dimension_semantics=("parallel", "arbitrary"),
            # Raise for production tile sizes: cap at ~40-48 MiB on v7x (64 MiB
            # physical VMEM), up to ~96 MiB on v5e/v6e.  The demo shapes fit the
            # default scoped limit.
            vmem_limit_bytes=vmem_limit_bytes),
    )(xf, f4, r4, m4, n4, *weights)


def reference(x, r_double, f_double, neighbors, neighbor_mask, params, cutoff=6.0):
    """Pure-JAX (f32) reference mirroring the PyTorch module."""
    h = _ssp(f_double @ params["wf1"] + params["bf1"])
    W = h @ params["wf2"] + params["bf2"]                       # (B, At, Nbr, F)
    C = 0.5 * (jnp.cos(jnp.pi * r_double / cutoff) + 1.0)
    C = jnp.where(r_double < cutoff, C, 0.0)
    W = W * C[..., None]
    y = x @ params["w_in2f"]                                    # (B, At, F)
    y_j = jax.vmap(lambda yb, idx: yb[idx])(y, neighbors)       # (B, At, Nbr, F)
    prod = y_j * W * neighbor_mask[..., None]
    agg = prod.sum(axis=2)                                      # (B, At, F)
    v = _ssp(agg @ params["w_f2out"] + params["b_f2out"])
    v = v @ params["w_dense"] + params["b_dense"]
    return x + v


def make_params(key, n_atom_basis, n_gaussian_double, n_filters):
    ks = jax.random.split(key, 5)
    s = 0.1
    return {
        # filternet_double: Dense(GD, F, ssp) -> Dense(F, F)
        "wf1": s * jax.random.normal(ks[0], (n_gaussian_double, n_filters), jnp.float32),
        "bf1": jnp.zeros((1, n_filters), jnp.float32),
        "wf2": s * jax.random.normal(ks[1], (n_filters, n_filters), jnp.float32),
        "bf2": jnp.zeros((1, n_filters), jnp.float32),
        # cfconv in2f (no bias) and f2out (bias + ssp)
        "w_in2f": s * jax.random.normal(ks[2], (n_atom_basis, n_filters), jnp.float32),
        "w_f2out": s * jax.random.normal(ks[3], (n_filters, n_atom_basis), jnp.float32),
        "b_f2out": 0.01 * jnp.ones((1, n_atom_basis), jnp.float32),
        # final dense
        "w_dense": s * jax.random.normal(ks[4], (n_atom_basis, n_atom_basis), jnp.float32),
        "b_dense": 0.01 * jnp.ones((1, n_atom_basis), jnp.float32),
    }


if __name__ == "__main__":
    B, At, Nbr = 4, 8, 16
    n_atom_basis = 128      # lane-dense channel widths (multiples of 128)
    n_filters = 128
    n_gaussian_double = 16
    cutoff = 6.0

    key = jax.random.PRNGKey(0)
    k_x, k_r, k_f, k_n, k_m, k_p = jax.random.split(key, 6)

    x = jax.random.normal(k_x, (B, At, n_atom_basis), jnp.float32)
    r_double = jax.random.uniform(k_r, (B, At, Nbr), jnp.float32, 0.5, 8.0)
    f_double = jax.random.uniform(k_f, (B, At, Nbr, n_gaussian_double), jnp.float32)
    neighbors = jax.random.randint(k_n, (B, At, Nbr), 0, At, jnp.int32)
    neighbor_mask = (jax.random.uniform(k_m, (B, At, Nbr)) > 0.2).astype(jnp.float32)

    params = make_params(k_p, n_atom_basis, n_gaussian_double, n_filters)

    # Default heuristics pick Bt=2 (two "parallel" steps -> both v7x TCs) and
    # Nc=Nbr (single neighbor step, rows = 256 folded into the MXU M dim).
    out = schnet_interaction_double(x, r_double, f_double, neighbors,
                                    neighbor_mask, params, cutoff=cutoff)
    out = jax.block_until_ready(out)

    ref = reference(x, r_double, f_double, neighbors, neighbor_mask, params,
                    cutoff=cutoff)
    assert out.shape == (B, At, n_atom_basis)
    # bf16 MXU operands (f32 accumulation) => loosened tolerance vs f32 reference.
    max_err = float(jnp.max(jnp.abs(out - ref)))
    assert jnp.allclose(out, ref, rtol=5e-2, atol=5e-2), (
        "mismatch vs pure-JAX reference; max abs diff = %g" % max_err)

    print("KERNEL_OK")
</pallas_src>

<mosaic_0001>
module attributes {stable_mosaic.version = 11 : i64} {
  func.func @_interaction_kernel(%arg0: i32, %arg1: i32, %arg2: memref<2x8x128xf32, #tpu.memory_space<vmem>>, %arg3: memref<2x8x16x16xbf16, #tpu.memory_space<vmem>>, %arg4: memref<2x8x16x1xf32, #tpu.memory_space<vmem>>, %arg5: memref<2x8x16x1xf32, #tpu.memory_space<vmem>>, %arg6: memref<2x8x16x1xi32, #tpu.memory_space<vmem>>, %arg7: memref<16x128xbf16, #tpu.memory_space<vmem>>, %arg8: memref<1x128xf32, #tpu.memory_space<vmem>>, %arg9: memref<128x128xbf16, #tpu.memory_space<vmem>>, %arg10: memref<1x128xf32, #tpu.memory_space<vmem>>, %arg11: memref<128x128xbf16, #tpu.memory_space<vmem>>, %arg12: memref<128x128xbf16, #tpu.memory_space<vmem>>, %arg13: memref<1x128xf32, #tpu.memory_space<vmem>>, %arg14: memref<128x128xbf16, #tpu.memory_space<vmem>>, %arg15: memref<1x128xf32, #tpu.memory_space<vmem>>, %arg16: memref<2x8x128xf32, #tpu.memory_space<vmem>>, %arg17: memref<16x128xf32, #tpu.memory_space<vmem>>, %arg18: memref<16x128xbf16, #tpu.memory_space<vmem>>) attributes {dimension_semantics = [#tpu.dimension_semantics<parallel>, #tpu.dimension_semantics<arbitrary>], iteration_bounds = array<i64: 2, 1>, scalar_prefetch = 0 : i64, scratch_operands = 2 : i64, tpu.core_type = #tpu.core_type<tc>, window_params = [{transform_indices = @transform_0, window_bounds = array<i64: 2, 8, 128>}, {transform_indices = @transform_1, window_bounds = array<i64: 2, 8, 16, 16>}, {transform_indices = @transform_2, window_bounds = array<i64: 2, 8, 16, 1>}, {transform_indices = @transform_3, window_bounds = array<i64: 2, 8, 16, 1>}, {transform_indices = @transform_4, window_bounds = array<i64: 2, 8, 16, 1>}, {pipeline_mode = #tpu.pipeline_mode<synchronous>, transform_indices = @transform_5, window_bounds = array<i64: 16, 128>}, {pipeline_mode = #tpu.pipeline_mode<synchronous>, transform_indices = @transform_6, window_bounds = array<i64: 1, 128>}, {pipeline_mode = #tpu.pipeline_mode<synchronous>, transform_indices = @transform_7, window_bounds = array<i64: 128, 128>}, {pipeline_mode = #tpu.pipeline_mode<synchronous>, transform_indices = @transform_8, window_bounds = array<i64: 1, 128>}, {pipeline_mode = #tpu.pipeline_mode<synchronous>, transform_indices = @transform_9, window_bounds = array<i64: 128, 128>}, {pipeline_mode = #tpu.pipeline_mode<synchronous>, transform_indices = @transform_10, window_bounds = array<i64: 128, 128>}, {pipeline_mode = #tpu.pipeline_mode<synchronous>, transform_indices = @transform_11, window_bounds = array<i64: 1, 128>}, {pipeline_mode = #tpu.pipeline_mode<synchronous>, transform_indices = @transform_12, window_bounds = array<i64: 128, 128>}, {pipeline_mode = #tpu.pipeline_mode<synchronous>, transform_indices = @transform_13, window_bounds = array<i64: 1, 128>}, {transform_indices = @transform_14, window_bounds = array<i64: 2, 8, 128>}]} {
    %c0_i32 = arith.constant 0 : i32
    %0 = arith.cmpi eq, %arg1, %c0_i32 : i32
    %1 = arith.extui %0 : i1 to i32
    %c0_i32_0 = arith.constant 0 : i32
    %2 = arith.cmpi ne, %1, %c0_i32_0 : i32
    scf.if %2 {
      %cst_48 = arith.constant 0.000000e+00 : f32
      %94 = vector.broadcast %cst_48 : f32 to vector<16x128xf32>
      %c0_49 = arith.constant 0 : index
      %c0_50 = arith.constant 0 : index
      %95 = vector.load %arg17[%c0_49, %c0_50] : memref<16x128xf32, #tpu.memory_space<vmem>>, vector<16x128xf32>
      tpu.vector_store %arg17[%c0_49, %c0_50], %94 {strides = array<i32>} : memref<16x128xf32, #tpu.memory_space<vmem>>, vector<16x128xf32>,
      %c0_51 = arith.constant 0 : index
      %c0_52 = arith.constant 0 : index
      %c0_53 = arith.constant 0 : index
      %96 = vector.load %arg2[%c0_51, %c0_52, %c0_53] : memref<2x8x128xf32, #tpu.memory_space<vmem>>, vector<2x8x128xf32>
      %97 = vector.shape_cast %96 : vector<2x8x128xf32> to vector<16x128xf32>
      %98 = arith.truncf %97 : vector<16x128xf32> to vector<16x128xbf16>
      %c0_54 = arith.constant 0 : index
      %c0_55 = arith.constant 0 : index
      %99 = vector.load %arg11[%c0_54, %c0_55] : memref<128x128xbf16, #tpu.memory_space<vmem>>, vector<128x128xbf16>
      %cst_56 = arith.constant dense<0.000000e+00> : vector<16x128xf32>
      %100 = tpu.matmul %98, %99, %cst_56 {dimension_numbers = #tpu.dot_dimension_numbers<[1], [0], [0], [1], [0, 0, 1, 1], [], []>} : vector<16x128xbf16>, vector<128x128xbf16>, vector<16x128xf32> -> vector<16x128xf32>
      %101 = arith.truncf %100 : vector<16x128xf32> to vector<16x128xbf16>
      %c0_57 = arith.constant 0 : index
      %c0_58 = arith.constant 0 : index
      %102 = vector.load %arg18[%c0_57, %c0_58] : memref<16x128xbf16, #tpu.memory_space<vmem>>, vector<16x128xbf16>
      tpu.vector_store %arg18[%c0_57, %c0_58], %101 {strides = array<i32>} : memref<16x128xbf16, #tpu.memory_space<vmem>>, vector<16x128xbf16>,
    } else {
    }
    %c0 = arith.constant 0 : index
    %c0_1 = arith.constant 0 : index
    %c0_2 = arith.constant 0 : index
    %c0_3 = arith.constant 0 : index
    %3 = vector.load %arg3[%c0, %c0_1, %c0_2, %c0_3] : memref<2x8x16x16xbf16, #tpu.memory_space<vmem>>, vector<2x8x16x16xbf16>
    %4 = vector.shape_cast %3 : vector<2x8x16x16xbf16> to vector<256x16xbf16>
    %c0_4 = arith.constant 0 : index
    %c0_5 = arith.constant 0 : index
    %5 = vector.load %arg7[%c0_4, %c0_5] : memref<16x128xbf16, #tpu.memory_space<vmem>>, vector<16x128xbf16>
    %cst = arith.constant dense<0.000000e+00> : vector<256x128xf32>
    %6 = tpu.matmul %4, %5, %cst {dimension_numbers = #tpu.dot_dimension_numbers<[1], [0], [0], [1], [0, 0, 1, 1], [], []>} : vector<256x16xbf16>, vector<16x128xbf16>, vector<256x128xf32> -> vector<256x128xf32>
    %c0_6 = arith.constant 0 : index
    %c0_7 = arith.constant 0 : index
    %7 = vector.load %arg8[%c0_6, %c0_7] : memref<1x128xf32, #tpu.memory_space<vmem>>, vector<1x128xf32>
    %8 = vector.broadcast %7 : vector<1x128xf32> to vector<256x128xf32>
    %9 = arith.addf %6, %8 : vector<256x128xf32>
    %cst_8 = arith.constant 0.000000e+00 : f32
    %10 = vector.broadcast %cst_8 : f32 to vector<256x128xf32>
    %11 = arith.maximumf %9, %10 : vector<256x128xf32>
    %12 = vector.broadcast %cst_8 : f32 to vector<256x128xf32>
    %13 = arith.subf %9, %12 : vector<256x128xf32>
    %14 = arith.cmpf one, %13, %13 : vector<256x128xf32>
    %15 = vector.broadcast %cst_8 : f32 to vector<256x128xf32>
    %16 = arith.addf %9, %15 : vector<256x128xf32>
    %17 = math.absf %13 : vector<256x128xf32>
    %cst_9 = arith.constant 0.000000e+00 : f32
    %18 = vector.broadcast %cst_9 : f32 to vector<256x128xf32>
    %19 = arith.subf %18, %17 : vector<256x128xf32>
    %20 = math.exp %19 : vector<256x128xf32>
    %21 = math.log1p %20 : vector<256x128xf32>
    %22 = arith.addf %11, %21 : vector<256x128xf32>
    %23 = arith.select %14, %16, %22 : vector<256x128xi1>, vector<256x128xf32>
    %cst_10 = arith.constant 2.000000e+00 : f32
    %24 = math.log %cst_10 : f32
    %25 = vector.broadcast %24 : f32 to vector<256x128xf32>
    %26 = arith.subf %23, %25 : vector<256x128xf32>
    %27 = arith.truncf %26 : vector<256x128xf32> to vector<256x128xbf16>
    %c0_11 = arith.constant 0 : index
    %c0_12 = arith.constant 0 : index
    %28 = vector.load %arg9[%c0_11, %c0_12] : memref<128x128xbf16, #tpu.memory_space<vmem>>, vector<128x128xbf16>
    %cst_13 = arith.constant dense<0.000000e+00> : vector<256x128xf32>
    %29 = tpu.matmul %27, %28, %cst_13 {dimension_numbers = #tpu.dot_dimension_numbers<[1], [0], [0], [1], [0, 0, 1, 1], [], []>} : vector<256x128xbf16>, vector<128x128xbf16>, vector<256x128xf32> -> vector<256x128xf32>
    %c0_14 = arith.constant 0 : index
    %c0_15 = arith.constant 0 : index
    %30 = vector.load %arg10[%c0_14, %c0_15] : memref<1x128xf32, #tpu.memory_space<vmem>>, vector<1x128xf32>
    %31 = vector.broadcast %30 : vector<1x128xf32> to vector<256x128xf32>
    %32 = arith.addf %29, %31 : vector<256x128xf32>
    %c0_16 = arith.constant 0 : index
    %c0_17 = arith.constant 0 : index
    %c0_18 = arith.constant 0 : index
    %c0_19 = arith.constant 0 : index
    %33 = vector.load %arg4[%c0_16, %c0_17, %c0_18, %c0_19] : memref<2x8x16x1xf32, #tpu.memory_space<vmem>>, vector<2x8x16x1xf32>
    %34 = vector.shape_cast %33 : vector<2x8x16x1xf32> to vector<256x1xf32>
    %c0_20 = arith.constant 0 : index
    %c0_21 = arith.constant 0 : index
    %c0_22 = arith.constant 0 : index
    %c0_23 = arith.constant 0 : index
    %35 = vector.load %arg5[%c0_20, %c0_21, %c0_22, %c0_23] : memref<2x8x16x1xf32, #tpu.memory_space<vmem>>, vector<2x8x16x1xf32>
    %36 = vector.shape_cast %35 : vector<2x8x16x1xf32> to vector<256x1xf32>
    %cst_24 = arith.constant 0.52359879 : f32
    %37 = vector.broadcast %cst_24 : f32 to vector<256x1xf32>
    %38 = arith.mulf %34, %37 : vector<256x1xf32>
    %39 = math.cos %38 : vector<256x1xf32>
    %cst_25 = arith.constant 1.000000e+00 : f32
    %40 = vector.broadcast %cst_25 : f32 to vector<256x1xf32>
    %41 = arith.addf %39, %40 : vector<256x1xf32>
    %cst_26 = arith.constant 5.000000e-01 : f32
    %42 = vector.broadcast %cst_26 : f32 to vector<256x1xf32>
    %43 = arith.mulf %42, %41 : vector<256x1xf32>
    %cst_27 = arith.constant 6.000000e+00 : f32
    %44 = vector.broadcast %cst_27 : f32 to vector<256x1xf32>
    %45 = arith.cmpf olt, %34, %44 : vector<256x1xf32>
    %cst_28 = arith.constant 0.000000e+00 : f32
    %46 = vector.broadcast %cst_28 : f32 to vector<256x1xf32>
    %47 = arith.select %45, %43, %46 : vector<256x1xi1>, vector<256x1xf32>
    %48 = arith.mulf %47, %36 : vector<256x1xf32>
    %c0_29 = arith.constant 0 : index
    %c0_30 = arith.constant 0 : index
    %c0_31 = arith.constant 0 : index
    %c0_32 = arith.constant 0 : index
    %49 = vector.load %arg6[%c0_29, %c0_30, %c0_31, %c0_32] : memref<2x8x16x1xi32, #tpu.memory_space<vmem>>, vector<2x8x16x1xi32>
    %50 = vector.shape_cast %49 : vector<2x8x16x1xi32> to vector<2x128x1xi32>
    %c0_33 = arith.constant 0 : index
    %c0_34 = arith.constant 0 : index
    %51 = vector.load %arg18[%c0_33, %c0_34] : memref<16x128xbf16, #tpu.memory_space<vmem>>, vector<16x128xbf16>
    %52 = tpu.iota {dimensions = array<i32: 1>} : vector<128x8xi32>
    %53 = vector.extract_strided_slice %50 {offsets = [0, 0, 0], sizes = [1, 128, 1], strides = [1, 1, 1]} : vector<2x128x1xi32> to vector<1x128x1xi32>
    %54 = vector.shape_cast %53 : vector<1x128x1xi32> to vector<128x1xi32>
    %55 = vector.broadcast %54 : vector<128x1xi32> to vector<128x8xi32>
    %56 = arith.cmpi eq, %55, %52 : vector<128x8xi32>
    %57 = arith.extui %56 : vector<128x8xi1> to vector<128x8xi32>
    %58 = arith.sitofp %57 : vector<128x8xi32> to vector<128x8xf32>
    %59 = arith.truncf %58 : vector<128x8xf32> to vector<128x8xbf16>
    %60 = vector.extract_strided_slice %51 {offsets = [0, 0], sizes = [8, 128], strides = [1, 1]} : vector<16x128xbf16> to vector<8x128xbf16>
    %cst_35 = arith.constant dense<0.000000e+00> : vector<128x128xf32>
    %61 = tpu.matmul %59, %60, %cst_35 {dimension_numbers = #tpu.dot_dimension_numbers<[1], [0], [0], [1], [0, 0, 1, 1], [], []>} : vector<128x8xbf16>, vector<8x128xbf16>, vector<128x128xf32> -> vector<128x128xf32>
    %62 = vector.extract_strided_slice %32 {offsets = [0, 0], sizes = [128, 128], strides = [1, 1]} : vector<256x128xf32> to vector<128x128xf32>
    %63 = arith.mulf %61, %62 : vector<128x128xf32>
    %64 = vector.extract_strided_slice %48 {offsets = [0, 0], sizes = [128, 1], strides = [1, 1]} : vector<256x1xf32> to vector<128x1xf32>
    %65 = vector.broadcast %64 : vector<128x1xf32> to vector<128x128xf32>
    %66 = arith.mulf %63, %65 : vector<128x128xf32>
    %c0_36 = arith.constant 0 : index
    %c0_37 = arith.constant 0 : index
    %67 = vector.load %arg17[%c0_36, %c0_37] : memref<16x128xf32, #tpu.memory_space<vmem>>, vector<8x128xf32>
    %68 = vector.shape_cast %66 : vector<128x128xf32> to vector<8x16x128xf32>
    %cst_38 = arith.constant dense<0.000000e+00> : vector<8x128xf32>
    %69 = vector.multi_reduction <add>, %68, %cst_38 [1] : vector<8x16x128xf32> to vector<8x128xf32>
    %70 = arith.addf %67, %69 : vector<8x128xf32>
    %c0_39 = arith.constant 0 : index
    %c0_40 = arith.constant 0 : index
    %71 = vector.load %arg17[%c0_39, %c0_40] : memref<16x128xf32, #tpu.memory_space<vmem>>, vector<8x128xf32>
    tpu.vector_store %arg17[%c0_39, %c0_40], %70 {strides = array<i32>} : memref<16x128xf32, #tpu.memory_space<vmem>>, vector<8x128xf32>,
    %72 = vector.extract_strided_slice %50 {offsets = [1, 0, 0], sizes = [1, 128, 1], strides = [1, 1, 1]} : vector<2x128x1xi32> to vector<1x128x1xi32>
    %73 = vector.shape_cast %72 : vector<1x128x1xi32> to vector<128x1xi32>
    %74 = vector.broadcast %73 : vector<128x1xi32> to vector<128x8xi32>
    %75 = arith.cmpi eq, %74, %52 : vector<128x8xi32>
    %76 = arith.extui %75 : vector<128x8xi1> to vector<128x8xi32>
    %77 = arith.sitofp %76 : vector<128x8xi32> to vector<128x8xf32>
    %78 = arith.truncf %77 : vector<128x8xf32> to vector<128x8xbf16>
    %79 = vector.extract_strided_slice %51 {offsets = [8, 0], sizes = [8, 128], strides = [1, 1]} : vector<16x128xbf16> to vector<8x128xbf16>
    %cst_41 = arith.constant dense<0.000000e+00> : vector<128x128xf32>
    %80 = tpu.matmul %78, %79, %cst_41 {dimension_numbers = #tpu.dot_dimension_numbers<[1], [0], [0], [1], [0, 0, 1, 1], [], []>} : vector<128x8xbf16>, vector<8x128xbf16>, vector<128x128xf32> -> vector<128x128xf32>
    %81 = vector.extract_strided_slice %32 {offsets = [128, 0], sizes = [128, 128], strides = [1, 1]} : vector<256x128xf32> to vector<128x128xf32>
    %82 = arith.mulf %80, %81 : vector<128x128xf32>
    %83 = vector.extract_strided_slice %48 {offsets = [128, 0], sizes = [128, 1], strides = [1, 1]} : vector<256x1xf32> to vector<128x1xf32>
    %84 = vector.broadcast %83 : vector<128x1xf32> to vector<128x128xf32>
    %85 = arith.mulf %82, %84 : vector<128x128xf32>
    %c8 = arith.constant 8 : index
    %c0_42 = arith.constant 0 : index
    %86 = vector.load %arg17[%c8, %c0_42] : memref<16x128xf32, #tpu.memory_space<vmem>>, vector<8x128xf32>
    %87 = vector.shape_cast %85 : vector<128x128xf32> to vector<8x16x128xf32>
    %cst_43 = arith.constant dense<0.000000e+00> : vector<8x128xf32>
    %88 = vector.multi_reduction <add>, %87, %cst_43 [1] : vector<8x16x128xf32> to vector<8x128xf32>
    %89 = arith.addf %86, %88 : vector<8x128xf32>
    %c8_44 = arith.constant 8 : index
    %c0_45 = arith.constant 0 : index
    %90 = vector.load %arg17[%c8_44, %c0_45] : memref<16x128xf32, #tpu.memory_space<vmem>>, vector<8x128xf32>
    tpu.vector_store %arg17[%c8_44, %c0_45], %89 {strides = array<i32>} : memref<16x128xf32, #tpu.memory_space<vmem>>, vector<8x128xf32>,
    %c0_i32_46 = arith.constant 0 : i32
    %91 = arith.cmpi eq, %arg1, %c0_i32_46 : i32
    %92 = arith.extui %91 : i1 to i32
    %c0_i32_47 = arith.constant 0 : i32
    %93 = arith.cmpi ne, %92, %c0_i32_47 : i32
    scf.if %93 {
      %c0_48 = arith.constant 0 : index
      %c0_49 = arith.constant 0 : index
      %94 = vector.load %arg17[%c0_48, %c0_49] : memref<16x128xf32, #tpu.memory_space<vmem>>, vector<16x128xf32>
      %95 = arith.truncf %94 : vector<16x128xf32> to vector<16x128xbf16>
      %c0_50 = arith.constant 0 : index
      %c0_51 = arith.constant 0 : index
      %96 = vector.load %arg12[%c0_50, %c0_51] : memref<128x128xbf16, #tpu.memory_space<vmem>>, vector<128x128xbf16>
      %cst_52 = arith.constant dense<0.000000e+00> : vector<16x128xf32>
      %97 = tpu.matmul %95, %96, %cst_52 {dimension_numbers = #tpu.dot_dimension_numbers<[1], [0], [0], [1], [0, 0, 1, 1], [], []>} : vector<16x128xbf16>, vector<128x128xbf16>, vector<16x128xf32> -> vector<16x128xf32>
      %c0_53 = arith.constant 0 : index
      %c0_54 = arith.constant 0 : index
      %98 = vector.load %arg13[%c0_53, %c0_54] : memref<1x128xf32, #tpu.memory_space<vmem>>, vector<1x128xf32>
      %99 = vector.broadcast %98 : vector<1x128xf32> to vector<16x128xf32>
      %100 = arith.addf %97, %99 : vector<16x128xf32>
      %cst_55 = arith.constant 0.000000e+00 : f32
      %101 = vector.broadcast %cst_55 : f32 to vector<16x128xf32>
      %102 = arith.maximumf %100, %101 : vector<16x128xf32>
      %103 = vector.broadcast %cst_55 : f32 to vector<16x128xf32>
      %104 = arith.subf %100, %103 : vector<16x128xf32>
      %105 = arith.cmpf one, %104, %104 : vector<16x128xf32>
      %106 = vector.broadcast %cst_55 : f32 to vector<16x128xf32>
      %107 = arith.addf %100, %106 : vector<16x128xf32>
      %108 = math.absf %104 : vector<16x128xf32>
      %cst_56 = arith.constant 0.000000e+00 : f32
      %109 = vector.broadcast %cst_56 : f32 to vector<16x128xf32>
      %110 = arith.subf %109, %108 : vector<16x128xf32>
      %111 = math.exp %110 : vector<16x128xf32>
      %112 = math.log1p %111 : vector<16x128xf32>
      %113 = arith.addf %102, %112 : vector<16x128xf32>
      %114 = arith.select %105, %107, %113 : vector<16x128xi1>, vector<16x128xf32>
      %cst_57 = arith.constant 2.000000e+00 : f32
      %115 = math.log %cst_57 : f32
      %116 = vector.broadcast %115 : f32 to vector<16x128xf32>
      %117 = arith.subf %114, %116 : vector<16x128xf32>
      %118 = arith.truncf %117 : vector<16x128xf32> to vector<16x128xbf16>
      %c0_58 = arith.constant 0 : index
      %c0_59 = arith.constant 0 : index
      %119 = vector.load %arg14[%c0_58, %c0_59] : memref<128x128xbf16, #tpu.memory_space<vmem>>, vector<128x128xbf16>
      %cst_60 = arith.constant dense<0.000000e+00> : vector<16x128xf32>
      %120 = tpu.matmul %118, %119, %cst_60 {dimension_numbers = #tpu.dot_dimension_numbers<[1], [0], [0], [1], [0, 0, 1, 1], [], []>} : vector<16x128xbf16>, vector<128x128xbf16>, vector<16x128xf32> -> vector<16x128xf32>
      %c0_61 = arith.constant 0 : index
      %c0_62 = arith.constant 0 : index
      %121 = vector.load %arg15[%c0_61, %c0_62] : memref<1x128xf32, #tpu.memory_space<vmem>>, vector<1x128xf32>
      %122 = vector.broadcast %121 : vector<1x128xf32> to vector<16x128xf32>
      %123 = arith.addf %120, %122 : vector<16x128xf32>
      %c0_63 = arith.constant 0 : index
      %c0_64 = arith.constant 0 : index
      %c0_65 = arith.constant 0 : index
      %124 = vector.load %arg2[%c0_63, %c0_64, %c0_65] : memref<2x8x128xf32, #tpu.memory_space<vmem>>, vector<2x8x128xf32>
      %125 = vector.shape_cast %123 : vector<16x128xf32> to vector<2x8x128xf32>
      %126 = arith.addf %124, %125 : vector<2x8x128xf32>
      %c0_66 = arith.constant 0 : index
      %c0_67 = arith.constant 0 : index
      %c0_68 = arith.constant 0 : index
      %127 = vector.load %arg16[%c0_66, %c0_67, %c0_68] : memref<2x8x128xf32, #tpu.memory_space<vmem>>, vector<2x8x128xf32>
      tpu.vector_store %arg16[%c0_66, %c0_67, %c0_68], %126 {strides = array<i32>} : memref<2x8x128xf32, #tpu.memory_space<vmem>>, vector<2x8x128xf32>,
    } else {
    }
    return
  }
  func.func @transform_0(%arg0: i32, %arg1: i32) -> (i32, i32, i32) {
    %c0_i32 = arith.constant 0 : i32
    %c0_i32_0 = arith.constant 0 : i32
    %c0_i32_1 = arith.constant 0 : i32
    return %arg0, %c0_i32, %c0_i32_0 : i32, i32, i32
  }
  func.func @transform_1(%arg0: i32, %arg1: i32) -> (i32, i32, i32, i32) {
    %c0_i32 = arith.constant 0 : i32
    %c0_i32_0 = arith.constant 0 : i32
    %c0_i32_1 = arith.constant 0 : i32
    return %arg0, %c0_i32, %arg1, %c0_i32_0 : i32, i32, i32, i32
  }
  func.func @transform_2(%arg0: i32, %arg1: i32) -> (i32, i32, i32, i32) {
    %c0_i32 = arith.constant 0 : i32
    %c0_i32_0 = arith.constant 0 : i32
    %c0_i32_1 = arith.constant 0 : i32
    return %arg0, %c0_i32, %arg1, %c0_i32_0 : i32, i32, i32, i32
  }
  func.func @transform_3(%arg0: i32, %arg1: i32) -> (i32, i32, i32, i32) {
    %c0_i32 = arith.constant 0 : i32
    %c0_i32_0 = arith.constant 0 : i32
    %c0_i32_1 = arith.constant 0 : i32
    return %arg0, %c0_i32, %arg1, %c0_i32_0 : i32, i32, i32, i32
  }
  func.func @transform_4(%arg0: i32, %arg1: i32) -> (i32, i32, i32, i32) {
    %c0_i32 = arith.constant 0 : i32
    %c0_i32_0 = arith.constant 0 : i32
    %c0_i32_1 = arith.constant 0 : i32
    return %arg0, %c0_i32, %arg1, %c0_i32_0 : i32, i32, i32, i32
  }
  func.func @transform_5(%arg0: i32, %arg1: i32) -> (i32, i32) {
    %c0_i32 = arith.constant 0 : i32
    %c0_i32_0 = arith.constant 0 : i32
    %c0_i32_1 = arith.constant 0 : i32
    return %c0_i32, %c0_i32_0 : i32, i32
  }
  func.func @transform_6(%arg0: i32, %arg1: i32) -> (i32, i32) {
    %c0_i32 = arith.constant 0 : i32
    %c0_i32_0 = arith.constant 0 : i32
    %c0_i32_1 = arith.constant 0 : i32
    return %c0_i32, %c0_i32_0 : i32, i32
  }
  func.func @transform_7(%arg0: i32, %arg1: i32) -> (i32, i32) {
    %c0_i32 = arith.constant 0 : i32
    %c0_i32_0 = arith.constant 0 : i32
    %c0_i32_1 = arith.constant 0 : i32
    return %c0_i32, %c0_i32_0 : i32, i32
  }
  func.func @transform_8(%arg0: i32, %arg1: i32) -> (i32, i32) {
    %c0_i32 = arith.constant 0 : i32
    %c0_i32_0 = arith.constant 0 : i32
    %c0_i32_1 = arith.constant 0 : i32
    return %c0_i32, %c0_i32_0 : i32, i32
  }
  func.func @transform_9(%arg0: i32, %arg1: i32) -> (i32, i32) {
    %c0_i32 = arith.constant 0 : i32
    %c0_i32_0 = arith.constant 0 : i32
    %c0_i32_1 = arith.constant 0 : i32
    return %c0_i32, %c0_i32_0 : i32, i32
  }
  func.func @transform_10(%arg0: i32, %arg1: i32) -> (i32, i32) {
    %c0_i32 = arith.constant 0 : i32
    %c0_i32_0 = arith.constant 0 : i32
    %c0_i32_1 = arith.constant 0 : i32
    return %c0_i32, %c0_i32_0 : i32, i32
  }
  func.func @transform_11(%arg0: i32, %arg1: i32) -> (i32, i32) {
    %c0_i32 = arith.constant 0 : i32
    %c0_i32_0 = arith.constant 0 : i32
    %c0_i32_1 = arith.constant 0 : i32
    return %c0_i32, %c0_i32_0 : i32, i32
  }
  func.func @transform_12(%arg0: i32, %arg1: i32) -> (i32, i32) {
    %c0_i32 = arith.constant 0 : i32
    %c0_i32_0 = arith.constant 0 : i32
    %c0_i32_1 = arith.constant 0 : i32
    return %c0_i32, %c0_i32_0 : i32, i32
  }
  func.func @transform_13(%arg0: i32, %arg1: i32) -> (i32, i32) {
    %c0_i32 = arith.constant 0 : i32
    %c0_i32_0 = arith.constant 0 : i32
    %c0_i32_1 = arith.constant 0 : i32
    return %c0_i32, %c0_i32_0 : i32, i32
  }
  func.func @transform_14(%arg0: i32, %arg1: i32) -> (i32, i32, i32) {
    %c0_i32 = arith.constant 0 : i32
    %c0_i32_0 = arith.constant 0 : i32
    %c0_i32_1 = arith.constant 0 : i32
    return %arg0, %c0_i32, %c0_i32_0 : i32, i32, i32
  }
}

</mosaic_0001>

<llo_original>
// kernel: tpu_custom_call.1
$region0: #{tpu_custom_call.1}
  #allocation0 [shape = 'u32[]', space=smem, size = 0x4, offset = 0x4, fixed_abs, tag = 'smem constant byte address 0x4 - core index']
  #allocation1 [shape = 'u32[144,128]{1,0:T(1,128)}', space=vmem, size = 0x12000, scoped, tag = 'internal scratch']
  #allocation2 [shape = 'f32[16,128]{1,0:T(8,128)}', space=vmem, size = 0x2000, scoped, tag = 'scratch operand']
  #allocation3 [shape = 'bf16[16,128]{1,0:T(8,128)(2,1)}', space=vmem, size = 0x1000, scoped, tag = 'scratch operand']
  %s0 = inlined_call_operand.vmem [shape: f32[4,8,128], index: 0, kind: input, shape index: {}]
  %s1 = inlined_call_operand.vmem [shape: bf16[4,8,16,16], index: 1, kind: input, shape index: {}]
  %s2 = inlined_call_operand.vmem [shape: f32[4,8,16,1], index: 2, kind: input, shape index: {}]
  %s3 = inlined_call_operand.vmem [shape: f32[4,8,16,1], index: 3, kind: input, shape index: {}]
  %s4 = inlined_call_operand.vmem [shape: s32[4,8,16,1], index: 4, kind: input, shape index: {}]
  %s5 = inlined_call_operand.vmem [shape: bf16[16,128], index: 5, kind: input, shape index: {}]
  %s6 = inlined_call_operand.vmem [shape: f32[1,128], index: 6, kind: input, shape index: {}]
  %s7 = inlined_call_operand.vmem [shape: bf16[128,128], index: 7, kind: input, shape index: {}]
  %s8 = inlined_call_operand.vmem [shape: f32[1,128], index: 8, kind: input, shape index: {}]
  %s9 = inlined_call_operand.vmem [shape: bf16[128,128], index: 9, kind: input, shape index: {}]
  %s10 = inlined_call_operand.vmem [shape: bf16[128,128], index: 10, kind: input, shape index: {}]
  %s11 = inlined_call_operand.vmem [shape: f32[1,128], index: 11, kind: input, shape index: {}]
  %s12 = inlined_call_operand.vmem [shape: bf16[128,128], index: 12, kind: input, shape index: {}]
  %s13 = inlined_call_operand.vmem [shape: f32[1,128], index: 13, kind: input, shape index: {}]
  %s14 = inlined_call_operand.hbm [shape: f32[4,8,128], index: 14, kind: output, shape index: {}]
  %s15 = sld [smem:[#allocation0]]
  $region97: #{tpu_custom_call.1} parent=0
    _
  %s17 = ssub.s32 1, %s15
  %s18 = scalar_select 0, %s17, %s15
  $region1: #{tpu_custom_call.1} parent=0
    #allocation4 [shape = 'u8[16384]{0}', space=vmem, size = 0x4000, scoped, tag = 'output window, operand 0']
    #allocation5 [shape = 's32[2]{0}', space=sflag, size = 0x8, scoped, tag = 'scoped memory for tpu_custom_call.1']
    %19 = vsyncpa [#allocation5], 0
    %s20 = scalar_lea.sflag [#allocation5], 1
    %21 = vsyncpa %s20, 0
    loop: start=0, step=1, limit=4
    $region2: #{tpu_custom_call.1} parent=1 // loop_pre_header
      _
    $region3: #{tpu_custom_call.1} parent=1 // loop_header
      %s23 = sphi 0, %s27
      %p24 = scmp.ge.s32.totalorder %s23, 4
      %s30 = sphi 0, %s42
      %s31 = sphi 0, %s38
      %s32 = sphi 0, %s30
      %s33 = sphi 0, %s31
      %s34 = sphi 0, %s32
      %s35 = sphi 0, %s33
      %s45 = sphi 0, %s47
      %s48 = sphi 0, %s45
      %s49 = sphi 0, %s48
      %s65 = sphi 0, %s49
      %s73 = sphi 0, %s75
      %s76 = sphi 0, %s73
      %s77 = sphi 0, %s76
      %s93 = sphi 0, %s77
      %s101 = sphi 0, %s103
      %s104 = sphi 0, %s101
      %s105 = sphi 0, %s104
      %s121 = sphi 0, %s105
      %s129 = sphi 0, %s131
      %s132 = sphi 0, %s129
      %s133 = sphi 0, %s132
      %s149 = sphi 0, %s133
      %s157 = sphi 0, %s159
      %s160 = sphi 0, %s157
      %s161 = sphi 0, %s160
      %s177 = sphi 0, %s161
      %s181 = sphi 0, %s181
      %s183 = sphi 0, %s181
      %s184 = sphi 0, %s183
      %s198 = sphi 0, %s184
      %s202 = sphi 0, %s202
      %s204 = sphi 0, %s202
      %s205 = sphi 0, %s204
      %s219 = sphi 0, %s205
      %s223 = sphi 0, %s223
      %s225 = sphi 0, %s223
      %s226 = sphi 0, %s225
      %s240 = sphi 0, %s226
      %s244 = sphi 0, %s244
      %s246 = sphi 0, %s244
      %s247 = sphi 0, %s246
      %s261 = sphi 0, %s247
      %s265 = sphi 0, %s265
      %s267 = sphi 0, %s265
      %s268 = sphi 0, %s267
      %s282 = sphi 0, %s268
      %s286 = sphi 0, %s286
      %s288 = sphi 0, %s286
      %s289 = sphi 0, %s288
      %s303 = sphi 0, %s289
      %s307 = sphi 0, %s307
      %s309 = sphi 0, %s307
      %s310 = sphi 0, %s309
      %s324 = sphi 0, %s310
      %s328 = sphi 0, %s328
      %s330 = sphi 0, %s328
      %s331 = sphi 0, %s330
      %s345 = sphi 0, %s331
      %s349 = sphi 0, %s349
      %s351 = sphi 0, %s349
      %s352 = sphi 0, %s351
      %s366 = sphi 0, %s352
      %s372 = sphi 0, %s374
      %s375 = sphi 0, %s372
      %s376 = sphi 0, %s375
      %s392 = sphi 0, %s376
    $region4: #{tpu_custom_call.1} parent=1 // loop_header_branch
      %26 = sbr.rel (%p24) target = $region8
    $region5: #{tpu_custom_call.1} parent=1 // loop_body
      %s28 = ssub.s32 %s23, 1
      %s29 = ssub.s32 %s23, 2
      %s36 = sadd.s32 1, %s31
      %p37 = scmp.ge.s32.totalorder %s36, 1
      %s38 = scalar_select %p37, 0, %s36
      %s39 = sadd.s32 1, %s30
      %s40 = scalar_select %p37, %s39, %s30
      %p41 = scmp.ge.s32.totalorder %s40, 2
      %s42 = scalar_select %p41, 0, %s40
      %s43 = ssub.s32 %s30, %s42
      %p44 = scmp.eq.s32.totalorder %s43, 0
      %s46 = sadd.s32 %s45, 1
      %s47 = scalar_select %p44, %s45, %s46
      %p50 = pneg %p44
      %p51 = scmp.eq.s32.totalorder %s23, 1
      %p52 = por %p50, %p51
      %p53 = scmp.ne.s32.totalorder %s45, %s48
      %p54 = scmp.eq.s32.totalorder %s23, 0
      %p55 = por %p53, %p54
      %p56 = scmp.ne.s32.totalorder %s45, %s48
      %p57 = scmp.eq.s32.totalorder %s28, 1
      %p58 = por %p56, %p57
      %p59 = scmp.ne.s32.totalorder %s48, %s49
      %p60 = scmp.eq.s32.totalorder %s28, 0
      %p61 = por %p59, %p60
      %p62 = scmp.ne.s32.totalorder %s48, %s49
      %p63 = scmp.eq.s32.totalorder %s29, 1
      %p64 = por %p62, %p63
      %p66 = scmp.ne.s32.totalorder %s49, %s65
      %p67 = scmp.eq.s32.totalorder %s29, 0
      %p68 = por %p66, %p67
      %s69 = ssub.s32 %s30, %s42
      %s70 = ssub.s32 %s31, %s38
      %s71 = sor.u32 %s69, %s70
      %p72 = scmp.eq.s32.totalorder %s71, 0
      %s74 = sadd.s32 %s73, 1
      %s75 = scalar_select %p72, %s73, %s74
      %p78 = pneg %p72
      %p79 = scmp.eq.s32.totalorder %s23, 1
      %p80 = por %p78, %p79
      %p81 = scmp.ne.s32.totalorder %s73, %s76
      %p82 = scmp.eq.s32.totalorder %s23, 0
      %p83 = por %p81, %p82
      %p84 = scmp.ne.s32.totalorder %s73, %s76
      %p85 = scmp.eq.s32.totalorder %s28, 1
      %p86 = por %p84, %p85
      %p87 = scmp.ne.s32.totalorder %s76, %s77
      %p88 = scmp.eq.s32.totalorder %s28, 0
      %p89 = por %p87, %p88
      %p90 = scmp.ne.s32.totalorder %s76, %s77
      %p91 = scmp.eq.s32.totalorder %s29, 1
      %p92 = por %p90, %p91
      %p94 = scmp.ne.s32.totalorder %s77, %s93
      %p95 = scmp.eq.s32.totalorder %s29, 0
      %p96 = por %p94, %p95
      %s97 = ssub.s32 %s30, %s42
      %s98 = ssub.s32 %s31, %s38
      %s99 = sor.u32 %s97, %s98
      %p100 = scmp.eq.s32.totalorder %s99, 0
      %s102 = sadd.s32 %s101, 1
      %s103 = scalar_select %p100, %s101, %s102
      %p106 = pneg %p100
      %p107 = scmp.eq.s32.totalorder %s23, 1
      %p108 = por %p106, %p107
      %p109 = scmp.ne.s32.totalorder %s101, %s104
      %p110 = scmp.eq.s32.totalorder %s23, 0
      %p111 = por %p109, %p110
      %p112 = scmp.ne.s32.totalorder %s101, %s104
      %p113 = scmp.eq.s32.totalorder %s28, 1
      %p114 = por %p112, %p113
      %p115 = scmp.ne.s32.totalorder %s104, %s105
      %p116 = scmp.eq.s32.totalorder %s28, 0
      %p117 = por %p115, %p116
      %p118 = scmp.ne.s32.totalorder %s104, %s105
      %p119 = scmp.eq.s32.totalorder %s29, 1
      %p120 = por %p118, %p119
      %p122 = scmp.ne.s32.totalorder %s105, %s121
      %p123 = scmp.eq.s32.totalorder %s29, 0
      %p124 = por %p122, %p123
      %s125 = ssub.s32 %s30, %s42
      %s126 = ssub.s32 %s31, %s38
      %s127 = sor.u32 %s125, %s126
      %p128 = scmp.eq.s32.totalorder %s127, 0
      %s130 = sadd.s32 %s129, 1
      %s131 = scalar_select %p128, %s129, %s130
      %p134 = pneg %p128
      %p135 = scmp.eq.s32.totalorder %s23, 1
      %p136 = por %p134, %p135
      %p137 = scmp.ne.s32.totalorder %s129, %s132
      %p138 = scmp.eq.s32.totalorder %s23, 0
      %p139 = por %p137, %p138
      %p140 = scmp.ne.s32.totalorder %s129, %s132
      %p141 = scmp.eq.s32.totalorder %s28, 1
      %p142 = por %p140, %p141
      %p143 = scmp.ne.s32.totalorder %s132, %s133
      %p144 = scmp.eq.s32.totalorder %s28, 0
      %p145 = por %p143, %p144
      %p146 = scmp.ne.s32.totalorder %s132, %s133
      %p147 = scmp.eq.s32.totalorder %s29, 1
      %p148 = por %p146, %p147
      %p150 = scmp.ne.s32.totalorder %s133, %s149
      %p151 = scmp.eq.s32.totalorder %s29, 0
      %p152 = por %p150, %p151
      %s153 = ssub.s32 %s30, %s42
      %s154 = ssub.s32 %s31, %s38
      %s155 = sor.u32 %s153, %s154
      %p156 = scmp.eq.s32.totalorder %s155, 0
      %s158 = sadd.s32 %s157, 1
      %s159 = scalar_select %p156, %s157, %s158
      %p162 = pneg %p156
      %p163 = scmp.eq.s32.totalorder %s23, 1
      %p164 = por %p162, %p163
      %p165 = scmp.ne.s32.totalorder %s157, %s160
      %p166 = scmp.eq.s32.totalorder %s23, 0
      %p167 = por %p165, %p166
      %p168 = scmp.ne.s32.totalorder %s157, %s160
      %p169 = scmp.eq.s32.totalorder %s28, 1
      %p170 = por %p168, %p169
      %p171 = scmp.ne.s32.totalorder %s160, %s161
      %p172 = scmp.eq.s32.totalorder %s28, 0
      %p173 = por %p171, %p172
      %p174 = scmp.ne.s32.totalorder %s160, %s161
      %p175 = scmp.eq.s32.totalorder %s29, 1
      %p176 = por %p174, %p175
      %p178 = scmp.ne.s32.totalorder %s161, %s177
      %p179 = scmp.eq.s32.totalorder %s29, 0
      %p180 = por %p178, %p179
      %s182 = sadd.s32 %s181, 1
      %p185 = scmp.eq.s32.totalorder %s23, 1
      %p186 = scmp.ne.s32.totalorder %s181, %s183
      %p187 = scmp.eq.s32.totalorder %s23, 0
      %p188 = por %p186, %p187
      %p189 = scmp.ne.s32.totalorder %s181, %s183
      %p190 = scmp.eq.s32.totalorder %s28, 1
      %p191 = por %p189, %p190
      %p192 = scmp.ne.s32.totalorder %s183, %s184
      %p193 = scmp.eq.s32.totalorder %s28, 0
      %p194 = por %p192, %p193
      %p195 = scmp.ne.s32.totalorder %s183, %s184
      %p196 = scmp.eq.s32.totalorder %s29, 1
      %p197 = por %p195, %p196
      %p199 = scmp.ne.s32.totalorder %s184, %s198
      %p200 = scmp.eq.s32.totalorder %s29, 0
      %p201 = por %p199, %p200
      %s203 = sadd.s32 %s202, 1
      %p206 = scmp.eq.s32.totalorder %s23, 1
      %p207 = scmp.ne.s32.totalorder %s202, %s204
      %p208 = scmp.eq.s32.totalorder %s23, 0
      %p209 = por %p207, %p208
      %p210 = scmp.ne.s32.totalorder %s202, %s204
      %p211 = scmp.eq.s32.totalorder %s28, 1
      %p212 = por %p210, %p211
      %p213 = scmp.ne.s32.totalorder %s204, %s205
      %p214 = scmp.eq.s32.totalorder %s28, 0
      %p215 = por %p213, %p214
      %p216 = scmp.ne.s32.totalorder %s204, %s205
      %p217 = scmp.eq.s32.totalorder %s29, 1
      %p218 = por %p216, %p217
      %p220 = scmp.ne.s32.totalorder %s205, %s219
      %p221 = scmp.eq.s32.totalorder %s29, 0
      %p222 = por %p220, %p221
      %s224 = sadd.s32 %s223, 1
      %p227 = scmp.eq.s32.totalorder %s23, 1
      %p228 = scmp.ne.s32.totalorder %s223, %s225
      %p229 = scmp.eq.s32.totalorder %s23, 0
      %p230 = por %p228, %p229
      %p231 = scmp.ne.s32.totalorder %s223, %s225
      %p232 = scmp.eq.s32.totalorder %s28, 1
      %p233 = por %p231, %p232
      %p234 = scmp.ne.s32.totalorder %s225, %s226
      %p235 = scmp.eq.s32.totalorder %s28, 0
      %p236 = por %p234, %p235
      %p237 = scmp.ne.s32.totalorder %s225, %s226
      %p238 = scmp.eq.s32.totalorder %s29, 1
      %p239 = por %p237, %p238
      %p241 = scmp.ne.s32.totalorder %s226, %s240
      %p242 = scmp.eq.s32.totalorder %s29, 0
      %p243 = por %p241, %p242
      %s245 = sadd.s32 %s244, 1
      %p248 = scmp.eq.s32.totalorder %s23, 1
      %p249 = scmp.ne.s32.totalorder %s244, %s246
      %p250 = scmp.eq.s32.totalorder %s23, 0
      %p251 = por %p249, %p250
      %p252 = scmp.ne.s32.totalorder %s244, %s246
      %p253 = scmp.eq.s32.totalorder %s28, 1
      %p254 = por %p252, %p253
      %p255 = scmp.ne.s32.totalorder %s246, %s247
      %p256 = scmp.eq.s32.totalorder %s28, 0
      %p257 = por %p255, %p256
      %p258 = scmp.ne.s32.totalorder %s246, %s247
      %p259 = scmp.eq.s32.totalorder %s29, 1
      %p260 = por %p258, %p259
      %p262 = scmp.ne.s32.totalorder %s247, %s261
      %p263 = scmp.eq.s32.totalorder %s29, 0
      %p264 = por %p262, %p263
      %s266 = sadd.s32 %s265, 1
      %p269 = scmp.eq.s32.totalorder %s23, 1
      %p270 = scmp.ne.s32.totalorder %s265, %s267
      %p271 = scmp.eq.s32.totalorder %s23, 0
      %p272 = por %p270, %p271
      %p273 = scmp.ne.s32.totalorder %s265, %s267
      %p274 = scmp.eq.s32.totalorder %s28, 1
      %p275 = por %p273, %p274
      %p276 = scmp.ne.s32.totalorder %s267, %s268
      %p277 = scmp.eq.s32.totalorder %s28, 0
      %p278 = por %p276, %p277
      %p279 = scmp.ne.s32.totalorder %s267, %s268
      %p280 = scmp.eq.s32.totalorder %s29, 1
      %p281 = por %p279, %p280
      %p283 = scmp.ne.s32.totalorder %s268, %s282
      %p284 = scmp.eq.s32.totalorder %s29, 0
      %p285 = por %p283, %p284
      %s287 = sadd.s32 %s286, 1
      %p290 = scmp.eq.s32.totalorder %s23, 1
      %p291 = scmp.ne.s32.totalorder %s286, %s288
      %p292 = scmp.eq.s32.totalorder %s23, 0
      %p293 = por %p291, %p292
      %p294 = scmp.ne.s32.totalorder %s286, %s288
      %p295 = scmp.eq.s32.totalorder %s28, 1
      %p296 = por %p294, %p295
      %p297 = scmp.ne.s32.totalorder %s288, %s289
      %p298 = scmp.eq.s32.totalorder %s28, 0
      %p299 = por %p297, %p298
      %p300 = scmp.ne.s32.totalorder %s288, %s289
      %p301 = scmp.eq.s32.totalorder %s29, 1
      %p302 = por %p300, %p301
      %p304 = scmp.ne.s32.totalorder %s289, %s303
      %p305 = scmp.eq.s32.totalorder %s29, 0
      %p306 = por %p304, %p305
      %s308 = sadd.s32 %s307, 1
      %p311 = scmp.eq.s32.totalorder %s23, 1
      %p312 = scmp.ne.s32.totalorder %s307, %s309
      %p313 = scmp.eq.s32.totalorder %s23, 0
      %p314 = por %p312, %p313
      %p315 = scmp.ne.s32.totalorder %s307, %s309
      %p316 = scmp.eq.s32.totalorder %s28, 1
      %p317 = por %p315, %p316
      %p318 = scmp.ne.s32.totalorder %s309, %s310
      %p319 = scmp.eq.s32.totalorder %s28, 0
      %p320 = por %p318, %p319
      %p321 = scmp.ne.s32.totalorder %s309, %s310
      %p322 = scmp.eq.s32.totalorder %s29, 1
      %p323 = por %p321, %p322
      %p325 = scmp.ne.s32.totalorder %s310, %s324
      %p326 = scmp.eq.s32.totalorder %s29, 0
      %p327 = por %p325, %p326
      %s329 = sadd.s32 %s328, 1
      %p332 = scmp.eq.s32.totalorder %s23, 1
      %p333 = scmp.ne.s32.totalorder %s328, %s330
      %p334 = scmp.eq.s32.totalorder %s23, 0
      %p335 = por %p333, %p334
      %p336 = scmp.ne.s32.totalorder %s328, %s330
      %p337 = scmp.eq.s32.totalorder %s28, 1
      %p338 = por %p336, %p337
      %p339 = scmp.ne.s32.totalorder %s330, %s331
      %p340 = scmp.eq.s32.totalorder %s28, 0
      %p341 = por %p339, %p340
      %p342 = scmp.ne.s32.totalorder %s330, %s331
      %p343 = scmp.eq.s32.totalorder %s29, 1
      %p344 = por %p342, %p343
      %p346 = scmp.ne.s32.totalorder %s331, %s345
      %p347 = scmp.eq.s32.totalorder %s29, 0
      %p348 = por %p346, %p347
      %s350 = sadd.s32 %s349, 1
      %p353 = scmp.eq.s32.totalorder %s23, 1
      %p354 = scmp.ne.s32.totalorder %s349, %s351
      %p355 = scmp.eq.s32.totalorder %s23, 0
      %p356 = por %p354, %p355
      %p357 = scmp.ne.s32.totalorder %s349, %s351
      %p358 = scmp.eq.s32.totalorder %s28, 1
      %p359 = por %p357, %p358
      %p360 = scmp.ne.s32.totalorder %s351, %s352
      %p361 = scmp.eq.s32.totalorder %s28, 0
      %p362 = por %p360, %p361
      %p363 = scmp.ne.s32.totalorder %s351, %s352
      %p364 = scmp.eq.s32.totalorder %s29, 1
      %p365 = por %p363, %p364
      %p367 = scmp.ne.s32.totalorder %s352, %s366
      %p368 = scmp.eq.s32.totalorder %s29, 0
      %p369 = por %p367, %p368
      %s370 = ssub.s32 %s30, %s42
      %p371 = scmp.eq.s32.totalorder %s370, 0
      %s373 = sadd.s32 %s372, 1
      %s374 = scalar_select %p371, %s372, %s373
      %p377 = pneg %p371
      %p378 = scmp.eq.s32.totalorder %s23, 1
      %p379 = por %p377, %p378
      %p380 = scmp.ne.s32.totalorder %s372, %s375
      %p381 = scmp.eq.s32.totalorder %s23, 0
      %p382 = por %p380, %p381
      %p383 = scmp.ne.s32.totalorder %s372, %s375
      %p384 = scmp.eq.s32.totalorder %s28, 1
      %p385 = por %p383, %p384
      %p386 = scmp.ne.s32.totalorder %s375, %s376
      %p387 = scmp.eq.s32.totalorder %s28, 0
      %p388 = por %p386, %p387
      %p389 = scmp.ne.s32.totalorder %s375, %s376
      %p390 = scmp.eq.s32.totalorder %s29, 1
      %p391 = por %p389, %p390
      %p393 = scmp.ne.s32.totalorder %s376, %s392
      %p394 = scmp.eq.s32.totalorder %s29, 0
      %p395 = por %p393, %p394
      %p396 = scmp.le.s32.totalorder 1, %s23
      %p397 = scmp.lt.s32.totalorder %s23, 3
      %p398 = pnand %p396, %p397
      %p399 = pneg %p398
      // Predicated region
      $region9: #{tpu_custom_call.1} parent=5 // pred_check
        _
      $region10: #{tpu_custom_call.1} parent=5 // pred_check_branch
        %401 = sbr.rel (%p398) target = $region12
      $region11: #{tpu_custom_call.1} parent=5 // pred_region
        %s402 = ssub.s32 %s23, 1
        // Predicated region
        $region13: #{tpu_custom_call.1} parent=11 // pred_check
          %p403 = pneg %p194
        $region14: #{tpu_custom_call.1} parent=11 // pred_check_branch
          %405 = sbr.rel (%p403) target = $region16
        $region15: #{tpu_custom_call.1} parent=11 // pred_region
          _
        $region16: #{tpu_custom_call.1} parent=11 // pred_fallthru
          _
        // Predicated region
        $region17: #{tpu_custom_call.1} parent=11 // pred_check
          %p406 = pneg %p215
        $region18: #{tpu_custom_call.1} parent=11 // pred_check_branch
          %408 = sbr.rel (%p406) target = $region20
        $region19: #{tpu_custom_call.1} parent=11 // pred_region
          _
        $region20: #{tpu_custom_call.1} parent=11 // pred_fallthru
          _
        // Predicated region
        $region21: #{tpu_custom_call.1} parent=11 // pred_check
          %p409 = pneg %p236
        $region22: #{tpu_custom_call.1} parent=11 // pred_check_branch
          %411 = sbr.rel (%p409) target = $region24
        $region23: #{tpu_custom_call.1} parent=11 // pred_region
          _
        $region24: #{tpu_custom_call.1} parent=11 // pred_fallthru
          _
        // Predicated region
        $region25: #{tpu_custom_call.1} parent=11 // pred_check
          %p412 = pneg %p257
        $region26: #{tpu_custom_call.1} parent=11 // pred_check_branch
          %414 = sbr.rel (%p412) target = $region28
        $region27: #{tpu_custom_call.1} parent=11 // pred_region
          _
        $region28: #{tpu_custom_call.1} parent=11 // pred_fallthru
          _
        // Predicated region
        $region29: #{tpu_custom_call.1} parent=11 // pred_check
          %p415 = pneg %p278
        $region30: #{tpu_custom_call.1} parent=11 // pred_check_branch
          %417 = sbr.rel (%p415) target = $region32
        $region31: #{tpu_custom_call.1} parent=11 // pred_region
          _
        $region32: #{tpu_custom_call.1} parent=11 // pred_fallthru
          _
        // Predicated region
        $region33: #{tpu_custom_call.1} parent=11 // pred_check
          %p418 = pneg %p299
        $region34: #{tpu_custom_call.1} parent=11 // pred_check_branch
          %420 = sbr.rel (%p418) target = $region36
        $region35: #{tpu_custom_call.1} parent=11 // pred_region
          _
        $region36: #{tpu_custom_call.1} parent=11 // pred_fallthru
          _
        // Predicated region
        $region37: #{tpu_custom_call.1} parent=11 // pred_check
          %p421 = pneg %p320
        $region38: #{tpu_custom_call.1} parent=11 // pred_check_branch
          %423 = sbr.rel (%p421) target = $region40
        $region39: #{tpu_custom_call.1} parent=11 // pred_region
          _
        $region40: #{tpu_custom_call.1} parent=11 // pred_fallthru
          _
        // Predicated region
        $region41: #{tpu_custom_call.1} parent=11 // pred_check
          %p424 = pneg %p341
        $region42: #{tpu_custom_call.1} parent=11 // pred_check_branch
          %426 = sbr.rel (%p424) target = $region44
        $region43: #{tpu_custom_call.1} parent=11 // pred_region
          _
        $region44: #{tpu_custom_call.1} parent=11 // pred_fallthru
          _
        // Predicated region
        $region45: #{tpu_custom_call.1} parent=11 // pred_check
          %p427 = pneg %p362
        $region46: #{tpu_custom_call.1} parent=11 // pred_check_branch
          %429 = sbr.rel (%p427) target = $region48
        $region47: #{tpu_custom_call.1} parent=11 // pred_region
          _
        $region48: #{tpu_custom_call.1} parent=11 // pred_fallthru
          _
      $region12: #{tpu_custom_call.1} parent=5 // pred_fallthru
        _
      %p430 = scmp.lt.s32.totalorder %s23, 2
      // Predicated region
      $region49: #{tpu_custom_call.1} parent=5 // pred_check
        %p431 = pneg %p430
      $region50: #{tpu_custom_call.1} parent=5 // pred_check_branch
        %433 = sbr.rel (%p431) target = $region52
      $region51: #{tpu_custom_call.1} parent=5 // pred_region
        // Predicated region
        $region53: #{tpu_custom_call.1} parent=51 // pred_check
          %p434 = pneg %p55
        $region54: #{tpu_custom_call.1} parent=51 // pred_check_branch
          %436 = sbr.rel (%p434) target = $region56
        $region55: #{tpu_custom_call.1} parent=51 // pred_region
          %s437 = smul.u32 2, %s30
          %p438 = scmp.lt.s32.totalorder %s437, 3
          %s439 = scalar_select %p438, %s437, 3
          %s440 = smul.addr %s439, 8
          %s441 = scalar_lea.vmem %s0, %s440
          %s442 = smul.u32 2, %s30
        $region56: #{tpu_custom_call.1} parent=51 // pred_fallthru
          _
        // Predicated region
        $region57: #{tpu_custom_call.1} parent=51 // pred_check
          %p443 = pneg %p83
        $region58: #{tpu_custom_call.1} parent=51 // pred_check_branch
          %445 = sbr.rel (%p443) target = $region60
        $region59: #{tpu_custom_call.1} parent=51 // pred_region
          %s446 = smul.u32 2, %s30
          %s447 = smul.u32 2, %s31
          %p448 = scmp.lt.s32.totalorder %s446, 3
          %s449 = scalar_select %p448, %s446, 3
          %p450 = scmp.lt.s32.totalorder %s447, 1
          %s451 = scalar_select %p450, %s447, 1
          %s452 = smul.addr %s449, 16
          %s453 = sadd.s32 %s451, %s452
          %s454 = smul.addr %s453, 4
          %s455 = scalar_lea.vmem %s1, %s454
          %s456 = smul.u32 2, %s30
          %s457 = smul.u32 2, %s31
        $region60: #{tpu_custom_call.1} parent=51 // pred_fallthru
          _
        // Predicated region
        $region61: #{tpu_custom_call.1} parent=51 // pred_check
          %p458 = pneg %p111
        $region62: #{tpu_custom_call.1} parent=51 // pred_check_branch
          %460 = sbr.rel (%p458) target = $region64
        $region63: #{tpu_custom_call.1} parent=51 // pred_region
          %s461 = smul.u32 2, %s30
          %s462 = smul.u32 2, %s31
          %p463 = scmp.lt.s32.totalorder %s461, 3
          %s464 = scalar_select %p463, %s461, 3
          %p465 = scmp.lt.s32.totalorder %s462, 1
          %s466 = scalar_select %p465, %s462, 1
          %s467 = smul.addr %s464, 16
          %s468 = sadd.s32 %s466, %s467
          %s469 = smul.addr %s468, 8
          %s470 = scalar_lea.vmem %s2, %s469
          %s471 = smul.u32 2, %s30
          %s472 = smul.u32 2, %s31
        $region64: #{tpu_custom_call.1} parent=51 // pred_fallthru
          _
        // Predicated region
        $region65: #{tpu_custom_call.1} parent=51 // pred_check
          %p473 = pneg %p139
        $region66: #{tpu_custom_call.1} parent=51 // pred_check_branch
          %475 = sbr.rel (%p473) target = $region68
        $region67: #{tpu_custom_call.1} parent=51 // pred_region
          %s476 = smul.u32 2, %s30
          %s477 = smul.u32 2, %s31
          %p478 = scmp.lt.s32.totalorder %s476, 3
          %s479 = scalar_select %p478, %s476, 3
          %p480 = scmp.lt.s32.totalorder %s477, 1
          %s481 = scalar_select %p480, %s477, 1
          %s482 = smul.addr %s479, 16
          %s483 = sadd.s32 %s481, %s482
          %s484 = smul.addr %s483, 8
          %s485 = scalar_lea.vmem %s3, %s484
          %s486 = smul.u32 2, %s30
          %s487 = smul.u32 2, %s31
        $region68: #{tpu_custom_call.1} parent=51 // pred_fallthru
          _
        // Predicated region
        $region69: #{tpu_custom_call.1} parent=51 // pred_check
          %p488 = pneg %p167
        $region70: #{tpu_custom_call.1} parent=51 // pred_check_branch
          %490 = sbr.rel (%p488) target = $region72
        $region71: #{tpu_custom_call.1} parent=51 // pred_region
          %s491 = smul.u32 2, %s30
          %s492 = smul.u32 2, %s31
          %p493 = scmp.lt.s32.totalorder %s491, 3
          %s494 = scalar_select %p493, %s491, 3
          %p495 = scmp.lt.s32.totalorder %s492, 1
          %s496 = scalar_select %p495, %s492, 1
          %s497 = smul.addr %s494, 16
          %s498 = sadd.s32 %s496, %s497
          %s499 = smul.addr %s498, 8
          %s500 = scalar_lea.vmem %s4, %s499
          %s501 = smul.u32 2, %s30
          %s502 = smul.u32 2, %s31
        $region72: #{tpu_custom_call.1} parent=51 // pred_fallthru
          _
      $region52: #{tpu_custom_call.1} parent=5 // pred_fallthru
        _
      %p503 = scmp.le.s32.totalorder 1, %s23
      %p504 = scmp.lt.s32.totalorder %s23, 3
      %p505 = pnand %p503, %p504
      %p506 = pneg %p505
      // Predicated region
      $region73: #{tpu_custom_call.1} parent=5 // pred_check
        _
      $region74: #{tpu_custom_call.1} parent=5 // pred_check_branch
        %508 = sbr.rel (%p505) target = $region76
      $region75: #{tpu_custom_call.1} parent=5 // pred_region
        %s509 = ssub.s32 %s23, 1
        %s510 = smul.u32 2, %s32
        %p511 = scmp.lt.s32.totalorder %s510, 3
        %s512 = scalar_select %p511, %s510, 3
        %s513 = smul.addr %s512, 8
        %s514 = scalar_lea.vmem %s0, %s513
        %p515 = pneg %p61
        %p516 = pneg %p58
        %s517 = smul.u32 2, %s32
        %s518 = smul.u32 2, %s33
        %p519 = scmp.lt.s32.totalorder %s517, 3
        %s520 = scalar_select %p519, %s517, 3
        %p521 = scmp.lt.s32.totalorder %s518, 1
        %s522 = scalar_select %p521, %s518, 1
        %s523 = smul.addr %s520, 16
        %s524 = sadd.s32 %s522, %s523
        %s525 = smul.addr %s524, 4
        %s526 = scalar_lea.vmem %s1, %s525
        %p527 = pneg %p89
        %p528 = pneg %p86
        %s529 = smul.u32 2, %s32
        %s530 = smul.u32 2, %s33
        %p531 = scmp.lt.s32.totalorder %s529, 3
        %s532 = scalar_select %p531, %s529, 3
        %p533 = scmp.lt.s32.totalorder %s530, 1
        %s534 = scalar_select %p533, %s530, 1
        %s535 = smul.addr %s532, 16
        %s536 = sadd.s32 %s534, %s535
        %s537 = smul.addr %s536, 8
        %s538 = scalar_lea.vmem %s2, %s537
        %p539 = pneg %p117
        %p540 = pneg %p114
        %s541 = smul.u32 2, %s32
        %s542 = smul.u32 2, %s33
        %p543 = scmp.lt.s32.totalorder %s541, 3
        %s544 = scalar_select %p543, %s541, 3
        %p545 = scmp.lt.s32.totalorder %s542, 1
        %s546 = scalar_select %p545, %s542, 1
        %s547 = smul.addr %s544, 16
        %s548 = sadd.s32 %s546, %s547
        %s549 = smul.addr %s548, 8
        %s550 = scalar_lea.vmem %s3, %s549
        %p551 = pneg %p145
        %p552 = pneg %p142
        %s553 = smul.u32 2, %s32
        %s554 = smul.u32 2, %s33
        %p555 = scmp.lt.s32.totalorder %s553, 3
        %s556 = scalar_select %p555, %s553, 3
        %p557 = scmp.lt.s32.totalorder %s554, 1
        %s558 = scalar_select %p557, %s554, 1
        %s559 = smul.addr %s556, 16
        %s560 = sadd.s32 %s558, %s559
        %s561 = smul.addr %s560, 8
        %s562 = scalar_lea.vmem %s4, %s561
        %p563 = pneg %p173
        %p564 = pneg %p170
        %p565 = pneg %p194
        %p566 = pneg %p191
        %p567 = pneg %p215
        %p568 = pneg %p212
        %p569 = pneg %p236
        %p570 = pneg %p233
        %p571 = pneg %p257
        %p572 = pneg %p254
        %p573 = pneg %p278
        %p574 = pneg %p275
        %p575 = pneg %p299
        %p576 = pneg %p296
        %p577 = pneg %p320
        %p578 = pneg %p317
        %p579 = pneg %p341
        %p580 = pneg %p338
        %p581 = pneg %p362
        %p582 = pneg %p359
        %p583 = pneg %p388
        %p584 = pneg %p385
        %s585 = sand.u32 %s375, 1
        %s586 = scalar_lea.sflag [#allocation5], %s585
        %s587 = sand.u32 %s375, 1
        %s588 = smul.addr %s587, 16
        %s589 = scalar_lea.vmem [#allocation4], %s588
        %s590 = smul.u32 2, %s32
        %p591 = scmp.lt.s32.totalorder %s590, 3
        %s592 = scalar_select %p591, %s590, 3
        %s593 = smul.addr %s592, 8
        %s594 = scalar_lea.vmem %s0, %s593
        %s595 = smul.u32 2, %s32
        %s596 = smul.u32 2, %s32
        %s597 = smul.u32 2, %s33
        %p598 = scmp.lt.s32.totalorder %s596, 3
        %s599 = scalar_select %p598, %s596, 3
        %p600 = scmp.lt.s32.totalorder %s597, 1
        %s601 = scalar_select %p600, %s597, 1
        %s602 = smul.addr %s599, 16
        %s603 = sadd.s32 %s601, %s602
        %s604 = smul.addr %s603, 4
        %s605 = scalar_lea.vmem %s1, %s604
        %s606 = smul.u32 2, %s32
        %s607 = smul.u32 2, %s33
        %s608 = smul.u32 2, %s32
        %s609 = smul.u32 2, %s33
        %p610 = scmp.lt.s32.totalorder %s608, 3
        %s611 = scalar_select %p610, %s608, 3
        %p612 = scmp.lt.s32.totalorder %s609, 1
        %s613 = scalar_select %p612, %s609, 1
        %s614 = smul.addr %s611, 16
        %s615 = sadd.s32 %s613, %s614
        %s616 = smul.addr %s615, 8
        %s617 = scalar_lea.vmem %s2, %s616
        %s618 = smul.u32 2, %s32
        %s619 = smul.u32 2, %s33
        %s620 = smul.u32 2, %s32
        %s621 = smul.u32 2, %s33
        %p622 = scmp.lt.s32.totalorder %s620, 3
        %s623 = scalar_select %p622, %s620, 3
        %p624 = scmp.lt.s32.totalorder %s621, 1
        %s625 = scalar_select %p624, %s621, 1
        %s626 = smul.addr %s623, 16
        %s627 = sadd.s32 %s625, %s626
        %s628 = smul.addr %s627, 8
        %s629 = scalar_lea.vmem %s3, %s628
        %s630 = smul.u32 2, %s32
        %s631 = smul.u32 2, %s33
        %s632 = smul.u32 2, %s32
        %s633 = smul.u32 2, %s33
        %p634 = scmp.lt.s32.totalorder %s632, 3
        %s635 = scalar_select %p634, %s632, 3
        %p636 = scmp.lt.s32.totalorder %s633, 1
        %s637 = scalar_select %p636, %s633, 1
        %s638 = smul.addr %s635, 16
        %s639 = sadd.s32 %s637, %s638
        %s640 = smul.addr %s639, 8
        %s641 = scalar_lea.vmem %s4, %s640
        %s642 = smul.u32 2, %s32
        %s643 = smul.u32 2, %s33
        %s644 = smul.u32 2, %s32
        %p646 = scmp.eq.s32.totalorder %s33, 0
        // Predicated region
        $region77: #{tpu_custom_call.1} parent=75 // pred_check
          %p647 = pneg %p646
        $region78: #{tpu_custom_call.1} parent=75 // pred_check_branch
          %649 = sbr.rel (%p647) target = $region80
        $region79: #{tpu_custom_call.1} parent=75 // pred_region
          %650 = vst [vmem:[#allocation2] sm:$0xff] 0.0
          %651 = vst [vmem:[#allocation2 + $0x8] sm:$0xff] 0.0
          %v652 = vld [vmem:[%s594] sm:$0xff]
          %v653 = vld [vmem:[%s594 + $0x8] sm:$0xff]
          %v654 = vpack.c.bf16 %v653, %v652
          %v655 = vld [vmem:[%s9] sm:$0xf]
          %v656 = vld [vmem:[%s9 + $0x4] sm:$0xf]
          %v657 = vld [vmem:[%s9 + $0x8] sm:$0xf]
          %v658 = vld [vmem:[%s9 + $0xc] sm:$0xf]
          %v659 = vld [vmem:[%s9 + $0x10] sm:$0xf]
          %v660 = vld [vmem:[%s9 + $0x14] sm:$0xf]
          %v661 = vld [vmem:[%s9 + $0x18] sm:$0xf]
          %v662 = vld [vmem:[%s9 + $0x1c] sm:$0xf]
          %v663 = vld [vmem:[%s9 + $0x20] sm:$0xf]
          %v664 = vld [vmem:[%s9 + $0x24] sm:$0xf]
          %v665 = vld [vmem:[%s9 + $0x28] sm:$0xf]
          %v666 = vld [vmem:[%s9 + $0x2c] sm:$0xf]
          %v667 = vld [vmem:[%s9 + $0x30] sm:$0xf]
          %v668 = vld [vmem:[%s9 + $0x34] sm:$0xf]
          %v669 = vld [vmem:[%s9 + $0x38] sm:$0xf]
          %v670 = vld [vmem:[%s9 + $0x3c] sm:$0xf]
          %v687 = vunpack.c.l.b16 %v655
          %v688 = vunpack.c.l.b16 %v656
          %v689 = vunpack.c.l.b16 %v657
          %v690 = vunpack.c.l.b16 %v658
          %v691 = vunpack.c.l.b16 %v659
          %v692 = vunpack.c.l.b16 %v660
          %v693 = vunpack.c.l.b16 %v661
          %v694 = vunpack.c.l.b16 %v662
          %v695 = vunpack.c.l.b16 %v663
          %v696 = vunpack.c.l.b16 %v664
          %v697 = vunpack.c.l.b16 %v665
          %v698 = vunpack.c.l.b16 %v666
          %v699 = vunpack.c.l.b16 %v667
          %v700 = vunpack.c.l.b16 %v668
          %v701 = vunpack.c.l.b16 %v669
          %v702 = vunpack.c.l.b16 %v670
          %v703 = vpack.c.b16 %v688, %v687
          %v704 = vpack.c.b16 %v690, %v689
          %v705 = vpack.c.b16 %v692, %v691
          %v706 = vpack.c.b16 %v694, %v693
          %v707 = vpack.c.b16 %v696, %v695
          %v708 = vpack.c.b16 %v698, %v697
          %v709 = vpack.c.b16 %v700, %v699
          %v710 = vpack.c.b16 %v702, %v701
          %719 = vmatprep.subr.bf16.mxu0 0
          %720 = vmatpush1.bf16.msra.mxu0 %v710
          %721 = vmatprep.subr.bf16.mxu0 0
          %722 = vmatpush1.bf16.msra.mxu0 %v709
          %723 = vmatprep.subr.bf16.mxu0 0
          %724 = vmatpush1.bf16.msra.mxu0 %v708
          %725 = vmatprep.subr.bf16.mxu0 0
          %726 = vmatpush1.bf16.msra.mxu0 %v707
          %727 = vmatprep.subr.bf16.mxu0 0
          %728 = vmatpush1.bf16.msra.mxu0 %v706
          %729 = vmatprep.subr.bf16.mxu0 0
          %730 = vmatpush1.bf16.msra.mxu0 %v705
          %731 = vmatprep.subr.bf16.mxu0 0
          %732 = vmatpush1.bf16.msra.mxu0 %v704
          %733 = vmatprep.subr.bf16.mxu0 0
          %734 = vmatpush1.bf16.msra.mxu0 %v703
          %735 = vmatprep.subr.bf16.mxu0 0
          %736 = vmatpush2.bf16.msra.mxu0 0
          %737 = vmatprep.subr.bf16.mxu0 0
          %738 = vmatpush2.bf16.msra.mxu0 0
          %739 = vmatprep.subr.bf16.mxu0 0
          %740 = vmatpush2.bf16.msra.mxu0 0
          %741 = vmatprep.subr.bf16.mxu0 0
          %742 = vmatpush2.bf16.msra.mxu0 0
          %743 = vmatprep.subr.bf16.mxu0 0
          %744 = vmatpush2.bf16.msra.mxu0 0
          %745 = vmatprep.subr.bf16.mxu0 0
          %746 = vmatpush2.bf16.msra.mxu0 0
          %747 = vmatprep.subr.bf16.mxu0 0
          %748 = vmatpush2.bf16.msra.mxu0 0
          %749 = vmatprep.subr.bf16.mxu0 0
          %750 = vmatpush2.bf16.msra.mxu0 0
          %751 = vmatprep.mubr.bf16.mxu0 0
          %752 = vmatmul.mubr.bf16.gmra.mxu0 %v654
          %v753 = vpop.f32.mrf.mxu0
          %v754 = vadd.f32 0.0, %v753
          %v755 = vpop.f32.mrf.mxu0
          %v756 = vpop.f32.mrf.mxu0
          %v757 = vadd.f32 0.0, %v756
          %v758 = vpop.f32.mrf.mxu0
          %759 = vdwg.mxu0
          %v760 = vpack.c.bf16 %v757, %v754
          %v762 = vunpack.c.l.b16 %v760
          %v763 = vunpack.c.h.b16 %v760
          %v764 = vpack.c.b16 %v762, %v762
          %v765 = vpack.c.b16 %v763, %v763
          %768 = vst [vmem:[#allocation3] sm:$0xf] %v764
          %769 = vst [vmem:[#allocation3 + $0x4] sm:$0xf] %v765
        $region80: #{tpu_custom_call.1} parent=75 // pred_fallthru
          _
        %v770 = vld [vmem:[%s605] sm:$0xf]
        %v771 = vld [vmem:[%s605 + $0x4] sm:$0xf]
        %v772 = vld [vmem:[%s605 + $0x8] sm:$0xf]
        %v773 = vld [vmem:[%s605 + $0xc] sm:$0xf]
        %v774 = vld [vmem:[%s605 + $0x10] sm:$0xf]
        %v775 = vld [vmem:[%s605 + $0x14] sm:$0xf]
        %v776 = vld [vmem:[%s605 + $0x18] sm:$0xf]
        %v777 = vld [vmem:[%s605 + $0x1c] sm:$0xf]
        %v778 = vld [vmem:[%s605 + $0x20] sm:$0xf]
        %v779 = vld [vmem:[%s605 + $0x24] sm:$0xf]
        %v780 = vld [vmem:[%s605 + $0x28] sm:$0xf]
        %v781 = vld [vmem:[%s605 + $0x2c] sm:$0xf]
        %v782 = vld [vmem:[%s605 + $0x30] sm:$0xf]
        %v783 = vld [vmem:[%s605 + $0x34] sm:$0xf]
        %v784 = vld [vmem:[%s605 + $0x38] sm:$0xf]
        %v785 = vld [vmem:[%s605 + $0x3c] sm:$0xf]
        %v786 = vld [vmem:[%s605 + $0x40] sm:$0xf]
        %v787 = vld [vmem:[%s605 + $0x44] sm:$0xf]
        %v788 = vld [vmem:[%s605 + $0x48] sm:$0xf]
        %v789 = vld [vmem:[%s605 + $0x4c] sm:$0xf]
        %v790 = vld [vmem:[%s605 + $0x50] sm:$0xf]
        %v791 = vld [vmem:[%s605 + $0x54] sm:$0xf]
        %v792 = vld [vmem:[%s605 + $0x58] sm:$0xf]
        %v793 = vld [vmem:[%s605 + $0x5c] sm:$0xf]
        %v794 = vld [vmem:[%s605 + $0x60] sm:$0xf]
        %v795 = vld [vmem:[%s605 + $0x64] sm:$0xf]
        %v796 = vld [vmem:[%s605 + $0x68] sm:$0xf]
        %v797 = vld [vmem:[%s605 + $0x6c] sm:$0xf]
        %v798 = vld [vmem:[%s605 + $0x70] sm:$0xf]
        %v799 = vld [vmem:[%s605 + $0x74] sm:$0xf]
        %v800 = vld [vmem:[%s605 + $0x78] sm:$0xf]
        %v801 = vld [vmem:[%s605 + $0x7c] sm:$0xf]
        %v802 = vld [vmem:[%s5] sm:$0xf]
        %v803 = vld [vmem:[%s5 + $0x4] sm:$0xf]
        %v804 = vld [vmem:[%s6] sm:$0x1]
        %v806 = vlaneseq
        %v807 = vshrl.u32 %v806, 7
        %v808 = vsub.s32 0, %v807
        %v809 = vrot.slane %v804, %v808
        %v843 = vunpack.c.l.b16 %v770
        %v844 = vunpack.c.l.b16 %v771
        %v845 = vunpack.c.l.b16 %v772
        %v846 = vunpack.c.l.b16 %v773
        %v847 = vunpack.c.l.b16 %v774
        %v848 = vunpack.c.l.b16 %v775
        %v849 = vunpack.c.l.b16 %v776
        %v850 = vunpack.c.l.b16 %v777
        %v851 = vunpack.c.l.b16 %v778
        %v852 = vunpack.c.l.b16 %v779
        %v853 = vunpack.c.l.b16 %v780
        %v854 = vunpack.c.l.b16 %v781
        %v855 = vunpack.c.l.b16 %v782
        %v856 = vunpack.c.l.b16 %v783
        %v857 = vunpack.c.l.b16 %v784
        %v858 = vunpack.c.l.b16 %v785
        %v859 = vunpack.c.l.b16 %v786
        %v860 = vunpack.c.l.b16 %v787
        %v861 = vunpack.c.l.b16 %v788
        %v862 = vunpack.c.l.b16 %v789
        %v863 = vunpack.c.l.b16 %v790
        %v864 = vunpack.c.l.b16 %v791
        %v865 = vunpack.c.l.b16 %v792
        %v866 = vunpack.c.l.b16 %v793
        %v867 = vunpack.c.l.b16 %v794
        %v868 = vunpack.c.l.b16 %v795
        %v869 = vunpack.c.l.b16 %v796
        %v870 = vunpack.c.l.b16 %v797
        %v871 = vunpack.c.l.b16 %v798
        %v872 = vunpack.c.l.b16 %v799
        %v873 = vunpack.c.l.b16 %v800
        %v874 = vunpack.c.l.b16 %v801
        %v875 = vpack.c.b16 %v844, %v843
        %v876 = vpack.c.b16 %v846, %v845
        %v877 = vpack.c.b16 %v848, %v847
        %v878 = vpack.c.b16 %v850, %v849
        %v879 = vpack.c.b16 %v852, %v851
        %v880 = vpack.c.b16 %v854, %v853
        %v881 = vpack.c.b16 %v856, %v855
        %v882 = vpack.c.b16 %v858, %v857
        %v883 = vpack.c.b16 %v860, %v859
        %v884 = vpack.c.b16 %v862, %v861
        %v885 = vpack.c.b16 %v864, %v863
        %v886 = vpack.c.b16 %v866, %v865
        %v887 = vpack.c.b16 %v868, %v867
        %v888 = vpack.c.b16 %v870, %v869
        %v889 = vpack.c.b16 %v872, %v871
        %v890 = vpack.c.b16 %v874, %v873
        %v893 = vunpack.c.l.b16 %v802
        %v894 = vunpack.c.l.b16 %v803
        %v895 = vpack.c.b16 %v894, %v893
        %vm897 = vcmask 130048
        %v899 = vsel %vm897, %v875, 0
        %v902 = vsel %vm897, %v876, 0
        %v905 = vsel %vm897, %v877, 0
        %v908 = vsel %vm897, %v878, 0
        %v911 = vsel %vm897, %v879, 0
        %v914 = vsel %vm897, %v880, 0
        %v917 = vsel %vm897, %v881, 0
        %v920 = vsel %vm897, %v882, 0
        %v923 = vsel %vm897, %v883, 0
        %v926 = vsel %vm897, %v884, 0
        %v929 = vsel %vm897, %v885, 0
        %v932 = vsel %vm897, %v886, 0
        %v935 = vsel %vm897, %v887, 0
        %v938 = vsel %vm897, %v888, 0
        %v941 = vsel %vm897, %v889, 0
        %v944 = vsel %vm897, %v890, 0
        %946 = vmatprep.subr.bf16.mxu0 0
        %947 = vmatpush1.bf16.msra.mxu0 0
        %948 = vmatprep.subr.bf16.mxu0 0
        %949 = vmatpush1.bf16.msra.mxu0 0
        %950 = vmatprep.subr.bf16.mxu0 0
        %951 = vmatpush1.bf16.msra.mxu0 0
        %952 = vmatprep.subr.bf16.mxu0 0
        %953 = vmatpush1.bf16.msra.mxu0 0
        %954 = vmatprep.subr.bf16.mxu0 0
        %955 = vmatpush1.bf16.msra.mxu0 0
        %956 = vmatprep.subr.bf16.mxu0 0
        %957 = vmatpush1.bf16.msra.mxu0 0
        %958 = vmatprep.subr.bf16.mxu0 0
        %959 = vmatpush1.bf16.msra.mxu0 0
        %960 = vmatprep.subr.bf16.mxu0 0
        %961 = vmatpush1.bf16.msra.mxu0 %v895
        %962 = vmatprep.subr.bf16.mxu0 0
        %963 = vmatpush2.bf16.msra.mxu0 0
        %964 = vmatprep.subr.bf16.mxu0 0
        %965 = vmatpush2.bf16.msra.mxu0 0
        %966 = vmatprep.subr.bf16.mxu0 0
        %967 = vmatpush2.bf16.msra.mxu0 0
        %968 = vmatprep.subr.bf16.mxu0 0
        %969 = vmatpush2.bf16.msra.mxu0 0
        %970 = vmatprep.subr.bf16.mxu0 0
        %971 = vmatpush2.bf16.msra.mxu0 0
        %972 = vmatprep.subr.bf16.mxu0 0
        %973 = vmatpush2.bf16.msra.mxu0 0
        %974 = vmatprep.subr.bf16.mxu0 0
        %975 = vmatpush2.bf16.msra.mxu0 0
        %976 = vmatprep.subr.bf16.mxu0 0
        %977 = vmatpush2.bf16.msra.mxu0 0
        %978 = vmatprep.mubr.bf16.mxu0 0
        %979 = vmatmul.mubr.bf16.gmra.mxu0 %v899
        %v980 = vpop.f32.mrf.mxu0
        %v981 = vadd.f32 %v809, %v980
        %v982 = vpop.f32.mrf.mxu0
        %v983 = vpop.f32.mrf.mxu0
        %v984 = vadd.f32 %v809, %v983
        %v985 = vpop.f32.mrf.mxu0
        %986 = vmatprep.mubr.bf16.mxu0 0
        %987 = vmatmul.mubr.bf16.gmra.mxu0 %v902
        %v988 = vpop.f32.mrf.mxu0
        %v989 = vadd.f32 %v809, %v988
        %v990 = vpop.f32.mrf.mxu0
        %v991 = vpop.f32.mrf.mxu0
        %v992 = vadd.f32 %v809, %v991
        %v993 = vpop.f32.mrf.mxu0
        %994 = vmatprep.mubr.bf16.mxu0 0
        %995 = vmatmul.mubr.bf16.gmra.mxu0 %v905
        %v996 = vpop.f32.mrf.mxu0
        %v997 = vadd.f32 %v809, %v996
        %v998 = vpop.f32.mrf.mxu0
        %v999 = vpop.f32.mrf.mxu0
        %v1000 = vadd.f32 %v809, %v999
        %v1001 = vpop.f32.mrf.mxu0
        %1002 = vmatprep.mubr.bf16.mxu0 0
        %1003 = vmatmul.mubr.bf16.gmra.mxu0 %v908
        %v1004 = vpop.f32.mrf.mxu0
        %v1005 = vadd.f32 %v809, %v1004
        %v1006 = vpop.f32.mrf.mxu0
        %v1007 = vpop.f32.mrf.mxu0
        %v1008 = vadd.f32 %v809, %v1007
        %v1009 = vpop.f32.mrf.mxu0
        %1010 = vmatprep.mubr.bf16.mxu0 0
        %1011 = vmatmul.mubr.bf16.gmra.mxu0 %v911
        %v1012 = vpop.f32.mrf.mxu0
        %v1013 = vadd.f32 %v809, %v1012
        %v1014 = vpop.f32.mrf.mxu0
        %v1015 = vpop.f32.mrf.mxu0
        %v1016 = vadd.f32 %v809, %v1015
        %v1017 = vpop.f32.mrf.mxu0
        %1018 = vmatprep.mubr.bf16.mxu0 0
        %1019 = vmatmul.mubr.bf16.gmra.mxu0 %v914
        %v1020 = vpop.f32.mrf.mxu0
        %v1021 = vadd.f32 %v809, %v1020
        %v1022 = vpop.f32.mrf.mxu0
        %v1023 = vpop.f32.mrf.mxu0
        %v1024 = vadd.f32 %v809, %v1023
        %v1025 = vpop.f32.mrf.mxu0
        %1026 = vmatprep.mubr.bf16.mxu0 0
        %1027 = vmatmul.mubr.bf16.gmra.mxu0 %v917
        %v1028 = vpop.f32.mrf.mxu0
        %v1029 = vadd.f32 %v809, %v1028
        %v1030 = vpop.f32.mrf.mxu0
        %v1031 = vpop.f32.mrf.mxu0
        %v1032 = vadd.f32 %v809, %v1031
        %v1033 = vpop.f32.mrf.mxu0
        %1034 = vmatprep.mubr.bf16.mxu0 0
        %1035 = vmatmul.mubr.bf16.gmra.mxu0 %v920
        %v1036 = vpop.f32.mrf.mxu0
        %v1037 = vadd.f32 %v809, %v1036
        %v1038 = vpop.f32.mrf.mxu0
        %v1039 = vpop.f32.mrf.mxu0
        %v1040 = vadd.f32 %v809, %v1039
        %v1041 = vpop.f32.mrf.mxu0
        %1042 = vmatprep.mubr.bf16.mxu0 0
        %1043 = vmatmul.mubr.bf16.gmra.mxu0 %v923
        %v1044 = vpop.f32.mrf.mxu0
        %v1045 = vadd.f32 %v809, %v1044
        %v1046 = vpop.f32.mrf.mxu0
        %v1047 = vpop.f32.mrf.mxu0
        %v1048 = vadd.f32 %v809, %v1047
        %v1049 = vpop.f32.mrf.mxu0
        %1050 = vmatprep.mubr.bf16.mxu0 0
        %1051 = vmatmul.mubr.bf16.gmra.mxu0 %v926
        %v1052 = vpop.f32.mrf.mxu0
        %v1053 = vadd.f32 %v809, %v1052
        %v1054 = vpop.f32.mrf.mxu0
        %v1055 = vpop.f32.mrf.mxu0
        %v1056 = vadd.f32 %v809, %v1055
        %v1057 = vpop.f32.mrf.mxu0
        %1058 = vmatprep.mubr.bf16.mxu0 0
        %1059 = vmatmul.mubr.bf16.gmra.mxu0 %v929
        %v1060 = vpop.f32.mrf.mxu0
        %v1061 = vadd.f32 %v809, %v1060
        %v1062 = vpop.f32.mrf.mxu0
        %v1063 = vpop.f32.mrf.mxu0
        %v1064 = vadd.f32 %v809, %v1063
        %v1065 = vpop.f32.mrf.mxu0
        %1066 = vmatprep.mubr.bf16.mxu0 0
        %1067 = vmatmul.mubr.bf16.gmra.mxu0 %v932
        %v1068 = vpop.f32.mrf.mxu0
        %v1069 = vadd.f32 %v809, %v1068
        %v1070 = vpop.f32.mrf.mxu0
        %v1071 = vpop.f32.mrf.mxu0
        %v1072 = vadd.f32 %v809, %v1071
        %v1073 = vpop.f32.mrf.mxu0
        %1074 = vmatprep.mubr.bf16.mxu0 0
        %1075 = vmatmul.mubr.bf16.gmra.mxu0 %v935
        %v1076 = vpop.f32.mrf.mxu0
        %v1077 = vadd.f32 %v809, %v1076
        %v1078 = vpop.f32.mrf.mxu0
        %v1079 = vpop.f32.mrf.mxu0
        %v1080 = vadd.f32 %v809, %v1079
        %v1081 = vpop.f32.mrf.mxu0
        %1082 = vmatprep.mubr.bf16.mxu0 0
        %1083 = vmatmul.mubr.bf16.gmra.mxu0 %v938
        %v1084 = vpop.f32.mrf.mxu0
        %v1085 = vadd.f32 %v809, %v1084
        %v1086 = vpop.f32.mrf.mxu0
        %v1087 = vpop.f32.mrf.mxu0
        %v1088 = vadd.f32 %v809, %v1087
        %v1089 = vpop.f32.mrf.mxu0
        %1090 = vmatprep.mubr.bf16.mxu0 0
        %1091 = vmatmul.mubr.bf16.gmra.mxu0 %v941
        %v1092 = vpop.f32.mrf.mxu0
        %v1093 = vadd.f32 %v809, %v1092
        %v1094 = vpop.f32.mrf.mxu0
        %v1095 = vpop.f32.mrf.mxu0
        %v1096 = vadd.f32 %v809, %v1095
        %v1097 = vpop.f32.mrf.mxu0
        %1098 = vmatprep.mubr.bf16.mxu0 0
        %1099 = vmatmul.mubr.bf16.gmra.mxu0 %v944
        %v1100 = vpop.f32.mrf.mxu0
        %v1101 = vadd.f32 %v809, %v1100
        %v1102 = vpop.f32.mrf.mxu0
        %v1103 = vpop.f32.mrf.mxu0
        %v1104 = vadd.f32 %v809, %v1103
        %v1105 = vpop.f32.mrf.mxu0
        %1106 = vdwg.mxu0
        %v1107 = vmax.f32 %v981, 0.0
        %v1108 = vmax.f32 %v984, 0.0
        %v1109 = vmax.f32 %v989, 0.0
        %v1110 = vmax.f32 %v992, 0.0
        %v1111 = vmax.f32 %v997, 0.0
        %v1112 = vmax.f32 %v1000, 0.0
        %v1113 = vmax.f32 %v1005, 0.0
        %v1114 = vmax.f32 %v1008, 0.0
        %v1115 = vmax.f32 %v1013, 0.0
        %v1116 = vmax.f32 %v1016, 0.0
        %v1117 = vmax.f32 %v1021, 0.0
        %v1118 = vmax.f32 %v1024, 0.0
        %v1119 = vmax.f32 %v1029, 0.0
        %v1120 = vmax.f32 %v1032, 0.0
        %v1121 = vmax.f32 %v1037, 0.0
        %v1122 = vmax.f32 %v1040, 0.0
        %v1123 = vmax.f32 %v1045, 0.0
        %v1124 = vmax.f32 %v1048, 0.0
        %v1125 = vmax.f32 %v1053, 0.0
        %v1126 = vmax.f32 %v1056, 0.0
        %v1127 = vmax.f32 %v1061, 0.0
        %v1128 = vmax.f32 %v1064, 0.0
        %v1129 = vmax.f32 %v1069, 0.0
        %v1130 = vmax.f32 %v1072, 0.0
        %v1131 = vmax.f32 %v1077, 0.0
        %v1132 = vmax.f32 %v1080, 0.0
        %v1133 = vmax.f32 %v1085, 0.0
        %v1134 = vmax.f32 %v1088, 0.0
        %v1135 = vmax.f32 %v1093, 0.0
        %v1136 = vmax.f32 %v1096, 0.0
        %v1137 = vmax.f32 %v1101, 0.0
        %v1138 = vmax.f32 %v1104, 0.0
        %vm1139 = vcmp.ne.f32.partialorder %v981, %v981
        %vm1140 = vcmp.ne.f32.partialorder %v984, %v984
        %vm1141 = vcmp.ne.f32.partialorder %v989, %v989
        %vm1142 = vcmp.ne.f32.partialorder %v992, %v992
        %vm1143 = vcmp.ne.f32.partialorder %v997, %v997
        %vm1144 = vcmp.ne.f32.partialorder %v1000, %v1000
        %vm1145 = vcmp.ne.f32.partialorder %v1005, %v1005
        %vm1146 = vcmp.ne.f32.partialorder %v1008, %v1008
        %vm1147 = vcmp.ne.f32.partialorder %v1013, %v1013
        %vm1148 = vcmp.ne.f32.partialorder %v1016, %v1016
        %vm1149 = vcmp.ne.f32.partialorder %v1021, %v1021
        %vm1150 = vcmp.ne.f32.partialorder %v1024, %v1024
        %vm1151 = vcmp.ne.f32.partialorder %v1029, %v1029
        %vm1152 = vcmp.ne.f32.partialorder %v1032, %v1032
        %vm1153 = vcmp.ne.f32.partialorder %v1037, %v1037
        %vm1154 = vcmp.ne.f32.partialorder %v1040, %v1040
        %vm1155 = vcmp.ne.f32.partialorder %v1045, %v1045
        %vm1156 = vcmp.ne.f32.partialorder %v1048, %v1048
        %vm1157 = vcmp.ne.f32.partialorder %v1053, %v1053
        %vm1158 = vcmp.ne.f32.partialorder %v1056, %v1056
        %vm1159 = vcmp.ne.f32.partialorder %v1061, %v1061
        %vm1160 = vcmp.ne.f32.partialorder %v1064, %v1064
        %vm1161 = vcmp.ne.f32.partialorder %v1069, %v1069
        %vm1162 = vcmp.ne.f32.partialorder %v1072, %v1072
        %vm1163 = vcmp.ne.f32.partialorder %v1077, %v1077
        %vm1164 = vcmp.ne.f32.partialorder %v1080, %v1080
        %vm1165 = vcmp.ne.f32.partialorder %v1085, %v1085
        %vm1166 = vcmp.ne.f32.partialorder %v1088, %v1088
        %vm1167 = vcmp.ne.f32.partialorder %v1093, %v1093
        %vm1168 = vcmp.ne.f32.partialorder %v1096, %v1096
        %vm1169 = vcmp.ne.f32.partialorder %v1101, %v1101
        %vm1170 = vcmp.ne.f32.partialorder %v1104, %v1104
        %v1171 = vadd.f32 %v981, 0.0
        %v1172 = vadd.f32 %v984, 0.0
        %v1173 = vadd.f32 %v989, 0.0
        %v1174 = vadd.f32 %v992, 0.0
        %v1175 = vadd.f32 %v997, 0.0
        %v1176 = vadd.f32 %v1000, 0.0
        %v1177 = vadd.f32 %v1005, 0.0
        %v1178 = vadd.f32 %v1008, 0.0
        %v1179 = vadd.f32 %v1013, 0.0
        %v1180 = vadd.f32 %v1016, 0.0
        %v1181 = vadd.f32 %v1021, 0.0
        %v1182 = vadd.f32 %v1024, 0.0
        %v1183 = vadd.f32 %v1029, 0.0
        %v1184 = vadd.f32 %v1032, 0.0
        %v1185 = vadd.f32 %v1037, 0.0
        %v1186 = vadd.f32 %v1040, 0.0
        %v1187 = vadd.f32 %v1045, 0.0
        %v1188 = vadd.f32 %v1048, 0.0
        %v1189 = vadd.f32 %v1053, 0.0
        %v1190 = vadd.f32 %v1056, 0.0
        %v1191 = vadd.f32 %v1061, 0.0
        %v1192 = vadd.f32 %v1064, 0.0
        %v1193 = vadd.f32 %v1069, 0.0
        %v1194 = vadd.f32 %v1072, 0.0
        %v1195 = vadd.f32 %v1077, 0.0
        %v1196 = vadd.f32 %v1080, 0.0
        %v1197 = vadd.f32 %v1085, 0.0
        %v1198 = vadd.f32 %v1088, 0.0
        %v1199 = vadd.f32 %v1093, 0.0
        %v1200 = vadd.f32 %v1096, 0.0
        %v1201 = vadd.f32 %v1101, 0.0
        %v1202 = vadd.f32 %v1104, 0.0
        %v1203 = vand.u32 2147483647, %v981
        %v1204 = vand.u32 2147483647, %v984
        %v1205 = vand.u32 2147483647, %v989
        %v1206 = vand.u32 2147483647, %v992
        %v1207 = vand.u32 2147483647, %v997
        %v1208 = vand.u32 2147483647, %v1000
        %v1209 = vand.u32 2147483647, %v1005
        %v1210 = vand.u32 2147483647, %v1008
        %v1211 = vand.u32 2147483647, %v1013
        %v1212 = vand.u32 2147483647, %v1016
        %v1213 = vand.u32 2147483647, %v1021
        %v1214 = vand.u32 2147483647, %v1024
        %v1215 = vand.u32 2147483647, %v1029
        %v1216 = vand.u32 2147483647, %v1032
        %v1217 = vand.u32 2147483647, %v1037
        %v1218 = vand.u32 2147483647, %v1040
        %v1219 = vand.u32 2147483647, %v1045
        %v1220 = vand.u32 2147483647, %v1048
        %v1221 = vand.u32 2147483647, %v1053
        %v1222 = vand.u32 2147483647, %v1056
        %v1223 = vand.u32 2147483647, %v1061
        %v1224 = vand.u32 2147483647, %v1064
        %v1225 = vand.u32 2147483647, %v1069
        %v1226 = vand.u32 2147483647, %v1072
        %v1227 = vand.u32 2147483647, %v1077
        %v1228 = vand.u32 2147483647, %v1080
        %v1229 = vand.u32 2147483647, %v1085
        %v1230 = vand.u32 2147483647, %v1088
        %v1231 = vand.u32 2147483647, %v1093
        %v1232 = vand.u32 2147483647, %v1096
        %v1233 = vand.u32 2147483647, %v1101
        %v1234 = vand.u32 2147483647, %v1104
        %v1235 = vsub.f32 0.0, %v1203
        %v1236 = vsub.f32 0.0, %v1204
        %v1237 = vsub.f32 0.0, %v1205
        %v1238 = vsub.f32 0.0, %v1206
        %v1239 = vsub.f32 0.0, %v1207
        %v1240 = vsub.f32 0.0, %v1208
        %v1241 = vsub.f32 0.0, %v1209
        %v1242 = vsub.f32 0.0, %v1210
        %v1243 = vsub.f32 0.0, %v1211
        %v1244 = vsub.f32 0.0, %v1212
        %v1245 = vsub.f32 0.0, %v1213
        %v1246 = vsub.f32 0.0, %v1214
        %v1247 = vsub.f32 0.0, %v1215
        %v1248 = vsub.f32 0.0, %v1216
        %v1249 = vsub.f32 0.0, %v1217
        %v1250 = vsub.f32 0.0, %v1218
        %v1251 = vsub.f32 0.0, %v1219
        %v1252 = vsub.f32 0.0, %v1220
        %v1253 = vsub.f32 0.0, %v1221
        %v1254 = vsub.f32 0.0, %v1222
        %v1255 = vsub.f32 0.0, %v1223
        %v1256 = vsub.f32 0.0, %v1224
        %v1257 = vsub.f32 0.0, %v1225
        %v1258 = vsub.f32 0.0, %v1226
        %v1259 = vsub.f32 0.0, %v1227
        %v1260 = vsub.f32 0.0, %v1228
        %v1261 = vsub.f32 0.0, %v1229
        %v1262 = vsub.f32 0.0, %v1230
        %v1263 = vsub.f32 0.0, %v1231
        %v1264 = vsub.f32 0.0, %v1232
        %v1265 = vsub.f32 0.0, %v1233
        %v1266 = vsub.f32 0.0, %v1234
        %v1267 = vmul.f32 %v1235, 1.442695
        %v1268 = vpow.pop %v1267
        %v1269 = vmul.f32 %v1236, 1.442695
        %v1270 = vpow.pop %v1269
        %v1271 = vmul.f32 %v1237, 1.442695
        %v1272 = vpow.pop %v1271
        %v1273 = vmul.f32 %v1238, 1.442695
        %v1274 = vpow.pop %v1273
        %v1275 = vmul.f32 %v1239, 1.442695
        %v1276 = vpow.pop %v1275
        %v1277 = vmul.f32 %v1240, 1.442695
        %v1278 = vpow.pop %v1277
        %v1279 = vmul.f32 %v1241, 1.442695
        %v1280 = vpow.pop %v1279
        %v1281 = vmul.f32 %v1242, 1.442695
        %v1282 = vpow.pop %v1281
        %v1283 = vmul.f32 %v1243, 1.442695
        %v1284 = vpow.pop %v1283
        %v1285 = vmul.f32 %v1244, 1.442695
        %v1286 = vpow.pop %v1285
        %v1287 = vmul.f32 %v1245, 1.442695
        %v1288 = vpow.pop %v1287
        %v1289 = vmul.f32 %v1246, 1.442695
        %v1290 = vpow.pop %v1289
        %v1291 = vmul.f32 %v1247, 1.442695
        %v1292 = vpow.pop %v1291
        %v1293 = vmul.f32 %v1248, 1.442695
        %v1294 = vpow.pop %v1293
        %v1295 = vmul.f32 %v1249, 1.442695
        %v1296 = vpow.pop %v1295
        %v1297 = vmul.f32 %v1250, 1.442695
        %v1298 = vpow.pop %v1297
        %v1299 = vmul.f32 %v1251, 1.442695
        %v1300 = vpow.pop %v1299
        %v1301 = vmul.f32 %v1252, 1.442695
        %v1302 = vpow.pop %v1301
        %v1303 = vmul.f32 %v1253, 1.442695
        %v1304 = vpow.pop %v1303
        %v1305 = vmul.f32 %v1254, 1.442695
        %v1306 = vpow.pop %v1305
        %v1307 = vmul.f32 %v1255, 1.442695
        %v1308 = vpow.pop %v1307
        %v1309 = vmul.f32 %v1256, 1.442695
        %v1310 = vpow.pop %v1309
        %v1311 = vmul.f32 %v1257, 1.442695
        %v1312 = vpow.pop %v1311
        %v1313 = vmul.f32 %v1258, 1.442695
        %v1314 = vpow.pop %v1313
        %v1315 = vmul.f32 %v1259, 1.442695
        %v1316 = vpow.pop %v1315
        %v1317 = vmul.f32 %v1260, 1.442695
        %v1318 = vpow.pop %v1317
        %v1319 = vmul.f32 %v1261, 1.442695
        %v1320 = vpow.pop %v1319
        %v1321 = vmul.f32 %v1262, 1.442695
        %v1322 = vpow.pop %v1321
        %v1323 = vmul.f32 %v1263, 1.442695
        %v1324 = vpow.pop %v1323
        %v1325 = vmul.f32 %v1264, 1.442695
        %v1326 = vpow.pop %v1325
        %v1327 = vmul.f32 %v1265, 1.442695
        %v1328 = vpow.pop %v1327
        %v1329 = vmul.f32 %v1266, 1.442695
        %v1330 = vpow.pop %v1329
        %v1331 = vadd.f32 %v1268, 1.0
        %v1332 = vlog2.pop %v1331
        %v1333 = vmul.f32 %v1332, 0.6931472
        %v1334 = vmul.f32 -0.5, %v1268
        %v1335 = vadd.f32 %v1334, 1.0
        %v1336 = vmul.f32 %v1335, %v1268
        %v1337 = vand.u32 2147483647, %v1268
        %vm1338 = vcmp.lt.f32.partialorder %v1337, 0.0004427343
        %v1339 = vsel %vm1338, %v1336, %v1333
        %v1340 = vadd.f32 %v1270, 1.0
        %v1341 = vlog2.pop %v1340
        %v1342 = vmul.f32 %v1341, 0.6931472
        %v1343 = vmul.f32 -0.5, %v1270
        %v1344 = vadd.f32 %v1343, 1.0
        %v1345 = vmul.f32 %v1344, %v1270
        %v1346 = vand.u32 2147483647, %v1270
        %vm1347 = vcmp.lt.f32.partialorder %v1346, 0.0004427343
        %v1348 = vsel %vm1347, %v1345, %v1342
        %v1349 = vadd.f32 %v1272, 1.0
        %v1350 = vlog2.pop %v1349
        %v1351 = vmul.f32 %v1350, 0.6931472
        %v1352 = vmul.f32 -0.5, %v1272
        %v1353 = vadd.f32 %v1352, 1.0
        %v1354 = vmul.f32 %v1353, %v1272
        %v1355 = vand.u32 2147483647, %v1272
        %vm1356 = vcmp.lt.f32.partialorder %v1355, 0.0004427343
        %v1357 = vsel %vm1356, %v1354, %v1351
        %v1358 = vadd.f32 %v1274, 1.0
        %v1359 = vlog2.pop %v1358
        %v1360 = vmul.f32 %v1359, 0.6931472
        %v1361 = vmul.f32 -0.5, %v1274
        %v1362 = vadd.f32 %v1361, 1.0
        %v1363 = vmul.f32 %v1362, %v1274
        %v1364 = vand.u32 2147483647, %v1274
        %vm1365 = vcmp.lt.f32.partialorder %v1364, 0.0004427343
        %v1366 = vsel %vm1365, %v1363, %v1360
        %v1367 = vadd.f32 %v1276, 1.0
        %v1368 = vlog2.pop %v1367
        %v1369 = vmul.f32 %v1368, 0.6931472
        %v1370 = vmul.f32 -0.5, %v1276
        %v1371 = vadd.f32 %v1370, 1.0
        %v1372 = vmul.f32 %v1371, %v1276
        %v1373 = vand.u32 2147483647, %v1276
        %vm1374 = vcmp.lt.f32.partialorder %v1373, 0.0004427343
        %v1375 = vsel %vm1374, %v1372, %v1369
        %v1376 = vadd.f32 %v1278, 1.0
        %v1377 = vlog2.pop %v1376
        %v1378 = vmul.f32 %v1377, 0.6931472
        %v1379 = vmul.f32 -0.5, %v1278
        %v1380 = vadd.f32 %v1379, 1.0
        %v1381 = vmul.f32 %v1380, %v1278
        %v1382 = vand.u32 2147483647, %v1278
        %vm1383 = vcmp.lt.f32.partialorder %v1382, 0.0004427343
        %v1384 = vsel %vm1383, %v1381, %v1378
        %v1385 = vadd.f32 %v1280, 1.0
        %v1386 = vlog2.pop %v1385
        %v1387 = vmul.f32 %v1386, 0.6931472
        %v1388 = vmul.f32 -0.5, %v1280
        %v1389 = vadd.f32 %v1388, 1.0
        %v1390 = vmul.f32 %v1389, %v1280
        %v1391 = vand.u32 2147483647, %v1280
        %vm1392 = vcmp.lt.f32.partialorder %v1391, 0.0004427343
        %v1393 = vsel %vm1392, %v1390, %v1387
        %v1394 = vadd.f32 %v1282, 1.0
        %v1395 = vlog2.pop %v1394
        %v1396 = vmul.f32 %v1395, 0.6931472
        %v1397 = vmul.f32 -0.5, %v1282
        %v1398 = vadd.f32 %v1397, 1.0
        %v1399 = vmul.f32 %v1398, %v1282
        %v1400 = vand.u32 2147483647, %v1282
        %vm1401 = vcmp.lt.f32.partialorder %v1400, 0.0004427343
        %v1402 = vsel %vm1401, %v1399, %v1396
        %v1403 = vadd.f32 %v1284, 1.0
        %v1404 = vlog2.pop %v1403
        %v1405 = vmul.f32 %v1404, 0.6931472
        %v1406 = vmul.f32 -0.5, %v1284
        %v1407 = vadd.f32 %v1406, 1.0
        %v1408 = vmul.f32 %v1407, %v1284
        %v1409 = vand.u32 2147483647, %v1284
        %vm1410 = vcmp.lt.f32.partialorder %v1409, 0.0004427343
        %v1411 = vsel %vm1410, %v1408, %v1405
        %v1412 = vadd.f32 %v1286, 1.0
        %v1413 = vlog2.pop %v1412
        %v1414 = vmul.f32 %v1413, 0.6931472
        %v1415 = vmul.f32 -0.5, %v1286
        %v1416 = vadd.f32 %v1415, 1.0
        %v1417 = vmul.f32 %v1416, %v1286
        %v1418 = vand.u32 2147483647, %v1286
        %vm1419 = vcmp.lt.f32.partialorder %v1418, 0.0004427343
        %v1420 = vsel %vm1419, %v1417, %v1414
        %v1421 = vadd.f32 %v1288, 1.0
        %v1422 = vlog2.pop %v1421
        %v1423 = vmul.f32 %v1422, 0.6931472
        %v1424 = vmul.f32 -0.5, %v1288
        %v1425 = vadd.f32 %v1424, 1.0
        %v1426 = vmul.f32 %v1425, %v1288
        %v1427 = vand.u32 2147483647, %v1288
        %vm1428 = vcmp.lt.f32.partialorder %v1427, 0.0004427343
        %v1429 = vsel %vm1428, %v1426, %v1423
        %v1430 = vadd.f32 %v1290, 1.0
        %v1431 = vlog2.pop %v1430
        %v1432 = vmul.f32 %v1431, 0.6931472
        %v1433 = vmul.f32 -0.5, %v1290
        %v1434 = vadd.f32 %v1433, 1.0
        %v1435 = vmul.f32 %v1434, %v1290
        %v1436 = vand.u32 2147483647, %v1290
        %vm1437 = vcmp.lt.f32.partialorder %v1436, 0.0004427343
        %v1438 = vsel %vm1437, %v1435, %v1432
        %v1439 = vadd.f32 %v1292, 1.0
        %v1440 = vlog2.pop %v1439
        %v1441 = vmul.f32 %v1440, 0.6931472
        %v1442 = vmul.f32 -0.5, %v1292
        %v1443 = vadd.f32 %v1442, 1.0
        %v1444 = vmul.f32 %v1443, %v1292
        %v1445 = vand.u32 2147483647, %v1292
        %vm1446 = vcmp.lt.f32.partialorder %v1445, 0.0004427343
        %v1447 = vsel %vm1446, %v1444, %v1441
        %v1448 = vadd.f32 %v1294, 1.0
        %v1449 = vlog2.pop %v1448
        %v1450 = vmul.f32 %v1449, 0.6931472
        %v1451 = vmul.f32 -0.5, %v1294
        %v1452 = vadd.f32 %v1451, 1.0
        %v1453 = vmul.f32 %v1452, %v1294
        %v1454 = vand.u32 2147483647, %v1294
        %vm1455 = vcmp.lt.f32.partialorder %v1454, 0.0004427343
        %v1456 = vsel %vm1455, %v1453, %v1450
        %v1457 = vadd.f32 %v1296, 1.0
        %v1458 = vlog2.pop %v1457
        %v1459 = vmul.f32 %v1458, 0.6931472
        %v1460 = vmul.f32 -0.5, %v1296
        %v1461 = vadd.f32 %v1460, 1.0
        %v1462 = vmul.f32 %v1461, %v1296
        %v1463 = vand.u32 2147483647, %v1296
        %vm1464 = vcmp.lt.f32.partialorder %v1463, 0.0004427343
        %v1465 = vsel %vm1464, %v1462, %v1459
        %v1466 = vadd.f32 %v1298, 1.0
        %v1467 = vlog2.pop %v1466
        %v1468 = vmul.f32 %v1467, 0.6931472
        %v1469 = vmul.f32 -0.5, %v1298
        %v1470 = vadd.f32 %v1469, 1.0
        %v1471 = vmul.f32 %v1470, %v1298
        %v1472 = vand.u32 2147483647, %v1298
        %vm1473 = vcmp.lt.f32.partialorder %v1472, 0.0004427343
        %v1474 = vsel %vm1473, %v1471, %v1468
        %v1475 = vadd.f32 %v1300, 1.0
        %v1476 = vlog2.pop %v1475
        %v1477 = vmul.f32 %v1476, 0.6931472
        %v1478 = vmul.f32 -0.5, %v1300
        %v1479 = vadd.f32 %v1478, 1.0
        %v1480 = vmul.f32 %v1479, %v1300
        %v1481 = vand.u32 2147483647, %v1300
        %vm1482 = vcmp.lt.f32.partialorder %v1481, 0.0004427343
        %v1483 = vsel %vm1482, %v1480, %v1477
        %v1484 = vadd.f32 %v1302, 1.0
        %v1485 = vlog2.pop %v1484
        %v1486 = vmul.f32 %v1485, 0.6931472
        %v1487 = vmul.f32 -0.5, %v1302
        %v1488 = vadd.f32 %v1487, 1.0
        %v1489 = vmul.f32 %v1488, %v1302
        %v1490 = vand.u32 2147483647, %v1302
        %vm1491 = vcmp.lt.f32.partialorder %v1490, 0.0004427343
        %v1492 = vsel %vm1491, %v1489, %v1486
        %v1493 = vadd.f32 %v1304, 1.0
        %v1494 = vlog2.pop %v1493
        %v1495 = vmul.f32 %v1494, 0.6931472
        %v1496 = vmul.f32 -0.5, %v1304
        %v1497 = vadd.f32 %v1496, 1.0
        %v1498 = vmul.f32 %v1497, %v1304
        %v1499 = vand.u32 2147483647, %v1304
        %vm1500 = vcmp.lt.f32.partialorder %v1499, 0.0004427343
        %v1501 = vsel %vm1500, %v1498, %v1495
        %v1502 = vadd.f32 %v1306, 1.0
        %v1503 = vlog2.pop %v1502
        %v1504 = vmul.f32 %v1503, 0.6931472
        %v1505 = vmul.f32 -0.5, %v1306
        %v1506 = vadd.f32 %v1505, 1.0
        %v1507 = vmul.f32 %v1506, %v1306
        %v1508 = vand.u32 2147483647, %v1306
        %vm1509 = vcmp.lt.f32.partialorder %v1508, 0.0004427343
        %v1510 = vsel %vm1509, %v1507, %v1504
        %v1511 = vadd.f32 %v1308, 1.0
        %v1512 = vlog2.pop %v1511
        %v1513 = vmul.f32 %v1512, 0.6931472
        %v1514 = vmul.f32 -0.5, %v1308
        %v1515 = vadd.f32 %v1514, 1.0
        %v1516 = vmul.f32 %v1515, %v1308
        %v1517 = vand.u32 2147483647, %v1308
        %vm1518 = vcmp.lt.f32.partialorder %v1517, 0.0004427343
        %v1519 = vsel %vm1518, %v1516, %v1513
        %v1520 = vadd.f32 %v1310, 1.0
        %v1521 = vlog2.pop %v1520
        %v1522 = vmul.f32 %v1521, 0.6931472
        %v1523 = vmul.f32 -0.5, %v1310
        %v1524 = vadd.f32 %v1523, 1.0
        %v1525 = vmul.f32 %v1524, %v1310
        %v1526 = vand.u32 2147483647, %v1310
        %vm1527 = vcmp.lt.f32.partialorder %v1526, 0.0004427343
        %v1528 = vsel %vm1527, %v1525, %v1522
        %v1529 = vadd.f32 %v1312, 1.0
        %v1530 = vlog2.pop %v1529
        %v1531 = vmul.f32 %v1530, 0.6931472
        %v1532 = vmul.f32 -0.5, %v1312
        %v1533 = vadd.f32 %v1532, 1.0
        %v1534 = vmul.f32 %v1533, %v1312
        %v1535 = vand.u32 2147483647, %v1312
        %vm1536 = vcmp.lt.f32.partialorder %v1535, 0.0004427343
        %v1537 = vsel %vm1536, %v1534, %v1531
        %v1538 = vadd.f32 %v1314, 1.0
        %v1539 = vlog2.pop %v1538
        %v1540 = vmul.f32 %v1539, 0.6931472
        %v1541 = vmul.f32 -0.5, %v1314
        %v1542 = vadd.f32 %v1541, 1.0
        %v1543 = vmul.f32 %v1542, %v1314
        %v1544 = vand.u32 2147483647, %v1314
        %vm1545 = vcmp.lt.f32.partialorder %v1544, 0.0004427343
        %v1546 = vsel %vm1545, %v1543, %v1540
        %v1547 = vadd.f32 %v1316, 1.0
        %v1548 = vlog2.pop %v1547
        %v1549 = vmul.f32 %v1548, 0.6931472
        %v1550 = vmul.f32 -0.5, %v1316
        %v1551 = vadd.f32 %v1550, 1.0
        %v1552 = vmul.f32 %v1551, %v1316
        %v1553 = vand.u32 2147483647, %v1316
        %vm1554 = vcmp.lt.f32.partialorder %v1553, 0.0004427343
        %v1555 = vsel %vm1554, %v1552, %v1549
        %v1556 = vadd.f32 %v1318, 1.0
        %v1557 = vlog2.pop %v1556
        %v1558 = vmul.f32 %v1557, 0.6931472
        %v1559 = vmul.f32 -0.5, %v1318
        %v1560 = vadd.f32 %v1559, 1.0
        %v1561 = vmul.f32 %v1560, %v1318
        %v1562 = vand.u32 2147483647, %v1318
        %vm1563 = vcmp.lt.f32.partialorder %v1562, 0.0004427343
        %v1564 = vsel %vm1563, %v1561, %v1558
        %v1565 = vadd.f32 %v1320, 1.0
        %v1566 = vlog2.pop %v1565
        %v1567 = vmul.f32 %v1566, 0.6931472
        %v1568 = vmul.f32 -0.5, %v1320
        %v1569 = vadd.f32 %v1568, 1.0
        %v1570 = vmul.f32 %v1569, %v1320
        %v1571 = vand.u32 2147483647, %v1320
        %vm1572 = vcmp.lt.f32.partialorder %v1571, 0.0004427343
        %v1573 = vsel %vm1572, %v1570, %v1567
        %v1574 = vadd.f32 %v1322, 1.0
        %v1575 = vlog2.pop %v1574
        %v1576 = vmul.f32 %v1575, 0.6931472
        %v1577 = vmul.f32 -0.5, %v1322
        %v1578 = vadd.f32 %v1577, 1.0
        %v1579 = vmul.f32 %v1578, %v1322
        %v1580 = vand.u32 2147483647, %v1322
        %vm1581 = vcmp.lt.f32.partialorder %v1580, 0.0004427343
        %v1582 = vsel %vm1581, %v1579, %v1576
        %v1583 = vadd.f32 %v1324, 1.0
        %v1584 = vlog2.pop %v1583
        %v1585 = vmul.f32 %v1584, 0.6931472
        %v1586 = vmul.f32 -0.5, %v1324
        %v1587 = vadd.f32 %v1586, 1.0
        %v1588 = vmul.f32 %v1587, %v1324
        %v1589 = vand.u32 2147483647, %v1324
        %vm1590 = vcmp.lt.f32.partialorder %v1589, 0.0004427343
        %v1591 = vsel %vm1590, %v1588, %v1585
        %v1592 = vadd.f32 %v1326, 1.0
        %v1593 = vlog2.pop %v1592
        %v1594 = vmul.f32 %v1593, 0.6931472
        %v1595 = vmul.f32 -0.5, %v1326
        %v1596 = vadd.f32 %v1595, 1.0
        %v1597 = vmul.f32 %v1596, %v1326
        %v1598 = vand.u32 2147483647, %v1326
        %vm1599 = vcmp.lt.f32.partialorder %v1598, 0.0004427343
        %v1600 = vsel %vm1599, %v1597, %v1594
        %v1601 = vadd.f32 %v1328, 1.0
        %v1602 = vlog2.pop %v1601
        %v1603 = vmul.f32 %v1602, 0.6931472
        %v1604 = vmul.f32 -0.5, %v1328
        %v1605 = vadd.f32 %v1604, 1.0
        %v1606 = vmul.f32 %v1605, %v1328
        %v1607 = vand.u32 2147483647, %v1328
        %vm1608 = vcmp.lt.f32.partialorder %v1607, 0.0004427343
        %v1609 = vsel %vm1608, %v1606, %v1603
        %v1610 = vadd.f32 %v1330, 1.0
        %v1611 = vlog2.pop %v1610
        %v1612 = vmul.f32 %v1611, 0.6931472
        %v1613 = vmul.f32 -0.5, %v1330
        %v1614 = vadd.f32 %v1613, 1.0
        %v1615 = vmul.f32 %v1614, %v1330
        %v1616 = vand.u32 2147483647, %v1330
        %vm1617 = vcmp.lt.f32.partialorder %v1616, 0.0004427343
        %v1618 = vsel %vm1617, %v1615, %v1612
        %v1619 = vadd.f32 %v1107, %v1339
        %v1620 = vadd.f32 %v1108, %v1348
        %v1621 = vadd.f32 %v1109, %v1357
        %v1622 = vadd.f32 %v1110, %v1366
        %v1623 = vadd.f32 %v1111, %v1375
        %v1624 = vadd.f32 %v1112, %v1384
        %v1625 = vadd.f32 %v1113, %v1393
        %v1626 = vadd.f32 %v1114, %v1402
        %v1627 = vadd.f32 %v1115, %v1411
        %v1628 = vadd.f32 %v1116, %v1420
        %v1629 = vadd.f32 %v1117, %v1429
        %v1630 = vadd.f32 %v1118, %v1438
        %v1631 = vadd.f32 %v1119, %v1447
        %v1632 = vadd.f32 %v1120, %v1456
        %v1633 = vadd.f32 %v1121, %v1465
        %v1634 = vadd.f32 %v1122, %v1474
        %v1635 = vadd.f32 %v1123, %v1483
        %v1636 = vadd.f32 %v1124, %v1492
        %v1637 = vadd.f32 %v1125, %v1501
        %v1638 = vadd.f32 %v1126, %v1510
        %v1639 = vadd.f32 %v1127, %v1519
        %v1640 = vadd.f32 %v1128, %v1528
        %v1641 = vadd.f32 %v1129, %v1537
        %v1642 = vadd.f32 %v1130, %v1546
        %v1643 = vadd.f32 %v1131, %v1555
        %v1644 = vadd.f32 %v1132, %v1564
        %v1645 = vadd.f32 %v1133, %v1573
        %v1646 = vadd.f32 %v1134, %v1582
        %v1647 = vadd.f32 %v1135, %v1591
        %v1648 = vadd.f32 %v1136, %v1600
        %v1649 = vadd.f32 %v1137, %v1609
        %v1650 = vadd.f32 %v1138, %v1618
        %v1651 = vsel %vm1139, %v1171, %v1619
        %v1652 = vsel %vm1140, %v1172, %v1620
        %v1653 = vsel %vm1141, %v1173, %v1621
        %v1654 = vsel %vm1142, %v1174, %v1622
        %v1655 = vsel %vm1143, %v1175, %v1623
        %v1656 = vsel %vm1144, %v1176, %v1624
        %v1657 = vsel %vm1145, %v1177, %v1625
        %v1658 = vsel %vm1146, %v1178, %v1626
        %v1659 = vsel %vm1147, %v1179, %v1627
        %v1660 = vsel %vm1148, %v1180, %v1628
        %v1661 = vsel %vm1149, %v1181, %v1629
        %v1662 = vsel %vm1150, %v1182, %v1630
        %v1663 = vsel %vm1151, %v1183, %v1631
        %v1664 = vsel %vm1152, %v1184, %v1632
        %v1665 = vsel %vm1153, %v1185, %v1633
        %v1666 = vsel %vm1154, %v1186, %v1634
        %v1667 = vsel %vm1155, %v1187, %v1635
        %v1668 = vsel %vm1156, %v1188, %v1636
        %v1669 = vsel %vm1157, %v1189, %v1637
        %v1670 = vsel %vm1158, %v1190, %v1638
        %v1671 = vsel %vm1159, %v1191, %v1639
        %v1672 = vsel %vm1160, %v1192, %v1640
        %v1673 = vsel %vm1161, %v1193, %v1641
        %v1674 = vsel %vm1162, %v1194, %v1642
        %v1675 = vsel %vm1163, %v1195, %v1643
        %v1676 = vsel %vm1164, %v1196, %v1644
        %v1677 = vsel %vm1165, %v1197, %v1645
        %v1678 = vsel %vm1166, %v1198, %v1646
        %v1679 = vsel %vm1167, %v1199, %v1647
        %v1680 = vsel %vm1168, %v1200, %v1648
        %v1681 = vsel %vm1169, %v1201, %v1649
        %v1682 = vsel %vm1170, %v1202, %v1650
        %v1683 = vsub.f32 %v1651, 0.6931472
        %v1684 = vsub.f32 %v1652, 0.6931472
        %v1685 = vsub.f32 %v1653, 0.6931472
        %v1686 = vsub.f32 %v1654, 0.6931472
        %v1687 = vsub.f32 %v1655, 0.6931472
        %v1688 = vsub.f32 %v1656, 0.6931472
        %v1689 = vsub.f32 %v1657, 0.6931472
        %v1690 = vsub.f32 %v1658, 0.6931472
        %v1691 = vsub.f32 %v1659, 0.6931472
        %v1692 = vsub.f32 %v1660, 0.6931472
        %v1693 = vsub.f32 %v1661, 0.6931472
        %v1694 = vsub.f32 %v1662, 0.6931472
        %v1695 = vsub.f32 %v1663, 0.6931472
        %v1696 = vsub.f32 %v1664, 0.6931472
        %v1697 = vsub.f32 %v1665, 0.6931472
        %v1698 = vsub.f32 %v1666, 0.6931472
        %v1699 = vsub.f32 %v1667, 0.6931472
        %v1700 = vsub.f32 %v1668, 0.6931472
        %v1701 = vsub.f32 %v1669, 0.6931472
        %v1702 = vsub.f32 %v1670, 0.6931472
        %v1703 = vsub.f32 %v1671, 0.6931472
        %v1704 = vsub.f32 %v1672, 0.6931472
        %v1705 = vsub.f32 %v1673, 0.6931472
        %v1706 = vsub.f32 %v1674, 0.6931472
        %v1707 = vsub.f32 %v1675, 0.6931472
        %v1708 = vsub.f32 %v1676, 0.6931472
        %v1709 = vsub.f32 %v1677, 0.6931472
        %v1710 = vsub.f32 %v1678, 0.6931472
        %v1711 = vsub.f32 %v1679, 0.6931472
        %v1712 = vsub.f32 %v1680, 0.6931472
        %v1713 = vsub.f32 %v1681, 0.6931472
        %v1714 = vsub.f32 %v1682, 0.6931472
        %v1715 = vpack.c.bf16 %v1684, %v1683
        %v1716 = vpack.c.bf16 %v1686, %v1685
        %v1717 = vpack.c.bf16 %v1688, %v1687
        %v1718 = vpack.c.bf16 %v1690, %v1689
        %v1719 = vpack.c.bf16 %v1692, %v1691
        %v1720 = vpack.c.bf16 %v1694, %v1693
        %v1721 = vpack.c.bf16 %v1696, %v1695
        %v1722 = vpack.c.bf16 %v1698, %v1697
        %v1723 = vpack.c.bf16 %v1700, %v1699
        %v1724 = vpack.c.bf16 %v1702, %v1701
        %v1725 = vpack.c.bf16 %v1704, %v1703
        %v1726 = vpack.c.bf16 %v1706, %v1705
        %v1727 = vpack.c.bf16 %v1708, %v1707
        %v1728 = vpack.c.bf16 %v1710, %v1709
        %v1729 = vpack.c.bf16 %v1712, %v1711
        %v1730 = vpack.c.bf16 %v1714, %v1713
        %v1731 = vld [vmem:[%s7] sm:$0xf]
        %v1732 = vld [vmem:[%s7 + $0x4] sm:$0xf]
        %v1733 = vld [vmem:[%s7 + $0x8] sm:$0xf]
        %v1734 = vld [vmem:[%s7 + $0xc] sm:$0xf]
        %v1735 = vld [vmem:[%s7 + $0x10] sm:$0xf]
        %v1736 = vld [vmem:[%s7 + $0x14] sm:$0xf]
        %v1737 = vld [vmem:[%s7 + $0x18] sm:$0xf]
        %v1738 = vld [vmem:[%s7 + $0x1c] sm:$0xf]
        %v1739 = vld [vmem:[%s7 + $0x20] sm:$0xf]
        %v1740 = vld [vmem:[%s7 + $0x24] sm:$0xf]
        %v1741 = vld [vmem:[%s7 + $0x28] sm:$0xf]
        %v1742 = vld [vmem:[%s7 + $0x2c] sm:$0xf]
        %v1743 = vld [vmem:[%s7 + $0x30] sm:$0xf]
        %v1744 = vld [vmem:[%s7 + $0x34] sm:$0xf]
        %v1745 = vld [vmem:[%s7 + $0x38] sm:$0xf]
        %v1746 = vld [vmem:[%s7 + $0x3c] sm:$0xf]
        %v1747 = vld [vmem:[%s8] sm:$0x1]
        %v1749 = vlaneseq
        %v1750 = vshrl.u32 %v1749, 7
        %v1751 = vsub.s32 0, %v1750
        %v1752 = vrot.slane %v1747, %v1751
        %v1770 = vunpack.c.l.b16 %v1731
        %v1771 = vunpack.c.l.b16 %v1732
        %v1772 = vunpack.c.l.b16 %v1733
        %v1773 = vunpack.c.l.b16 %v1734
        %v1774 = vunpack.c.l.b16 %v1735
        %v1775 = vunpack.c.l.b16 %v1736
        %v1776 = vunpack.c.l.b16 %v1737
        %v1777 = vunpack.c.l.b16 %v1738
        %v1778 = vunpack.c.l.b16 %v1739
        %v1779 = vunpack.c.l.b16 %v1740
        %v1780 = vunpack.c.l.b16 %v1741
        %v1781 = vunpack.c.l.b16 %v1742
        %v1782 = vunpack.c.l.b16 %v1743
        %v1783 = vunpack.c.l.b16 %v1744
        %v1784 = vunpack.c.l.b16 %v1745
        %v1785 = vunpack.c.l.b16 %v1746
        %v1786 = vpack.c.b16 %v1771, %v1770
        %v1787 = vpack.c.b16 %v1773, %v1772
        %v1788 = vpack.c.b16 %v1775, %v1774
        %v1789 = vpack.c.b16 %v1777, %v1776
        %v1790 = vpack.c.b16 %v1779, %v1778
        %v1791 = vpack.c.b16 %v1781, %v1780
        %v1792 = vpack.c.b16 %v1783, %v1782
        %v1793 = vpack.c.b16 %v1785, %v1784
        %1802 = vmatprep.subr.bf16.mxu0 0
        %1803 = vmatpush1.bf16.msra.mxu0 %v1793
        %1804 = vmatprep.subr.bf16.mxu0 0
        %1805 = vmatpush1.bf16.msra.mxu0 %v1792
        %1806 = vmatprep.subr.bf16.mxu0 0
        %1807 = vmatpush1.bf16.msra.mxu0 %v1791
        %1808 = vmatprep.subr.bf16.mxu0 0
        %1809 = vmatpush1.bf16.msra.mxu0 %v1790
        %1810 = vmatprep.subr.bf16.mxu0 0
        %1811 = vmatpush1.bf16.msra.mxu0 %v1789
        %1812 = vmatprep.subr.bf16.mxu0 0
        %1813 = vmatpush1.bf16.msra.mxu0 %v1788
        %1814 = vmatprep.subr.bf16.mxu0 0
        %1815 = vmatpush1.bf16.msra.mxu0 %v1787
        %1816 = vmatprep.subr.bf16.mxu0 0
        %1817 = vmatpush1.bf16.msra.mxu0 %v1786
        %1818 = vmatprep.subr.bf16.mxu0 0
        %1819 = vmatpush2.bf16.msra.mxu0 0
        %1820 = vmatprep.subr.bf16.mxu0 0
        %1821 = vmatpush2.bf16.msra.mxu0 0
        %1822 = vmatprep.subr.bf16.mxu0 0
        %1823 = vmatpush2.bf16.msra.mxu0 0
        %1824 = vmatprep.subr.bf16.mxu0 0
        %1825 = vmatpush2.bf16.msra.mxu0 0
        %1826 = vmatprep.subr.bf16.mxu0 0
        %1827 = vmatpush2.bf16.msra.mxu0 0
        %1828 = vmatprep.subr.bf16.mxu0 0
        %1829 = vmatpush2.bf16.msra.mxu0 0
        %1830 = vmatprep.subr.bf16.mxu0 0
        %1831 = vmatpush2.bf16.msra.mxu0 0
        %1832 = vmatprep.subr.bf16.mxu0 0
        %1833 = vmatpush2.bf16.msra.mxu0 0
        %1834 = vmatprep.mubr.bf16.mxu0 0
        %1835 = vmatmul.mubr.bf16.gmra.mxu0 %v1715
        %v1836 = vpop.f32.mrf.mxu0
        %v1837 = vadd.f32 %v1752, %v1836
        %v1838 = vpop.f32.mrf.mxu0
        %v1839 = vpop.f32.mrf.mxu0
        %v1840 = vadd.f32 %v1752, %v1839
        %v1841 = vpop.f32.mrf.mxu0
        %1842 = vmatprep.mubr.bf16.mxu0 0
        %1843 = vmatmul.mubr.bf16.gmra.mxu0 %v1716
        %v1844 = vpop.f32.mrf.mxu0
        %v1845 = vadd.f32 %v1752, %v1844
        %v1846 = vpop.f32.mrf.mxu0
        %v1847 = vpop.f32.mrf.mxu0
        %v1848 = vadd.f32 %v1752, %v1847
        %v1849 = vpop.f32.mrf.mxu0
        %1850 = vmatprep.mubr.bf16.mxu0 0
        %1851 = vmatmul.mubr.bf16.gmra.mxu0 %v1717
        %v1852 = vpop.f32.mrf.mxu0
        %v1853 = vadd.f32 %v1752, %v1852
        %v1854 = vpop.f32.mrf.mxu0
        %v1855 = vpop.f32.mrf.mxu0
        %v1856 = vadd.f32 %v1752, %v1855
        %v1857 = vpop.f32.mrf.mxu0
        %1858 = vmatprep.mubr.bf16.mxu0 0
        %1859 = vmatmul.mubr.bf16.gmra.mxu0 %v1718
        %v1860 = vpop.f32.mrf.mxu0
        %v1861 = vadd.f32 %v1752, %v1860
        %v1862 = vpop.f32.mrf.mxu0
        %v1863 = vpop.f32.mrf.mxu0
        %v1864 = vadd.f32 %v1752, %v1863
        %v1865 = vpop.f32.mrf.mxu0
        %1866 = vmatprep.mubr.bf16.mxu0 0
        %1867 = vmatmul.mubr.bf16.gmra.mxu0 %v1719
        %v1868 = vpop.f32.mrf.mxu0
        %v1869 = vadd.f32 %v1752, %v1868
        %v1870 = vpop.f32.mrf.mxu0
        %v1871 = vpop.f32.mrf.mxu0
        %v1872 = vadd.f32 %v1752, %v1871
        %v1873 = vpop.f32.mrf.mxu0
        %1874 = vmatprep.mubr.bf16.mxu0 0
        %1875 = vmatmul.mubr.bf16.gmra.mxu0 %v1720
        %v1876 = vpop.f32.mrf.mxu0
        %v1877 = vadd.f32 %v1752, %v1876
        %v1878 = vpop.f32.mrf.mxu0
        %v1879 = vpop.f32.mrf.mxu0
        %v1880 = vadd.f32 %v1752, %v1879
        %v1881 = vpop.f32.mrf.mxu0
        %1882 = vmatprep.mubr.bf16.mxu0 0
        %1883 = vmatmul.mubr.bf16.gmra.mxu0 %v1721
        %v1884 = vpop.f32.mrf.mxu0
        %v1885 = vadd.f32 %v1752, %v1884
        %v1886 = vpop.f32.mrf.mxu0
        %v1887 = vpop.f32.mrf.mxu0
        %v1888 = vadd.f32 %v1752, %v1887
        %v1889 = vpop.f32.mrf.mxu0
        %1890 = vmatprep.mubr.bf16.mxu0 0
        %1891 = vmatmul.mubr.bf16.gmra.mxu0 %v1722
        %v1892 = vpop.f32.mrf.mxu0
        %v1893 = vadd.f32 %v1752, %v1892
        %v1894 = vpop.f32.mrf.mxu0
        %v1895 = vpop.f32.mrf.mxu0
        %v1896 = vadd.f32 %v1752, %v1895
        %v1897 = vpop.f32.mrf.mxu0
        %1898 = vmatprep.mubr.bf16.mxu0 0
        %1899 = vmatmul.mubr.bf16.gmra.mxu0 %v1723
        %v1900 = vpop.f32.mrf.mxu0
        %v1901 = vadd.f32 %v1752, %v1900
        %v1902 = vpop.f32.mrf.mxu0
        %v1903 = vpop.f32.mrf.mxu0
        %v1904 = vadd.f32 %v1752, %v1903
        %v1905 = vpop.f32.mrf.mxu0
        %1906 = vmatprep.mubr.bf16.mxu0 0
        %1907 = vmatmul.mubr.bf16.gmra.mxu0 %v1724
        %v1908 = vpop.f32.mrf.mxu0
        %v1909 = vadd.f32 %v1752, %v1908
        %v1910 = vpop.f32.mrf.mxu0
        %v1911 = vpop.f32.mrf.mxu0
        %v1912 = vadd.f32 %v1752, %v1911
        %v1913 = vpop.f32.mrf.mxu0
        %1914 = vmatprep.mubr.bf16.mxu0 0
        %1915 = vmatmul.mubr.bf16.gmra.mxu0 %v1725
        %v1916 = vpop.f32.mrf.mxu0
        %v1917 = vadd.f32 %v1752, %v1916
        %v1918 = vpop.f32.mrf.mxu0
        %v1919 = vpop.f32.mrf.mxu0
        %v1920 = vadd.f32 %v1752, %v1919
        %v1921 = vpop.f32.mrf.mxu0
        %1922 = vmatprep.mubr.bf16.mxu0 0
        %1923 = vmatmul.mubr.bf16.gmra.mxu0 %v1726
        %v1924 = vpop.f32.mrf.mxu0
        %v1925 = vadd.f32 %v1752, %v1924
        %v1926 = vpop.f32.mrf.mxu0
        %v1927 = vpop.f32.mrf.mxu0
        %v1928 = vadd.f32 %v1752, %v1927
        %v1929 = vpop.f32.mrf.mxu0
        %1930 = vmatprep.mubr.bf16.mxu0 0
        %1931 = vmatmul.mubr.bf16.gmra.mxu0 %v1727
        %v1932 = vpop.f32.mrf.mxu0
        %v1933 = vadd.f32 %v1752, %v1932
        %v1934 = vpop.f32.mrf.mxu0
        %v1935 = vpop.f32.mrf.mxu0
        %v1936 = vadd.f32 %v1752, %v1935
        %v1937 = vpop.f32.mrf.mxu0
        %1938 = vmatprep.mubr.bf16.mxu0 0
        %1939 = vmatmul.mubr.bf16.gmra.mxu0 %v1728
        %v1940 = vpop.f32.mrf.mxu0
        %v1941 = vadd.f32 %v1752, %v1940
        %v1942 = vpop.f32.mrf.mxu0
        %v1943 = vpop.f32.mrf.mxu0
        %v1944 = vadd.f32 %v1752, %v1943
        %v1945 = vpop.f32.mrf.mxu0
        %1946 = vmatprep.mubr.bf16.mxu0 0
        %1947 = vmatmul.mubr.bf16.gmra.mxu0 %v1729
        %v1948 = vpop.f32.mrf.mxu0
        %v1949 = vadd.f32 %v1752, %v1948
        %v1950 = vpop.f32.mrf.mxu0
        %v1951 = vpop.f32.mrf.mxu0
        %v1952 = vadd.f32 %v1752, %v1951
        %v1953 = vpop.f32.mrf.mxu0
        %1954 = vmatprep.mubr.bf16.mxu0 0
        %1955 = vmatmul.mubr.bf16.gmra.mxu0 %v1730
        %v1956 = vpop.f32.mrf.mxu0
        %v1957 = vadd.f32 %v1752, %v1956
        %v1958 = vpop.f32.mrf.mxu0
        %v1959 = vpop.f32.mrf.mxu0
        %v1960 = vadd.f32 %v1752, %v1959
        %v1961 = vpop.f32.mrf.mxu0
        %1962 = vdwg.mxu0
        %v1963 = vld [vmem:[%s617] sm:$0xff]
        %v1964 = vld [vmem:[%s617 + $0x8] sm:$0xff]
        %v1965 = vld [vmem:[%s617 + $0x10] sm:$0xff]
        %v1966 = vld [vmem:[%s617 + $0x18] sm:$0xff]
        %v1967 = vld [vmem:[%s617 + $0x20] sm:$0xff]
        %v1968 = vld [vmem:[%s617 + $0x28] sm:$0xff]
        %v1969 = vld [vmem:[%s617 + $0x30] sm:$0xff]
        %v1970 = vld [vmem:[%s617 + $0x38] sm:$0xff]
        %v1971 = vld [vmem:[%s617 + $0x40] sm:$0xff]
        %v1972 = vld [vmem:[%s617 + $0x48] sm:$0xff]
        %v1973 = vld [vmem:[%s617 + $0x50] sm:$0xff]
        %v1974 = vld [vmem:[%s617 + $0x58] sm:$0xff]
        %v1975 = vld [vmem:[%s617 + $0x60] sm:$0xff]
        %v1976 = vld [vmem:[%s617 + $0x68] sm:$0xff]
        %v1977 = vld [vmem:[%s617 + $0x70] sm:$0xff]
        %v1978 = vld [vmem:[%s617 + $0x78] sm:$0xff]
        %v1979 = vld [vmem:[%s617 + $0x80] sm:$0xff]
        %v1980 = vld [vmem:[%s617 + $0x88] sm:$0xff]
        %v1981 = vld [vmem:[%s617 + $0x90] sm:$0xff]
        %v1982 = vld [vmem:[%s617 + $0x98] sm:$0xff]
        %v1983 = vld [vmem:[%s617 + $0xa0] sm:$0xff]
        %v1984 = vld [vmem:[%s617 + $0xa8] sm:$0xff]
        %v1985 = vld [vmem:[%s617 + $0xb0] sm:$0xff]
        %v1986 = vld [vmem:[%s617 + $0xb8] sm:$0xff]
        %v1987 = vld [vmem:[%s617 + $0xc0] sm:$0xff]
        %v1988 = vld [vmem:[%s617 + $0xc8] sm:$0xff]
        %v1989 = vld [vmem:[%s617 + $0xd0] sm:$0xff]
        %v1990 = vld [vmem:[%s617 + $0xd8] sm:$0xff]
        %v1991 = vld [vmem:[%s617 + $0xe0] sm:$0xff]
        %v1992 = vld [vmem:[%s617 + $0xe8] sm:$0xff]
        %v1993 = vld [vmem:[%s617 + $0xf0] sm:$0xff]
        %v1994 = vld [vmem:[%s617 + $0xf8] sm:$0xff]
        %v1995 = vld [vmem:[%s629] sm:$0xff]
        %v1996 = vld [vmem:[%s629 + $0x8] sm:$0xff]
        %v1997 = vld [vmem:[%s629 + $0x10] sm:$0xff]
        %v1998 = vld [vmem:[%s629 + $0x18] sm:$0xff]
        %v1999 = vld [vmem:[%s629 + $0x20] sm:$0xff]
        %v2000 = vld [vmem:[%s629 + $0x28] sm:$0xff]
        %v2001 = vld [vmem:[%s629 + $0x30] sm:$0xff]
        %v2002 = vld [vmem:[%s629 + $0x38] sm:$0xff]
        %v2003 = vld [vmem:[%s629 + $0x40] sm:$0xff]
        %v2004 = vld [vmem:[%s629 + $0x48] sm:$0xff]
        %v2005 = vld [vmem:[%s629 + $0x50] sm:$0xff]
        %v2006 = vld [vmem:[%s629 + $0x58] sm:$0xff]
        %v2007 = vld [vmem:[%s629 + $0x60] sm:$0xff]
        %v2008 = vld [vmem:[%s629 + $0x68] sm:$0xff]
        %v2009 = vld [vmem:[%s629 + $0x70] sm:$0xff]
        %v2010 = vld [vmem:[%s629 + $0x78] sm:$0xff]
        %v2011 = vld [vmem:[%s629 + $0x80] sm:$0xff]
        %v2012 = vld [vmem:[%s629 + $0x88] sm:$0xff]
        %v2013 = vld [vmem:[%s629 + $0x90] sm:$0xff]
        %v2014 = vld [vmem:[%s629 + $0x98] sm:$0xff]
        %v2015 = vld [vmem:[%s629 + $0xa0] sm:$0xff]
        %v2016 = vld [vmem:[%s629 + $0xa8] sm:$0xff]
        %v2017 = vld [vmem:[%s629 + $0xb0] sm:$0xff]
        %v2018 = vld [vmem:[%s629 + $0xb8] sm:$0xff]
        %v2019 = vld [vmem:[%s629 + $0xc0] sm:$0xff]
        %v2020 = vld [vmem:[%s629 + $0xc8] sm:$0xff]
        %v2021 = vld [vmem:[%s629 + $0xd0] sm:$0xff]
        %v2022 = vld [vmem:[%s629 + $0xd8] sm:$0xff]
        %v2023 = vld [vmem:[%s629 + $0xe0] sm:$0xff]
        %v2024 = vld [vmem:[%s629 + $0xe8] sm:$0xff]
        %v2025 = vld [vmem:[%s629 + $0xf0] sm:$0xff]
        %v2026 = vld [vmem:[%s629 + $0xf8] sm:$0xff]
        %v2027 = vmul.f32 %v1963, 0.5235988
        %v2028 = vmul.f32 %v1964, 0.5235988
        %v2029 = vmul.f32 %v1965, 0.5235988
        %v2030 = vmul.f32 %v1966, 0.5235988
        %v2031 = vmul.f32 %v1967, 0.5235988
        %v2032 = vmul.f32 %v1968, 0.5235988
        %v2033 = vmul.f32 %v1969, 0.5235988
        %v2034 = vmul.f32 %v1970, 0.5235988
        %v2035 = vmul.f32 %v1971, 0.5235988
        %v2036 = vmul.f32 %v1972, 0.5235988
        %v2037 = vmul.f32 %v1973, 0.5235988
        %v2038 = vmul.f32 %v1974, 0.5235988
        %v2039 = vmul.f32 %v1975, 0.5235988
        %v2040 = vmul.f32 %v1976, 0.5235988
        %v2041 = vmul.f32 %v1977, 0.5235988
        %v2042 = vmul.f32 %v1978, 0.5235988
        %v2043 = vmul.f32 %v1979, 0.5235988
        %v2044 = vmul.f32 %v1980, 0.5235988
        %v2045 = vmul.f32 %v1981, 0.5235988
        %v2046 = vmul.f32 %v1982, 0.5235988
        %v2047 = vmul.f32 %v1983, 0.5235988
        %v2048 = vmul.f32 %v1984, 0.5235988
        %v2049 = vmul.f32 %v1985, 0.5235988
        %v2050 = vmul.f32 %v1986, 0.5235988
        %v2051 = vmul.f32 %v1987, 0.5235988
        %v2052 = vmul.f32 %v1988, 0.5235988
        %v2053 = vmul.f32 %v1989, 0.5235988
        %v2054 = vmul.f32 %v1990, 0.5235988
        %v2055 = vmul.f32 %v1991, 0.5235988
        %v2056 = vmul.f32 %v1992, 0.5235988
        %v2057 = vmul.f32 %v1993, 0.5235988
        %v2058 = vmul.f32 %v1994, 0.5235988
        %v2059 = vand.u32 2147483647, %v2027
        %vm2060 = vcmp.le.f32.partialorder %v2059, 0.7853982
        %vm2061 = vcmp.lt.s32.totalorder %v2027, 0
        %v2062 = vand.u32 %v2027, 2139095040
        %v2063 = vshrl.u32 %v2062, 23
        %v2064 = vsub.s32 %v2063, 127
        %v2065 = vand.u32 2147483647, %v2027
        %v2066 = vand.u32 %v2065, 8388607
        %v2067 = vor.u32 %v2066, 8388608
        %v2068 = vsub.s32 0, %v2067
        %v2069 = vadd.s32 %v2064, 1
        %vm2070 = vcmp.gt.s32.totalorder %v2069, 0
        %v2071 = vsel %vm2070, %v2069, 0
        %v2072 = vshrl.u32 %v2071, 5
        %v2073 = vand.u32 %v2071, 31
        %v2074 = vsub.s32 32, %v2073
        %v2075 = vshrl.u32 683565275, %v2074
        %v2076 = vshll.u32 683565275, %v2073
        %v2077 = vshrl.u32 2475754826, %v2074
        %v2078 = vor.u32 %v2076, %v2077
        %v2079 = vshll.u32 2475754826, %v2073
        %v2080 = vshrl.u32 2131351028, %v2074
        %v2081 = vor.u32 %v2079, %v2080
        %v2082 = vshll.u32 2131351028, %v2073
        %v2083 = vshrl.u32 2102212464, %v2074
        %v2084 = vor.u32 %v2082, %v2083
        %v2085 = vshll.u32 2102212464, %v2073
        %v2086 = vshrl.u32 920167782, %v2074
        %v2087 = vor.u32 %v2085, %v2086
        %v2088 = vshll.u32 920167782, %v2073
        %v2089 = vshrl.u32 1326507024, %v2074
        %v2090 = vor.u32 %v2088, %v2089
        %vm2091 = vcmp.lt.s32.totalorder %v2072, 1
        %vm2092 = vcmp.lt.s32.totalorder %v2072, 2
        %vm2093 = vcmp.lt.s32.totalorder %v2072, 3
        %vm2094 = vcmp.lt.s32.totalorder %v2072, 4
        %v2095 = vsel %vm2091, %v2075, %v2078
        %v2096 = vsel %vm2094, %v2084, 2102212464
        %v2097 = vsel %vm2093, %v2081, %v2096
        %v2098 = vsel %vm2092, %v2095, %v2097
        %v2099 = vsel %vm2091, %v2078, %v2081
        %v2100 = vsel %vm2094, %v2087, 920167782
        %v2101 = vsel %vm2093, %v2084, %v2100
        %v2102 = vsel %vm2092, %v2099, %v2101
        %v2103 = vsel %vm2091, %v2081, %v2084
        %v2104 = vsel %vm2094, %v2090, 1326507024
        %v2105 = vsel %vm2093, %v2087, %v2104
        %v2106 = vsel %vm2092, %v2103, %v2105
        %v2107 = vshll.u32 %v2067, 8
        %v2108 = vmul.u32.u64.compose %v2107, %v2106
        %v2109 = vextract.low.u32 %v2108
        %v2110 = vextract.high.u32 %v2108
        %v2111 = vmul.u32.u64.compose %v2107, %v2102
        %v2112 = vextract.low.u32 %v2111
        %v2113 = vextract.high.u32 %v2111
        %v2114 = vmul.u32 %v2107, %v2098
        %v2115 = vadd.s32 %v2110, %v2112
        %vm2116 = vc.u32 %v2110, %v2112
        %v2117 = vadd.s32 %v2113, 1
        %v2118 = vsel %vm2116, %v2117, %v2113
        %v2119 = vadd.s32 %v2114, %v2118
        %v2120 = vadd.s32 %v2119, 536870912
        %v2121 = vshrl.u32 %v2120, 30
        %v2122 = vshll.u32 %v2121, 30
        %v2123 = vsub.s32 %v2119, %v2122
        %vm2124 = vcmp.lt.s32.totalorder %v2123, 0
        %v2125 = vsub.s32 0, %v2123
        %v2126 = vsel %vm2124, %v2125, %v2123
        %v2127 = vclz %v2126
        %v2128 = vsub.s32 %v2127, 2
        %vm2129 = vcmp.gt.s32.totalorder 0, %v2128
        %v2130 = vsel %vm2129, 0, %v2128
        %v2131 = vsub.s32 32, %v2130
        %v2132 = vshll.u32 %v2123, %v2130
        %v2133 = vshrl.u32 %v2115, %v2131
        %v2134 = vor.u32 %v2132, %v2133
        %v2135 = vsub.s32 4294967266, %v2130
        %v2136 = vadd.s32 %v2135, 127
        %v2137 = vshll.u32 %v2136, 23
        %v2138 = vor.u32 4788187, %v2137
        %v2139 = vand.u32 2147483647, %v2138
        %v2141 = vcvt.s32.f32 %v2134
        %v2142 = vmul.f32 %v2141, %v2139
        %v2143 = vxor.u32 %v2142, 2147483648
        %v2144 = vsel %vm2061, %v2143, %v2142
        %v2145 = vsub.s32 4, %v2121
        %v2146 = vsel %vm2061, %v2145, %v2121
        %v2147 = vsel %vm2060, %v2027, %v2144
        %v2148 = vsel %vm2060, 0, %v2146
        %v2149 = vcosq.f32.pop %v2147
        %v2150 = vsinq.f32.pop %v2147
        %vm2151 = vweird.f32 %v2027
        %v2152 = vand.u32 %v2148, 3
        %vm2153 = vcmp.lt.s32.totalorder %v2152, 2
        %vm2154 = vcmp.eq.s32.totalorder %v2152, 0
        %v2155 = vxor.u32 %v2150, 2147483648
        %v2156 = vsel %vm2154, %v2149, %v2155
        %vm2157 = vcmp.eq.s32.totalorder %v2152, 2
        %v2158 = vxor.u32 %v2149, 2147483648
        %v2159 = vsel %vm2157, %v2158, %v2150
        %v2160 = vsel %vm2153, %v2156, %v2159
        %v2161 = vsel %vm2151, nan, %v2160
        %v2162 = vand.u32 2147483647, %v2028
        %vm2163 = vcmp.le.f32.partialorder %v2162, 0.7853982
        %vm2164 = vcmp.lt.s32.totalorder %v2028, 0
        %v2165 = vand.u32 %v2028, 2139095040
        %v2166 = vshrl.u32 %v2165, 23
        %v2167 = vsub.s32 %v2166, 127
        %v2168 = vand.u32 2147483647, %v2028
        %v2169 = vand.u32 %v2168, 8388607
        %v2170 = vor.u32 %v2169, 8388608
        %v2171 = vsub.s32 0, %v2170
        %v2172 = vadd.s32 %v2167, 1
        %vm2173 = vcmp.gt.s32.totalorder %v2172, 0
        %v2174 = vsel %vm2173, %v2172, 0
        %v2175 = vshrl.u32 %v2174, 5
        %v2176 = vand.u32 %v2174, 31
        %v2177 = vsub.s32 32, %v2176
        %v2178 = vshrl.u32 683565275, %v2177
        %v2179 = vshll.u32 683565275, %v2176
        %v2180 = vshrl.u32 2475754826, %v2177
        %v2181 = vor.u32 %v2179, %v2180
        %v2182 = vshll.u32 2475754826, %v2176
        %v2183 = vshrl.u32 2131351028, %v2177
        %v2184 = vor.u32 %v2182, %v2183
        %v2185 = vshll.u32 2131351028, %v2176
        %v2186 = vshrl.u32 2102212464, %v2177
        %v2187 = vor.u32 %v2185, %v2186
        %v2188 = vshll.u32 2102212464, %v2176
        %v2189 = vshrl.u32 920167782, %v2177
        %v2190 = vor.u32 %v2188, %v2189
        %v2191 = vshll.u32 920167782, %v2176
        %v2192 = vshrl.u32 1326507024, %v2177
        %v2193 = vor.u32 %v2191, %v2192
        %vm2194 = vcmp.lt.s32.totalorder %v2175, 1
        %vm2195 = vcmp.lt.s32.totalorder %v2175, 2
        %vm2196 = vcmp.lt.s32.totalorder %v2175, 3
        %vm2197 = vcmp.lt.s32.totalorder %v2175, 4
        %v2198 = vsel %vm2194, %v2178, %v2181
        %v2199 = vsel %vm2197, %v2187, 2102212464
        %v2200 = vsel %vm2196, %v2184, %v2199
        %v2201 = vsel %vm2195, %v2198, %v2200
        %v2202 = vsel %vm2194, %v2181, %v2184
        %v2203 = vsel %vm2197, %v2190, 920167782
        %v2204 = vsel %vm2196, %v2187, %v2203
        %v2205 = vsel %vm2195, %v2202, %v2204
        %v2206 = vsel %vm2194, %v2184, %v2187
        %v2207 = vsel %vm2197, %v2193, 1326507024
        %v2208 = vsel %vm2196, %v2190, %v2207
        %v2209 = vsel %vm2195, %v2206, %v2208
        %v2210 = vshll.u32 %v2170, 8
        %v2211 = vmul.u32.u64.compose %v2210, %v2209
        %v2212 = vextract.low.u32 %v2211
        %v2213 = vextract.high.u32 %v2211
        %v2214 = vmul.u32.u64.compose %v2210, %v2205
        %v2215 = vextract.low.u32 %v2214
        %v2216 = vextract.high.u32 %v2214
        %v2217 = vmul.u32 %v2210, %v2201
        %v2218 = vadd.s32 %v2213, %v2215
        %vm2219 = vc.u32 %v2213, %v2215
        %v2220 = vadd.s32 %v2216, 1
        %v2221 = vsel %vm2219, %v2220, %v2216
        %v2222 = vadd.s32 %v2217, %v2221
        %v2223 = vadd.s32 %v2222, 536870912
        %v2224 = vshrl.u32 %v2223, 30
        %v2225 = vshll.u32 %v2224, 30
        %v2226 = vsub.s32 %v2222, %v2225
        %vm2227 = vcmp.lt.s32.totalorder %v2226, 0
        %v2228 = vsub.s32 0, %v2226
        %v2229 = vsel %vm2227, %v2228, %v2226
        %v2230 = vclz %v2229
        %v2231 = vsub.s32 %v2230, 2
        %vm2232 = vcmp.gt.s32.totalorder 0, %v2231
        %v2233 = vsel %vm2232, 0, %v2231
        %v2234 = vsub.s32 32, %v2233
        %v2235 = vshll.u32 %v2226, %v2233
        %v2236 = vshrl.u32 %v2218, %v2234
        %v2237 = vor.u32 %v2235, %v2236
        %v2238 = vsub.s32 4294967266, %v2233
        %v2239 = vadd.s32 %v2238, 127
        %v2240 = vshll.u32 %v2239, 23
        %v2241 = vor.u32 4788187, %v2240
        %v2242 = vand.u32 2147483647, %v2241
        %v2244 = vcvt.s32.f32 %v2237
        %v2245 = vmul.f32 %v2244, %v2242
        %v2246 = vxor.u32 %v2245, 2147483648
        %v2247 = vsel %vm2164, %v2246, %v2245
        %v2248 = vsub.s32 4, %v2224
        %v2249 = vsel %vm2164, %v2248, %v2224
        %v2250 = vsel %vm2163, %v2028, %v2247
        %v2251 = vsel %vm2163, 0, %v2249
        %v2252 = vcosq.f32.pop %v2250
        %v2253 = vsinq.f32.pop %v2250
        %vm2254 = vweird.f32 %v2028
        %v2255 = vand.u32 %v2251, 3
        %vm2256 = vcmp.lt.s32.totalorder %v2255, 2
        %vm2257 = vcmp.eq.s32.totalorder %v2255, 0
        %v2258 = vxor.u32 %v2253, 2147483648
        %v2259 = vsel %vm2257, %v2252, %v2258
        %vm2260 = vcmp.eq.s32.totalorder %v2255, 2
        %v2261 = vxor.u32 %v2252, 2147483648
        %v2262 = vsel %vm2260, %v2261, %v2253
        %v2263 = vsel %vm2256, %v2259, %v2262
        %v2264 = vsel %vm2254, nan, %v2263
        %v2265 = vand.u32 2147483647, %v2029
        %vm2266 = vcmp.le.f32.partialorder %v2265, 0.7853982
        %vm2267 = vcmp.lt.s32.totalorder %v2029, 0
        %v2268 = vand.u32 %v2029, 2139095040
        %v2269 = vshrl.u32 %v2268, 23
        %v2270 = vsub.s32 %v2269, 127
        %v2271 = vand.u32 2147483647, %v2029
        %v2272 = vand.u32 %v2271, 8388607
        %v2273 = vor.u32 %v2272, 8388608
        %v2274 = vsub.s32 0, %v2273
        %v2275 = vadd.s32 %v2270, 1
        %vm2276 = vcmp.gt.s32.totalorder %v2275, 0
        %v2277 = vsel %vm2276, %v2275, 0
        %v2278 = vshrl.u32 %v2277, 5
        %v2279 = vand.u32 %v2277, 31
        %v2280 = vsub.s32 32, %v2279
        %v2281 = vshrl.u32 683565275, %v2280
        %v2282 = vshll.u32 683565275, %v2279
        %v2283 = vshrl.u32 2475754826, %v2280
        %v2284 = vor.u32 %v2282, %v2283
        %v2285 = vshll.u32 2475754826, %v2279
        %v2286 = vshrl.u32 2131351028, %v2280
        %v2287 = vor.u32 %v2285, %v2286
        %v2288 = vshll.u32 2131351028, %v2279
        %v2289 = vshrl.u32 2102212464, %v2280
        %v2290 = vor.u32 %v2288, %v2289
        %v2291 = vshll.u32 2102212464, %v2279
        %v2292 = vshrl.u32 920167782, %v2280
        %v2293 = vor.u32 %v2291, %v2292
        %v2294 = vshll.u32 920167782, %v2279
        %v2295 = vshrl.u32 1326507024, %v2280
        %v2296 = vor.u32 %v2294, %v2295
        %vm2297 = vcmp.lt.s32.totalorder %v2278, 1
        %vm2298 = vcmp.lt.s32.totalorder %v2278, 2
        %vm2299 = vcmp.lt.s32.totalorder %v2278, 3
        %vm2300 = vcmp.lt.s32.totalorder %v2278, 4
        %v2301 = vsel %vm2297, %v2281, %v2284
        %v2302 = vsel %vm2300, %v2290, 2102212464
        %v2303 = vsel %vm2299, %v2287, %v2302
        %v2304 = vsel %vm2298, %v2301, %v2303
        %v2305 = vsel %vm2297, %v2284, %v2287
        %v2306 = vsel %vm2300, %v2293, 920167782
        %v2307 = vsel %vm2299, %v2290, %v2306
        %v2308 = vsel %vm2298, %v2305, %v2307
        %v2309 = vsel %vm2297, %v2287, %v2290
        %v2310 = vsel %vm2300, %v2296, 1326507024
        %v2311 = vsel %vm2299, %v2293, %v2310
        %v2312 = vsel %vm2298, %v2309, %v2311
        %v2313 = vshll.u32 %v2273, 8
        %v2314 = vmul.u32.u64.compose %v2313, %v2312
        %v2315 = vextract.low.u32 %v2314
        %v2316 = vextract.high.u32 %v2314
        %v2317 = vmul.u32.u64.compose %v2313, %v2308
        %v2318 = vextract.low.u32 %v2317
        %v2319 = vextract.high.u32 %v2317
        %v2320 = vmul.u32 %v2313, %v2304
        %v2321 = vadd.s32 %v2316, %v2318
        %vm2322 = vc.u32 %v2316, %v2318
        %v2323 = vadd.s32 %v2319, 1
        %v2324 = vsel %vm2322, %v2323, %v2319
        %v2325 = vadd.s32 %v2320, %v2324
        %v2326 = vadd.s32 %v2325, 536870912
        %v2327 = vshrl.u32 %v2326, 30
        %v2328 = vshll.u32 %v2327, 30
        %v2329 = vsub.s32 %v2325, %v2328
        %vm2330 = vcmp.lt.s32.totalorder %v2329, 0
        %v2331 = vsub.s32 0, %v2329
        %v2332 = vsel %vm2330, %v2331, %v2329
        %v2333 = vclz %v2332
        %v2334 = vsub.s32 %v2333, 2
        %vm2335 = vcmp.gt.s32.totalorder 0, %v2334
        %v2336 = vsel %vm2335, 0, %v2334
        %v2337 = vsub.s32 32, %v2336
        %v2338 = vshll.u32 %v2329, %v2336
        %v2339 = vshrl.u32 %v2321, %v2337
        %v2340 = vor.u32 %v2338, %v2339
        %v2341 = vsub.s32 4294967266, %v2336
        %v2342 = vadd.s32 %v2341, 127
        %v2343 = vshll.u32 %v2342, 23
        %v2344 = vor.u32 4788187, %v2343
        %v2345 = vand.u32 2147483647, %v2344
        %v2347 = vcvt.s32.f32 %v2340
        %v2348 = vmul.f32 %v2347, %v2345
        %v2349 = vxor.u32 %v2348, 2147483648
        %v2350 = vsel %vm2267, %v2349, %v2348
        %v2351 = vsub.s32 4, %v2327
        %v2352 = vsel %vm2267, %v2351, %v2327
        %v2353 = vsel %vm2266, %v2029, %v2350
        %v2354 = vsel %vm2266, 0, %v2352
        %v2355 = vcosq.f32.pop %v2353
        %v2356 = vsinq.f32.pop %v2353
        %vm2357 = vweird.f32 %v2029
        %v2358 = vand.u32 %v2354, 3
        %vm2359 = vcmp.lt.s32.totalorder %v2358, 2
        %vm2360 = vcmp.eq.s32.totalorder %v2358, 0
        %v2361 = vxor.u32 %v2356, 2147483648
        %v2362 = vsel %vm2360, %v2355, %v2361
        %vm2363 = vcmp.eq.s32.totalorder %v2358, 2
        %v2364 = vxor.u32 %v2355, 2147483648
        %v2365 = vsel %vm2363, %v2364, %v2356
        %v2366 = vsel %vm2359, %v2362, %v2365
        %v2367 = vsel %vm2357, nan, %v2366
        %v2368 = vand.u32 2147483647, %v2030
        %vm2369 = vcmp.le.f32.partialorder %v2368, 0.7853982
        %vm2370 = vcmp.lt.s32.totalorder %v2030, 0
        %v2371 = vand.u32 %v2030, 2139095040
        %v2372 = vshrl.u32 %v2371, 23
        %v2373 = vsub.s32 %v2372, 127
        %v2374 = vand.u32 2147483647, %v2030
        %v2375 = vand.u32 %v2374, 8388607
        %v2376 = vor.u32 %v2375, 8388608
        %v2377 = vsub.s32 0, %v2376
        %v2378 = vadd.s32 %v2373, 1
        %vm2379 = vcmp.gt.s32.totalorder %v2378, 0
        %v2380 = vsel %vm2379, %v2378, 0
        %v2381 = vshrl.u32 %v2380, 5
        %v2382 = vand.u32 %v2380, 31
        %v2383 = vsub.s32 32, %v2382
        %v2384 = vshrl.u32 683565275, %v2383
        %v2385 = vshll.u32 683565275, %v2382
        %v2386 = vshrl.u32 2475754826, %v2383
        %v2387 = vor.u32 %v2385, %v2386
        %v2388 = vshll.u32 2475754826, %v2382
        %v2389 = vshrl.u32 2131351028, %v2383
        %v2390 = vor.u32 %v2388, %v2389
        %v2391 = vshll.u32 2131351028, %v2382
        %v2392 = vshrl.u32 2102212464, %v2383
        %v2393 = vor.u32 %v2391, %v2392
        %v2394 = vshll.u32 2102212464, %v2382
        %v2395 = vshrl.u32 920167782, %v2383
        %v2396 = vor.u32 %v2394, %v2395
        %v2397 = vshll.u32 920167782, %v2382
        %v2398 = vshrl.u32 1326507024, %v2383
        %v2399 = vor.u32 %v2397, %v2398
        %vm2400 = vcmp.lt.s32.totalorder %v2381, 1
        %vm2401 = vcmp.lt.s32.totalorder %v2381, 2
        %vm2402 = vcmp.lt.s32.totalorder %v2381, 3
        %vm2403 = vcmp.lt.s32.totalorder %v2381, 4
        %v2404 = vsel %vm2400, %v2384, %v2387
        %v2405 = vsel %vm2403, %v2393, 2102212464
        %v2406 = vsel %vm2402, %v2390, %v2405
        %v2407 = vsel %vm2401, %v2404, %v2406
        %v2408 = vsel %vm2400, %v2387, %v2390
        %v2409 = vsel %vm2403, %v2396, 920167782
        %v2410 = vsel %vm2402, %v2393, %v2409
        %v2411 = vsel %vm2401, %v2408, %v2410
        %v2412 = vsel %vm2400, %v2390, %v2393
        %v2413 = vsel %vm2403, %v2399, 1326507024
        %v2414 = vsel %vm2402, %v2396, %v2413
        %v2415 = vsel %vm2401, %v2412, %v2414
        %v2416 = vshll.u32 %v2376, 8
        %v2417 = vmul.u32.u64.compose %v2416, %v2415
        %v2418 = vextract.low.u32 %v2417
        %v2419 = vextract.high.u32 %v2417
        %v2420 = vmul.u32.u64.compose %v2416, %v2411
        %v2421 = vextract.low.u32 %v2420
        %v2422 = vextract.high.u32 %v2420
        %v2423 = vmul.u32 %v2416, %v2407
        %v2424 = vadd.s32 %v2419, %v2421
        %vm2425 = vc.u32 %v2419, %v2421
        %v2426 = vadd.s32 %v2422, 1
        %v2427 = vsel %vm2425, %v2426, %v2422
        %v2428 = vadd.s32 %v2423, %v2427
        %v2429 = vadd.s32 %v2428, 536870912
        %v2430 = vshrl.u32 %v2429, 30
        %v2431 = vshll.u32 %v2430, 30
        %v2432 = vsub.s32 %v2428, %v2431
        %vm2433 = vcmp.lt.s32.totalorder %v2432, 0
        %v2434 = vsub.s32 0, %v2432
        %v2435 = vsel %vm2433, %v2434, %v2432
        %v2436 = vclz %v2435
        %v2437 = vsub.s32 %v2436, 2
        %vm2438 = vcmp.gt.s32.totalorder 0, %v2437
        %v2439 = vsel %vm2438, 0, %v2437
        %v2440 = vsub.s32 32, %v2439
        %v2441 = vshll.u32 %v2432, %v2439
        %v2442 = vshrl.u32 %v2424, %v2440
        %v2443 = vor.u32 %v2441, %v2442
        %v2444 = vsub.s32 4294967266, %v2439
        %v2445 = vadd.s32 %v2444, 127
        %v2446 = vshll.u32 %v2445, 23
        %v2447 = vor.u32 4788187, %v2446
        %v2448 = vand.u32 2147483647, %v2447
        %v2450 = vcvt.s32.f32 %v2443
        %v2451 = vmul.f32 %v2450, %v2448
        %v2452 = vxor.u32 %v2451, 2147483648
        %v2453 = vsel %vm2370, %v2452, %v2451
        %v2454 = vsub.s32 4, %v2430
        %v2455 = vsel %vm2370, %v2454, %v2430
        %v2456 = vsel %vm2369, %v2030, %v2453
        %v2457 = vsel %vm2369, 0, %v2455
        %v2458 = vcosq.f32.pop %v2456
        %v2459 = vsinq.f32.pop %v2456
        %vm2460 = vweird.f32 %v2030
        %v2461 = vand.u32 %v2457, 3
        %vm2462 = vcmp.lt.s32.totalorder %v2461, 2
        %vm2463 = vcmp.eq.s32.totalorder %v2461, 0
        %v2464 = vxor.u32 %v2459, 2147483648
        %v2465 = vsel %vm2463, %v2458, %v2464
        %vm2466 = vcmp.eq.s32.totalorder %v2461, 2
        %v2467 = vxor.u32 %v2458, 2147483648
        %v2468 = vsel %vm2466, %v2467, %v2459
        %v2469 = vsel %vm2462, %v2465, %v2468
        %v2470 = vsel %vm2460, nan, %v2469
        %v2471 = vand.u32 2147483647, %v2031
        %vm2472 = vcmp.le.f32.partialorder %v2471, 0.7853982
        %vm2473 = vcmp.lt.s32.totalorder %v2031, 0
        %v2474 = vand.u32 %v2031, 2139095040
        %v2475 = vshrl.u32 %v2474, 23
        %v2476 = vsub.s32 %v2475, 127
        %v2477 = vand.u32 2147483647, %v2031
        %v2478 = vand.u32 %v2477, 8388607
        %v2479 = vor.u32 %v2478, 8388608
        %v2480 = vsub.s32 0, %v2479
        %v2481 = vadd.s32 %v2476, 1
        %vm2482 = vcmp.gt.s32.totalorder %v2481, 0
        %v2483 = vsel %vm2482, %v2481, 0
        %v2484 = vshrl.u32 %v2483, 5
        %v2485 = vand.u32 %v2483, 31
        %v2486 = vsub.s32 32, %v2485
        %v2487 = vshrl.u32 683565275, %v2486
        %v2488 = vshll.u32 683565275, %v2485
        %v2489 = vshrl.u32 2475754826, %v2486
        %v2490 = vor.u32 %v2488, %v2489
        %v2491 = vshll.u32 2475754826, %v2485
        %v2492 = vshrl.u32 2131351028, %v2486
        %v2493 = vor.u32 %v2491, %v2492
        %v2494 = vshll.u32 2131351028, %v2485
        %v2495 = vshrl.u32 2102212464, %v2486
        %v2496 = vor.u32 %v2494, %v2495
        %v2497 = vshll.u32 2102212464, %v2485
        %v2498 = vshrl.u32 920167782, %v2486
        %v2499 = vor.u32 %v2497, %v2498
        %v2500 = vshll.u32 920167782, %v2485
        %v2501 = vshrl.u32 1326507024, %v2486
        %v2502 = vor.u32 %v2500, %v2501
        %vm2503 = vcmp.lt.s32.totalorder %v2484, 1
        %vm2504 = vcmp.lt.s32.totalorder %v2484, 2
        %vm2505 = vcmp.lt.s32.totalorder %v2484, 3
        %vm2506 = vcmp.lt.s32.totalorder %v2484, 4
        %v2507 = vsel %vm2503, %v2487, %v2490
        %v2508 = vsel %vm2506, %v2496, 2102212464
        %v2509 = vsel %vm2505, %v2493, %v2508
        %v2510 = vsel %vm2504, %v2507, %v2509
        %v2511 = vsel %vm2503, %v2490, %v2493
        %v2512 = vsel %vm2506, %v2499, 920167782
        %v2513 = vsel %vm2505, %v2496, %v2512
        %v2514 = vsel %vm2504, %v2511, %v2513
        %v2515 = vsel %vm2503, %v2493, %v2496
        %v2516 = vsel %vm2506, %v2502, 1326507024
        %v2517 = vsel %vm2505, %v2499, %v2516
        %v2518 = vsel %vm2504, %v2515, %v2517
        %v2519 = vshll.u32 %v2479, 8
        %v2520 = vmul.u32.u64.compose %v2519, %v2518
        %v2521 = vextract.low.u32 %v2520
        %v2522 = vextract.high.u32 %v2520
        %v2523 = vmul.u32.u64.compose %v2519, %v2514
        %v2524 = vextract.low.u32 %v2523
        %v2525 = vextract.high.u32 %v2523
        %v2526 = vmul.u32 %v2519, %v2510
        %v2527 = vadd.s32 %v2522, %v2524
        %vm2528 = vc.u32 %v2522, %v2524
        %v2529 = vadd.s32 %v2525, 1
        %v2530 = vsel %vm2528, %v2529, %v2525
        %v2531 = vadd.s32 %v2526, %v2530
        %v2532 = vadd.s32 %v2531, 536870912
        %v2533 = vshrl.u32 %v2532, 30
        %v2534 = vshll.u32 %v2533, 30
        %v2535 = vsub.s32 %v2531, %v2534
        %vm2536 = vcmp.lt.s32.totalorder %v2535, 0
        %v2537 = vsub.s32 0, %v2535
        %v2538 = vsel %vm2536, %v2537, %v2535
        %v2539 = vclz %v2538
        %v2540 = vsub.s32 %v2539, 2
        %vm2541 = vcmp.gt.s32.totalorder 0, %v2540
        %v2542 = vsel %vm2541, 0, %v2540
        %v2543 = vsub.s32 32, %v2542
        %v2544 = vshll.u32 %v2535, %v2542
        %v2545 = vshrl.u32 %v2527, %v2543
        %v2546 = vor.u32 %v2544, %v2545
        %v2547 = vsub.s32 4294967266, %v2542
        %v2548 = vadd.s32 %v2547, 127
        %v2549 = vshll.u32 %v2548, 23
        %v2550 = vor.u32 4788187, %v2549
        %v2551 = vand.u32 2147483647, %v2550
        %v2553 = vcvt.s32.f32 %v2546
        %v2554 = vmul.f32 %v2553, %v2551
        %v2555 = vxor.u32 %v2554, 2147483648
        %v2556 = vsel %vm2473, %v2555, %v2554
        %v2557 = vsub.s32 4, %v2533
        %v2558 = vsel %vm2473, %v2557, %v2533
        %v2559 = vsel %vm2472, %v2031, %v2556
        %v2560 = vsel %vm2472, 0, %v2558
        %v2561 = vcosq.f32.pop %v2559
        %v2562 = vsinq.f32.pop %v2559
        %vm2563 = vweird.f32 %v2031
        %v2564 = vand.u32 %v2560, 3
        %vm2565 = vcmp.lt.s32.totalorder %v2564, 2
        %vm2566 = vcmp.eq.s32.totalorder %v2564, 0
        %v2567 = vxor.u32 %v2562, 2147483648
        %v2568 = vsel %vm2566, %v2561, %v2567
        %vm2569 = vcmp.eq.s32.totalorder %v2564, 2
        %v2570 = vxor.u32 %v2561, 2147483648
        %v2571 = vsel %vm2569, %v2570, %v2562
        %v2572 = vsel %vm2565, %v2568, %v2571
        %v2573 = vsel %vm2563, nan, %v2572
        %v2574 = vand.u32 2147483647, %v2032
        %vm2575 = vcmp.le.f32.partialorder %v2574, 0.7853982
        %vm2576 = vcmp.lt.s32.totalorder %v2032, 0
        %v2577 = vand.u32 %v2032, 2139095040
        %v2578 = vshrl.u32 %v2577, 23
        %v2579 = vsub.s32 %v2578, 127
        %v2580 = vand.u32 2147483647, %v2032
        %v2581 = vand.u32 %v2580, 8388607
        %v2582 = vor.u32 %v2581, 8388608
        %v2583 = vsub.s32 0, %v2582
        %v2584 = vadd.s32 %v2579, 1
        %vm2585 = vcmp.gt.s32.totalorder %v2584, 0
        %v2586 = vsel %vm2585, %v2584, 0
        %v2587 = vshrl.u32 %v2586, 5
        %v2588 = vand.u32 %v2586, 31
        %v2589 = vsub.s32 32, %v2588
        %v2590 = vshrl.u32 683565275, %v2589
        %v2591 = vshll.u32 683565275, %v2588
        %v2592 = vshrl.u32 2475754826, %v2589
        %v2593 = vor.u32 %v2591, %v2592
        %v2594 = vshll.u32 2475754826, %v2588
        %v2595 = vshrl.u32 2131351028, %v2589
        %v2596 = vor.u32 %v2594, %v2595
        %v2597 = vshll.u32 2131351028, %v2588
        %v2598 = vshrl.u32 2102212464, %v2589
        %v2599 = vor.u32 %v2597, %v2598
        %v2600 = vshll.u32 2102212464, %v2588
        %v2601 = vshrl.u32 920167782, %v2589
        %v2602 = vor.u32 %v2600, %v2601
        %v2603 = vshll.u32 920167782, %v2588
        %v2604 = vshrl.u32 1326507024, %v2589
        %v2605 = vor.u32 %v2603, %v2604
        %vm2606 = vcmp.lt.s32.totalorder %v2587, 1
        %vm2607 = vcmp.lt.s32.totalorder %v2587, 2
        %vm2608 = vcmp.lt.s32.totalorder %v2587, 3
        %vm2609 = vcmp.lt.s32.totalorder %v2587, 4
        %v2610 = vsel %vm2606, %v2590, %v2593
        %v2611 = vsel %vm2609, %v2599, 2102212464
        %v2612 = vsel %vm2608, %v2596, %v2611
        %v2613 = vsel %vm2607, %v2610, %v2612
        %v2614 = vsel %vm2606, %v2593, %v2596
        %v2615 = vsel %vm2609, %v2602, 920167782
        %v2616 = vsel %vm2608, %v2599, %v2615
        %v2617 = vsel %vm2607, %v2614, %v2616
        %v2618 = vsel %vm2606, %v2596, %v2599
        %v2619 = vsel %vm2609, %v2605, 1326507024
        %v2620 = vsel %vm2608, %v2602, %v2619
        %v2621 = vsel %vm2607, %v2618, %v2620
        %v2622 = vshll.u32 %v2582, 8
        %v2623 = vmul.u32.u64.compose %v2622, %v2621
        %v2624 = vextract.low.u32 %v2623
        %v2625 = vextract.high.u32 %v2623
        %v2626 = vmul.u32.u64.compose %v2622, %v2617
        %v2627 = vextract.low.u32 %v2626
        %v2628 = vextract.high.u32 %v2626
        %v2629 = vmul.u32 %v2622, %v2613
        %v2630 = vadd.s32 %v2625, %v2627
        %vm2631 = vc.u32 %v2625, %v2627
        %v2632 = vadd.s32 %v2628, 1
        %v2633 = vsel %vm2631, %v2632, %v2628
        %v2634 = vadd.s32 %v2629, %v2633
        %v2635 = vadd.s32 %v2634, 536870912
        %v2636 = vshrl.u32 %v2635, 30
        %v2637 = vshll.u32 %v2636, 30
        %v2638 = vsub.s32 %v2634, %v2637
        %vm2639 = vcmp.lt.s32.totalorder %v2638, 0
        %v2640 = vsub.s32 0, %v2638
        %v2641 = vsel %vm2639, %v2640, %v2638
        %v2642 = vclz %v2641
        %v2643 = vsub.s32 %v2642, 2
        %vm2644 = vcmp.gt.s32.totalorder 0, %v2643
        %v2645 = vsel %vm2644, 0, %v2643
        %v2646 = vsub.s32 32, %v2645
        %v2647 = vshll.u32 %v2638, %v2645
        %v2648 = vshrl.u32 %v2630, %v2646
        %v2649 = vor.u32 %v2647, %v2648
        %v2650 = vsub.s32 4294967266, %v2645
        %v2651 = vadd.s32 %v2650, 127
        %v2652 = vshll.u32 %v2651, 23
        %v2653 = vor.u32 4788187, %v2652
        %v2654 = vand.u32 2147483647, %v2653
        %v2656 = vcvt.s32.f32 %v2649
        %v2657 = vmul.f32 %v2656, %v2654
        %v2658 = vxor.u32 %v2657, 2147483648
        %v2659 = vsel %vm2576, %v2658, %v2657
        %v2660 = vsub.s32 4, %v2636
        %v2661 = vsel %vm2576, %v2660, %v2636
        %v2662 = vsel %vm2575, %v2032, %v2659
        %v2663 = vsel %vm2575, 0, %v2661
        %v2664 = vcosq.f32.pop %v2662
        %v2665 = vsinq.f32.pop %v2662
        %vm2666 = vweird.f32 %v2032
        %v2667 = vand.u32 %v2663, 3
        %vm2668 = vcmp.lt.s32.totalorder %v2667, 2
        %vm2669 = vcmp.eq.s32.totalorder %v2667, 0
        %v2670 = vxor.u32 %v2665, 2147483648
        %v2671 = vsel %vm2669, %v2664, %v2670
        %vm2672 = vcmp.eq.s32.totalorder %v2667, 2
        %v2673 = vxor.u32 %v2664, 2147483648
        %v2674 = vsel %vm2672, %v2673, %v2665
        %v2675 = vsel %vm2668, %v2671, %v2674
        %v2676 = vsel %vm2666, nan, %v2675
        %v2677 = vand.u32 2147483647, %v2033
        %vm2678 = vcmp.le.f32.partialorder %v2677, 0.7853982
        %vm2679 = vcmp.lt.s32.totalorder %v2033, 0
        %v2680 = vand.u32 %v2033, 2139095040
        %v2681 = vshrl.u32 %v2680, 23
        %v2682 = vsub.s32 %v2681, 127
        %v2683 = vand.u32 2147483647, %v2033
        %v2684 = vand.u32 %v2683, 8388607
        %v2685 = vor.u32 %v2684, 8388608
        %v2686 = vsub.s32 0, %v2685
        %v2687 = vadd.s32 %v2682, 1
        %vm2688 = vcmp.gt.s32.totalorder %v2687, 0
        %v2689 = vsel %vm2688, %v2687, 0
        %v2690 = vshrl.u32 %v2689, 5
        %v2691 = vand.u32 %v2689, 31
        %v2692 = vsub.s32 32, %v2691
        %v2693 = vshrl.u32 683565275, %v2692
        %v2694 = vshll.u32 683565275, %v2691
        %v2695 = vshrl.u32 2475754826, %v2692
        %v2696 = vor.u32 %v2694, %v2695
        %v2697 = vshll.u32 2475754826, %v2691
        %v2698 = vshrl.u32 2131351028, %v2692
        %v2699 = vor.u32 %v2697, %v2698
        %v2700 = vshll.u32 2131351028, %v2691
        %v2701 = vshrl.u32 2102212464, %v2692
        %v2702 = vor.u32 %v2700, %v2701
        %v2703 = vshll.u32 2102212464, %v2691
        %v2704 = vshrl.u32 920167782, %v2692
        %v2705 = vor.u32 %v2703, %v2704
        %v2706 = vshll.u32 920167782, %v2691
        %v2707 = vshrl.u32 1326507024, %v2692
        %v2708 = vor.u32 %v2706, %v2707
        %vm2709 = vcmp.lt.s32.totalorder %v2690, 1
        %vm2710 = vcmp.lt.s32.totalorder %v2690, 2
        %vm2711 = vcmp.lt.s32.totalorder %v2690, 3
        %vm2712 = vcmp.lt.s32.totalorder %v2690, 4
        %v2713 = vsel %vm2709, %v2693, %v2696
        %v2714 = vsel %vm2712, %v2702, 2102212464
        %v2715 = vsel %vm2711, %v2699, %v2714
        %v2716 = vsel %vm2710, %v2713, %v2715
        %v2717 = vsel %vm2709, %v2696, %v2699
        %v2718 = vsel %vm2712, %v2705, 920167782
        %v2719 = vsel %vm2711, %v2702, %v2718
        %v2720 = vsel %vm2710, %v2717, %v2719
        %v2721 = vsel %vm2709, %v2699, %v2702
        %v2722 = vsel %vm2712, %v2708, 1326507024
        %v2723 = vsel %vm2711, %v2705, %v2722
        %v2724 = vsel %vm2710, %v2721, %v2723
        %v2725 = vshll.u32 %v2685, 8
        %v2726 = vmul.u32.u64.compose %v2725, %v2724
        %v2727 = vextract.low.u32 %v2726
        %v2728 = vextract.high.u32 %v2726
        %v2729 = vmul.u32.u64.compose %v2725, %v2720
        %v2730 = vextract.low.u32 %v2729
        %v2731 = vextract.high.u32 %v2729
        %v2732 = vmul.u32 %v2725, %v2716
        %v2733 = vadd.s32 %v2728, %v2730
        %vm2734 = vc.u32 %v2728, %v2730
        %v2735 = vadd.s32 %v2731, 1
        %v2736 = vsel %vm2734, %v2735, %v2731
        %v2737 = vadd.s32 %v2732, %v2736
        %v2738 = vadd.s32 %v2737, 536870912
        %v2739 = vshrl.u32 %v2738, 30
        %v2740 = vshll.u32 %v2739, 30
        %v2741 = vsub.s32 %v2737, %v2740
        %vm2742 = vcmp.lt.s32.totalorder %v2741, 0
        %v2743 = vsub.s32 0, %v2741
        %v2744 = vsel %vm2742, %v2743, %v2741
        %v2745 = vclz %v2744
        %v2746 = vsub.s32 %v2745, 2
        %vm2747 = vcmp.gt.s32.totalorder 0, %v2746
        %v2748 = vsel %vm2747, 0, %v2746
        %v2749 = vsub.s32 32, %v2748
        %v2750 = vshll.u32 %v2741, %v2748
        %v2751 = vshrl.u32 %v2733, %v2749
        %v2752 = vor.u32 %v2750, %v2751
        %v2753 = vsub.s32 4294967266, %v2748
        %v2754 = vadd.s32 %v2753, 127
        %v2755 = vshll.u32 %v2754, 23
        %v2756 = vor.u32 4788187, %v2755
        %v2757 = vand.u32 2147483647, %v2756
        %v2759 = vcvt.s32.f32 %v2752
        %v2760 = vmul.f32 %v2759, %v2757
        %v2761 = vxor.u32 %v2760, 2147483648
        %v2762 = vsel %vm2679, %v2761, %v2760
        %v2763 = vsub.s32 4, %v2739
        %v2764 = vsel %vm2679, %v2763, %v2739
        %v2765 = vsel %vm2678, %v2033, %v2762
        %v2766 = vsel %vm2678, 0, %v2764
        %v2767 = vcosq.f32.pop %v2765
        %v2768 = vsinq.f32.pop %v2765
        %vm2769 = vweird.f32 %v2033
        %v2770 = vand.u32 %v2766, 3
        %vm2771 = vcmp.lt.s32.totalorder %v2770, 2
        %vm2772 = vcmp.eq.s32.totalorder %v2770, 0
        %v2773 = vxor.u32 %v2768, 2147483648
        %v2774 = vsel %vm2772, %v2767, %v2773
        %vm2775 = vcmp.eq.s32.totalorder %v2770, 2
        %v2776 = vxor.u32 %v2767, 2147483648
        %v2777 = vsel %vm2775, %v2776, %v2768
        %v2778 = vsel %vm2771, %v2774, %v2777
        %v2779 = vsel %vm2769, nan, %v2778
        %v2780 = vand.u32 2147483647, %v2034
        %vm2781 = vcmp.le.f32.partialorder %v2780, 0.7853982
        %vm2782 = vcmp.lt.s32.totalorder %v2034, 0
        %v2783 = vand.u32 %v2034, 2139095040
        %v2784 = vshrl.u32 %v2783, 23
        %v2785 = vsub.s32 %v2784, 127
        %v2786 = vand.u32 2147483647, %v2034
        %v2787 = vand.u32 %v2786, 8388607
        %v2788 = vor.u32 %v2787, 8388608
        %v2789 = vsub.s32 0, %v2788
        %v2790 = vadd.s32 %v2785, 1
        %vm2791 = vcmp.gt.s32.totalorder %v2790, 0
        %v2792 = vsel %vm2791, %v2790, 0
        %v2793 = vshrl.u32 %v2792, 5
        %v2794 = vand.u32 %v2792, 31
        %v2795 = vsub.s32 32, %v2794
        %v2796 = vshrl.u32 683565275, %v2795
        %v2797 = vshll.u32 683565275, %v2794
        %v2798 = vshrl.u32 2475754826, %v2795
        %v2799 = vor.u32 %v2797, %v2798
        %v2800 = vshll.u32 2475754826, %v2794
        %v2801 = vshrl.u32 2131351028, %v2795
        %v2802 = vor.u32 %v2800, %v2801
        %v2803 = vshll.u32 2131351028, %v2794
        %v2804 = vshrl.u32 2102212464, %v2795
        %v2805 = vor.u32 %v2803, %v2804
        %v2806 = vshll.u32 2102212464, %v2794
        %v2807 = vshrl.u32 920167782, %v2795
        %v2808 = vor.u32 %v2806, %v2807
        %v2809 = vshll.u32 920167782, %v2794
        %v2810 = vshrl.u32 1326507024, %v2795
        %v2811 = vor.u32 %v2809, %v2810
        %vm2812 = vcmp.lt.s32.totalorder %v2793, 1
        %vm2813 = vcmp.lt.s32.totalorder %v2793, 2
        %vm2814 = vcmp.lt.s32.totalorder %v2793, 3
        %vm2815 = vcmp.lt.s32.totalorder %v2793, 4
        %v2816 = vsel %vm2812, %v2796, %v2799
        %v2817 = vsel %vm2815, %v2805, 2102212464
        %v2818 = vsel %vm2814, %v2802, %v2817
        %v2819 = vsel %vm2813, %v2816, %v2818
        %v2820 = vsel %vm2812, %v2799, %v2802
        %v2821 = vsel %vm2815, %v2808, 920167782
        %v2822 = vsel %vm2814, %v2805, %v2821
        %v2823 = vsel %vm2813, %v2820, %v2822
        %v2824 = vsel %vm2812, %v2802, %v2805
        %v2825 = vsel %vm2815, %v2811, 1326507024
        %v2826 = vsel %vm2814, %v2808, %v2825
        %v2827 = vsel %vm2813, %v2824, %v2826
        %v2828 = vshll.u32 %v2788, 8
        %v2829 = vmul.u32.u64.compose %v2828, %v2827
        %v2830 = vextract.low.u32 %v2829
        %v2831 = vextract.high.u32 %v2829
        %v2832 = vmul.u32.u64.compose %v2828, %v2823
        %v2833 = vextract.low.u32 %v2832
        %v2834 = vextract.high.u32 %v2832
        %v2835 = vmul.u32 %v2828, %v2819
        %v2836 = vadd.s32 %v2831, %v2833
        %vm2837 = vc.u32 %v2831, %v2833
        %v2838 = vadd.s32 %v2834, 1
        %v2839 = vsel %vm2837, %v2838, %v2834
        %v2840 = vadd.s32 %v2835, %v2839
        %v2841 = vadd.s32 %v2840, 536870912
        %v2842 = vshrl.u32 %v2841, 30
        %v2843 = vshll.u32 %v2842, 30
        %v2844 = vsub.s32 %v2840, %v2843
        %vm2845 = vcmp.lt.s32.totalorder %v2844, 0
        %v2846 = vsub.s32 0, %v2844
        %v2847 = vsel %vm2845, %v2846, %v2844
        %v2848 = vclz %v2847
        %v2849 = vsub.s32 %v2848, 2
        %vm2850 = vcmp.gt.s32.totalorder 0, %v2849
        %v2851 = vsel %vm2850, 0, %v2849
        %v2852 = vsub.s32 32, %v2851
        %v2853 = vshll.u32 %v2844, %v2851
        %v2854 = vshrl.u32 %v2836, %v2852
        %v2855 = vor.u32 %v2853, %v2854
        %v2856 = vsub.s32 4294967266, %v2851
        %v2857 = vadd.s32 %v2856, 127
        %v2858 = vshll.u32 %v2857, 23
        %v2859 = vor.u32 4788187, %v2858
        %v2860 = vand.u32 2147483647, %v2859
        %v2862 = vcvt.s32.f32 %v2855
        %v2863 = vmul.f32 %v2862, %v2860
        %v2864 = vxor.u32 %v2863, 2147483648
        %v2865 = vsel %vm2782, %v2864, %v2863
        %v2866 = vsub.s32 4, %v2842
        %v2867 = vsel %vm2782, %v2866, %v2842
        %v2868 = vsel %vm2781, %v2034, %v2865
        %v2869 = vsel %vm2781, 0, %v2867
        %v2870 = vcosq.f32.pop %v2868
        %v2871 = vsinq.f32.pop %v2868
        %vm2872 = vweird.f32 %v2034
        %v2873 = vand.u32 %v2869, 3
        %vm2874 = vcmp.lt.s32.totalorder %v2873, 2
        %vm2875 = vcmp.eq.s32.totalorder %v2873, 0
        %v2876 = vxor.u32 %v2871, 2147483648
        %v2877 = vsel %vm2875, %v2870, %v2876
        %vm2878 = vcmp.eq.s32.totalorder %v2873, 2
        %v2879 = vxor.u32 %v2870, 2147483648
        %v2880 = vsel %vm2878, %v2879, %v2871
        %v2881 = vsel %vm2874, %v2877, %v2880
        %v2882 = vsel %vm2872, nan, %v2881
        %v2883 = vand.u32 2147483647, %v2035
        %vm2884 = vcmp.le.f32.partialorder %v2883, 0.7853982
        %vm2885 = vcmp.lt.s32.totalorder %v2035, 0
        %v2886 = vand.u32 %v2035, 2139095040
        %v2887 = vshrl.u32 %v2886, 23
        %v2888 = vsub.s32 %v2887, 127
        %v2889 = vand.u32 2147483647, %v2035
        %v2890 = vand.u32 %v2889, 8388607
        %v2891 = vor.u32 %v2890, 8388608
        %v2892 = vsub.s32 0, %v2891
        %v2893 = vadd.s32 %v2888, 1
        %vm2894 = vcmp.gt.s32.totalorder %v2893, 0
        %v2895 = vsel %vm2894, %v2893, 0
        %v2896 = vshrl.u32 %v2895, 5
        %v2897 = vand.u32 %v2895, 31
        %v2898 = vsub.s32 32, %v2897
        %v2899 = vshrl.u32 683565275, %v2898
        %v2900 = vshll.u32 683565275, %v2897
        %v2901 = vshrl.u32 2475754826, %v2898
        %v2902 = vor.u32 %v2900, %v2901
        %v2903 = vshll.u32 2475754826, %v2897
        %v2904 = vshrl.u32 2131351028, %v2898
        %v2905 = vor.u32 %v2903, %v2904
        %v2906 = vshll.u32 2131351028, %v2897
        %v2907 = vshrl.u32 2102212464, %v2898
        %v2908 = vor.u32 %v2906, %v2907
        %v2909 = vshll.u32 2102212464, %v2897
        %v2910 = vshrl.u32 920167782, %v2898
        %v2911 = vor.u32 %v2909, %v2910
        %v2912 = vshll.u32 920167782, %v2897
        %v2913 = vshrl.u32 1326507024, %v2898
        %v2914 = vor.u32 %v2912, %v2913
        %vm2915 = vcmp.lt.s32.totalorder %v2896, 1
        %vm2916 = vcmp.lt.s32.totalorder %v2896, 2
        %vm2917 = vcmp.lt.s32.totalorder %v2896, 3
        %vm2918 = vcmp.lt.s32.totalorder %v2896, 4
        %v2919 = vsel %vm2915, %v2899, %v2902
        %v2920 = vsel %vm2918, %v2908, 2102212464
        %v2921 = vsel %vm2917, %v2905, %v2920
        %v2922 = vsel %vm2916, %v2919, %v2921
        %v2923 = vsel %vm2915, %v2902, %v2905
        %v2924 = vsel %vm2918, %v2911, 920167782
        %v2925 = vsel %vm2917, %v2908, %v2924
        %v2926 = vsel %vm2916, %v2923, %v2925
        %v2927 = vsel %vm2915, %v2905, %v2908
        %v2928 = vsel %vm2918, %v2914, 1326507024
        %v2929 = vsel %vm2917, %v2911, %v2928
        %v2930 = vsel %vm2916, %v2927, %v2929
        %v2931 = vshll.u32 %v2891, 8
        %v2932 = vmul.u32.u64.compose %v2931, %v2930
        %v2933 = vextract.low.u32 %v2932
        %v2934 = vextract.high.u32 %v2932
        %v2935 = vmul.u32.u64.compose %v2931, %v2926
        %v2936 = vextract.low.u32 %v2935
        %v2937 = vextract.high.u32 %v2935
        %v2938 = vmul.u32 %v2931, %v2922
        %v2939 = vadd.s32 %v2934, %v2936
        %vm2940 = vc.u32 %v2934, %v2936
        %v2941 = vadd.s32 %v2937, 1
        %v2942 = vsel %vm2940, %v2941, %v2937
        %v2943 = vadd.s32 %v2938, %v2942
        %v2944 = vadd.s32 %v2943, 536870912
        %v2945 = vshrl.u32 %v2944, 30
        %v2946 = vshll.u32 %v2945, 30
        %v2947 = vsub.s32 %v2943, %v2946
        %vm2948 = vcmp.lt.s32.totalorder %v2947, 0
        %v2949 = vsub.s32 0, %v2947
        %v2950 = vsel %vm2948, %v2949, %v2947
        %v2951 = vclz %v2950
        %v2952 = vsub.s32 %v2951, 2
        %vm2953 = vcmp.gt.s32.totalorder 0, %v2952
        %v2954 = vsel %vm2953, 0, %v2952
        %v2955 = vsub.s32 32, %v2954
        %v2956 = vshll.u32 %v2947, %v2954
        %v2957 = vshrl.u32 %v2939, %v2955
        %v2958 = vor.u32 %v2956, %v2957
        %v2959 = vsub.s32 4294967266, %v2954
        %v2960 = vadd.s32 %v2959, 127
        %v2961 = vshll.u32 %v2960, 23
        %v2962 = vor.u32 4788187, %v2961
        %v2963 = vand.u32 2147483647, %v2962
        %v2965 = vcvt.s32.f32 %v2958
        %v2966 = vmul.f32 %v2965, %v2963
        %v2967 = vxor.u32 %v2966, 2147483648
        %v2968 = vsel %vm2885, %v2967, %v2966
        %v2969 = vsub.s32 4, %v2945
        %v2970 = vsel %vm2885, %v2969, %v2945
        %v2971 = vsel %vm2884, %v2035, %v2968
        %v2972 = vsel %vm2884, 0, %v2970
        %v2973 = vcosq.f32.pop %v2971
        %v2974 = vsinq.f32.pop %v2971
        %vm2975 = vweird.f32 %v2035
        %v2976 = vand.u32 %v2972, 3
        %vm2977 = vcmp.lt.s32.totalorder %v2976, 2
        %vm2978 = vcmp.eq.s32.totalorder %v2976, 0
        %v2979 = vxor.u32 %v2974, 2147483648
        %v2980 = vsel %vm2978, %v2973, %v2979
        %vm2981 = vcmp.eq.s32.totalorder %v2976, 2
        %v2982 = vxor.u32 %v2973, 2147483648
        %v2983 = vsel %vm2981, %v2982, %v2974
        %v2984 = vsel %vm2977, %v2980, %v2983
        %v2985 = vsel %vm2975, nan, %v2984
        %v2986 = vand.u32 2147483647, %v2036
        %vm2987 = vcmp.le.f32.partialorder %v2986, 0.7853982
        %vm2988 = vcmp.lt.s32.totalorder %v2036, 0
        %v2989 = vand.u32 %v2036, 2139095040
        %v2990 = vshrl.u32 %v2989, 23
        %v2991 = vsub.s32 %v2990, 127
        %v2992 = vand.u32 2147483647, %v2036
        %v2993 = vand.u32 %v2992, 8388607
        %v2994 = vor.u32 %v2993, 8388608
        %v2995 = vsub.s32 0, %v2994
        %v2996 = vadd.s32 %v2991, 1
        %vm2997 = vcmp.gt.s32.totalorder %v2996, 0
        %v2998 = vsel %vm2997, %v2996, 0
        %v2999 = vshrl.u32 %v2998, 5
        %v3000 = vand.u32 %v2998, 31
        %v3001 = vsub.s32 32, %v3000
        %v3002 = vshrl.u32 683565275, %v3001
        %v3003 = vshll.u32 683565275, %v3000
        %v3004 = vshrl.u32 2475754826, %v3001
        %v3005 = vor.u32 %v3003, %v3004
        %v3006 = vshll.u32 2475754826, %v3000
        %v3007 = vshrl.u32 2131351028, %v3001
        %v3008 = vor.u32 %v3006, %v3007
        %v3009 = vshll.u32 2131351028, %v3000
        %v3010 = vshrl.u32 2102212464, %v3001
        %v3011 = vor.u32 %v3009, %v3010
        %v3012 = vshll.u32 2102212464, %v3000
        %v3013 = vshrl.u32 920167782, %v3001
        %v3014 = vor.u32 %v3012, %v3013
        %v3015 = vshll.u32 920167782, %v3000
        %v3016 = vshrl.u32 1326507024, %v3001
        %v3017 = vor.u32 %v3015, %v3016
        %vm3018 = vcmp.lt.s32.totalorder %v2999, 1
        %vm3019 = vcmp.lt.s32.totalorder %v2999, 2
        %vm3020 = vcmp.lt.s32.totalorder %v2999, 3
        %vm3021 = vcmp.lt.s32.totalorder %v2999, 4
        %v3022 = vsel %vm3018, %v3002, %v3005
        %v3023 = vsel %vm3021, %v3011, 2102212464
        %v3024 = vsel %vm3020, %v3008, %v3023
        %v3025 = vsel %vm3019, %v3022, %v3024
        %v3026 = vsel %vm3018, %v3005, %v3008
        %v3027 = vsel %vm3021, %v3014, 920167782
        %v3028 = vsel %vm3020, %v3011, %v3027
        %v3029 = vsel %vm3019, %v3026, %v3028
        %v3030 = vsel %vm3018, %v3008, %v3011
        %v3031 = vsel %vm3021, %v3017, 1326507024
        %v3032 = vsel %vm3020, %v3014, %v3031
        %v3033 = vsel %vm3019, %v3030, %v3032
        %v3034 = vshll.u32 %v2994, 8
        %v3035 = vmul.u32.u64.compose %v3034, %v3033
        %v3036 = vextract.low.u32 %v3035
        %v3037 = vextract.high.u32 %v3035
        %v3038 = vmul.u32.u64.compose %v3034, %v3029
        %v3039 = vextract.low.u32 %v3038
        %v3040 = vextract.high.u32 %v3038
        %v3041 = vmul.u32 %v3034, %v3025
        %v3042 = vadd.s32 %v3037, %v3039
        %vm3043 = vc.u32 %v3037, %v3039
        %v3044 = vadd.s32 %v3040, 1
        %v3045 = vsel %vm3043, %v3044, %v3040
        %v3046 = vadd.s32 %v3041, %v3045
        %v3047 = vadd.s32 %v3046, 536870912
        %v3048 = vshrl.u32 %v3047, 30
        %v3049 = vshll.u32 %v3048, 30
        %v3050 = vsub.s32 %v3046, %v3049
        %vm3051 = vcmp.lt.s32.totalorder %v3050, 0
        %v3052 = vsub.s32 0, %v3050
        %v3053 = vsel %vm3051, %v3052, %v3050
        %v3054 = vclz %v3053
        %v3055 = vsub.s32 %v3054, 2
        %vm3056 = vcmp.gt.s32.totalorder 0, %v3055
        %v3057 = vsel %vm3056, 0, %v3055
        %v3058 = vsub.s32 32, %v3057
        %v3059 = vshll.u32 %v3050, %v3057
        %v3060 = vshrl.u32 %v3042, %v3058
        %v3061 = vor.u32 %v3059, %v3060
        %v3062 = vsub.s32 4294967266, %v3057
        %v3063 = vadd.s32 %v3062, 127
        %v3064 = vshll.u32 %v3063, 23
        %v3065 = vor.u32 4788187, %v3064
        %v3066 = vand.u32 2147483647, %v3065
        %v3068 = vcvt.s32.f32 %v3061
        %v3069 = vmul.f32 %v3068, %v3066
        %v3070 = vxor.u32 %v3069, 2147483648
        %v3071 = vsel %vm2988, %v3070, %v3069
        %v3072 = vsub.s32 4, %v3048
        %v3073 = vsel %vm2988, %v3072, %v3048
        %v3074 = vsel %vm2987, %v2036, %v3071
        %v3075 = vsel %vm2987, 0, %v3073
        %v3076 = vcosq.f32.pop %v3074
        %v3077 = vsinq.f32.pop %v3074
        %vm3078 = vweird.f32 %v2036
        %v3079 = vand.u32 %v3075, 3
        %vm3080 = vcmp.lt.s32.totalorder %v3079, 2
        %vm3081 = vcmp.eq.s32.totalorder %v3079, 0
        %v3082 = vxor.u32 %v3077, 2147483648
        %v3083 = vsel %vm3081, %v3076, %v3082
        %vm3084 = vcmp.eq.s32.totalorder %v3079, 2
        %v3085 = vxor.u32 %v3076, 2147483648
        %v3086 = vsel %vm3084, %v3085, %v3077
        %v3087 = vsel %vm3080, %v3083, %v3086
        %v3088 = vsel %vm3078, nan, %v3087
        %v3089 = vand.u32 2147483647, %v2037
        %vm3090 = vcmp.le.f32.partialorder %v3089, 0.7853982
        %vm3091 = vcmp.lt.s32.totalorder %v2037, 0
        %v3092 = vand.u32 %v2037, 2139095040
        %v3093 = vshrl.u32 %v3092, 23
        %v3094 = vsub.s32 %v3093, 127
        %v3095 = vand.u32 2147483647, %v2037
        %v3096 = vand.u32 %v3095, 8388607
        %v3097 = vor.u32 %v3096, 8388608
        %v3098 = vsub.s32 0, %v3097
        %v3099 = vadd.s32 %v3094, 1
        %vm3100 = vcmp.gt.s32.totalorder %v3099, 0
        %v3101 = vsel %vm3100, %v3099, 0
        %v3102 = vshrl.u32 %v3101, 5
        %v3103 = vand.u32 %v3101, 31
        %v3104 = vsub.s32 32, %v3103
        %v3105 = vshrl.u32 683565275, %v3104
        %v3106 = vshll.u32 683565275, %v3103
        %v3107 = vshrl.u32 2475754826, %v3104
        %v3108 = vor.u32 %v3106, %v3107
        %v3109 = vshll.u32 2475754826, %v3103
        %v3110 = vshrl.u32 2131351028, %v3104
        %v3111 = vor.u32 %v3109, %v3110
        %v3112 = vshll.u32 2131351028, %v3103
        %v3113 = vshrl.u32 2102212464, %v3104
        %v3114 = vor.u32 %v3112, %v3113
        %v3115 = vshll.u32 2102212464, %v3103
        %v3116 = vshrl.u32 920167782, %v3104
        %v3117 = vor.u32 %v3115, %v3116
        %v3118 = vshll.u32 920167782, %v3103
        %v3119 = vshrl.u32 1326507024, %v3104
        %v3120 = vor.u32 %v3118, %v3119
        %vm3121 = vcmp.lt.s32.totalorder %v3102, 1
        %vm3122 = vcmp.lt.s32.totalorder %v3102, 2
        %vm3123 = vcmp.lt.s32.totalorder %v3102, 3
        %vm3124 = vcmp.lt.s32.totalorder %v3102, 4
        %v3125 = vsel %vm3121, %v3105, %v3108
        %v3126 = vsel %vm3124, %v3114, 2102212464
        %v3127 = vsel %vm3123, %v3111, %v3126
        %v3128 = vsel %vm3122, %v3125, %v3127
        %v3129 = vsel %vm3121, %v3108, %v3111
        %v3130 = vsel %vm3124, %v3117, 920167782
        %v3131 = vsel %vm3123, %v3114, %v3130
        %v3132 = vsel %vm3122, %v3129, %v3131
        %v3133 = vsel %vm3121, %v3111, %v3114
        %v3134 = vsel %vm3124, %v3120, 1326507024
        %v3135 = vsel %vm3123, %v3117, %v3134
        %v3136 = vsel %vm3122, %v3133, %v3135
        %v3137 = vshll.u32 %v3097, 8
        %v3138 = vmul.u32.u64.compose %v3137, %v3136
        %v3139 = vextract.low.u32 %v3138
        %v3140 = vextract.high.u32 %v3138
        %v3141 = vmul.u32.u64.compose %v3137, %v3132
        %v3142 = vextract.low.u32 %v3141
        %v3143 = vextract.high.u32 %v3141
        %v3144 = vmul.u32 %v3137, %v3128
        %v3145 = vadd.s32 %v3140, %v3142
        %vm3146 = vc.u32 %v3140, %v3142
        %v3147 = vadd.s32 %v3143, 1
        %v3148 = vsel %vm3146, %v3147, %v3143
        %v3149 = vadd.s32 %v3144, %v3148
        %v3150 = vadd.s32 %v3149, 536870912
        %v3151 = vshrl.u32 %v3150, 30
        %v3152 = vshll.u32 %v3151, 30
        %v3153 = vsub.s32 %v3149, %v3152
        %vm3154 = vcmp.lt.s32.totalorder %v3153, 0
        %v3155 = vsub.s32 0, %v3153
        %v3156 = vsel %vm3154, %v3155, %v3153
        %v3157 = vclz %v3156
        %v3158 = vsub.s32 %v3157, 2
        %vm3159 = vcmp.gt.s32.totalorder 0, %v3158
        %v3160 = vsel %vm3159, 0, %v3158
        %v3161 = vsub.s32 32, %v3160
        %v3162 = vshll.u32 %v3153, %v3160
        %v3163 = vshrl.u32 %v3145, %v3161
        %v3164 = vor.u32 %v3162, %v3163
        %v3165 = vsub.s32 4294967266, %v3160
        %v3166 = vadd.s32 %v3165, 127
        %v3167 = vshll.u32 %v3166, 23
        %v3168 = vor.u32 4788187, %v3167
        %v3169 = vand.u32 2147483647, %v3168
        %v3171 = vcvt.s32.f32 %v3164
        %v3172 = vmul.f32 %v3171, %v3169
        %v3173 = vxor.u32 %v3172, 2147483648
        %v3174 = vsel %vm3091, %v3173, %v3172
        %v3175 = vsub.s32 4, %v3151
        %v3176 = vsel %vm3091, %v3175, %v3151
        %v3177 = vsel %vm3090, %v2037, %v3174
        %v3178 = vsel %vm3090, 0, %v3176
        %v3179 = vcosq.f32.pop %v3177
        %v3180 = vsinq.f32.pop %v3177
        %vm3181 = vweird.f32 %v2037
        %v3182 = vand.u32 %v3178, 3
        %vm3183 = vcmp.lt.s32.totalorder %v3182, 2
        %vm3184 = vcmp.eq.s32.totalorder %v3182, 0
        %v3185 = vxor.u32 %v3180, 2147483648
        %v3186 = vsel %vm3184, %v3179, %v3185
        %vm3187 = vcmp.eq.s32.totalorder %v3182, 2
        %v3188 = vxor.u32 %v3179, 2147483648
        %v3189 = vsel %vm3187, %v3188, %v3180
        %v3190 = vsel %vm3183, %v3186, %v3189
        %v3191 = vsel %vm3181, nan, %v3190
        %v3192 = vand.u32 2147483647, %v2038
        %vm3193 = vcmp.le.f32.partialorder %v3192, 0.7853982
        %vm3194 = vcmp.lt.s32.totalorder %v2038, 0
        %v3195 = vand.u32 %v2038, 2139095040
        %v3196 = vshrl.u32 %v3195, 23
        %v3197 = vsub.s32 %v3196, 127
        %v3198 = vand.u32 2147483647, %v2038
        %v3199 = vand.u32 %v3198, 8388607
        %v3200 = vor.u32 %v3199, 8388608
        %v3201 = vsub.s32 0, %v3200
        %v3202 = vadd.s32 %v3197, 1
        %vm3203 = vcmp.gt.s32.totalorder %v3202, 0
        %v3204 = vsel %vm3203, %v3202, 0
        %v3205 = vshrl.u32 %v3204, 5
        %v3206 = vand.u32 %v3204, 31
        %v3207 = vsub.s32 32, %v3206
        %v3208 = vshrl.u32 683565275, %v3207
        %v3209 = vshll.u32 683565275, %v3206
        %v3210 = vshrl.u32 2475754826, %v3207
        %v3211 = vor.u32 %v3209, %v3210
        %v3212 = vshll.u32 2475754826, %v3206
        %v3213 = vshrl.u32 2131351028, %v3207
        %v3214 = vor.u32 %v3212, %v3213
        %v3215 = vshll.u32 2131351028, %v3206
        %v3216 = vshrl.u32 2102212464, %v3207
        %v3217 = vor.u32 %v3215, %v3216
        %v3218 = vshll.u32 2102212464, %v3206
        %v3219 = vshrl.u32 920167782, %v3207
        %v3220 = vor.u32 %v3218, %v3219
        %v3221 = vshll.u32 920167782, %v3206
        %v3222 = vshrl.u32 1326507024, %v3207
        %v3223 = vor.u32 %v3221, %v3222
        %vm3224 = vcmp.lt.s32.totalorder %v3205, 1
        %vm3225 = vcmp.lt.s32.totalorder %v3205, 2
        %vm3226 = vcmp.lt.s32.totalorder %v3205, 3
        %vm3227 = vcmp.lt.s32.totalorder %v3205, 4
        %v3228 = vsel %vm3224, %v3208, %v3211
        %v3229 = vsel %vm3227, %v3217, 2102212464
        %v3230 = vsel %vm3226, %v3214, %v3229
        %v3231 = vsel %vm3225, %v3228, %v3230
        %v3232 = vsel %vm3224, %v3211, %v3214
        %v3233 = vsel %vm3227, %v3220, 920167782
        %v3234 = vsel %vm3226, %v3217, %v3233
        %v3235 = vsel %vm3225, %v3232, %v3234
        %v3236 = vsel %vm3224, %v3214, %v3217
        %v3237 = vsel %vm3227, %v3223, 1326507024
        %v3238 = vsel %vm3226, %v3220, %v3237
        %v3239 = vsel %vm3225, %v3236, %v3238
        %v3240 = vshll.u32 %v3200, 8
        %v3241 = vmul.u32.u64.compose %v3240, %v3239
        %v3242 = vextract.low.u32 %v3241
        %v3243 = vextract.high.u32 %v3241
        %v3244 = vmul.u32.u64.compose %v3240, %v3235
        %v3245 = vextract.low.u32 %v3244
        %v3246 = vextract.high.u32 %v3244
        %v3247 = vmul.u32 %v3240, %v3231
        %v3248 = vadd.s32 %v3243, %v3245
        %vm3249 = vc.u32 %v3243, %v3245
        %v3250 = vadd.s32 %v3246, 1
        %v3251 = vsel %vm3249, %v3250, %v3246
        %v3252 = vadd.s32 %v3247, %v3251
        %v3253 = vadd.s32 %v3252, 536870912
        %v3254 = vshrl.u32 %v3253, 30
        %v3255 = vshll.u32 %v3254, 30
        %v3256 = vsub.s32 %v3252, %v3255
        %vm3257 = vcmp.lt.s32.totalorder %v3256, 0
        %v3258 = vsub.s32 0, %v3256
        %v3259 = vsel %vm3257, %v3258, %v3256
        %v3260 = vclz %v3259
        %v3261 = vsub.s32 %v3260, 2
        %vm3262 = vcmp.gt.s32.totalorder 0, %v3261
        %v3263 = vsel %vm3262, 0, %v3261
        %v3264 = vsub.s32 32, %v3263
        %v3265 = vshll.u32 %v3256, %v3263
        %v3266 = vshrl.u32 %v3248, %v3264
        %v3267 = vor.u32 %v3265, %v3266
        %v3268 = vsub.s32 4294967266, %v3263
        %v3269 = vadd.s32 %v3268, 127
        %v3270 = vshll.u32 %v3269, 23
        %v3271 = vor.u32 4788187, %v3270
        %v3272 = vand.u32 2147483647, %v3271
        %v3274 = vcvt.s32.f32 %v3267
        %v3275 = vmul.f32 %v3274, %v3272
        %v3276 = vxor.u32 %v3275, 2147483648
        %v3277 = vsel %vm3194, %v3276, %v3275
        %v3278 = vsub.s32 4, %v3254
        %v3279 = vsel %vm3194, %v3278, %v3254
        %v3280 = vsel %vm3193, %v2038, %v3277
        %v3281 = vsel %vm3193, 0, %v3279
        %v3282 = vcosq.f32.pop %v3280
        %v3283 = vsinq.f32.pop %v3280
        %vm3284 = vweird.f32 %v2038
        %v3285 = vand.u32 %v3281, 3
        %vm3286 = vcmp.lt.s32.totalorder %v3285, 2
        %vm3287 = vcmp.eq.s32.totalorder %v3285, 0
        %v3288 = vxor.u32 %v3283, 2147483648
        %v3289 = vsel %vm3287, %v3282, %v3288
        %vm3290 = vcmp.eq.s32.totalorder %v3285, 2
        %v3291 = vxor.u32 %v3282, 2147483648
        %v3292 = vsel %vm3290, %v3291, %v3283
        %v3293 = vsel %vm3286, %v3289, %v3292
        %v3294 = vsel %vm3284, nan, %v3293
        %v3295 = vand.u32 2147483647, %v2039
        %vm3296 = vcmp.le.f32.partialorder %v3295, 0.7853982
        %vm3297 = vcmp.lt.s32.totalorder %v2039, 0
        %v3298 = vand.u32 %v2039, 2139095040
        %v3299 = vshrl.u32 %v3298, 23
        %v3300 = vsub.s32 %v3299, 127
        %v3301 = vand.u32 2147483647, %v2039
        %v3302 = vand.u32 %v3301, 8388607
        %v3303 = vor.u32 %v3302, 8388608
        %v3304 = vsub.s32 0, %v3303
        %v3305 = vadd.s32 %v3300, 1
        %vm3306 = vcmp.gt.s32.totalorder %v3305, 0
        %v3307 = vsel %vm3306, %v3305, 0
        %v3308 = vshrl.u32 %v3307, 5
        %v3309 = vand.u32 %v3307, 31
        %v3310 = vsub.s32 32, %v3309
        %v3311 = vshrl.u32 683565275, %v3310
        %v3312 = vshll.u32 683565275, %v3309
        %v3313 = vshrl.u32 2475754826, %v3310
        %v3314 = vor.u32 %v3312, %v3313
        %v3315 = vshll.u32 2475754826, %v3309
        %v3316 = vshrl.u32 2131351028, %v3310
        %v3317 = vor.u32 %v3315, %v3316
        %v3318 = vshll.u32 2131351028, %v3309
        %v3319 = vshrl.u32 2102212464, %v3310
        %v3320 = vor.u32 %v3318, %v3319
        %v3321 = vshll.u32 2102212464, %v3309
        %v3322 = vshrl.u32 920167782, %v3310
        %v3323 = vor.u32 %v3321, %v3322
        %v3324 = vshll.u32 920167782, %v3309
        %v3325 = vshrl.u32 1326507024, %v3310
        %v3326 = vor.u32 %v3324, %v3325
        %vm3327 = vcmp.lt.s32.totalorder %v3308, 1
        %vm3328 = vcmp.lt.s32.totalorder %v3308, 2
        %vm3329 = vcmp.lt.s32.totalorder %v3308, 3
        %vm3330 = vcmp.lt.s32.totalorder %v3308, 4
        %v3331 = vsel %vm3327, %v3311, %v3314
        %v3332 = vsel %vm3330, %v3320, 2102212464
        %v3333 = vsel %vm3329, %v3317, %v3332
        %v3334 = vsel %vm3328, %v3331, %v3333
        %v3335 = vsel %vm3327, %v3314, %v3317
        %v3336 = vsel %vm3330, %v3323, 920167782
        %v3337 = vsel %vm3329, %v3320, %v3336
        %v3338 = vsel %vm3328, %v3335, %v3337
        %v3339 = vsel %vm3327, %v3317, %v3320
        %v3340 = vsel %vm3330, %v3326, 1326507024
        %v3341 = vsel %vm3329, %v3323, %v3340
        %v3342 = vsel %vm3328, %v3339, %v3341
        %v3343 = vshll.u32 %v3303, 8
        %v3344 = vmul.u32.u64.compose %v3343, %v3342
        %v3345 = vextract.low.u32 %v3344
        %v3346 = vextract.high.u32 %v3344
        %v3347 = vmul.u32.u64.compose %v3343, %v3338
        %v3348 = vextract.low.u32 %v3347
        %v3349 = vextract.high.u32 %v3347
        %v3350 = vmul.u32 %v3343, %v3334
        %v3351 = vadd.s32 %v3346, %v3348
        %vm3352 = vc.u32 %v3346, %v3348
        %v3353 = vadd.s32 %v3349, 1
        %v3354 = vsel %vm3352, %v3353, %v3349
        %v3355 = vadd.s32 %v3350, %v3354
        %v3356 = vadd.s32 %v3355, 536870912
        %v3357 = vshrl.u32 %v3356, 30
        %v3358 = vshll.u32 %v3357, 30
        %v3359 = vsub.s32 %v3355, %v3358
        %vm3360 = vcmp.lt.s32.totalorder %v3359, 0
        %v3361 = vsub.s32 0, %v3359
        %v3362 = vsel %vm3360, %v3361, %v3359
        %v3363 = vclz %v3362
        %v3364 = vsub.s32 %v3363, 2
        %vm3365 = vcmp.gt.s32.totalorder 0, %v3364
        %v3366 = vsel %vm3365, 0, %v3364
        %v3367 = vsub.s32 32, %v3366
        %v3368 = vshll.u32 %v3359, %v3366
        %v3369 = vshrl.u32 %v3351, %v3367
        %v3370 = vor.u32 %v3368, %v3369
        %v3371 = vsub.s32 4294967266, %v3366
        %v3372 = vadd.s32 %v3371, 127
        %v3373 = vshll.u32 %v3372, 23
        %v3374 = vor.u32 4788187, %v3373
        %v3375 = vand.u32 2147483647, %v3374
        %v3377 = vcvt.s32.f32 %v3370
        %v3378 = vmul.f32 %v3377, %v3375
        %v3379 = vxor.u32 %v3378, 2147483648
        %v3380 = vsel %vm3297, %v3379, %v3378
        %v3381 = vsub.s32 4, %v3357
        %v3382 = vsel %vm3297, %v3381, %v3357
        %v3383 = vsel %vm3296, %v2039, %v3380
        %v3384 = vsel %vm3296, 0, %v3382
        %v3385 = vcosq.f32.pop %v3383
        %v3386 = vsinq.f32.pop %v3383
        %vm3387 = vweird.f32 %v2039
        %v3388 = vand.u32 %v3384, 3
        %vm3389 = vcmp.lt.s32.totalorder %v3388, 2
        %vm3390 = vcmp.eq.s32.totalorder %v3388, 0
        %v3391 = vxor.u32 %v3386, 2147483648
        %v3392 = vsel %vm3390, %v3385, %v3391
        %vm3393 = vcmp.eq.s32.totalorder %v3388, 2
        %v3394 = vxor.u32 %v3385, 2147483648
        %v3395 = vsel %vm3393, %v3394, %v3386
        %v3396 = vsel %vm3389, %v3392, %v3395
        %v3397 = vsel %vm3387, nan, %v3396
        %v3398 = vand.u32 2147483647, %v2040
        %vm3399 = vcmp.le.f32.partialorder %v3398, 0.7853982
        %vm3400 = vcmp.lt.s32.totalorder %v2040, 0
        %v3401 = vand.u32 %v2040, 2139095040
        %v3402 = vshrl.u32 %v3401, 23
        %v3403 = vsub.s32 %v3402, 127
        %v3404 = vand.u32 2147483647, %v2040
        %v3405 = vand.u32 %v3404, 8388607
        %v3406 = vor.u32 %v3405, 8388608
        %v3407 = vsub.s32 0, %v3406
        %v3408 = vadd.s32 %v3403, 1
        %vm3409 = vcmp.gt.s32.totalorder %v3408, 0
        %v3410 = vsel %vm3409, %v3408, 0
        %v3411 = vshrl.u32 %v3410, 5
        %v3412 = vand.u32 %v3410, 31
        %v3413 = vsub.s32 32, %v3412
        %v3414 = vshrl.u32 683565275, %v3413
        %v3415 = vshll.u32 683565275, %v3412
        %v3416 = vshrl.u32 2475754826, %v3413
        %v3417 = vor.u32 %v3415, %v3416
        %v3418 = vshll.u32 2475754826, %v3412
        %v3419 = vshrl.u32 2131351028, %v3413
        %v3420 = vor.u32 %v3418, %v3419
        %v3421 = vshll.u32 2131351028, %v3412
        %v3422 = vshrl.u32 2102212464, %v3413
        %v3423 = vor.u32 %v3421, %v3422
        %v3424 = vshll.u32 2102212464, %v3412
        %v3425 = vshrl.u32 920167782, %v3413
        %v3426 = vor.u32 %v3424, %v3425
        %v3427 = vshll.u32 920167782, %v3412
        %v3428 = vshrl.u32 1326507024, %v3413
        %v3429 = vor.u32 %v3427, %v3428
        %vm3430 = vcmp.lt.s32.totalorder %v3411, 1
        %vm3431 = vcmp.lt.s32.totalorder %v3411, 2
        %vm3432 = vcmp.lt.s32.totalorder %v3411, 3
        %vm3433 = vcmp.lt.s32.totalorder %v3411, 4
        %v3434 = vsel %vm3430, %v3414, %v3417
        %v3435 = vsel %vm3433, %v3423, 2102212464
        %v3436 = vsel %vm3432, %v3420, %v3435
        %v3437 = vsel %vm3431, %v3434, %v3436
        %v3438 = vsel %vm3430, %v3417, %v3420
        %v3439 = vsel %vm3433, %v3426, 920167782
        %v3440 = vsel %vm3432, %v3423, %v3439
        %v3441 = vsel %vm3431, %v3438, %v3440
        %v3442 = vsel %vm3430, %v3420, %v3423
        %v3443 = vsel %vm3433, %v3429, 1326507024
        %v3444 = vsel %vm3432, %v3426, %v3443
        %v3445 = vsel %vm3431, %v3442, %v3444
        %v3446 = vshll.u32 %v3406, 8
        %v3447 = vmul.u32.u64.compose %v3446, %v3445
        %v3448 = vextract.low.u32 %v3447
        %v3449 = vextract.high.u32 %v3447
        %v3450 = vmul.u32.u64.compose %v3446, %v3441
        %v3451 = vextract.low.u32 %v3450
        %v3452 = vextract.high.u32 %v3450
        %v3453 = vmul.u32 %v3446, %v3437
        %v3454 = vadd.s32 %v3449, %v3451
        %vm3455 = vc.u32 %v3449, %v3451
        %v3456 = vadd.s32 %v3452, 1
        %v3457 = vsel %vm3455, %v3456, %v3452
        %v3458 = vadd.s32 %v3453, %v3457
        %v3459 = vadd.s32 %v3458, 536870912
        %v3460 = vshrl.u32 %v3459, 30
        %v3461 = vshll.u32 %v3460, 30
        %v3462 = vsub.s32 %v3458, %v3461
        %vm3463 = vcmp.lt.s32.totalorder %v3462, 0
        %v3464 = vsub.s32 0, %v3462
        %v3465 = vsel %vm3463, %v3464, %v3462
        %v3466 = vclz %v3465
        %v3467 = vsub.s32 %v3466, 2
        %vm3468 = vcmp.gt.s32.totalorder 0, %v3467
        %v3469 = vsel %vm3468, 0, %v3467
        %v3470 = vsub.s32 32, %v3469
        %v3471 = vshll.u32 %v3462, %v3469
        %v3472 = vshrl.u32 %v3454, %v3470
        %v3473 = vor.u32 %v3471, %v3472
        %v3474 = vsub.s32 4294967266, %v3469
        %v3475 = vadd.s32 %v3474, 127
        %v3476 = vshll.u32 %v3475, 23
        %v3477 = vor.u32 4788187, %v3476
        %v3478 = vand.u32 2147483647, %v3477
        %v3480 = vcvt.s32.f32 %v3473
        %v3481 = vmul.f32 %v3480, %v3478
        %v3482 = vxor.u32 %v3481, 2147483648
        %v3483 = vsel %vm3400, %v3482, %v3481
        %v3484 = vsub.s32 4, %v3460
        %v3485 = vsel %vm3400, %v3484, %v3460
        %v3486 = vsel %vm3399, %v2040, %v3483
        %v3487 = vsel %vm3399, 0, %v3485
        %v3488 = vcosq.f32.pop %v3486
        %v3489 = vsinq.f32.pop %v3486
        %vm3490 = vweird.f32 %v2040
        %v3491 = vand.u32 %v3487, 3
        %vm3492 = vcmp.lt.s32.totalorder %v3491, 2
        %vm3493 = vcmp.eq.s32.totalorder %v3491, 0
        %v3494 = vxor.u32 %v3489, 2147483648
        %v3495 = vsel %vm3493, %v3488, %v3494
        %vm3496 = vcmp.eq.s32.totalorder %v3491, 2
        %v3497 = vxor.u32 %v3488, 2147483648
        %v3498 = vsel %vm3496, %v3497, %v3489
        %v3499 = vsel %vm3492, %v3495, %v3498
        %v3500 = vsel %vm3490, nan, %v3499
        %v3501 = vand.u32 2147483647, %v2041
        %vm3502 = vcmp.le.f32.partialorder %v3501, 0.7853982
        %vm3503 = vcmp.lt.s32.totalorder %v2041, 0
        %v3504 = vand.u32 %v2041, 2139095040
        %v3505 = vshrl.u32 %v3504, 23
        %v3506 = vsub.s32 %v3505, 127
        %v3507 = vand.u32 2147483647, %v2041
        %v3508 = vand.u32 %v3507, 8388607
        %v3509 = vor.u32 %v3508, 8388608
        %v3510 = vsub.s32 0, %v3509
        %v3511 = vadd.s32 %v3506, 1
        %vm3512 = vcmp.gt.s32.totalorder %v3511, 0
        %v3513 = vsel %vm3512, %v3511, 0
        %v3514 = vshrl.u32 %v3513, 5
        %v3515 = vand.u32 %v3513, 31
        %v3516 = vsub.s32 32, %v3515
        %v3517 = vshrl.u32 683565275, %v3516
        %v3518 = vshll.u32 683565275, %v3515
        %v3519 = vshrl.u32 2475754826, %v3516
        %v3520 = vor.u32 %v3518, %v3519
        %v3521 = vshll.u32 2475754826, %v3515
        %v3522 = vshrl.u32 2131351028, %v3516
        %v3523 = vor.u32 %v3521, %v3522
        %v3524 = vshll.u32 2131351028, %v3515
        %v3525 = vshrl.u32 2102212464, %v3516
        %v3526 = vor.u32 %v3524, %v3525
        %v3527 = vshll.u32 2102212464, %v3515
        %v3528 = vshrl.u32 920167782, %v3516
        %v3529 = vor.u32 %v3527, %v3528
        %v3530 = vshll.u32 920167782, %v3515
        %v3531 = vshrl.u32 1326507024, %v3516
        %v3532 = vor.u32 %v3530, %v3531
        %vm3533 = vcmp.lt.s32.totalorder %v3514, 1
        %vm3534 = vcmp.lt.s32.totalorder %v3514, 2
        %vm3535 = vcmp.lt.s32.totalorder %v3514, 3
        %vm3536 = vcmp.lt.s32.totalorder %v3514, 4
        %v3537 = vsel %vm3533, %v3517, %v3520
        %v3538 = vsel %vm3536, %v3526, 2102212464
        %v3539 = vsel %vm3535, %v3523, %v3538
        %v3540 = vsel %vm3534, %v3537, %v3539
        %v3541 = vsel %vm3533, %v3520, %v3523
        %v3542 = vsel %vm3536, %v3529, 920167782
        %v3543 = vsel %vm3535, %v3526, %v3542
        %v3544 = vsel %vm3534, %v3541, %v3543
        %v3545 = vsel %vm3533, %v3523, %v3526
        %v3546 = vsel %vm3536, %v3532, 1326507024
        %v3547 = vsel %vm3535, %v3529, %v3546
        %v3548 = vsel %vm3534, %v3545, %v3547
        %v3549 = vshll.u32 %v3509, 8
        %v3550 = vmul.u32.u64.compose %v3549, %v3548
        %v3551 = vextract.low.u32 %v3550
        %v3552 = vextract.high.u32 %v3550
        %v3553 = vmul.u32.u64.compose %v3549, %v3544
        %v3554 = vextract.low.u32 %v3553
        %v3555 = vextract.high.u32 %v3553
        %v3556 = vmul.u32 %v3549, %v3540
        %v3557 = vadd.s32 %v3552, %v3554
        %vm3558 = vc.u32 %v3552, %v3554
        %v3559 = vadd.s32 %v3555, 1
        %v3560 = vsel %vm3558, %v3559, %v3555
        %v3561 = vadd.s32 %v3556, %v3560
        %v3562 = vadd.s32 %v3561, 536870912
        %v3563 = vshrl.u32 %v3562, 30
        %v3564 = vshll.u32 %v3563, 30
        %v3565 = vsub.s32 %v3561, %v3564
        %vm3566 = vcmp.lt.s32.totalorder %v3565, 0
        %v3567 = vsub.s32 0, %v3565
        %v3568 = vsel %vm3566, %v3567, %v3565
        %v3569 = vclz %v3568
        %v3570 = vsub.s32 %v3569, 2
        %vm3571 = vcmp.gt.s32.totalorder 0, %v3570
        %v3572 = vsel %vm3571, 0, %v3570
        %v3573 = vsub.s32 32, %v3572
        %v3574 = vshll.u32 %v3565, %v3572
        %v3575 = vshrl.u32 %v3557, %v3573
        %v3576 = vor.u32 %v3574, %v3575
        %v3577 = vsub.s32 4294967266, %v3572
        %v3578 = vadd.s32 %v3577, 127
        %v3579 = vshll.u32 %v3578, 23
        %v3580 = vor.u32 4788187, %v3579
        %v3581 = vand.u32 2147483647, %v3580
        %v3583 = vcvt.s32.f32 %v3576
        %v3584 = vmul.f32 %v3583, %v3581
        %v3585 = vxor.u32 %v3584, 2147483648
        %v3586 = vsel %vm3503, %v3585, %v3584
        %v3587 = vsub.s32 4, %v3563
        %v3588 = vsel %vm3503, %v3587, %v3563
        %v3589 = vsel %vm3502, %v2041, %v3586
        %v3590 = vsel %vm3502, 0, %v3588
        %v3591 = vcosq.f32.pop %v3589
        %v3592 = vsinq.f32.pop %v3589
        %vm3593 = vweird.f32 %v2041
        %v3594 = vand.u32 %v3590, 3
        %vm3595 = vcmp.lt.s32.totalorder %v3594, 2
        %vm3596 = vcmp.eq.s32.totalorder %v3594, 0
        %v3597 = vxor.u32 %v3592, 2147483648
        %v3598 = vsel %vm3596, %v3591, %v3597
        %vm3599 = vcmp.eq.s32.totalorder %v3594, 2
        %v3600 = vxor.u32 %v3591, 2147483648
        %v3601 = vsel %vm3599, %v3600, %v3592
        %v3602 = vsel %vm3595, %v3598, %v3601
        %v3603 = vsel %vm3593, nan, %v3602
        %v3604 = vand.u32 2147483647, %v2042
        %vm3605 = vcmp.le.f32.partialorder %v3604, 0.7853982
        %vm3606 = vcmp.lt.s32.totalorder %v2042, 0
        %v3607 = vand.u32 %v2042, 2139095040
        %v3608 = vshrl.u32 %v3607, 23
        %v3609 = vsub.s32 %v3608, 127
        %v3610 = vand.u32 2147483647, %v2042
        %v3611 = vand.u32 %v3610, 8388607
        %v3612 = vor.u32 %v3611, 8388608
        %v3613 = vsub.s32 0, %v3612
        %v3614 = vadd.s32 %v3609, 1
        %vm3615 = vcmp.gt.s32.totalorder %v3614, 0
        %v3616 = vsel %vm3615, %v3614, 0
        %v3617 = vshrl.u32 %v3616, 5
        %v3618 = vand.u32 %v3616, 31
        %v3619 = vsub.s32 32, %v3618
        %v3620 = vshrl.u32 683565275, %v3619
        %v3621 = vshll.u32 683565275, %v3618
        %v3622 = vshrl.u32 2475754826, %v3619
        %v3623 = vor.u32 %v3621, %v3622
        %v3624 = vshll.u32 2475754826, %v3618
        %v3625 = vshrl.u32 2131351028, %v3619
        %v3626 = vor.u32 %v3624, %v3625
        %v3627 = vshll.u32 2131351028, %v3618
        %v3628 = vshrl.u32 2102212464, %v3619
        %v3629 = vor.u32 %v3627, %v3628
        %v3630 = vshll.u32 2102212464, %v3618
        %v3631 = vshrl.u32 920167782, %v3619
        %v3632 = vor.u32 %v3630, %v3631
        %v3633 = vshll.u32 920167782, %v3618
        %v3634 = vshrl.u32 1326507024, %v3619
        %v3635 = vor.u32 %v3633, %v3634
        %vm3636 = vcmp.lt.s32.totalorder %v3617, 1
        %vm3637 = vcmp.lt.s32.totalorder %v3617, 2
        %vm3638 = vcmp.lt.s32.totalorder %v3617, 3
        %vm3639 = vcmp.lt.s32.totalorder %v3617, 4
        %v3640 = vsel %vm3636, %v3620, %v3623
        %v3641 = vsel %vm3639, %v3629, 2102212464
        %v3642 = vsel %vm3638, %v3626, %v3641
        %v3643 = vsel %vm3637, %v3640, %v3642
        %v3644 = vsel %vm3636, %v3623, %v3626
        %v3645 = vsel %vm3639, %v3632, 920167782
        %v3646 = vsel %vm3638, %v3629, %v3645
        %v3647 = vsel %vm3637, %v3644, %v3646
        %v3648 = vsel %vm3636, %v3626, %v3629
        %v3649 = vsel %vm3639, %v3635, 1326507024
        %v3650 = vsel %vm3638, %v3632, %v3649
        %v3651 = vsel %vm3637, %v3648, %v3650
        %v3652 = vshll.u32 %v3612, 8
        %v3653 = vmul.u32.u64.compose %v3652, %v3651
        %v3654 = vextract.low.u32 %v3653
        %v3655 = vextract.high.u32 %v3653
        %v3656 = vmul.u32.u64.compose %v3652, %v3647
        %v3657 = vextract.low.u32 %v3656
        %v3658 = vextract.high.u32 %v3656
        %v3659 = vmul.u32 %v3652, %v3643
        %v3660 = vadd.s32 %v3655, %v3657
        %vm3661 = vc.u32 %v3655, %v3657
        %v3662 = vadd.s32 %v3658, 1
        %v3663 = vsel %vm3661, %v3662, %v3658
        %v3664 = vadd.s32 %v3659, %v3663
        %v3665 = vadd.s32 %v3664, 536870912
        %v3666 = vshrl.u32 %v3665, 30
        %v3667 = vshll.u32 %v3666, 30
        %v3668 = vsub.s32 %v3664, %v3667
        %vm3669 = vcmp.lt.s32.totalorder %v3668, 0
        %v3670 = vsub.s32 0, %v3668
        %v3671 = vsel %vm3669, %v3670, %v3668
        %v3672 = vclz %v3671
        %v3673 = vsub.s32 %v3672, 2
        %vm3674 = vcmp.gt.s32.totalorder 0, %v3673
        %v3675 = vsel %vm3674, 0, %v3673
        %v3676 = vsub.s32 32, %v3675
        %v3677 = vshll.u32 %v3668, %v3675
        %v3678 = vshrl.u32 %v3660, %v3676
        %v3679 = vor.u32 %v3677, %v3678
        %v3680 = vsub.s32 4294967266, %v3675
        %v3681 = vadd.s32 %v3680, 127
        %v3682 = vshll.u32 %v3681, 23
        %v3683 = vor.u32 4788187, %v3682
        %v3684 = vand.u32 2147483647, %v3683
        %v3686 = vcvt.s32.f32 %v3679
        %v3687 = vmul.f32 %v3686, %v3684
        %v3688 = vxor.u32 %v3687, 2147483648
        %v3689 = vsel %vm3606, %v3688, %v3687
        %v3690 = vsub.s32 4, %v3666
        %v3691 = vsel %vm3606, %v3690, %v3666
        %v3692 = vsel %vm3605, %v2042, %v3689
        %v3693 = vsel %vm3605, 0, %v3691
        %v3694 = vcosq.f32.pop %v3692
        %v3695 = vsinq.f32.pop %v3692
        %vm3696 = vweird.f32 %v2042
        %v3697 = vand.u32 %v3693, 3
        %vm3698 = vcmp.lt.s32.totalorder %v3697, 2
        %vm3699 = vcmp.eq.s32.totalorder %v3697, 0
        %v3700 = vxor.u32 %v3695, 2147483648
        %v3701 = vsel %vm3699, %v3694, %v3700
        %vm3702 = vcmp.eq.s32.totalorder %v3697, 2
        %v3703 = vxor.u32 %v3694, 2147483648
        %v3704 = vsel %vm3702, %v3703, %v3695
        %v3705 = vsel %vm3698, %v3701, %v3704
        %v3706 = vsel %vm3696, nan, %v3705
        %v3707 = vand.u32 2147483647, %v2043
        %vm3708 = vcmp.le.f32.partialorder %v3707, 0.7853982
        %vm3709 = vcmp.lt.s32.totalorder %v2043, 0
        %v3710 = vand.u32 %v2043, 2139095040
        %v3711 = vshrl.u32 %v3710, 23
        %v3712 = vsub.s32 %v3711, 127
        %v3713 = vand.u32 2147483647, %v2043
        %v3714 = vand.u32 %v3713, 8388607
        %v3715 = vor.u32 %v3714, 8388608
        %v3716 = vsub.s32 0, %v3715
        %v3717 = vadd.s32 %v3712, 1
        %vm3718 = vcmp.gt.s32.totalorder %v3717, 0
        %v3719 = vsel %vm3718, %v3717, 0
        %v3720 = vshrl.u32 %v3719, 5
        %v3721 = vand.u32 %v3719, 31
        %v3722 = vsub.s32 32, %v3721
        %v3723 = vshrl.u32 683565275, %v3722
        %v3724 = vshll.u32 683565275, %v3721
        %v3725 = vshrl.u32 2475754826, %v3722
        %v3726 = vor.u32 %v3724, %v3725
        %v3727 = vshll.u32 2475754826, %v3721
        %v3728 = vshrl.u32 2131351028, %v3722
        %v3729 = vor.u32 %v3727, %v3728
        %v3730 = vshll.u32 2131351028, %v3721
        %v3731 = vshrl.u32 2102212464, %v3722
        %v3732 = vor.u32 %v3730, %v3731
        %v3733 = vshll.u32 2102212464, %v3721
        %v3734 = vshrl.u32 920167782, %v3722
        %v3735 = vor.u32 %v3733, %v3734
        %v3736 = vshll.u32 920167782, %v3721
        %v3737 = vshrl.u32 1326507024, %v3722
        %v3738 = vor.u32 %v3736, %v3737
        %vm3739 = vcmp.lt.s32.totalorder %v3720, 1
        %vm3740 = vcmp.lt.s32.totalorder %v3720, 2
        %vm3741 = vcmp.lt.s32.totalorder %v3720, 3
        %vm3742 = vcmp.lt.s32.totalorder %v3720, 4
        %v3743 = vsel %vm3739, %v3723, %v3726
        %v3744 = vsel %vm3742, %v3732, 2102212464
        %v3745 = vsel %vm3741, %v3729, %v3744
        %v3746 = vsel %vm3740, %v3743, %v3745
        %v3747 = vsel %vm3739, %v3726, %v3729
        %v3748 = vsel %vm3742, %v3735, 920167782
        %v3749 = vsel %vm3741, %v3732, %v3748
        %v3750 = vsel %vm3740, %v3747, %v3749
        %v3751 = vsel %vm3739, %v3729, %v3732
        %v3752 = vsel %vm3742, %v3738, 1326507024
        %v3753 = vsel %vm3741, %v3735, %v3752
        %v3754 = vsel %vm3740, %v3751, %v3753
        %v3755 = vshll.u32 %v3715, 8
        %v3756 = vmul.u32.u64.compose %v3755, %v3754
        %v3757 = vextract.low.u32 %v3756
        %v3758 = vextract.high.u32 %v3756
        %v3759 = vmul.u32.u64.compose %v3755, %v3750
        %v3760 = vextract.low.u32 %v3759
        %v3761 = vextract.high.u32 %v3759
        %v3762 = vmul.u32 %v3755, %v3746
        %v3763 = vadd.s32 %v3758, %v3760
        %vm3764 = vc.u32 %v3758, %v3760
        %v3765 = vadd.s32 %v3761, 1
        %v3766 = vsel %vm3764, %v3765, %v3761
        %v3767 = vadd.s32 %v3762, %v3766
        %v3768 = vadd.s32 %v3767, 536870912
        %v3769 = vshrl.u32 %v3768, 30
        %v3770 = vshll.u32 %v3769, 30
        %v3771 = vsub.s32 %v3767, %v3770
        %vm3772 = vcmp.lt.s32.totalorder %v3771, 0
        %v3773 = vsub.s32 0, %v3771
        %v3774 = vsel %vm3772, %v3773, %v3771
        %v3775 = vclz %v3774
        %v3776 = vsub.s32 %v3775, 2
        %vm3777 = vcmp.gt.s32.totalorder 0, %v3776
        %v3778 = vsel %vm3777, 0, %v3776
        %v3779 = vsub.s32 32, %v3778
        %v3780 = vshll.u32 %v3771, %v3778
        %v3781 = vshrl.u32 %v3763, %v3779
        %v3782 = vor.u32 %v3780, %v3781
        %v3783 = vsub.s32 4294967266, %v3778
        %v3784 = vadd.s32 %v3783, 127
        %v3785 = vshll.u32 %v3784, 23
        %v3786 = vor.u32 4788187, %v3785
        %v3787 = vand.u32 2147483647, %v3786
        %v3789 = vcvt.s32.f32 %v3782
        %v3790 = vmul.f32 %v3789, %v3787
        %v3791 = vxor.u32 %v3790, 2147483648
        %v3792 = vsel %vm3709, %v3791, %v3790
        %v3793 = vsub.s32 4, %v3769
        %v3794 = vsel %vm3709, %v3793, %v3769
        %v3795 = vsel %vm3708, %v2043, %v3792
        %v3796 = vsel %vm3708, 0, %v3794
        %v3797 = vcosq.f32.pop %v3795
        %v3798 = vsinq.f32.pop %v3795
        %vm3799 = vweird.f32 %v2043
        %v3800 = vand.u32 %v3796, 3
        %vm3801 = vcmp.lt.s32.totalorder %v3800, 2
        %vm3802 = vcmp.eq.s32.totalorder %v3800, 0
        %v3803 = vxor.u32 %v3798, 2147483648
        %v3804 = vsel %vm3802, %v3797, %v3803
        %vm3805 = vcmp.eq.s32.totalorder %v3800, 2
        %v3806 = vxor.u32 %v3797, 2147483648
        %v3807 = vsel %vm3805, %v3806, %v3798
        %v3808 = vsel %vm3801, %v3804, %v3807
        %v3809 = vsel %vm3799, nan, %v3808
        %v3810 = vand.u32 2147483647, %v2044
        %vm3811 = vcmp.le.f32.partialorder %v3810, 0.7853982
        %vm3812 = vcmp.lt.s32.totalorder %v2044, 0
        %v3813 = vand.u32 %v2044, 2139095040
        %v3814 = vshrl.u32 %v3813, 23
        %v3815 = vsub.s32 %v3814, 127
        %v3816 = vand.u32 2147483647, %v2044
        %v3817 = vand.u32 %v3816, 8388607
        %v3818 = vor.u32 %v3817, 8388608
        %v3819 = vsub.s32 0, %v3818
        %v3820 = vadd.s32 %v3815, 1
        %vm3821 = vcmp.gt.s32.totalorder %v3820, 0
        %v3822 = vsel %vm3821, %v3820, 0
        %v3823 = vshrl.u32 %v3822, 5
        %v3824 = vand.u32 %v3822, 31
        %v3825 = vsub.s32 32, %v3824
        %v3826 = vshrl.u32 683565275, %v3825
        %v3827 = vshll.u32 683565275, %v3824
        %v3828 = vshrl.u32 2475754826, %v3825
        %v3829 = vor.u32 %v3827, %v3828
        %v3830 = vshll.u32 2475754826, %v3824
        %v3831 = vshrl.u32 2131351028, %v3825
        %v3832 = vor.u32 %v3830, %v3831
        %v3833 = vshll.u32 2131351028, %v3824
        %v3834 = vshrl.u32 2102212464, %v3825
        %v3835 = vor.u32 %v3833, %v3834
        %v3836 = vshll.u32 2102212464, %v3824
        %v3837 = vshrl.u32 920167782, %v3825
        %v3838 = vor.u32 %v3836, %v3837
        %v3839 = vshll.u32 920167782, %v3824
        %v3840 = vshrl.u32 1326507024, %v3825
        %v3841 = vor.u32 %v3839, %v3840
        %vm3842 = vcmp.lt.s32.totalorder %v3823, 1
        %vm3843 = vcmp.lt.s32.totalorder %v3823, 2
        %vm3844 = vcmp.lt.s32.totalorder %v3823, 3
        %vm3845 = vcmp.lt.s32.totalorder %v3823, 4
        %v3846 = vsel %vm3842, %v3826, %v3829
        %v3847 = vsel %vm3845, %v3835, 2102212464
        %v3848 = vsel %vm3844, %v3832, %v3847
        %v3849 = vsel %vm3843, %v3846, %v3848
        %v3850 = vsel %vm3842, %v3829, %v3832
        %v3851 = vsel %vm3845, %v3838, 920167782
        %v3852 = vsel %vm3844, %v3835, %v3851
        %v3853 = vsel %vm3843, %v3850, %v3852
        %v3854 = vsel %vm3842, %v3832, %v3835
        %v3855 = vsel %vm3845, %v3841, 1326507024
        %v3856 = vsel %vm3844, %v3838, %v3855
        %v3857 = vsel %vm3843, %v3854, %v3856
        %v3858 = vshll.u32 %v3818, 8
        %v3859 = vmul.u32.u64.compose %v3858, %v3857
        %v3860 = vextract.low.u32 %v3859
        %v3861 = vextract.high.u32 %v3859
        %v3862 = vmul.u32.u64.compose %v3858, %v3853
        %v3863 = vextract.low.u32 %v3862
        %v3864 = vextract.high.u32 %v3862
        %v3865 = vmul.u32 %v3858, %v3849
        %v3866 = vadd.s32 %v3861, %v3863
        %vm3867 = vc.u32 %v3861, %v3863
        %v3868 = vadd.s32 %v3864, 1
        %v3869 = vsel %vm3867, %v3868, %v3864
        %v3870 = vadd.s32 %v3865, %v3869
        %v3871 = vadd.s32 %v3870, 536870912
        %v3872 = vshrl.u32 %v3871, 30
        %v3873 = vshll.u32 %v3872, 30
        %v3874 = vsub.s32 %v3870, %v3873
        %vm3875 = vcmp.lt.s32.totalorder %v3874, 0
        %v3876 = vsub.s32 0, %v3874
        %v3877 = vsel %vm3875, %v3876, %v3874
        %v3878 = vclz %v3877
        %v3879 = vsub.s32 %v3878, 2
        %vm3880 = vcmp.gt.s32.totalorder 0, %v3879
        %v3881 = vsel %vm3880, 0, %v3879
        %v3882 = vsub.s32 32, %v3881
        %v3883 = vshll.u32 %v3874, %v3881
        %v3884 = vshrl.u32 %v3866, %v3882
        %v3885 = vor.u32 %v3883, %v3884
        %v3886 = vsub.s32 4294967266, %v3881
        %v3887 = vadd.s32 %v3886, 127
        %v3888 = vshll.u32 %v3887, 23
        %v3889 = vor.u32 4788187, %v3888
        %v3890 = vand.u32 2147483647, %v3889
        %v3892 = vcvt.s32.f32 %v3885
        %v3893 = vmul.f32 %v3892, %v3890
        %v3894 = vxor.u32 %v3893, 2147483648
        %v3895 = vsel %vm3812, %v3894, %v3893
        %v3896 = vsub.s32 4, %v3872
        %v3897 = vsel %vm3812, %v3896, %v3872
        %v3898 = vsel %vm3811, %v2044, %v3895
        %v3899 = vsel %vm3811, 0, %v3897
        %v3900 = vcosq.f32.pop %v3898
        %v3901 = vsinq.f32.pop %v3898
        %vm3902 = vweird.f32 %v2044
        %v3903 = vand.u32 %v3899, 3
        %vm3904 = vcmp.lt.s32.totalorder %v3903, 2
        %vm3905 = vcmp.eq.s32.totalorder %v3903, 0
        %v3906 = vxor.u32 %v3901, 2147483648
        %v3907 = vsel %vm3905, %v3900, %v3906
        %vm3908 = vcmp.eq.s32.totalorder %v3903, 2
        %v3909 = vxor.u32 %v3900, 2147483648
        %v3910 = vsel %vm3908, %v3909, %v3901
        %v3911 = vsel %vm3904, %v3907, %v3910
        %v3912 = vsel %vm3902, nan, %v3911
        %v3913 = vand.u32 2147483647, %v2045
        %vm3914 = vcmp.le.f32.partialorder %v3913, 0.7853982
        %vm3915 = vcmp.lt.s32.totalorder %v2045, 0
        %v3916 = vand.u32 %v2045, 2139095040
        %v3917 = vshrl.u32 %v3916, 23
        %v3918 = vsub.s32 %v3917, 127
        %v3919 = vand.u32 2147483647, %v2045
        %v3920 = vand.u32 %v3919, 8388607
        %v3921 = vor.u32 %v3920, 8388608
        %v3922 = vsub.s32 0, %v3921
        %v3923 = vadd.s32 %v3918, 1
        %vm3924 = vcmp.gt.s32.totalorder %v3923, 0
        %v3925 = vsel %vm3924, %v3923, 0
        %v3926 = vshrl.u32 %v3925, 5
        %v3927 = vand.u32 %v3925, 31
        %v3928 = vsub.s32 32, %v3927
        %v3929 = vshrl.u32 683565275, %v3928
        %v3930 = vshll.u32 683565275, %v3927
        %v3931 = vshrl.u32 2475754826, %v3928
        %v3932 = vor.u32 %v3930, %v3931
        %v3933 = vshll.u32 2475754826, %v3927
        %v3934 = vshrl.u32 2131351028, %v3928
        %v3935 = vor.u32 %v3933, %v3934
        %v3936 = vshll.u32 2131351028, %v3927
        %v3937 = vshrl.u32 2102212464, %v3928
        %v3938 = vor.u32 %v3936, %v3937
        %v3939 = vshll.u32 2102212464, %v3927
        %v3940 = vshrl.u32 920167782, %v3928
        %v3941 = vor.u32 %v3939, %v3940
        %v3942 = vshll.u32 920167782, %v3927
        %v3943 = vshrl.u32 1326507024, %v3928
        %v3944 = vor.u32 %v3942, %v3943
        %vm3945 = vcmp.lt.s32.totalorder %v3926, 1
        %vm3946 = vcmp.lt.s32.totalorder %v3926, 2
        %vm3947 = vcmp.lt.s32.totalorder %v3926, 3
        %vm3948 = vcmp.lt.s32.totalorder %v3926, 4
        %v3949 = vsel %vm3945, %v3929, %v3932
        %v3950 = vsel %vm3948, %v3938, 2102212464
        %v3951 = vsel %vm3947, %v3935, %v3950
        %v3952 = vsel %vm3946, %v3949, %v3951
        %v3953 = vsel %vm3945, %v3932, %v3935
        %v3954 = vsel %vm3948, %v3941, 920167782
        %v3955 = vsel %vm3947, %v3938, %v3954
        %v3956 = vsel %vm3946, %v3953, %v3955
        %v3957 = vsel %vm3945, %v3935, %v3938
        %v3958 = vsel %vm3948, %v3944, 1326507024
        %v3959 = vsel %vm3947, %v3941, %v3958
        %v3960 = vsel %vm3946, %v3957, %v3959
        %v3961 = vshll.u32 %v3921, 8
        %v3962 = vmul.u32.u64.compose %v3961, %v3960
        %v3963 = vextract.low.u32 %v3962
        %v3964 = vextract.high.u32 %v3962
        %v3965 = vmul.u32.u64.compose %v3961, %v3956
        %v3966 = vextract.low.u32 %v3965
        %v3967 = vextract.high.u32 %v3965
        %v3968 = vmul.u32 %v3961, %v3952
        %v3969 = vadd.s32 %v3964, %v3966
        %vm3970 = vc.u32 %v3964, %v3966
        %v3971 = vadd.s32 %v3967, 1
        %v3972 = vsel %vm3970, %v3971, %v3967
        %v3973 = vadd.s32 %v3968, %v3972
        %v3974 = vadd.s32 %v3973, 536870912
        %v3975 = vshrl.u32 %v3974, 30
        %v3976 = vshll.u32 %v3975, 30
        %v3977 = vsub.s32 %v3973, %v3976
        %vm3978 = vcmp.lt.s32.totalorder %v3977, 0
        %v3979 = vsub.s32 0, %v3977
        %v3980 = vsel %vm3978, %v3979, %v3977
        %v3981 = vclz %v3980
        %v3982 = vsub.s32 %v3981, 2
        %vm3983 = vcmp.gt.s32.totalorder 0, %v3982
        %v3984 = vsel %vm3983, 0, %v3982
        %v3985 = vsub.s32 32, %v3984
        %v3986 = vshll.u32 %v3977, %v3984
        %v3987 = vshrl.u32 %v3969, %v3985
        %v3988 = vor.u32 %v3986, %v3987
        %v3989 = vsub.s32 4294967266, %v3984
        %v3990 = vadd.s32 %v3989, 127
        %v3991 = vshll.u32 %v3990, 23
        %v3992 = vor.u32 4788187, %v3991
        %v3993 = vand.u32 2147483647, %v3992
        %v3995 = vcvt.s32.f32 %v3988
        %v3996 = vmul.f32 %v3995, %v3993
        %v3997 = vxor.u32 %v3996, 2147483648
        %v3998 = vsel %vm3915, %v3997, %v3996
        %v3999 = vsub.s32 4, %v3975
        %v4000 = vsel %vm3915, %v3999, %v3975
        %v4001 = vsel %vm3914, %v2045, %v3998
        %v4002 = vsel %vm3914, 0, %v4000
        %v4003 = vcosq.f32.pop %v4001
        %v4004 = vsinq.f32.pop %v4001
        %vm4005 = vweird.f32 %v2045
        %v4006 = vand.u32 %v4002, 3
        %vm4007 = vcmp.lt.s32.totalorder %v4006, 2
        %vm4008 = vcmp.eq.s32.totalorder %v4006, 0
        %v4009 = vxor.u32 %v4004, 2147483648
        %v4010 = vsel %vm4008, %v4003, %v4009
        %vm4011 = vcmp.eq.s32.totalorder %v4006, 2
        %v4012 = vxor.u32 %v4003, 2147483648
        %v4013 = vsel %vm4011, %v4012, %v4004
        %v4014 = vsel %vm4007, %v4010, %v4013
        %v4015 = vsel %vm4005, nan, %v4014
        %v4016 = vand.u32 2147483647, %v2046
        %vm4017 = vcmp.le.f32.partialorder %v4016, 0.7853982
        %vm4018 = vcmp.lt.s32.totalorder %v2046, 0
        %v4019 = vand.u32 %v2046, 2139095040
        %v4020 = vshrl.u32 %v4019, 23
        %v4021 = vsub.s32 %v4020, 127
        %v4022 = vand.u32 2147483647, %v2046
        %v4023 = vand.u32 %v4022, 8388607
        %v4024 = vor.u32 %v4023, 8388608
        %v4025 = vsub.s32 0, %v4024
        %v4026 = vadd.s32 %v4021, 1
        %vm4027 = vcmp.gt.s32.totalorder %v4026, 0
        %v4028 = vsel %vm4027, %v4026, 0
        %v4029 = vshrl.u32 %v4028, 5
        %v4030 = vand.u32 %v4028, 31
        %v4031 = vsub.s32 32, %v4030
        %v4032 = vshrl.u32 683565275, %v4031
        %v4033 = vshll.u32 683565275, %v4030
        %v4034 = vshrl.u32 2475754826, %v4031
        %v4035 = vor.u32 %v4033, %v4034
        %v4036 = vshll.u32 2475754826, %v4030
        %v4037 = vshrl.u32 2131351028, %v4031
        %v4038 = vor.u32 %v4036, %v4037
        %v4039 = vshll.u32 2131351028, %v4030
        %v4040 = vshrl.u32 2102212464, %v4031
        %v4041 = vor.u32 %v4039, %v4040
        %v4042 = vshll.u32 2102212464, %v4030
        %v4043 = vshrl.u32 920167782, %v4031
        %v4044 = vor.u32 %v4042, %v4043
        %v4045 = vshll.u32 920167782, %v4030
        %v4046 = vshrl.u32 1326507024, %v4031
        %v4047 = vor.u32 %v4045, %v4046
        %vm4048 = vcmp.lt.s32.totalorder %v4029, 1
        %vm4049 = vcmp.lt.s32.totalorder %v4029, 2
        %vm4050 = vcmp.lt.s32.totalorder %v4029, 3
        %vm4051 = vcmp.lt.s32.totalorder %v4029, 4
        %v4052 = vsel %vm4048, %v4032, %v4035
        %v4053 = vsel %vm4051, %v4041, 2102212464
        %v4054 = vsel %vm4050, %v4038, %v4053
        %v4055 = vsel %vm4049, %v4052, %v4054
        %v4056 = vsel %vm4048, %v4035, %v4038
        %v4057 = vsel %vm4051, %v4044, 920167782
        %v4058 = vsel %vm4050, %v4041, %v4057
        %v4059 = vsel %vm4049, %v4056, %v4058
        %v4060 = vsel %vm4048, %v4038, %v4041
        %v4061 = vsel %vm4051, %v4047, 1326507024
        %v4062 = vsel %vm4050, %v4044, %v4061
        %v4063 = vsel %vm4049, %v4060, %v4062
        %v4064 = vshll.u32 %v4024, 8
        %v4065 = vmul.u32.u64.compose %v4064, %v4063
        %v4066 = vextract.low.u32 %v4065
        %v4067 = vextract.high.u32 %v4065
        %v4068 = vmul.u32.u64.compose %v4064, %v4059
        %v4069 = vextract.low.u32 %v4068
        %v4070 = vextract.high.u32 %v4068
        %v4071 = vmul.u32 %v4064, %v4055
        %v4072 = vadd.s32 %v4067, %v4069
        %vm4073 = vc.u32 %v4067, %v4069
        %v4074 = vadd.s32 %v4070, 1
        %v4075 = vsel %vm4073, %v4074, %v4070
        %v4076 = vadd.s32 %v4071, %v4075
        %v4077 = vadd.s32 %v4076, 536870912
        %v4078 = vshrl.u32 %v4077, 30
        %v4079 = vshll.u32 %v4078, 30
        %v4080 = vsub.s32 %v4076, %v4079
        %vm4081 = vcmp.lt.s32.totalorder %v4080, 0
        %v4082 = vsub.s32 0, %v4080
        %v4083 = vsel %vm4081, %v4082, %v4080
        %v4084 = vclz %v4083
        %v4085 = vsub.s32 %v4084, 2
        %vm4086 = vcmp.gt.s32.totalorder 0, %v4085
        %v4087 = vsel %vm4086, 0, %v4085
        %v4088 = vsub.s32 32, %v4087
        %v4089 = vshll.u32 %v4080, %v4087
        %v4090 = vshrl.u32 %v4072, %v4088
        %v4091 = vor.u32 %v4089, %v4090
        %v4092 = vsub.s32 4294967266, %v4087
        %v4093 = vadd.s32 %v4092, 127
        %v4094 = vshll.u32 %v4093, 23
        %v4095 = vor.u32 4788187, %v4094
        %v4096 = vand.u32 2147483647, %v4095
        %v4098 = vcvt.s32.f32 %v4091
        %v4099 = vmul.f32 %v4098, %v4096
        %v4100 = vxor.u32 %v4099, 2147483648
        %v4101 = vsel %vm4018, %v4100, %v4099
        %v4102 = vsub.s32 4, %v4078
        %v4103 = vsel %vm4018, %v4102, %v4078
        %v4104 = vsel %vm4017, %v2046, %v4101
        %v4105 = vsel %vm4017, 0, %v4103
        %v4106 = vcosq.f32.pop %v4104
        %v4107 = vsinq.f32.pop %v4104
        %vm4108 = vweird.f32 %v2046
        %v4109 = vand.u32 %v4105, 3
        %vm4110 = vcmp.lt.s32.totalorder %v4109, 2
        %vm4111 = vcmp.eq.s32.totalorder %v4109, 0
        %v4112 = vxor.u32 %v4107, 2147483648
        %v4113 = vsel %vm4111, %v4106, %v4112
        %vm4114 = vcmp.eq.s32.totalorder %v4109, 2
        %v4115 = vxor.u32 %v4106, 2147483648
        %v4116 = vsel %vm4114, %v4115, %v4107
        %v4117 = vsel %vm4110, %v4113, %v4116
        %v4118 = vsel %vm4108, nan, %v4117
        %v4119 = vand.u32 2147483647, %v2047
        %vm4120 = vcmp.le.f32.partialorder %v4119, 0.7853982
        %vm4121 = vcmp.lt.s32.totalorder %v2047, 0
        %v4122 = vand.u32 %v2047, 2139095040
        %v4123 = vshrl.u32 %v4122, 23
        %v4124 = vsub.s32 %v4123, 127
        %v4125 = vand.u32 2147483647, %v2047
        %v4126 = vand.u32 %v4125, 8388607
        %v4127 = vor.u32 %v4126, 8388608
        %v4128 = vsub.s32 0, %v4127
        %v4129 = vadd.s32 %v4124, 1
        %vm4130 = vcmp.gt.s32.totalorder %v4129, 0
        %v4131 = vsel %vm4130, %v4129, 0
        %v4132 = vshrl.u32 %v4131, 5
        %v4133 = vand.u32 %v4131, 31
        %v4134 = vsub.s32 32, %v4133
        %v4135 = vshrl.u32 683565275, %v4134
        %v4136 = vshll.u32 683565275, %v4133
        %v4137 = vshrl.u32 2475754826, %v4134
        %v4138 = vor.u32 %v4136, %v4137
        %v4139 = vshll.u32 2475754826, %v4133
        %v4140 = vshrl.u32 2131351028, %v4134
        %v4141 = vor.u32 %v4139, %v4140
        %v4142 = vshll.u32 2131351028, %v4133
        %v4143 = vshrl.u32 2102212464, %v4134
        %v4144 = vor.u32 %v4142, %v4143
        %v4145 = vshll.u32 2102212464, %v4133
        %v4146 = vshrl.u32 920167782, %v4134
        %v4147 = vor.u32 %v4145, %v4146
        %v4148 = vshll.u32 920167782, %v4133
        %v4149 = vshrl.u32 1326507024, %v4134
        %v4150 = vor.u32 %v4148, %v4149
        %vm4151 = vcmp.lt.s32.totalorder %v4132, 1
        %vm4152 = vcmp.lt.s32.totalorder %v4132, 2
        %vm4153 = vcmp.lt.s32.totalorder %v4132, 3
        %vm4154 = vcmp.lt.s32.totalorder %v4132, 4
        %v4155 = vsel %vm4151, %v4135, %v4138
        %v4156 = vsel %vm4154, %v4144, 2102212464
        %v4157 = vsel %vm4153, %v4141, %v4156
        %v4158 = vsel %vm4152, %v4155, %v4157
        %v4159 = vsel %vm4151, %v4138, %v4141
        %v4160 = vsel %vm4154, %v4147, 920167782
        %v4161 = vsel %vm4153, %v4144, %v4160
        %v4162 = vsel %vm4152, %v4159, %v4161
        %v4163 = vsel %vm4151, %v4141, %v4144
        %v4164 = vsel %vm4154, %v4150, 1326507024
        %v4165 = vsel %vm4153, %v4147, %v4164
        %v4166 = vsel %vm4152, %v4163, %v4165
        %v4167 = vshll.u32 %v4127, 8
        %v4168 = vmul.u32.u64.compose %v4167, %v4166
        %v4169 = vextract.low.u32 %v4168
        %v4170 = vextract.high.u32 %v4168
        %v4171 = vmul.u32.u64.compose %v4167, %v4162
        %v4172 = vextract.low.u32 %v4171
        %v4173 = vextract.high.u32 %v4171
        %v4174 = vmul.u32 %v4167, %v4158
        %v4175 = vadd.s32 %v4170, %v4172
        %vm4176 = vc.u32 %v4170, %v4172
        %v4177 = vadd.s32 %v4173, 1
        %v4178 = vsel %vm4176, %v4177, %v4173
        %v4179 = vadd.s32 %v4174, %v4178
        %v4180 = vadd.s32 %v4179, 536870912
        %v4181 = vshrl.u32 %v4180, 30
        %v4182 = vshll.u32 %v4181, 30
        %v4183 = vsub.s32 %v4179, %v4182
        %vm4184 = vcmp.lt.s32.totalorder %v4183, 0
        %v4185 = vsub.s32 0, %v4183
        %v4186 = vsel %vm4184, %v4185, %v4183
        %v4187 = vclz %v4186
        %v4188 = vsub.s32 %v4187, 2
        %vm4189 = vcmp.gt.s32.totalorder 0, %v4188
        %v4190 = vsel %vm4189, 0, %v4188
        %v4191 = vsub.s32 32, %v4190
        %v4192 = vshll.u32 %v4183, %v4190
        %v4193 = vshrl.u32 %v4175, %v4191
        %v4194 = vor.u32 %v4192, %v4193
        %v4195 = vsub.s32 4294967266, %v4190
        %v4196 = vadd.s32 %v4195, 127
        %v4197 = vshll.u32 %v4196, 23
        %v4198 = vor.u32 4788187, %v4197
        %v4199 = vand.u32 2147483647, %v4198
        %v4201 = vcvt.s32.f32 %v4194
        %v4202 = vmul.f32 %v4201, %v4199
        %v4203 = vxor.u32 %v4202, 2147483648
        %v4204 = vsel %vm4121, %v4203, %v4202
        %v4205 = vsub.s32 4, %v4181
        %v4206 = vsel %vm4121, %v4205, %v4181
        %v4207 = vsel %vm4120, %v2047, %v4204
        %v4208 = vsel %vm4120, 0, %v4206
        %v4209 = vcosq.f32.pop %v4207
        %v4210 = vsinq.f32.pop %v4207
        %vm4211 = vweird.f32 %v2047
        %v4212 = vand.u32 %v4208, 3
        %vm4213 = vcmp.lt.s32.totalorder %v4212, 2
        %vm4214 = vcmp.eq.s32.totalorder %v4212, 0
        %v4215 = vxor.u32 %v4210, 2147483648
        %v4216 = vsel %vm4214, %v4209, %v4215
        %vm4217 = vcmp.eq.s32.totalorder %v4212, 2
        %v4218 = vxor.u32 %v4209, 2147483648
        %v4219 = vsel %vm4217, %v4218, %v4210
        %v4220 = vsel %vm4213, %v4216, %v4219
        %v4221 = vsel %vm4211, nan, %v4220
        %v4222 = vand.u32 2147483647, %v2048
        %vm4223 = vcmp.le.f32.partialorder %v4222, 0.7853982
        %vm4224 = vcmp.lt.s32.totalorder %v2048, 0
        %v4225 = vand.u32 %v2048, 2139095040
        %v4226 = vshrl.u32 %v4225, 23
        %v4227 = vsub.s32 %v4226, 127
        %v4228 = vand.u32 2147483647, %v2048
        %v4229 = vand.u32 %v4228, 8388607
        %v4230 = vor.u32 %v4229, 8388608
        %v4231 = vsub.s32 0, %v4230
        %v4232 = vadd.s32 %v4227, 1
        %vm4233 = vcmp.gt.s32.totalorder %v4232, 0
        %v4234 = vsel %vm4233, %v4232, 0
        %v4235 = vshrl.u32 %v4234, 5
        %v4236 = vand.u32 %v4234, 31
        %v4237 = vsub.s32 32, %v4236
        %v4238 = vshrl.u32 683565275, %v4237
        %v4239 = vshll.u32 683565275, %v4236
        %v4240 = vshrl.u32 2475754826, %v4237
        %v4241 = vor.u32 %v4239, %v4240
        %v4242 = vshll.u32 2475754826, %v4236
        %v4243 = vshrl.u32 2131351028, %v4237
        %v4244 = vor.u32 %v4242, %v4243
        %v4245 = vshll.u32 2131351028, %v4236
        %v4246 = vshrl.u32 2102212464, %v4237
        %v4247 = vor.u32 %v4245, %v4246
        %v4248 = vshll.u32 2102212464, %v4236
        %v4249 = vshrl.u32 920167782, %v4237
        %v4250 = vor.u32 %v4248, %v4249
        %v4251 = vshll.u32 920167782, %v4236
        %v4252 = vshrl.u32 1326507024, %v4237
        %v4253 = vor.u32 %v4251, %v4252
        %vm4254 = vcmp.lt.s32.totalorder %v4235, 1
        %vm4255 = vcmp.lt.s32.totalorder %v4235, 2
        %vm4256 = vcmp.lt.s32.totalorder %v4235, 3
        %vm4257 = vcmp.lt.s32.totalorder %v4235, 4
        %v4258 = vsel %vm4254, %v4238, %v4241
        %v4259 = vsel %vm4257, %v4247, 2102212464
        %v4260 = vsel %vm4256, %v4244, %v4259
        %v4261 = vsel %vm4255, %v4258, %v4260
        %v4262 = vsel %vm4254, %v4241, %v4244
        %v4263 = vsel %vm4257, %v4250, 920167782
        %v4264 = vsel %vm4256, %v4247, %v4263
        %v4265 = vsel %vm4255, %v4262, %v4264
        %v4266 = vsel %vm4254, %v4244, %v4247
        %v4267 = vsel %vm4257, %v4253, 1326507024
        %v4268 = vsel %vm4256, %v4250, %v4267
        %v4269 = vsel %vm4255, %v4266, %v4268
        %v4270 = vshll.u32 %v4230, 8
        %v4271 = vmul.u32.u64.compose %v4270, %v4269
        %v4272 = vextract.low.u32 %v4271
        %v4273 = vextract.high.u32 %v4271
        %v4274 = vmul.u32.u64.compose %v4270, %v4265
        %v4275 = vextract.low.u32 %v4274
        %v4276 = vextract.high.u32 %v4274
        %v4277 = vmul.u32 %v4270, %v4261
        %v4278 = vadd.s32 %v4273, %v4275
        %vm4279 = vc.u32 %v4273, %v4275
        %v4280 = vadd.s32 %v4276, 1
        %v4281 = vsel %vm4279, %v4280, %v4276
        %v4282 = vadd.s32 %v4277, %v4281
        %v4283 = vadd.s32 %v4282, 536870912
        %v4284 = vshrl.u32 %v4283, 30
        %v4285 = vshll.u32 %v4284, 30
        %v4286 = vsub.s32 %v4282, %v4285
        %vm4287 = vcmp.lt.s32.totalorder %v4286, 0
        %v4288 = vsub.s32 0, %v4286
        %v4289 = vsel %vm4287, %v4288, %v4286
        %v4290 = vclz %v4289
        %v4291 = vsub.s32 %v4290, 2
        %vm4292 = vcmp.gt.s32.totalorder 0, %v4291
        %v4293 = vsel %vm4292, 0, %v4291
        %v4294 = vsub.s32 32, %v4293
        %v4295 = vshll.u32 %v4286, %v4293
        %v4296 = vshrl.u32 %v4278, %v4294
        %v4297 = vor.u32 %v4295, %v4296
        %v4298 = vsub.s32 4294967266, %v4293
        %v4299 = vadd.s32 %v4298, 127
        %v4300 = vshll.u32 %v4299, 23
        %v4301 = vor.u32 4788187, %v4300
        %v4302 = vand.u32 2147483647, %v4301
        %v4304 = vcvt.s32.f32 %v4297
        %v4305 = vmul.f32 %v4304, %v4302
        %v4306 = vxor.u32 %v4305, 2147483648
        %v4307 = vsel %vm4224, %v4306, %v4305
        %v4308 = vsub.s32 4, %v4284
        %v4309 = vsel %vm4224, %v4308, %v4284
        %v4310 = vsel %vm4223, %v2048, %v4307
        %v4311 = vsel %vm4223, 0, %v4309
        %v4312 = vcosq.f32.pop %v4310
        %v4313 = vsinq.f32.pop %v4310
        %vm4314 = vweird.f32 %v2048
        %v4315 = vand.u32 %v4311, 3
        %vm4316 = vcmp.lt.s32.totalorder %v4315, 2
        %vm4317 = vcmp.eq.s32.totalorder %v4315, 0
        %v4318 = vxor.u32 %v4313, 2147483648
        %v4319 = vsel %vm4317, %v4312, %v4318
        %vm4320 = vcmp.eq.s32.totalorder %v4315, 2
        %v4321 = vxor.u32 %v4312, 2147483648
        %v4322 = vsel %vm4320, %v4321, %v4313
        %v4323 = vsel %vm4316, %v4319, %v4322
        %v4324 = vsel %vm4314, nan, %v4323
        %v4325 = vand.u32 2147483647, %v2049
        %vm4326 = vcmp.le.f32.partialorder %v4325, 0.7853982
        %vm4327 = vcmp.lt.s32.totalorder %v2049, 0
        %v4328 = vand.u32 %v2049, 2139095040
        %v4329 = vshrl.u32 %v4328, 23
        %v4330 = vsub.s32 %v4329, 127
        %v4331 = vand.u32 2147483647, %v2049
        %v4332 = vand.u32 %v4331, 8388607
        %v4333 = vor.u32 %v4332, 8388608
        %v4334 = vsub.s32 0, %v4333
        %v4335 = vadd.s32 %v4330, 1
        %vm4336 = vcmp.gt.s32.totalorder %v4335, 0
        %v4337 = vsel %vm4336, %v4335, 0
        %v4338 = vshrl.u32 %v4337, 5
        %v4339 = vand.u32 %v4337, 31
        %v4340 = vsub.s32 32, %v4339
        %v4341 = vshrl.u32 683565275, %v4340
        %v4342 = vshll.u32 683565275, %v4339
        %v4343 = vshrl.u32 2475754826, %v4340
        %v4344 = vor.u32 %v4342, %v4343
        %v4345 = vshll.u32 2475754826, %v4339
        %v4346 = vshrl.u32 2131351028, %v4340
        %v4347 = vor.u32 %v4345, %v4346
        %v4348 = vshll.u32 2131351028, %v4339
        %v4349 = vshrl.u32 2102212464, %v4340
        %v4350 = vor.u32 %v4348, %v4349
        %v4351 = vshll.u32 2102212464, %v4339
        %v4352 = vshrl.u32 920167782, %v4340
        %v4353 = vor.u32 %v4351, %v4352
        %v4354 = vshll.u32 920167782, %v4339
        %v4355 = vshrl.u32 1326507024, %v4340
        %v4356 = vor.u32 %v4354, %v4355
        %vm4357 = vcmp.lt.s32.totalorder %v4338, 1
        %vm4358 = vcmp.lt.s32.totalorder %v4338, 2
        %vm4359 = vcmp.lt.s32.totalorder %v4338, 3
        %vm4360 = vcmp.lt.s32.totalorder %v4338, 4
        %v4361 = vsel %vm4357, %v4341, %v4344
        %v4362 = vsel %vm4360, %v4350, 2102212464
        %v4363 = vsel %vm4359, %v4347, %v4362
        %v4364 = vsel %vm4358, %v4361, %v4363
        %v4365 = vsel %vm4357, %v4344, %v4347
        %v4366 = vsel %vm4360, %v4353, 920167782
        %v4367 = vsel %vm4359, %v4350, %v4366
        %v4368 = vsel %vm4358, %v4365, %v4367
        %v4369 = vsel %vm4357, %v4347, %v4350
        %v4370 = vsel %vm4360, %v4356, 1326507024
        %v4371 = vsel %vm4359, %v4353, %v4370
        %v4372 = vsel %vm4358, %v4369, %v4371
        %v4373 = vshll.u32 %v4333, 8
        %v4374 = vmul.u32.u64.compose %v4373, %v4372
        %v4375 = vextract.low.u32 %v4374
        %v4376 = vextract.high.u32 %v4374
        %v4377 = vmul.u32.u64.compose %v4373, %v4368
        %v4378 = vextract.low.u32 %v4377
        %v4379 = vextract.high.u32 %v4377
        %v4380 = vmul.u32 %v4373, %v4364
        %v4381 = vadd.s32 %v4376, %v4378
        %vm4382 = vc.u32 %v4376, %v4378
        %v4383 = vadd.s32 %v4379, 1
        %v4384 = vsel %vm4382, %v4383, %v4379
        %v4385 = vadd.s32 %v4380, %v4384
        %v4386 = vadd.s32 %v4385, 536870912
        %v4387 = vshrl.u32 %v4386, 30
        %v4388 = vshll.u32 %v4387, 30
        %v4389 = vsub.s32 %v4385, %v4388
        %vm4390 = vcmp.lt.s32.totalorder %v4389, 0
        %v4391 = vsub.s32 0, %v4389
        %v4392 = vsel %vm4390, %v4391, %v4389
        %v4393 = vclz %v4392
        %v4394 = vsub.s32 %v4393, 2
        %vm4395 = vcmp.gt.s32.totalorder 0, %v4394
        %v4396 = vsel %vm4395, 0, %v4394
        %v4397 = vsub.s32 32, %v4396
        %v4398 = vshll.u32 %v4389, %v4396
        %v4399 = vshrl.u32 %v4381, %v4397
        %v4400 = vor.u32 %v4398, %v4399
        %v4401 = vsub.s32 4294967266, %v4396
        %v4402 = vadd.s32 %v4401, 127
        %v4403 = vshll.u32 %v4402, 23
        %v4404 = vor.u32 4788187, %v4403
        %v4405 = vand.u32 2147483647, %v4404
        %v4407 = vcvt.s32.f32 %v4400
        %v4408 = vmul.f32 %v4407, %v4405
        %v4409 = vxor.u32 %v4408, 2147483648
        %v4410 = vsel %vm4327, %v4409, %v4408
        %v4411 = vsub.s32 4, %v4387
        %v4412 = vsel %vm4327, %v4411, %v4387
        %v4413 = vsel %vm4326, %v2049, %v4410
        %v4414 = vsel %vm4326, 0, %v4412
        %v4415 = vcosq.f32.pop %v4413
        %v4416 = vsinq.f32.pop %v4413
        %vm4417 = vweird.f32 %v2049
        %v4418 = vand.u32 %v4414, 3
        %vm4419 = vcmp.lt.s32.totalorder %v4418, 2
        %vm4420 = vcmp.eq.s32.totalorder %v4418, 0
        %v4421 = vxor.u32 %v4416, 2147483648
        %v4422 = vsel %vm4420, %v4415, %v4421
        %vm4423 = vcmp.eq.s32.totalorder %v4418, 2
        %v4424 = vxor.u32 %v4415, 2147483648
        %v4425 = vsel %vm4423, %v4424, %v4416
        %v4426 = vsel %vm4419, %v4422, %v4425
        %v4427 = vsel %vm4417, nan, %v4426
        %v4428 = vand.u32 2147483647, %v2050
        %vm4429 = vcmp.le.f32.partialorder %v4428, 0.7853982
        %vm4430 = vcmp.lt.s32.totalorder %v2050, 0
        %v4431 = vand.u32 %v2050, 2139095040
        %v4432 = vshrl.u32 %v4431, 23
        %v4433 = vsub.s32 %v4432, 127
        %v4434 = vand.u32 2147483647, %v2050
        %v4435 = vand.u32 %v4434, 8388607
        %v4436 = vor.u32 %v4435, 8388608
        %v4437 = vsub.s32 0, %v4436
        %v4438 = vadd.s32 %v4433, 1
        %vm4439 = vcmp.gt.s32.totalorder %v4438, 0
        %v4440 = vsel %vm4439, %v4438, 0
        %v4441 = vshrl.u32 %v4440, 5
        %v4442 = vand.u32 %v4440, 31
        %v4443 = vsub.s32 32, %v4442
        %v4444 = vshrl.u32 683565275, %v4443
        %v4445 = vshll.u32 683565275, %v4442
        %v4446 = vshrl.u32 2475754826, %v4443
        %v4447 = vor.u32 %v4445, %v4446
        %v4448 = vshll.u32 2475754826, %v4442
        %v4449 = vshrl.u32 2131351028, %v4443
        %v4450 = vor.u32 %v4448, %v4449
        %v4451 = vshll.u32 2131351028, %v4442
        %v4452 = vshrl.u32 2102212464, %v4443
        %v4453 = vor.u32 %v4451, %v4452
        %v4454 = vshll.u32 2102212464, %v4442
        %v4455 = vshrl.u32 920167782, %v4443
        %v4456 = vor.u32 %v4454, %v4455
        %v4457 = vshll.u32 920167782, %v4442
        %v4458 = vshrl.u32 1326507024, %v4443
        %v4459 = vor.u32 %v4457, %v4458
        %vm4460 = vcmp.lt.s32.totalorder %v4441, 1
        %vm4461 = vcmp.lt.s32.totalorder %v4441, 2
        %vm4462 = vcmp.lt.s32.totalorder %v4441, 3
        %vm4463 = vcmp.lt.s32.totalorder %v4441, 4
        %v4464 = vsel %vm4460, %v4444, %v4447
        %v4465 = vsel %vm4463, %v4453, 2102212464
        %v4466 = vsel %vm4462, %v4450, %v4465
        %v4467 = vsel %vm4461, %v4464, %v4466
        %v4468 = vsel %vm4460, %v4447, %v4450
        %v4469 = vsel %vm4463, %v4456, 920167782
        %v4470 = vsel %vm4462, %v4453, %v4469
        %v4471 = vsel %vm4461, %v4468, %v4470
        %v4472 = vsel %vm4460, %v4450, %v4453
        %v4473 = vsel %vm4463, %v4459, 1326507024
        %v4474 = vsel %vm4462, %v4456, %v4473
        %v4475 = vsel %vm4461, %v4472, %v4474
        %v4476 = vshll.u32 %v4436, 8
        %v4477 = vmul.u32.u64.compose %v4476, %v4475
        %v4478 = vextract.low.u32 %v4477
        %v4479 = vextract.high.u32 %v4477
        %v4480 = vmul.u32.u64.compose %v4476, %v4471
        %v4481 = vextract.low.u32 %v4480
        %v4482 = vextract.high.u32 %v4480
        %v4483 = vmul.u32 %v4476, %v4467
        %v4484 = vadd.s32 %v4479, %v4481
        %vm4485 = vc.u32 %v4479, %v4481
        %v4486 = vadd.s32 %v4482, 1
        %v4487 = vsel %vm4485, %v4486, %v4482
        %v4488 = vadd.s32 %v4483, %v4487
        %v4489 = vadd.s32 %v4488, 536870912
        %v4490 = vshrl.u32 %v4489, 30
        %v4491 = vshll.u32 %v4490, 30
        %v4492 = vsub.s32 %v4488, %v4491
        %vm4493 = vcmp.lt.s32.totalorder %v4492, 0
        %v4494 = vsub.s32 0, %v4492
        %v4495 = vsel %vm4493, %v4494, %v4492
        %v4496 = vclz %v4495
        %v4497 = vsub.s32 %v4496, 2
        %vm4498 = vcmp.gt.s32.totalorder 0, %v4497
        %v4499 = vsel %vm4498, 0, %v4497
        %v4500 = vsub.s32 32, %v4499
        %v4501 = vshll.u32 %v4492, %v4499
        %v4502 = vshrl.u32 %v4484, %v4500
        %v4503 = vor.u32 %v4501, %v4502
        %v4504 = vsub.s32 4294967266, %v4499
        %v4505 = vadd.s32 %v4504, 127
        %v4506 = vshll.u32 %v4505, 23
        %v4507 = vor.u32 4788187, %v4506
        %v4508 = vand.u32 2147483647, %v4507
        %v4510 = vcvt.s32.f32 %v4503
        %v4511 = vmul.f32 %v4510, %v4508
        %v4512 = vxor.u32 %v4511, 2147483648
        %v4513 = vsel %vm4430, %v4512, %v4511
        %v4514 = vsub.s32 4, %v4490
        %v4515 = vsel %vm4430, %v4514, %v4490
        %v4516 = vsel %vm4429, %v2050, %v4513
        %v4517 = vsel %vm4429, 0, %v4515
        %v4518 = vcosq.f32.pop %v4516
        %v4519 = vsinq.f32.pop %v4516
        %vm4520 = vweird.f32 %v2050
        %v4521 = vand.u32 %v4517, 3
        %vm4522 = vcmp.lt.s32.totalorder %v4521, 2
        %vm4523 = vcmp.eq.s32.totalorder %v4521, 0
        %v4524 = vxor.u32 %v4519, 2147483648
        %v4525 = vsel %vm4523, %v4518, %v4524
        %vm4526 = vcmp.eq.s32.totalorder %v4521, 2
        %v4527 = vxor.u32 %v4518, 2147483648
        %v4528 = vsel %vm4526, %v4527, %v4519
        %v4529 = vsel %vm4522, %v4525, %v4528
        %v4530 = vsel %vm4520, nan, %v4529
        %v4531 = vand.u32 2147483647, %v2051
        %vm4532 = vcmp.le.f32.partialorder %v4531, 0.7853982
        %vm4533 = vcmp.lt.s32.totalorder %v2051, 0
        %v4534 = vand.u32 %v2051, 2139095040
        %v4535 = vshrl.u32 %v4534, 23
        %v4536 = vsub.s32 %v4535, 127
        %v4537 = vand.u32 2147483647, %v2051
        %v4538 = vand.u32 %v4537, 8388607
        %v4539 = vor.u32 %v4538, 8388608
        %v4540 = vsub.s32 0, %v4539
        %v4541 = vadd.s32 %v4536, 1
        %vm4542 = vcmp.gt.s32.totalorder %v4541, 0
        %v4543 = vsel %vm4542, %v4541, 0
        %v4544 = vshrl.u32 %v4543, 5
        %v4545 = vand.u32 %v4543, 31
        %v4546 = vsub.s32 32, %v4545
        %v4547 = vshrl.u32 683565275, %v4546
        %v4548 = vshll.u32 683565275, %v4545
        %v4549 = vshrl.u32 2475754826, %v4546
        %v4550 = vor.u32 %v4548, %v4549
        %v4551 = vshll.u32 2475754826, %v4545
        %v4552 = vshrl.u32 2131351028, %v4546
        %v4553 = vor.u32 %v4551, %v4552
        %v4554 = vshll.u32 2131351028, %v4545
        %v4555 = vshrl.u32 2102212464, %v4546
        %v4556 = vor.u32 %v4554, %v4555
        %v4557 = vshll.u32 2102212464, %v4545
        %v4558 = vshrl.u32 920167782, %v4546
        %v4559 = vor.u32 %v4557, %v4558
        %v4560 = vshll.u32 920167782, %v4545
        %v4561 = vshrl.u32 1326507024, %v4546
        %v4562 = vor.u32 %v4560, %v4561
        %vm4563 = vcmp.lt.s32.totalorder %v4544, 1
        %vm4564 = vcmp.lt.s32.totalorder %v4544, 2
        %vm4565 = vcmp.lt.s32.totalorder %v4544, 3
        %vm4566 = vcmp.lt.s32.totalorder %v4544, 4
        %v4567 = vsel %vm4563, %v4547, %v4550
        %v4568 = vsel %vm4566, %v4556, 2102212464
        %v4569 = vsel %vm4565, %v4553, %v4568
        %v4570 = vsel %vm4564, %v4567, %v4569
        %v4571 = vsel %vm4563, %v4550, %v4553
        %v4572 = vsel %vm4566, %v4559, 920167782
        %v4573 = vsel %vm4565, %v4556, %v4572
        %v4574 = vsel %vm4564, %v4571, %v4573
        %v4575 = vsel %vm4563, %v4553, %v4556
        %v4576 = vsel %vm4566, %v4562, 1326507024
        %v4577 = vsel %vm4565, %v4559, %v4576
        %v4578 = vsel %vm4564, %v4575, %v4577
        %v4579 = vshll.u32 %v4539, 8
        %v4580 = vmul.u32.u64.compose %v4579, %v4578
        %v4581 = vextract.low.u32 %v4580
        %v4582 = vextract.high.u32 %v4580
        %v4583 = vmul.u32.u64.compose %v4579, %v4574
        %v4584 = vextract.low.u32 %v4583
        %v4585 = vextract.high.u32 %v4583
        %v4586 = vmul.u32 %v4579, %v4570
        %v4587 = vadd.s32 %v4582, %v4584
        %vm4588 = vc.u32 %v4582, %v4584
        %v4589 = vadd.s32 %v4585, 1
        %v4590 = vsel %vm4588, %v4589, %v4585
        %v4591 = vadd.s32 %v4586, %v4590
        %v4592 = vadd.s32 %v4591, 536870912
        %v4593 = vshrl.u32 %v4592, 30
        %v4594 = vshll.u32 %v4593, 30
        %v4595 = vsub.s32 %v4591, %v4594
        %vm4596 = vcmp.lt.s32.totalorder %v4595, 0
        %v4597 = vsub.s32 0, %v4595
        %v4598 = vsel %vm4596, %v4597, %v4595
        %v4599 = vclz %v4598
        %v4600 = vsub.s32 %v4599, 2
        %vm4601 = vcmp.gt.s32.totalorder 0, %v4600
        %v4602 = vsel %vm4601, 0, %v4600
        %v4603 = vsub.s32 32, %v4602
        %v4604 = vshll.u32 %v4595, %v4602
        %v4605 = vshrl.u32 %v4587, %v4603
        %v4606 = vor.u32 %v4604, %v4605
        %v4607 = vsub.s32 4294967266, %v4602
        %v4608 = vadd.s32 %v4607, 127
        %v4609 = vshll.u32 %v4608, 23
        %v4610 = vor.u32 4788187, %v4609
        %v4611 = vand.u32 2147483647, %v4610
        %v4613 = vcvt.s32.f32 %v4606
        %v4614 = vmul.f32 %v4613, %v4611
        %v4615 = vxor.u32 %v4614, 2147483648
        %v4616 = vsel %vm4533, %v4615, %v4614
        %v4617 = vsub.s32 4, %v4593
        %v4618 = vsel %vm4533, %v4617, %v4593
        %v4619 = vsel %vm4532, %v2051, %v4616
        %v4620 = vsel %vm4532, 0, %v4618
        %v4621 = vcosq.f32.pop %v4619
        %v4622 = vsinq.f32.pop %v4619
        %vm4623 = vweird.f32 %v2051
        %v4624 = vand.u32 %v4620, 3
        %vm4625 = vcmp.lt.s32.totalorder %v4624, 2
        %vm4626 = vcmp.eq.s32.totalorder %v4624, 0
        %v4627 = vxor.u32 %v4622, 2147483648
        %v4628 = vsel %vm4626, %v4621, %v4627
        %vm4629 = vcmp.eq.s32.totalorder %v4624, 2
        %v4630 = vxor.u32 %v4621, 2147483648
        %v4631 = vsel %vm4629, %v4630, %v4622
        %v4632 = vsel %vm4625, %v4628, %v4631
        %v4633 = vsel %vm4623, nan, %v4632
        %v4634 = vand.u32 2147483647, %v2052
        %vm4635 = vcmp.le.f32.partialorder %v4634, 0.7853982
        %vm4636 = vcmp.lt.s32.totalorder %v2052, 0
        %v4637 = vand.u32 %v2052, 2139095040
        %v4638 = vshrl.u32 %v4637, 23
        %v4639 = vsub.s32 %v4638, 127
        %v4640 = vand.u32 2147483647, %v2052
        %v4641 = vand.u32 %v4640, 8388607
        %v4642 = vor.u32 %v4641, 8388608
        %v4643 = vsub.s32 0, %v4642
        %v4644 = vadd.s32 %v4639, 1
        %vm4645 = vcmp.gt.s32.totalorder %v4644, 0
        %v4646 = vsel %vm4645, %v4644, 0
        %v4647 = vshrl.u32 %v4646, 5
        %v4648 = vand.u32 %v4646, 31
        %v4649 = vsub.s32 32, %v4648
        %v4650 = vshrl.u32 683565275, %v4649
        %v4651 = vshll.u32 683565275, %v4648
        %v4652 = vshrl.u32 2475754826, %v4649
        %v4653 = vor.u32 %v4651, %v4652
        %v4654 = vshll.u32 2475754826, %v4648
        %v4655 = vshrl.u32 2131351028, %v4649
        %v4656 = vor.u32 %v4654, %v4655
        %v4657 = vshll.u32 2131351028, %v4648
        %v4658 = vshrl.u32 2102212464, %v4649
        %v4659 = vor.u32 %v4657, %v4658
        %v4660 = vshll.u32 2102212464, %v4648
        %v4661 = vshrl.u32 920167782, %v4649
        %v4662 = vor.u32 %v4660, %v4661
        %v4663 = vshll.u32 920167782, %v4648
        %v4664 = vshrl.u32 1326507024, %v4649
        %v4665 = vor.u32 %v4663, %v4664
        %vm4666 = vcmp.lt.s32.totalorder %v4647, 1
        %vm4667 = vcmp.lt.s32.totalorder %v4647, 2
        %vm4668 = vcmp.lt.s32.totalorder %v4647, 3
        %vm4669 = vcmp.lt.s32.totalorder %v4647, 4
        %v4670 = vsel %vm4666, %v4650, %v4653
        %v4671 = vsel %vm4669, %v4659, 2102212464
        %v4672 = vsel %vm4668, %v4656, %v4671
        %v4673 = vsel %vm4667, %v4670, %v4672
        %v4674 = vsel %vm4666, %v4653, %v4656
        %v4675 = vsel %vm4669, %v4662, 920167782
        %v4676 = vsel %vm4668, %v4659, %v4675
        %v4677 = vsel %vm4667, %v4674, %v4676
        %v4678 = vsel %vm4666, %v4656, %v4659
        %v4679 = vsel %vm4669, %v4665, 1326507024
        %v4680 = vsel %vm4668, %v4662, %v4679
        %v4681 = vsel %vm4667, %v4678, %v4680
        %v4682 = vshll.u32 %v4642, 8
        %v4683 = vmul.u32.u64.compose %v4682, %v4681
        %v4684 = vextract.low.u32 %v4683
        %v4685 = vextract.high.u32 %v4683
        %v4686 = vmul.u32.u64.compose %v4682, %v4677
        %v4687 = vextract.low.u32 %v4686
        %v4688 = vextract.high.u32 %v4686
        %v4689 = vmul.u32 %v4682, %v4673
        %v4690 = vadd.s32 %v4685, %v4687
        %vm4691 = vc.u32 %v4685, %v4687
        %v4692 = vadd.s32 %v4688, 1
        %v4693 = vsel %vm4691, %v4692, %v4688
        %v4694 = vadd.s32 %v4689, %v4693
        %v4695 = vadd.s32 %v4694, 536870912
        %v4696 = vshrl.u32 %v4695, 30
        %v4697 = vshll.u32 %v4696, 30
        %v4698 = vsub.s32 %v4694, %v4697
        %vm4699 = vcmp.lt.s32.totalorder %v4698, 0
        %v4700 = vsub.s32 0, %v4698
        %v4701 = vsel %vm4699, %v4700, %v4698
        %v4702 = vclz %v4701
        %v4703 = vsub.s32 %v4702, 2
        %vm4704 = vcmp.gt.s32.totalorder 0, %v4703
        %v4705 = vsel %vm4704, 0, %v4703
        %v4706 = vsub.s32 32, %v4705
        %v4707 = vshll.u32 %v4698, %v4705
        %v4708 = vshrl.u32 %v4690, %v4706
        %v4709 = vor.u32 %v4707, %v4708
        %v4710 = vsub.s32 4294967266, %v4705
        %v4711 = vadd.s32 %v4710, 127
        %v4712 = vshll.u32 %v4711, 23
        %v4713 = vor.u32 4788187, %v4712
        %v4714 = vand.u32 2147483647, %v4713
        %v4716 = vcvt.s32.f32 %v4709
        %v4717 = vmul.f32 %v4716, %v4714
        %v4718 = vxor.u32 %v4717, 2147483648
        %v4719 = vsel %vm4636, %v4718, %v4717
        %v4720 = vsub.s32 4, %v4696
        %v4721 = vsel %vm4636, %v4720, %v4696
        %v4722 = vsel %vm4635, %v2052, %v4719
        %v4723 = vsel %vm4635, 0, %v4721
        %v4724 = vcosq.f32.pop %v4722
        %v4725 = vsinq.f32.pop %v4722
        %vm4726 = vweird.f32 %v2052
        %v4727 = vand.u32 %v4723, 3
        %vm4728 = vcmp.lt.s32.totalorder %v4727, 2
        %vm4729 = vcmp.eq.s32.totalorder %v4727, 0
        %v4730 = vxor.u32 %v4725, 2147483648
        %v4731 = vsel %vm4729, %v4724, %v4730
        %vm4732 = vcmp.eq.s32.totalorder %v4727, 2
        %v4733 = vxor.u32 %v4724, 2147483648
        %v4734 = vsel %vm4732, %v4733, %v4725
        %v4735 = vsel %vm4728, %v4731, %v4734
        %v4736 = vsel %vm4726, nan, %v4735
        %v4737 = vand.u32 2147483647, %v2053
        %vm4738 = vcmp.le.f32.partialorder %v4737, 0.7853982
        %vm4739 = vcmp.lt.s32.totalorder %v2053, 0
        %v4740 = vand.u32 %v2053, 2139095040
        %v4741 = vshrl.u32 %v4740, 23
        %v4742 = vsub.s32 %v4741, 127
        %v4743 = vand.u32 2147483647, %v2053
        %v4744 = vand.u32 %v4743, 8388607
        %v4745 = vor.u32 %v4744, 8388608
        %v4746 = vsub.s32 0, %v4745
        %v4747 = vadd.s32 %v4742, 1
        %vm4748 = vcmp.gt.s32.totalorder %v4747, 0
        %v4749 = vsel %vm4748, %v4747, 0
        %v4750 = vshrl.u32 %v4749, 5
        %v4751 = vand.u32 %v4749, 31
        %v4752 = vsub.s32 32, %v4751
        %v4753 = vshrl.u32 683565275, %v4752
        %v4754 = vshll.u32 683565275, %v4751
        %v4755 = vshrl.u32 2475754826, %v4752
        %v4756 = vor.u32 %v4754, %v4755
        %v4757 = vshll.u32 2475754826, %v4751
        %v4758 = vshrl.u32 2131351028, %v4752
        %v4759 = vor.u32 %v4757, %v4758
        %v4760 = vshll.u32 2131351028, %v4751
        %v4761 = vshrl.u32 2102212464, %v4752
        %v4762 = vor.u32 %v4760, %v4761
        %v4763 = vshll.u32 2102212464, %v4751
        %v4764 = vshrl.u32 920167782, %v4752
        %v4765 = vor.u32 %v4763, %v4764
        %v4766 = vshll.u32 920167782, %v4751
        %v4767 = vshrl.u32 1326507024, %v4752
        %v4768 = vor.u32 %v4766, %v4767
        %vm4769 = vcmp.lt.s32.totalorder %v4750, 1
        %vm4770 = vcmp.lt.s32.totalorder %v4750, 2
        %vm4771 = vcmp.lt.s32.totalorder %v4750, 3
        %vm4772 = vcmp.lt.s32.totalorder %v4750, 4
        %v4773 = vsel %vm4769, %v4753, %v4756
        %v4774 = vsel %vm4772, %v4762, 2102212464
        %v4775 = vsel %vm4771, %v4759, %v4774
        %v4776 = vsel %vm4770, %v4773, %v4775
        %v4777 = vsel %vm4769, %v4756, %v4759
        %v4778 = vsel %vm4772, %v4765, 920167782
        %v4779 = vsel %vm4771, %v4762, %v4778
        %v4780 = vsel %vm4770, %v4777, %v4779
        %v4781 = vsel %vm4769, %v4759, %v4762
        %v4782 = vsel %vm4772, %v4768, 1326507024
        %v4783 = vsel %vm4771, %v4765, %v4782
        %v4784 = vsel %vm4770, %v4781, %v4783
        %v4785 = vshll.u32 %v4745, 8
        %v4786 = vmul.u32.u64.compose %v4785, %v4784
        %v4787 = vextract.low.u32 %v4786
        %v4788 = vextract.high.u32 %v4786
        %v4789 = vmul.u32.u64.compose %v4785, %v4780
        %v4790 = vextract.low.u32 %v4789
        %v4791 = vextract.high.u32 %v4789
        %v4792 = vmul.u32 %v4785, %v4776
        %v4793 = vadd.s32 %v4788, %v4790
        %vm4794 = vc.u32 %v4788, %v4790
        %v4795 = vadd.s32 %v4791, 1
        %v4796 = vsel %vm4794, %v4795, %v4791
        %v4797 = vadd.s32 %v4792, %v4796
        %v4798 = vadd.s32 %v4797, 536870912
        %v4799 = vshrl.u32 %v4798, 30
        %v4800 = vshll.u32 %v4799, 30
        %v4801 = vsub.s32 %v4797, %v4800
        %vm4802 = vcmp.lt.s32.totalorder %v4801, 0
        %v4803 = vsub.s32 0, %v4801
        %v4804 = vsel %vm4802, %v4803, %v4801
        %v4805 = vclz %v4804
        %v4806 = vsub.s32 %v4805, 2
        %vm4807 = vcmp.gt.s32.totalorder 0, %v4806
        %v4808 = vsel %vm4807, 0, %v4806
        %v4809 = vsub.s32 32, %v4808
        %v4810 = vshll.u32 %v4801, %v4808
        %v4811 = vshrl.u32 %v4793, %v4809
        %v4812 = vor.u32 %v4810, %v4811
        %v4813 = vsub.s32 4294967266, %v4808
        %v4814 = vadd.s32 %v4813, 127
        %v4815 = vshll.u32 %v4814, 23
        %v4816 = vor.u32 4788187, %v4815
        %v4817 = vand.u32 2147483647, %v4816
        %v4819 = vcvt.s32.f32 %v4812
        %v4820 = vmul.f32 %v4819, %v4817
        %v4821 = vxor.u32 %v4820, 2147483648
        %v4822 = vsel %vm4739, %v4821, %v4820
        %v4823 = vsub.s32 4, %v4799
        %v4824 = vsel %vm4739, %v4823, %v4799
        %v4825 = vsel %vm4738, %v2053, %v4822
        %v4826 = vsel %vm4738, 0, %v4824
        %v4827 = vcosq.f32.pop %v4825
        %v4828 = vsinq.f32.pop %v4825
        %vm4829 = vweird.f32 %v2053
        %v4830 = vand.u32 %v4826, 3
        %vm4831 = vcmp.lt.s32.totalorder %v4830, 2
        %vm4832 = vcmp.eq.s32.totalorder %v4830, 0
        %v4833 = vxor.u32 %v4828, 2147483648
        %v4834 = vsel %vm4832, %v4827, %v4833
        %vm4835 = vcmp.eq.s32.totalorder %v4830, 2
        %v4836 = vxor.u32 %v4827, 2147483648
        %v4837 = vsel %vm4835, %v4836, %v4828
        %v4838 = vsel %vm4831, %v4834, %v4837
        %v4839 = vsel %vm4829, nan, %v4838
        %v4840 = vand.u32 2147483647, %v2054
        %vm4841 = vcmp.le.f32.partialorder %v4840, 0.7853982
        %vm4842 = vcmp.lt.s32.totalorder %v2054, 0
        %v4843 = vand.u32 %v2054, 2139095040
        %v4844 = vshrl.u32 %v4843, 23
        %v4845 = vsub.s32 %v4844, 127
        %v4846 = vand.u32 2147483647, %v2054
        %v4847 = vand.u32 %v4846, 8388607
        %v4848 = vor.u32 %v4847, 8388608
        %v4849 = vsub.s32 0, %v4848
        %v4850 = vadd.s32 %v4845, 1
        %vm4851 = vcmp.gt.s32.totalorder %v4850, 0
        %v4852 = vsel %vm4851, %v4850, 0
        %v4853 = vshrl.u32 %v4852, 5
        %v4854 = vand.u32 %v4852, 31
        %v4855 = vsub.s32 32, %v4854
        %v4856 = vshrl.u32 683565275, %v4855
        %v4857 = vshll.u32 683565275, %v4854
        %v4858 = vshrl.u32 2475754826, %v4855
        %v4859 = vor.u32 %v4857, %v4858
        %v4860 = vshll.u32 2475754826, %v4854
        %v4861 = vshrl.u32 2131351028, %v4855
        %v4862 = vor.u32 %v4860, %v4861
        %v4863 = vshll.u32 2131351028, %v4854
        %v4864 = vshrl.u32 2102212464, %v4855
        %v4865 = vor.u32 %v4863, %v4864
        %v4866 = vshll.u32 2102212464, %v4854
        %v4867 = vshrl.u32 920167782, %v4855
        %v4868 = vor.u32 %v4866, %v4867
        %v4869 = vshll.u32 920167782, %v4854
        %v4870 = vshrl.u32 1326507024, %v4855
        %v4871 = vor.u32 %v4869, %v4870
        %vm4872 = vcmp.lt.s32.totalorder %v4853, 1
        %vm4873 = vcmp.lt.s32.totalorder %v4853, 2
        %vm4874 = vcmp.lt.s32.totalorder %v4853, 3
        %vm4875 = vcmp.lt.s32.totalorder %v4853, 4
        %v4876 = vsel %vm4872, %v4856, %v4859
        %v4877 = vsel %vm4875, %v4865, 2102212464
        %v4878 = vsel %vm4874, %v4862, %v4877
        %v4879 = vsel %vm4873, %v4876, %v4878
        %v4880 = vsel %vm4872, %v4859, %v4862
        %v4881 = vsel %vm4875, %v4868, 920167782
        %v4882 = vsel %vm4874, %v4865, %v4881
        %v4883 = vsel %vm4873, %v4880, %v4882
        %v4884 = vsel %vm4872, %v4862, %v4865
        %v4885 = vsel %vm4875, %v4871, 1326507024
        %v4886 = vsel %vm4874, %v4868, %v4885
        %v4887 = vsel %vm4873, %v4884, %v4886
        %v4888 = vshll.u32 %v4848, 8
        %v4889 = vmul.u32.u64.compose %v4888, %v4887
        %v4890 = vextract.low.u32 %v4889
        %v4891 = vextract.high.u32 %v4889
        %v4892 = vmul.u32.u64.compose %v4888, %v4883
        %v4893 = vextract.low.u32 %v4892
        %v4894 = vextract.high.u32 %v4892
        %v4895 = vmul.u32 %v4888, %v4879
        %v4896 = vadd.s32 %v4891, %v4893
        %vm4897 = vc.u32 %v4891, %v4893
        %v4898 = vadd.s32 %v4894, 1
        %v4899 = vsel %vm4897, %v4898, %v4894
        %v4900 = vadd.s32 %v4895, %v4899
        %v4901 = vadd.s32 %v4900, 536870912
        %v4902 = vshrl.u32 %v4901, 30
        %v4903 = vshll.u32 %v4902, 30
        %v4904 = vsub.s32 %v4900, %v4903
        %vm4905 = vcmp.lt.s32.totalorder %v4904, 0
        %v4906 = vsub.s32 0, %v4904
        %v4907 = vsel %vm4905, %v4906, %v4904
        %v4908 = vclz %v4907
        %v4909 = vsub.s32 %v4908, 2
        %vm4910 = vcmp.gt.s32.totalorder 0, %v4909
        %v4911 = vsel %vm4910, 0, %v4909
        %v4912 = vsub.s32 32, %v4911
        %v4913 = vshll.u32 %v4904, %v4911
        %v4914 = vshrl.u32 %v4896, %v4912
        %v4915 = vor.u32 %v4913, %v4914
        %v4916 = vsub.s32 4294967266, %v4911
        %v4917 = vadd.s32 %v4916, 127
        %v4918 = vshll.u32 %v4917, 23
        %v4919 = vor.u32 4788187, %v4918
        %v4920 = vand.u32 2147483647, %v4919
        %v4922 = vcvt.s32.f32 %v4915
        %v4923 = vmul.f32 %v4922, %v4920
        %v4924 = vxor.u32 %v4923, 2147483648
        %v4925 = vsel %vm4842, %v4924, %v4923
        %v4926 = vsub.s32 4, %v4902
        %v4927 = vsel %vm4842, %v4926, %v4902
        %v4928 = vsel %vm4841, %v2054, %v4925
        %v4929 = vsel %vm4841, 0, %v4927
        %v4930 = vcosq.f32.pop %v4928
        %v4931 = vsinq.f32.pop %v4928
        %vm4932 = vweird.f32 %v2054
        %v4933 = vand.u32 %v4929, 3
        %vm4934 = vcmp.lt.s32.totalorder %v4933, 2
        %vm4935 = vcmp.eq.s32.totalorder %v4933, 0
        %v4936 = vxor.u32 %v4931, 2147483648
        %v4937 = vsel %vm4935, %v4930, %v4936
        %vm4938 = vcmp.eq.s32.totalorder %v4933, 2
        %v4939 = vxor.u32 %v4930, 2147483648
        %v4940 = vsel %vm4938, %v4939, %v4931
        %v4941 = vsel %vm4934, %v4937, %v4940
        %v4942 = vsel %vm4932, nan, %v4941
        %v4943 = vand.u32 2147483647, %v2055
        %vm4944 = vcmp.le.f32.partialorder %v4943, 0.7853982
        %vm4945 = vcmp.lt.s32.totalorder %v2055, 0
        %v4946 = vand.u32 %v2055, 2139095040
        %v4947 = vshrl.u32 %v4946, 23
        %v4948 = vsub.s32 %v4947, 127
        %v4949 = vand.u32 2147483647, %v2055
        %v4950 = vand.u32 %v4949, 8388607
        %v4951 = vor.u32 %v4950, 8388608
        %v4952 = vsub.s32 0, %v4951
        %v4953 = vadd.s32 %v4948, 1
        %vm4954 = vcmp.gt.s32.totalorder %v4953, 0
        %v4955 = vsel %vm4954, %v4953, 0
        %v4956 = vshrl.u32 %v4955, 5
        %v4957 = vand.u32 %v4955, 31
        %v4958 = vsub.s32 32, %v4957
        %v4959 = vshrl.u32 683565275, %v4958
        %v4960 = vshll.u32 683565275, %v4957
        %v4961 = vshrl.u32 2475754826, %v4958
        %v4962 = vor.u32 %v4960, %v4961
        %v4963 = vshll.u32 2475754826, %v4957
        %v4964 = vshrl.u32 2131351028, %v4958
        %v4965 = vor.u32 %v4963, %v4964
        %v4966 = vshll.u32 2131351028, %v4957
        %v4967 = vshrl.u32 2102212464, %v4958
        %v4968 = vor.u32 %v4966, %v4967
        %v4969 = vshll.u32 2102212464, %v4957
        %v4970 = vshrl.u32 920167782, %v4958
        %v4971 = vor.u32 %v4969, %v4970
        %v4972 = vshll.u32 920167782, %v4957
        %v4973 = vshrl.u32 1326507024, %v4958
        %v4974 = vor.u32 %v4972, %v4973
        %vm4975 = vcmp.lt.s32.totalorder %v4956, 1
        %vm4976 = vcmp.lt.s32.totalorder %v4956, 2
        %vm4977 = vcmp.lt.s32.totalorder %v4956, 3
        %vm4978 = vcmp.lt.s32.totalorder %v4956, 4
        %v4979 = vsel %vm4975, %v4959, %v4962
        %v4980 = vsel %vm4978, %v4968, 2102212464
        %v4981 = vsel %vm4977, %v4965, %v4980
        %v4982 = vsel %vm4976, %v4979, %v4981
        %v4983 = vsel %vm4975, %v4962, %v4965
        %v4984 = vsel %vm4978, %v4971, 920167782
        %v4985 = vsel %vm4977, %v4968, %v4984
        %v4986 = vsel %vm4976, %v4983, %v4985
        %v4987 = vsel %vm4975, %v4965, %v4968
        %v4988 = vsel %vm4978, %v4974, 1326507024
        %v4989 = vsel %vm4977, %v4971, %v4988
        %v4990 = vsel %vm4976, %v4987, %v4989
        %v4991 = vshll.u32 %v4951, 8
        %v4992 = vmul.u32.u64.compose %v4991, %v4990
        %v4993 = vextract.low.u32 %v4992
        %v4994 = vextract.high.u32 %v4992
        %v4995 = vmul.u32.u64.compose %v4991, %v4986
        %v4996 = vextract.low.u32 %v4995
        %v4997 = vextract.high.u32 %v4995
        %v4998 = vmul.u32 %v4991, %v4982
        %v4999 = vadd.s32 %v4994, %v4996
        %vm5000 = vc.u32 %v4994, %v4996
        %v5001 = vadd.s32 %v4997, 1
        %v5002 = vsel %vm5000, %v5001, %v4997
        %v5003 = vadd.s32 %v4998, %v5002
        %v5004 = vadd.s32 %v5003, 536870912
        %v5005 = vshrl.u32 %v5004, 30
        %v5006 = vshll.u32 %v5005, 30
        %v5007 = vsub.s32 %v5003, %v5006
        %vm5008 = vcmp.lt.s32.totalorder %v5007, 0
        %v5009 = vsub.s32 0, %v5007
        %v5010 = vsel %vm5008, %v5009, %v5007
        %v5011 = vclz %v5010
        %v5012 = vsub.s32 %v5011, 2
        %vm5013 = vcmp.gt.s32.totalorder 0, %v5012
        %v5014 = vsel %vm5013, 0, %v5012
        %v5015 = vsub.s32 32, %v5014
        %v5016 = vshll.u32 %v5007, %v5014
        %v5017 = vshrl.u32 %v4999, %v5015
        %v5018 = vor.u32 %v5016, %v5017
        %v5019 = vsub.s32 4294967266, %v5014
        %v5020 = vadd.s32 %v5019, 127
        %v5021 = vshll.u32 %v5020, 23
        %v5022 = vor.u32 4788187, %v5021
        %v5023 = vand.u32 2147483647, %v5022
        %v5025 = vcvt.s32.f32 %v5018
        %v5026 = vmul.f32 %v5025, %v5023
        %v5027 = vxor.u32 %v5026, 2147483648
        %v5028 = vsel %vm4945, %v5027, %v5026
        %v5029 = vsub.s32 4, %v5005
        %v5030 = vsel %vm4945, %v5029, %v5005
        %v5031 = vsel %vm4944, %v2055, %v5028
        %v5032 = vsel %vm4944, 0, %v5030
        %v5033 = vcosq.f32.pop %v5031
        %v5034 = vsinq.f32.pop %v5031
        %vm5035 = vweird.f32 %v2055
        %v5036 = vand.u32 %v5032, 3
        %vm5037 = vcmp.lt.s32.totalorder %v5036, 2
        %vm5038 = vcmp.eq.s32.totalorder %v5036, 0
        %v5039 = vxor.u32 %v5034, 2147483648
        %v5040 = vsel %vm5038, %v5033, %v5039
        %vm5041 = vcmp.eq.s32.totalorder %v5036, 2
        %v5042 = vxor.u32 %v5033, 2147483648
        %v5043 = vsel %vm5041, %v5042, %v5034
        %v5044 = vsel %vm5037, %v5040, %v5043
        %v5045 = vsel %vm5035, nan, %v5044
        %v5046 = vand.u32 2147483647, %v2056
        %vm5047 = vcmp.le.f32.partialorder %v5046, 0.7853982
        %vm5048 = vcmp.lt.s32.totalorder %v2056, 0
        %v5049 = vand.u32 %v2056, 2139095040
        %v5050 = vshrl.u32 %v5049, 23
        %v5051 = vsub.s32 %v5050, 127
        %v5052 = vand.u32 2147483647, %v2056
        %v5053 = vand.u32 %v5052, 8388607
        %v5054 = vor.u32 %v5053, 8388608
        %v5055 = vsub.s32 0, %v5054
        %v5056 = vadd.s32 %v5051, 1
        %vm5057 = vcmp.gt.s32.totalorder %v5056, 0
        %v5058 = vsel %vm5057, %v5056, 0
        %v5059 = vshrl.u32 %v5058, 5
        %v5060 = vand.u32 %v5058, 31
        %v5061 = vsub.s32 32, %v5060
        %v5062 = vshrl.u32 683565275, %v5061
        %v5063 = vshll.u32 683565275, %v5060
        %v5064 = vshrl.u32 2475754826, %v5061
        %v5065 = vor.u32 %v5063, %v5064
        %v5066 = vshll.u32 2475754826, %v5060
        %v5067 = vshrl.u32 2131351028, %v5061
        %v5068 = vor.u32 %v5066, %v5067
        %v5069 = vshll.u32 2131351028, %v5060
        %v5070 = vshrl.u32 2102212464, %v5061
        %v5071 = vor.u32 %v5069, %v5070
        %v5072 = vshll.u32 2102212464, %v5060
        %v5073 = vshrl.u32 920167782, %v5061
        %v5074 = vor.u32 %v5072, %v5073
        %v5075 = vshll.u32 920167782, %v5060
        %v5076 = vshrl.u32 1326507024, %v5061
        %v5077 = vor.u32 %v5075, %v5076
        %vm5078 = vcmp.lt.s32.totalorder %v5059, 1
        %vm5079 = vcmp.lt.s32.totalorder %v5059, 2
        %vm5080 = vcmp.lt.s32.totalorder %v5059, 3
        %vm5081 = vcmp.lt.s32.totalorder %v5059, 4
        %v5082 = vsel %vm5078, %v5062, %v5065
        %v5083 = vsel %vm5081, %v5071, 2102212464
        %v5084 = vsel %vm5080, %v5068, %v5083
        %v5085 = vsel %vm5079, %v5082, %v5084
        %v5086 = vsel %vm5078, %v5065, %v5068
        %v5087 = vsel %vm5081, %v5074, 920167782
        %v5088 = vsel %vm5080, %v5071, %v5087
        %v5089 = vsel %vm5079, %v5086, %v5088
        %v5090 = vsel %vm5078, %v5068, %v5071
        %v5091 = vsel %vm5081, %v5077, 1326507024
        %v5092 = vsel %vm5080, %v5074, %v5091
        %v5093 = vsel %vm5079, %v5090, %v5092
        %v5094 = vshll.u32 %v5054, 8
        %v5095 = vmul.u32.u64.compose %v5094, %v5093
        %v5096 = vextract.low.u32 %v5095
        %v5097 = vextract.high.u32 %v5095
        %v5098 = vmul.u32.u64.compose %v5094, %v5089
        %v5099 = vextract.low.u32 %v5098
        %v5100 = vextract.high.u32 %v5098
        %v5101 = vmul.u32 %v5094, %v5085
        %v5102 = vadd.s32 %v5097, %v5099
        %vm5103 = vc.u32 %v5097, %v5099
        %v5104 = vadd.s32 %v5100, 1
        %v5105 = vsel %vm5103, %v5104, %v5100
        %v5106 = vadd.s32 %v5101, %v5105
        %v5107 = vadd.s32 %v5106, 536870912
        %v5108 = vshrl.u32 %v5107, 30
        %v5109 = vshll.u32 %v5108, 30
        %v5110 = vsub.s32 %v5106, %v5109
        %vm5111 = vcmp.lt.s32.totalorder %v5110, 0
        %v5112 = vsub.s32 0, %v5110
        %v5113 = vsel %vm5111, %v5112, %v5110
        %v5114 = vclz %v5113
        %v5115 = vsub.s32 %v5114, 2
        %vm5116 = vcmp.gt.s32.totalorder 0, %v5115
        %v5117 = vsel %vm5116, 0, %v5115
        %v5118 = vsub.s32 32, %v5117
        %v5119 = vshll.u32 %v5110, %v5117
        %v5120 = vshrl.u32 %v5102, %v5118
        %v5121 = vor.u32 %v5119, %v5120
        %v5122 = vsub.s32 4294967266, %v5117
        %v5123 = vadd.s32 %v5122, 127
        %v5124 = vshll.u32 %v5123, 23
        %v5125 = vor.u32 4788187, %v5124
        %v5126 = vand.u32 2147483647, %v5125
        %v5128 = vcvt.s32.f32 %v5121
        %v5129 = vmul.f32 %v5128, %v5126
        %v5130 = vxor.u32 %v5129, 2147483648
        %v5131 = vsel %vm5048, %v5130, %v5129
        %v5132 = vsub.s32 4, %v5108
        %v5133 = vsel %vm5048, %v5132, %v5108
        %v5134 = vsel %vm5047, %v2056, %v5131
        %v5135 = vsel %vm5047, 0, %v5133
        %v5136 = vcosq.f32.pop %v5134
        %v5137 = vsinq.f32.pop %v5134
        %vm5138 = vweird.f32 %v2056
        %v5139 = vand.u32 %v5135, 3
        %vm5140 = vcmp.lt.s32.totalorder %v5139, 2
        %vm5141 = vcmp.eq.s32.totalorder %v5139, 0
        %v5142 = vxor.u32 %v5137, 2147483648
        %v5143 = vsel %vm5141, %v5136, %v5142
        %vm5144 = vcmp.eq.s32.totalorder %v5139, 2
        %v5145 = vxor.u32 %v5136, 2147483648
        %v5146 = vsel %vm5144, %v5145, %v5137
        %v5147 = vsel %vm5140, %v5143, %v5146
        %v5148 = vsel %vm5138, nan, %v5147
        %v5149 = vand.u32 2147483647, %v2057
        %vm5150 = vcmp.le.f32.partialorder %v5149, 0.7853982
        %vm5151 = vcmp.lt.s32.totalorder %v2057, 0
        %v5152 = vand.u32 %v2057, 2139095040
        %v5153 = vshrl.u32 %v5152, 23
        %v5154 = vsub.s32 %v5153, 127
        %v5155 = vand.u32 2147483647, %v2057
        %v5156 = vand.u32 %v5155, 8388607
        %v5157 = vor.u32 %v5156, 8388608
        %v5158 = vsub.s32 0, %v5157
        %v5159 = vadd.s32 %v5154, 1
        %vm5160 = vcmp.gt.s32.totalorder %v5159, 0
        %v5161 = vsel %vm5160, %v5159, 0
        %v5162 = vshrl.u32 %v5161, 5
        %v5163 = vand.u32 %v5161, 31
        %v5164 = vsub.s32 32, %v5163
        %v5165 = vshrl.u32 683565275, %v5164
        %v5166 = vshll.u32 683565275, %v5163
        %v5167 = vshrl.u32 2475754826, %v5164
        %v5168 = vor.u32 %v5166, %v5167
        %v5169 = vshll.u32 2475754826, %v5163
        %v5170 = vshrl.u32 2131351028, %v5164
        %v5171 = vor.u32 %v5169, %v5170
        %v5172 = vshll.u32 2131351028, %v5163
        %v5173 = vshrl.u32 2102212464, %v5164
        %v5174 = vor.u32 %v5172, %v5173
        %v5175 = vshll.u32 2102212464, %v5163
        %v5176 = vshrl.u32 920167782, %v5164
        %v5177 = vor.u32 %v5175, %v5176
        %v5178 = vshll.u32 920167782, %v5163
        %v5179 = vshrl.u32 1326507024, %v5164
        %v5180 = vor.u32 %v5178, %v5179
        %vm5181 = vcmp.lt.s32.totalorder %v5162, 1
        %vm5182 = vcmp.lt.s32.totalorder %v5162, 2
        %vm5183 = vcmp.lt.s32.totalorder %v5162, 3
        %vm5184 = vcmp.lt.s32.totalorder %v5162, 4
        %v5185 = vsel %vm5181, %v5165, %v5168
        %v5186 = vsel %vm5184, %v5174, 2102212464
        %v5187 = vsel %vm5183, %v5171, %v5186
        %v5188 = vsel %vm5182, %v5185, %v5187
        %v5189 = vsel %vm5181, %v5168, %v5171
        %v5190 = vsel %vm5184, %v5177, 920167782
        %v5191 = vsel %vm5183, %v5174, %v5190
        %v5192 = vsel %vm5182, %v5189, %v5191
        %v5193 = vsel %vm5181, %v5171, %v5174
        %v5194 = vsel %vm5184, %v5180, 1326507024
        %v5195 = vsel %vm5183, %v5177, %v5194
        %v5196 = vsel %vm5182, %v5193, %v5195
        %v5197 = vshll.u32 %v5157, 8
        %v5198 = vmul.u32.u64.compose %v5197, %v5196
        %v5199 = vextract.low.u32 %v5198
        %v5200 = vextract.high.u32 %v5198
        %v5201 = vmul.u32.u64.compose %v5197, %v5192
        %v5202 = vextract.low.u32 %v5201
        %v5203 = vextract.high.u32 %v5201
        %v5204 = vmul.u32 %v5197, %v5188
        %v5205 = vadd.s32 %v5200, %v5202
        %vm5206 = vc.u32 %v5200, %v5202
        %v5207 = vadd.s32 %v5203, 1
        %v5208 = vsel %vm5206, %v5207, %v5203
        %v5209 = vadd.s32 %v5204, %v5208
        %v5210 = vadd.s32 %v5209, 536870912
        %v5211 = vshrl.u32 %v5210, 30
        %v5212 = vshll.u32 %v5211, 30
        %v5213 = vsub.s32 %v5209, %v5212
        %vm5214 = vcmp.lt.s32.totalorder %v5213, 0
        %v5215 = vsub.s32 0, %v5213
        %v5216 = vsel %vm5214, %v5215, %v5213
        %v5217 = vclz %v5216
        %v5218 = vsub.s32 %v5217, 2
        %vm5219 = vcmp.gt.s32.totalorder 0, %v5218
        %v5220 = vsel %vm5219, 0, %v5218
        %v5221 = vsub.s32 32, %v5220
        %v5222 = vshll.u32 %v5213, %v5220
        %v5223 = vshrl.u32 %v5205, %v5221
        %v5224 = vor.u32 %v5222, %v5223
        %v5225 = vsub.s32 4294967266, %v5220
        %v5226 = vadd.s32 %v5225, 127
        %v5227 = vshll.u32 %v5226, 23
        %v5228 = vor.u32 4788187, %v5227
        %v5229 = vand.u32 2147483647, %v5228
        %v5231 = vcvt.s32.f32 %v5224
        %v5232 = vmul.f32 %v5231, %v5229
        %v5233 = vxor.u32 %v5232, 2147483648
        %v5234 = vsel %vm5151, %v5233, %v5232
        %v5235 = vsub.s32 4, %v5211
        %v5236 = vsel %vm5151, %v5235, %v5211
        %v5237 = vsel %vm5150, %v2057, %v5234
        %v5238 = vsel %vm5150, 0, %v5236
        %v5239 = vcosq.f32.pop %v5237
        %v5240 = vsinq.f32.pop %v5237
        %vm5241 = vweird.f32 %v2057
        %v5242 = vand.u32 %v5238, 3
        %vm5243 = vcmp.lt.s32.totalorder %v5242, 2
        %vm5244 = vcmp.eq.s32.totalorder %v5242, 0
        %v5245 = vxor.u32 %v5240, 2147483648
        %v5246 = vsel %vm5244, %v5239, %v5245
        %vm5247 = vcmp.eq.s32.totalorder %v5242, 2
        %v5248 = vxor.u32 %v5239, 2147483648
        %v5249 = vsel %vm5247, %v5248, %v5240
        %v5250 = vsel %vm5243, %v5246, %v5249
        %v5251 = vsel %vm5241, nan, %v5250
        %v5252 = vand.u32 2147483647, %v2058
        %vm5253 = vcmp.le.f32.partialorder %v5252, 0.7853982
        %vm5254 = vcmp.lt.s32.totalorder %v2058, 0
        %v5255 = vand.u32 %v2058, 2139095040
        %v5256 = vshrl.u32 %v5255, 23
        %v5257 = vsub.s32 %v5256, 127
        %v5258 = vand.u32 2147483647, %v2058
        %v5259 = vand.u32 %v5258, 8388607
        %v5260 = vor.u32 %v5259, 8388608
        %v5261 = vsub.s32 0, %v5260
        %v5262 = vadd.s32 %v5257, 1
        %vm5263 = vcmp.gt.s32.totalorder %v5262, 0
        %v5264 = vsel %vm5263, %v5262, 0
        %v5265 = vshrl.u32 %v5264, 5
        %v5266 = vand.u32 %v5264, 31
        %v5267 = vsub.s32 32, %v5266
        %v5268 = vshrl.u32 683565275, %v5267
        %v5269 = vshll.u32 683565275, %v5266
        %v5270 = vshrl.u32 2475754826, %v5267
        %v5271 = vor.u32 %v5269, %v5270
        %v5272 = vshll.u32 2475754826, %v5266
        %v5273 = vshrl.u32 2131351028, %v5267
        %v5274 = vor.u32 %v5272, %v5273
        %v5275 = vshll.u32 2131351028, %v5266
        %v5276 = vshrl.u32 2102212464, %v5267
        %v5277 = vor.u32 %v5275, %v5276
        %v5278 = vshll.u32 2102212464, %v5266
        %v5279 = vshrl.u32 920167782, %v5267
        %v5280 = vor.u32 %v5278, %v5279
        %v5281 = vshll.u32 920167782, %v5266
        %v5282 = vshrl.u32 1326507024, %v5267
        %v5283 = vor.u32 %v5281, %v5282
        %vm5284 = vcmp.lt.s32.totalorder %v5265, 1
        %vm5285 = vcmp.lt.s32.totalorder %v5265, 2
        %vm5286 = vcmp.lt.s32.totalorder %v5265, 3
        %vm5287 = vcmp.lt.s32.totalorder %v5265, 4
        %v5288 = vsel %vm5284, %v5268, %v5271
        %v5289 = vsel %vm5287, %v5277, 2102212464
        %v5290 = vsel %vm5286, %v5274, %v5289
        %v5291 = vsel %vm5285, %v5288, %v5290
        %v5292 = vsel %vm5284, %v5271, %v5274
        %v5293 = vsel %vm5287, %v5280, 920167782
        %v5294 = vsel %vm5286, %v5277, %v5293
        %v5295 = vsel %vm5285, %v5292, %v5294
        %v5296 = vsel %vm5284, %v5274, %v5277
        %v5297 = vsel %vm5287, %v5283, 1326507024
        %v5298 = vsel %vm5286, %v5280, %v5297
        %v5299 = vsel %vm5285, %v5296, %v5298
        %v5300 = vshll.u32 %v5260, 8
        %v5301 = vmul.u32.u64.compose %v5300, %v5299
        %v5302 = vextract.low.u32 %v5301
        %v5303 = vextract.high.u32 %v5301
        %v5304 = vmul.u32.u64.compose %v5300, %v5295
        %v5305 = vextract.low.u32 %v5304
        %v5306 = vextract.high.u32 %v5304
        %v5307 = vmul.u32 %v5300, %v5291
        %v5308 = vadd.s32 %v5303, %v5305
        %vm5309 = vc.u32 %v5303, %v5305
        %v5310 = vadd.s32 %v5306, 1
        %v5311 = vsel %vm5309, %v5310, %v5306
        %v5312 = vadd.s32 %v5307, %v5311
        %v5313 = vadd.s32 %v5312, 536870912
        %v5314 = vshrl.u32 %v5313, 30
        %v5315 = vshll.u32 %v5314, 30
        %v5316 = vsub.s32 %v5312, %v5315
        %vm5317 = vcmp.lt.s32.totalorder %v5316, 0
        %v5318 = vsub.s32 0, %v5316
        %v5319 = vsel %vm5317, %v5318, %v5316
        %v5320 = vclz %v5319
        %v5321 = vsub.s32 %v5320, 2
        %vm5322 = vcmp.gt.s32.totalorder 0, %v5321
        %v5323 = vsel %vm5322, 0, %v5321
        %v5324 = vsub.s32 32, %v5323
        %v5325 = vshll.u32 %v5316, %v5323
        %v5326 = vshrl.u32 %v5308, %v5324
        %v5327 = vor.u32 %v5325, %v5326
        %v5328 = vsub.s32 4294967266, %v5323
        %v5329 = vadd.s32 %v5328, 127
        %v5330 = vshll.u32 %v5329, 23
        %v5331 = vor.u32 4788187, %v5330
        %v5332 = vand.u32 2147483647, %v5331
        %v5334 = vcvt.s32.f32 %v5327
        %v5335 = vmul.f32 %v5334, %v5332
        %v5336 = vxor.u32 %v5335, 2147483648
        %v5337 = vsel %vm5254, %v5336, %v5335
        %v5338 = vsub.s32 4, %v5314
        %v5339 = vsel %vm5254, %v5338, %v5314
        %v5340 = vsel %vm5253, %v2058, %v5337
        %v5341 = vsel %vm5253, 0, %v5339
        %v5342 = vcosq.f32.pop %v5340
        %v5343 = vsinq.f32.pop %v5340
        %vm5344 = vweird.f32 %v2058
        %v5345 = vand.u32 %v5341, 3
        %vm5346 = vcmp.lt.s32.totalorder %v5345, 2
        %vm5347 = vcmp.eq.s32.totalorder %v5345, 0
        %v5348 = vxor.u32 %v5343, 2147483648
        %v5349 = vsel %vm5347, %v5342, %v5348
        %vm5350 = vcmp.eq.s32.totalorder %v5345, 2
        %v5351 = vxor.u32 %v5342, 2147483648
        %v5352 = vsel %vm5350, %v5351, %v5343
        %v5353 = vsel %vm5346, %v5349, %v5352
        %v5354 = vsel %vm5344, nan, %v5353
        %v5355 = vadd.f32 %v2161, 1.0
        %v5356 = vadd.f32 %v2264, 1.0
        %v5357 = vadd.f32 %v2367, 1.0
        %v5358 = vadd.f32 %v2470, 1.0
        %v5359 = vadd.f32 %v2573, 1.0
        %v5360 = vadd.f32 %v2676, 1.0
        %v5361 = vadd.f32 %v2779, 1.0
        %v5362 = vadd.f32 %v2882, 1.0
        %v5363 = vadd.f32 %v2985, 1.0
        %v5364 = vadd.f32 %v3088, 1.0
        %v5365 = vadd.f32 %v3191, 1.0
        %v5366 = vadd.f32 %v3294, 1.0
        %v5367 = vadd.f32 %v3397, 1.0
        %v5368 = vadd.f32 %v3500, 1.0
        %v5369 = vadd.f32 %v3603, 1.0
        %v5370 = vadd.f32 %v3706, 1.0
        %v5371 = vadd.f32 %v3809, 1.0
        %v5372 = vadd.f32 %v3912, 1.0
        %v5373 = vadd.f32 %v4015, 1.0
        %v5374 = vadd.f32 %v4118, 1.0
        %v5375 = vadd.f32 %v4221, 1.0
        %v5376 = vadd.f32 %v4324, 1.0
        %v5377 = vadd.f32 %v4427, 1.0
        %v5378 = vadd.f32 %v4530, 1.0
        %v5379 = vadd.f32 %v4633, 1.0
        %v5380 = vadd.f32 %v4736, 1.0
        %v5381 = vadd.f32 %v4839, 1.0
        %v5382 = vadd.f32 %v4942, 1.0
        %v5383 = vadd.f32 %v5045, 1.0
        %v5384 = vadd.f32 %v5148, 1.0
        %v5385 = vadd.f32 %v5251, 1.0
        %v5386 = vadd.f32 %v5354, 1.0
        %v5387 = vmul.f32 %v5355, 0.5
        %v5388 = vmul.f32 %v5356, 0.5
        %v5389 = vmul.f32 %v5357, 0.5
        %v5390 = vmul.f32 %v5358, 0.5
        %v5391 = vmul.f32 %v5359, 0.5
        %v5392 = vmul.f32 %v5360, 0.5
        %v5393 = vmul.f32 %v5361, 0.5
        %v5394 = vmul.f32 %v5362, 0.5
        %v5395 = vmul.f32 %v5363, 0.5
        %v5396 = vmul.f32 %v5364, 0.5
        %v5397 = vmul.f32 %v5365, 0.5
        %v5398 = vmul.f32 %v5366, 0.5
        %v5399 = vmul.f32 %v5367, 0.5
        %v5400 = vmul.f32 %v5368, 0.5
        %v5401 = vmul.f32 %v5369, 0.5
        %v5402 = vmul.f32 %v5370, 0.5
        %v5403 = vmul.f32 %v5371, 0.5
        %v5404 = vmul.f32 %v5372, 0.5
        %v5405 = vmul.f32 %v5373, 0.5
        %v5406 = vmul.f32 %v5374, 0.5
        %v5407 = vmul.f32 %v5375, 0.5
        %v5408 = vmul.f32 %v5376, 0.5
        %v5409 = vmul.f32 %v5377, 0.5
        %v5410 = vmul.f32 %v5378, 0.5
        %v5411 = vmul.f32 %v5379, 0.5
        %v5412 = vmul.f32 %v5380, 0.5
        %v5413 = vmul.f32 %v5381, 0.5
        %v5414 = vmul.f32 %v5382, 0.5
        %v5415 = vmul.f32 %v5383, 0.5
        %v5416 = vmul.f32 %v5384, 0.5
        %v5417 = vmul.f32 %v5385, 0.5
        %v5418 = vmul.f32 %v5386, 0.5
        %vm5419 = vcmp.lt.f32.partialorder %v1963, 6.0
        %vm5420 = vcmp.lt.f32.partialorder %v1964, 6.0
        %vm5421 = vcmp.lt.f32.partialorder %v1965, 6.0
        %vm5422 = vcmp.lt.f32.partialorder %v1966, 6.0
        %vm5423 = vcmp.lt.f32.partialorder %v1967, 6.0
        %vm5424 = vcmp.lt.f32.partialorder %v1968, 6.0
        %vm5425 = vcmp.lt.f32.partialorder %v1969, 6.0
        %vm5426 = vcmp.lt.f32.partialorder %v1970, 6.0
        %vm5427 = vcmp.lt.f32.partialorder %v1971, 6.0
        %vm5428 = vcmp.lt.f32.partialorder %v1972, 6.0
        %vm5429 = vcmp.lt.f32.partialorder %v1973, 6.0
        %vm5430 = vcmp.lt.f32.partialorder %v1974, 6.0
        %vm5431 = vcmp.lt.f32.partialorder %v1975, 6.0
        %vm5432 = vcmp.lt.f32.partialorder %v1976, 6.0
        %vm5433 = vcmp.lt.f32.partialorder %v1977, 6.0
        %vm5434 = vcmp.lt.f32.partialorder %v1978, 6.0
        %vm5435 = vcmp.lt.f32.partialorder %v1979, 6.0
        %vm5436 = vcmp.lt.f32.partialorder %v1980, 6.0
        %vm5437 = vcmp.lt.f32.partialorder %v1981, 6.0
        %vm5438 = vcmp.lt.f32.partialorder %v1982, 6.0
        %vm5439 = vcmp.lt.f32.partialorder %v1983, 6.0
        %vm5440 = vcmp.lt.f32.partialorder %v1984, 6.0
        %vm5441 = vcmp.lt.f32.partialorder %v1985, 6.0
        %vm5442 = vcmp.lt.f32.partialorder %v1986, 6.0
        %vm5443 = vcmp.lt.f32.partialorder %v1987, 6.0
        %vm5444 = vcmp.lt.f32.partialorder %v1988, 6.0
        %vm5445 = vcmp.lt.f32.partialorder %v1989, 6.0
        %vm5446 = vcmp.lt.f32.partialorder %v1990, 6.0
        %vm5447 = vcmp.lt.f32.partialorder %v1991, 6.0
        %vm5448 = vcmp.lt.f32.partialorder %v1992, 6.0
        %vm5449 = vcmp.lt.f32.partialorder %v1993, 6.0
        %vm5450 = vcmp.lt.f32.partialorder %v1994, 6.0
        %v5451 = vsel %vm5419, %v5387, 0.0
        %v5452 = vsel %vm5420, %v5388, 0.0
        %v5453 = vsel %vm5421, %v5389, 0.0
        %v5454 = vsel %vm5422, %v5390, 0.0
        %v5455 = vsel %vm5423, %v5391, 0.0
        %v5456 = vsel %vm5424, %v5392, 0.0
        %v5457 = vsel %vm5425, %v5393, 0.0
        %v5458 = vsel %vm5426, %v5394, 0.0
        %v5459 = vsel %vm5427, %v5395, 0.0
        %v5460 = vsel %vm5428, %v5396, 0.0
        %v5461 = vsel %vm5429, %v5397, 0.0
        %v5462 = vsel %vm5430, %v5398, 0.0
        %v5463 = vsel %vm5431, %v5399, 0.0
        %v5464 = vsel %vm5432, %v5400, 0.0
        %v5465 = vsel %vm5433, %v5401, 0.0
        %v5466 = vsel %vm5434, %v5402, 0.0
        %v5467 = vsel %vm5435, %v5403, 0.0
        %v5468 = vsel %vm5436, %v5404, 0.0
        %v5469 = vsel %vm5437, %v5405, 0.0
        %v5470 = vsel %vm5438, %v5406, 0.0
        %v5471 = vsel %vm5439, %v5407, 0.0
        %v5472 = vsel %vm5440, %v5408, 0.0
        %v5473 = vsel %vm5441, %v5409, 0.0
        %v5474 = vsel %vm5442, %v5410, 0.0
        %v5475 = vsel %vm5443, %v5411, 0.0
        %v5476 = vsel %vm5444, %v5412, 0.0
        %v5477 = vsel %vm5445, %v5413, 0.0
        %v5478 = vsel %vm5446, %v5414, 0.0
        %v5479 = vsel %vm5447, %v5415, 0.0
        %v5480 = vsel %vm5448, %v5416, 0.0
        %v5481 = vsel %vm5449, %v5417, 0.0
        %v5482 = vsel %vm5450, %v5418, 0.0
        %v5483 = vmul.f32 %v5451, %v1995
        %v5484 = vmul.f32 %v5452, %v1996
        %v5485 = vmul.f32 %v5453, %v1997
        %v5486 = vmul.f32 %v5454, %v1998
        %v5487 = vmul.f32 %v5455, %v1999
        %v5488 = vmul.f32 %v5456, %v2000
        %v5489 = vmul.f32 %v5457, %v2001
        %v5490 = vmul.f32 %v5458, %v2002
        %v5491 = vmul.f32 %v5459, %v2003
        %v5492 = vmul.f32 %v5460, %v2004
        %v5493 = vmul.f32 %v5461, %v2005
        %v5494 = vmul.f32 %v5462, %v2006
        %v5495 = vmul.f32 %v5463, %v2007
        %v5496 = vmul.f32 %v5464, %v2008
        %v5497 = vmul.f32 %v5465, %v2009
        %v5498 = vmul.f32 %v5466, %v2010
        %v5499 = vmul.f32 %v5467, %v2011
        %v5500 = vmul.f32 %v5468, %v2012
        %v5501 = vmul.f32 %v5469, %v2013
        %v5502 = vmul.f32 %v5470, %v2014
        %v5503 = vmul.f32 %v5471, %v2015
        %v5504 = vmul.f32 %v5472, %v2016
        %v5505 = vmul.f32 %v5473, %v2017
        %v5506 = vmul.f32 %v5474, %v2018
        %v5507 = vmul.f32 %v5475, %v2019
        %v5508 = vmul.f32 %v5476, %v2020
        %v5509 = vmul.f32 %v5477, %v2021
        %v5510 = vmul.f32 %v5478, %v2022
        %v5511 = vmul.f32 %v5479, %v2023
        %v5512 = vmul.f32 %v5480, %v2024
        %v5513 = vmul.f32 %v5481, %v2025
        %v5514 = vmul.f32 %v5482, %v2026
        %v5515 = vld [vmem:[%s641] sm:$0xff]
        %v5516 = vld [vmem:[%s641 + $0x8] sm:$0xff]
        %v5517 = vld [vmem:[%s641 + $0x10] sm:$0xff]
        %v5518 = vld [vmem:[%s641 + $0x18] sm:$0xff]
        %v5519 = vld [vmem:[%s641 + $0x20] sm:$0xff]
        %v5520 = vld [vmem:[%s641 + $0x28] sm:$0xff]
        %v5521 = vld [vmem:[%s641 + $0x30] sm:$0xff]
        %v5522 = vld [vmem:[%s641 + $0x38] sm:$0xff]
        %v5523 = vld [vmem:[%s641 + $0x40] sm:$0xff]
        %v5524 = vld [vmem:[%s641 + $0x48] sm:$0xff]
        %v5525 = vld [vmem:[%s641 + $0x50] sm:$0xff]
        %v5526 = vld [vmem:[%s641 + $0x58] sm:$0xff]
        %v5527 = vld [vmem:[%s641 + $0x60] sm:$0xff]
        %v5528 = vld [vmem:[%s641 + $0x68] sm:$0xff]
        %v5529 = vld [vmem:[%s641 + $0x70] sm:$0xff]
        %v5530 = vld [vmem:[%s641 + $0x78] sm:$0xff]
        %v5531 = vld [vmem:[%s641 + $0x80] sm:$0xff]
        %v5532 = vld [vmem:[%s641 + $0x88] sm:$0xff]
        %v5533 = vld [vmem:[%s641 + $0x90] sm:$0xff]
        %v5534 = vld [vmem:[%s641 + $0x98] sm:$0xff]
        %v5535 = vld [vmem:[%s641 + $0xa0] sm:$0xff]
        %v5536 = vld [vmem:[%s641 + $0xa8] sm:$0xff]
        %v5537 = vld [vmem:[%s641 + $0xb0] sm:$0xff]
        %v5538 = vld [vmem:[%s641 + $0xb8] sm:$0xff]
        %v5539 = vld [vmem:[%s641 + $0xc0] sm:$0xff]
        %v5540 = vld [vmem:[%s641 + $0xc8] sm:$0xff]
        %v5541 = vld [vmem:[%s641 + $0xd0] sm:$0xff]
        %v5542 = vld [vmem:[%s641 + $0xd8] sm:$0xff]
        %v5543 = vld [vmem:[%s641 + $0xe0] sm:$0xff]
        %v5544 = vld [vmem:[%s641 + $0xe8] sm:$0xff]
        %v5545 = vld [vmem:[%s641 + $0xf0] sm:$0xff]
        %v5546 = vld [vmem:[%s641 + $0xf8] sm:$0xff]
        %v5547 = vld [vmem:[#allocation3] sm:$0xf]
        %v5548 = vld [vmem:[#allocation3 + $0x4] sm:$0xf]
        %v5549 = vlaneseq
        %v5550 = vand.u32 %v5549, 127
        %5551 = vset.pattern.permute.xlu0 0
        %5552 = vperm.xlu0 %5551, %v5515
        %v5553 = vpop.permute.xlu0 %5552
        %5554 = vset.pattern.permute.xlu0 0
        %5555 = vperm.xlu0 %5554, %v5516
        %v5556 = vpop.permute.xlu0 %5555
        %5557 = vset.pattern.permute.xlu0 0
        %5558 = vperm.xlu0 %5557, %v5517
        %v5559 = vpop.permute.xlu0 %5558
        %5560 = vset.pattern.permute.xlu0 0
        %5561 = vperm.xlu0 %5560, %v5518
        %v5562 = vpop.permute.xlu0 %5561
        %5563 = vset.pattern.permute.xlu0 0
        %5564 = vperm.xlu0 %5563, %v5519
        %v5565 = vpop.permute.xlu0 %5564
        %5566 = vset.pattern.permute.xlu0 0
        %5567 = vperm.xlu0 %5566, %v5520
        %v5568 = vpop.permute.xlu0 %5567
        %5569 = vset.pattern.permute.xlu0 0
        %5570 = vperm.xlu0 %5569, %v5521
        %v5571 = vpop.permute.xlu0 %5570
        %5572 = vset.pattern.permute.xlu0 0
        %5573 = vperm.xlu0 %5572, %v5522
        %v5574 = vpop.permute.xlu0 %5573
        %5575 = vset.pattern.permute.xlu0 0
        %5576 = vperm.xlu0 %5575, %v5523
        %v5577 = vpop.permute.xlu0 %5576
        %5578 = vset.pattern.permute.xlu0 0
        %5579 = vperm.xlu0 %5578, %v5524
        %v5580 = vpop.permute.xlu0 %5579
        %5581 = vset.pattern.permute.xlu0 0
        %5582 = vperm.xlu0 %5581, %v5525
        %v5583 = vpop.permute.xlu0 %5582
        %5584 = vset.pattern.permute.xlu0 0
        %5585 = vperm.xlu0 %5584, %v5526
        %v5586 = vpop.permute.xlu0 %5585
        %5587 = vset.pattern.permute.xlu0 0
        %5588 = vperm.xlu0 %5587, %v5527
        %v5589 = vpop.permute.xlu0 %5588
        %5590 = vset.pattern.permute.xlu0 0
        %5591 = vperm.xlu0 %5590, %v5528
        %v5592 = vpop.permute.xlu0 %5591
        %5593 = vset.pattern.permute.xlu0 0
        %5594 = vperm.xlu0 %5593, %v5529
        %v5595 = vpop.permute.xlu0 %5594
        %5596 = vset.pattern.permute.xlu0 0
        %5597 = vperm.xlu0 %5596, %v5530
        %v5598 = vpop.permute.xlu0 %5597
        %vm5599 = vcmp.eq.s32.totalorder %v5553, %v5550
        %vm5600 = vcmp.eq.s32.totalorder %v5556, %v5550
        %vm5601 = vcmp.eq.s32.totalorder %v5559, %v5550
        %vm5602 = vcmp.eq.s32.totalorder %v5562, %v5550
        %vm5603 = vcmp.eq.s32.totalorder %v5565, %v5550
        %vm5604 = vcmp.eq.s32.totalorder %v5568, %v5550
        %vm5605 = vcmp.eq.s32.totalorder %v5571, %v5550
        %vm5606 = vcmp.eq.s32.totalorder %v5574, %v5550
        %vm5607 = vcmp.eq.s32.totalorder %v5577, %v5550
        %vm5608 = vcmp.eq.s32.totalorder %v5580, %v5550
        %vm5609 = vcmp.eq.s32.totalorder %v5583, %v5550
        %vm5610 = vcmp.eq.s32.totalorder %v5586, %v5550
        %vm5611 = vcmp.eq.s32.totalorder %v5589, %v5550
        %vm5612 = vcmp.eq.s32.totalorder %v5592, %v5550
        %vm5613 = vcmp.eq.s32.totalorder %v5595, %v5550
        %vm5614 = vcmp.eq.s32.totalorder %v5598, %v5550
        %v5615 = vsel %vm5599, 1, 0
        %v5616 = vsel %vm5600, 1, 0
        %v5617 = vsel %vm5601, 1, 0
        %v5618 = vsel %vm5602, 1, 0
        %v5619 = vsel %vm5603, 1, 0
        %v5620 = vsel %vm5604, 1, 0
        %v5621 = vsel %vm5605, 1, 0
        %v5622 = vsel %vm5606, 1, 0
        %v5623 = vsel %vm5607, 1, 0
        %v5624 = vsel %vm5608, 1, 0
        %v5625 = vsel %vm5609, 1, 0
        %v5626 = vsel %vm5610, 1, 0
        %v5627 = vsel %vm5611, 1, 0
        %v5628 = vsel %vm5612, 1, 0
        %v5629 = vsel %vm5613, 1, 0
        %v5630 = vsel %vm5614, 1, 0
        %v5631 = vcvt.s32.f32 %v5615
        %v5632 = vcvt.s32.f32 %v5616
        %v5633 = vcvt.s32.f32 %v5617
        %v5634 = vcvt.s32.f32 %v5618
        %v5635 = vcvt.s32.f32 %v5619
        %v5636 = vcvt.s32.f32 %v5620
        %v5637 = vcvt.s32.f32 %v5621
        %v5638 = vcvt.s32.f32 %v5622
        %v5639 = vcvt.s32.f32 %v5623
        %v5640 = vcvt.s32.f32 %v5624
        %v5641 = vcvt.s32.f32 %v5625
        %v5642 = vcvt.s32.f32 %v5626
        %v5643 = vcvt.s32.f32 %v5627
        %v5644 = vcvt.s32.f32 %v5628
        %v5645 = vcvt.s32.f32 %v5629
        %v5646 = vcvt.s32.f32 %v5630
        %v5647 = vpack.c.bf16 %v5632, %v5631
        %v5648 = vpack.c.bf16 %v5634, %v5633
        %v5649 = vpack.c.bf16 %v5636, %v5635
        %v5650 = vpack.c.bf16 %v5638, %v5637
        %v5651 = vpack.c.bf16 %v5640, %v5639
        %v5652 = vpack.c.bf16 %v5642, %v5641
        %v5653 = vpack.c.bf16 %v5644, %v5643
        %v5654 = vpack.c.bf16 %v5646, %v5645
        %vm5655 = vcmask 64512
        %v5657 = vsel %vm5655, %v5647, 0
        %v5660 = vsel %vm5655, %v5648, 0
        %v5663 = vsel %vm5655, %v5649, 0
        %v5666 = vsel %vm5655, %v5650, 0
        %v5669 = vsel %vm5655, %v5651, 0
        %v5672 = vsel %vm5655, %v5652, 0
        %v5675 = vsel %vm5655, %v5653, 0
        %v5678 = vsel %vm5655, %v5654, 0
        %vm5680 = vcmask 1043456
        %v5682 = vsel %vm5680, %v5547, 0
        %5684 = vmatprep.subr.bf16.mxu0 0
        %5685 = vmatpush1.bf16.msra.mxu0 0
        %5686 = vmatprep.subr.bf16.mxu0 0
        %5687 = vmatpush1.bf16.msra.mxu0 0
        %5688 = vmatprep.subr.bf16.mxu0 0
        %5689 = vmatpush1.bf16.msra.mxu0 0
        %5690 = vmatprep.subr.bf16.mxu0 0
        %5691 = vmatpush1.bf16.msra.mxu0 0
        %5692 = vmatprep.subr.bf16.mxu0 0
        %5693 = vmatpush1.bf16.msra.mxu0 0
        %5694 = vmatprep.subr.bf16.mxu0 0
        %5695 = vmatpush1.bf16.msra.mxu0 0
        %5696 = vmatprep.subr.bf16.mxu0 0
        %5697 = vmatpush1.bf16.msra.mxu0 0
        %5698 = vmatprep.subr.bf16.mxu0 0
        %5699 = vmatpush1.bf16.msra.mxu0 %v5682
        %5700 = vmatprep.subr.bf16.mxu0 0
        %5701 = vmatpush2.bf16.msra.mxu0 0
        %5702 = vmatprep.subr.bf16.mxu0 0
        %5703 = vmatpush2.bf16.msra.mxu0 0
        %5704 = vmatprep.subr.bf16.mxu0 0
        %5705 = vmatpush2.bf16.msra.mxu0 0
        %5706 = vmatprep.subr.bf16.mxu0 0
        %5707 = vmatpush2.bf16.msra.mxu0 0
        %5708 = vmatprep.subr.bf16.mxu0 0
        %5709 = vmatpush2.bf16.msra.mxu0 0
        %5710 = vmatprep.subr.bf16.mxu0 0
        %5711 = vmatpush2.bf16.msra.mxu0 0
        %5712 = vmatprep.subr.bf16.mxu0 0
        %5713 = vmatpush2.bf16.msra.mxu0 0
        %5714 = vmatprep.subr.bf16.mxu0 0
        %5715 = vmatpush2.bf16.msra.mxu0 0
        %5716 = vmatprep.mubr.bf16.mxu0 0
        %5717 = vmatmul.mubr.bf16.gmra.mxu0 %v5657
        %v5718 = vpop.f32.mrf.mxu0
        %v5719 = vadd.f32 0.0, %v5718
        %v5720 = vpop.f32.mrf.mxu0
        %v5721 = vpop.f32.mrf.mxu0
        %v5722 = vadd.f32 0.0, %v5721
        %v5723 = vpop.f32.mrf.mxu0
        %5724 = vmatprep.mubr.bf16.mxu0 0
        %5725 = vmatmul.mubr.bf16.gmra.mxu0 %v5660
        %v5726 = vpop.f32.mrf.mxu0
        %v5727 = vadd.f32 0.0, %v5726
        %v5728 = vpop.f32.mrf.mxu0
        %v5729 = vpop.f32.mrf.mxu0
        %v5730 = vadd.f32 0.0, %v5729
        %v5731 = vpop.f32.mrf.mxu0
        %5732 = vmatprep.mubr.bf16.mxu0 0
        %5733 = vmatmul.mubr.bf16.gmra.mxu0 %v5663
        %v5734 = vpop.f32.mrf.mxu0
        %v5735 = vadd.f32 0.0, %v5734
        %v5736 = vpop.f32.mrf.mxu0
        %v5737 = vpop.f32.mrf.mxu0
        %v5738 = vadd.f32 0.0, %v5737
        %v5739 = vpop.f32.mrf.mxu0
        %5740 = vmatprep.mubr.bf16.mxu0 0
        %5741 = vmatmul.mubr.bf16.gmra.mxu0 %v5666
        %v5742 = vpop.f32.mrf.mxu0
        %v5743 = vadd.f32 0.0, %v5742
        %v5744 = vpop.f32.mrf.mxu0
        %v5745 = vpop.f32.mrf.mxu0
        %v5746 = vadd.f32 0.0, %v5745
        %v5747 = vpop.f32.mrf.mxu0
        %5748 = vmatprep.mubr.bf16.mxu0 0
        %5749 = vmatmul.mubr.bf16.gmra.mxu0 %v5669
        %v5750 = vpop.f32.mrf.mxu0
        %v5751 = vadd.f32 0.0, %v5750
        %v5752 = vpop.f32.mrf.mxu0
        %v5753 = vpop.f32.mrf.mxu0
        %v5754 = vadd.f32 0.0, %v5753
        %v5755 = vpop.f32.mrf.mxu0
        %5756 = vmatprep.mubr.bf16.mxu0 0
        %5757 = vmatmul.mubr.bf16.gmra.mxu0 %v5672
        %v5758 = vpop.f32.mrf.mxu0
        %v5759 = vadd.f32 0.0, %v5758
        %v5760 = vpop.f32.mrf.mxu0
        %v5761 = vpop.f32.mrf.mxu0
        %v5762 = vadd.f32 0.0, %v5761
        %v5763 = vpop.f32.mrf.mxu0
        %5764 = vmatprep.mubr.bf16.mxu0 0
        %5765 = vmatmul.mubr.bf16.gmra.mxu0 %v5675
        %v5766 = vpop.f32.mrf.mxu0
        %v5767 = vadd.f32 0.0, %v5766
        %v5768 = vpop.f32.mrf.mxu0
        %v5769 = vpop.f32.mrf.mxu0
        %v5770 = vadd.f32 0.0, %v5769
        %v5771 = vpop.f32.mrf.mxu0
        %5772 = vmatprep.mubr.bf16.mxu0 0
        %5773 = vmatmul.mubr.bf16.gmra.mxu0 %v5678
        %v5774 = vpop.f32.mrf.mxu0
        %v5775 = vadd.f32 0.0, %v5774
        %v5776 = vpop.f32.mrf.mxu0
        %v5777 = vpop.f32.mrf.mxu0
        %v5778 = vadd.f32 0.0, %v5777
        %v5779 = vpop.f32.mrf.mxu0
        %5780 = vdwg.mxu0
        %v5781 = vmul.f32 %v5719, %v1837
        %v5782 = vmul.f32 %v5722, %v1840
        %v5783 = vmul.f32 %v5727, %v1845
        %v5784 = vmul.f32 %v5730, %v1848
        %v5785 = vmul.f32 %v5735, %v1853
        %v5786 = vmul.f32 %v5738, %v1856
        %v5787 = vmul.f32 %v5743, %v1861
        %v5788 = vmul.f32 %v5746, %v1864
        %v5789 = vmul.f32 %v5751, %v1869
        %v5790 = vmul.f32 %v5754, %v1872
        %v5791 = vmul.f32 %v5759, %v1877
        %v5792 = vmul.f32 %v5762, %v1880
        %v5793 = vmul.f32 %v5767, %v1885
        %v5794 = vmul.f32 %v5770, %v1888
        %v5795 = vmul.f32 %v5775, %v1893
        %v5796 = vmul.f32 %v5778, %v1896
        %5798 = vset.pattern.permute.xlu0 0
        %5799 = vperm.xlu0 %5798, %v5483
        %v5800 = vpop.permute.xlu0 %5799
        %5803 = vset.pattern.permute.xlu0 0
        %5804 = vperm.xlu0 %5803, %v5484
        %v5805 = vpop.permute.xlu0 %5804
        %5808 = vset.pattern.permute.xlu0 0
        %5809 = vperm.xlu0 %5808, %v5485
        %v5810 = vpop.permute.xlu0 %5809
        %5813 = vset.pattern.permute.xlu0 0
        %5814 = vperm.xlu0 %5813, %v5486
        %v5815 = vpop.permute.xlu0 %5814
        %5818 = vset.pattern.permute.xlu0 0
        %5819 = vperm.xlu0 %5818, %v5487
        %v5820 = vpop.permute.xlu0 %5819
        %5823 = vset.pattern.permute.xlu0 0
        %5824 = vperm.xlu0 %5823, %v5488
        %v5825 = vpop.permute.xlu0 %5824
        %5828 = vset.pattern.permute.xlu0 0
        %5829 = vperm.xlu0 %5828, %v5489
        %v5830 = vpop.permute.xlu0 %5829
        %5833 = vset.pattern.permute.xlu0 0
        %5834 = vperm.xlu0 %5833, %v5490
        %v5835 = vpop.permute.xlu0 %5834
        %5838 = vset.pattern.permute.xlu0 0
        %5839 = vperm.xlu0 %5838, %v5491
        %v5840 = vpop.permute.xlu0 %5839
        %5843 = vset.pattern.permute.xlu0 0
        %5844 = vperm.xlu0 %5843, %v5492
        %v5845 = vpop.permute.xlu0 %5844
        %5848 = vset.pattern.permute.xlu0 0
        %5849 = vperm.xlu0 %5848, %v5493
        %v5850 = vpop.permute.xlu0 %5849
        %5853 = vset.pattern.permute.xlu0 0
        %5854 = vperm.xlu0 %5853, %v5494
        %v5855 = vpop.permute.xlu0 %5854
        %5858 = vset.pattern.permute.xlu0 0
        %5859 = vperm.xlu0 %5858, %v5495
        %v5860 = vpop.permute.xlu0 %5859
        %5863 = vset.pattern.permute.xlu0 0
        %5864 = vperm.xlu0 %5863, %v5496
        %v5865 = vpop.permute.xlu0 %5864
        %5868 = vset.pattern.permute.xlu0 0
        %5869 = vperm.xlu0 %5868, %v5497
        %v5870 = vpop.permute.xlu0 %5869
        %5873 = vset.pattern.permute.xlu0 0
        %5874 = vperm.xlu0 %5873, %v5498
        %v5875 = vpop.permute.xlu0 %5874
        %v5877 = vmul.f32 %v5781, %v5800
        %v5878 = vmul.f32 %v5782, %v5805
        %v5879 = vmul.f32 %v5783, %v5810
        %v5880 = vmul.f32 %v5784, %v5815
        %v5881 = vmul.f32 %v5785, %v5820
        %v5882 = vmul.f32 %v5786, %v5825
        %v5883 = vmul.f32 %v5787, %v5830
        %v5884 = vmul.f32 %v5788, %v5835
        %v5885 = vmul.f32 %v5789, %v5840
        %v5886 = vmul.f32 %v5790, %v5845
        %v5887 = vmul.f32 %v5791, %v5850
        %v5888 = vmul.f32 %v5792, %v5855
        %v5889 = vmul.f32 %v5793, %v5860
        %v5890 = vmul.f32 %v5794, %v5865
        %v5891 = vmul.f32 %v5795, %v5870
        %v5892 = vmul.f32 %v5796, %v5875
        %v5893 = vld [vmem:[#allocation2] sm:$0xff]
        %v5894 = vadd.f32 %v5877, %v5878
        %v5895 = vrot.slane %v5894, 4
        %v5896 = vadd.f32 %v5894, %v5895
        %v5897 = vrot.slane %v5896, 2
        %v5898 = vadd.f32 %v5896, %v5897
        %v5899 = vrot.slane %v5898, 1
        %v5900 = vadd.f32 %v5898, %v5899
        %v5901 = vadd.f32 %v5879, %v5880
        %v5902 = vrot.slane %v5901, 4
        %v5903 = vadd.f32 %v5901, %v5902
        %v5904 = vrot.slane %v5903, 2
        %v5905 = vadd.f32 %v5903, %v5904
        %v5906 = vrot.slane %v5905, 1
        %v5907 = vadd.f32 %v5905, %v5906
        %v5908 = vadd.f32 %v5881, %v5882
        %v5909 = vrot.slane %v5908, 4
        %v5910 = vadd.f32 %v5908, %v5909
        %v5911 = vrot.slane %v5910, 2
        %v5912 = vadd.f32 %v5910, %v5911
        %v5913 = vrot.slane %v5912, 1
        %v5914 = vadd.f32 %v5912, %v5913
        %v5915 = vadd.f32 %v5883, %v5884
        %v5916 = vrot.slane %v5915, 4
        %v5917 = vadd.f32 %v5915, %v5916
        %v5918 = vrot.slane %v5917, 2
        %v5919 = vadd.f32 %v5917, %v5918
        %v5920 = vrot.slane %v5919, 1
        %v5921 = vadd.f32 %v5919, %v5920
        %v5922 = vadd.f32 %v5885, %v5886
        %v5923 = vrot.slane %v5922, 4
        %v5924 = vadd.f32 %v5922, %v5923
        %v5925 = vrot.slane %v5924, 2
        %v5926 = vadd.f32 %v5924, %v5925
        %v5927 = vrot.slane %v5926, 1
        %v5928 = vadd.f32 %v5926, %v5927
        %v5929 = vadd.f32 %v5887, %v5888
        %v5930 = vrot.slane %v5929, 4
        %v5931 = vadd.f32 %v5929, %v5930
        %v5932 = vrot.slane %v5931, 2
        %v5933 = vadd.f32 %v5931, %v5932
        %v5934 = vrot.slane %v5933, 1
        %v5935 = vadd.f32 %v5933, %v5934
        %v5936 = vadd.f32 %v5889, %v5890
        %v5937 = vrot.slane %v5936, 4
        %v5938 = vadd.f32 %v5936, %v5937
        %v5939 = vrot.slane %v5938, 2
        %v5940 = vadd.f32 %v5938, %v5939
        %v5941 = vrot.slane %v5940, 1
        %v5942 = vadd.f32 %v5940, %v5941
        %v5943 = vadd.f32 %v5891, %v5892
        %v5944 = vrot.slane %v5943, 4
        %v5945 = vadd.f32 %v5943, %v5944
        %v5946 = vrot.slane %v5945, 2
        %v5947 = vadd.f32 %v5945, %v5946
        %v5948 = vrot.slane %v5947, 1
        %v5949 = vadd.f32 %v5947, %v5948
        %vm5958 = vcmask 1041409
        %v5959 = vsel %vm5958, %v5907, %v5900
        %vm5960 = vcmask 1042434
        %v5961 = vsel %vm5960, %v5914, %v5959
        %vm5962 = vcmask 1043459
        %v5963 = vsel %vm5962, %v5921, %v5961
        %vm5964 = vcmask 1044484
        %v5965 = vsel %vm5964, %v5928, %v5963
        %vm5966 = vcmask 1045509
        %v5967 = vsel %vm5966, %v5935, %v5965
        %vm5968 = vcmask 1046534
        %v5969 = vsel %vm5968, %v5942, %v5967
        %vm5970 = vcmask 1047559
        %v5971 = vsel %vm5970, %v5949, %v5969
        %v5973 = vadd.f32 %v5893, %v5971
        %5974 = vst [vmem:[#allocation2] sm:$0xff] %v5973
        %5975 = vset.pattern.permute.xlu0 0
        %5976 = vperm.xlu0 %5975, %v5531
        %v5977 = vpop.permute.xlu0 %5976
        %5978 = vset.pattern.permute.xlu0 0
        %5979 = vperm.xlu0 %5978, %v5532
        %v5980 = vpop.permute.xlu0 %5979
        %5981 = vset.pattern.permute.xlu0 0
        %5982 = vperm.xlu0 %5981, %v5533
        %v5983 = vpop.permute.xlu0 %5982
        %5984 = vset.pattern.permute.xlu0 0
        %5985 = vperm.xlu0 %5984, %v5534
        %v5986 = vpop.permute.xlu0 %5985
        %5987 = vset.pattern.permute.xlu0 0
        %5988 = vperm.xlu0 %5987, %v5535
        %v5989 = vpop.permute.xlu0 %5988
        %5990 = vset.pattern.permute.xlu0 0
        %5991 = vperm.xlu0 %5990, %v5536
        %v5992 = vpop.permute.xlu0 %5991
        %5993 = vset.pattern.permute.xlu0 0
        %5994 = vperm.xlu0 %5993, %v5537
        %v5995 = vpop.permute.xlu0 %5994
        %5996 = vset.pattern.permute.xlu0 0
        %5997 = vperm.xlu0 %5996, %v5538
        %v5998 = vpop.permute.xlu0 %5997
        %5999 = vset.pattern.permute.xlu0 0
        %6000 = vperm.xlu0 %5999, %v5539
        %v6001 = vpop.permute.xlu0 %6000
        %6002 = vset.pattern.permute.xlu0 0
        %6003 = vperm.xlu0 %6002, %v5540
        %v6004 = vpop.permute.xlu0 %6003
        %6005 = vset.pattern.permute.xlu0 0
        %6006 = vperm.xlu0 %6005, %v5541
        %v6007 = vpop.permute.xlu0 %6006
        %6008 = vset.pattern.permute.xlu0 0
        %6009 = vperm.xlu0 %6008, %v5542
        %v6010 = vpop.permute.xlu0 %6009
        %6011 = vset.pattern.permute.xlu0 0
        %6012 = vperm.xlu0 %6011, %v5543
        %v6013 = vpop.permute.xlu0 %6012
        %6014 = vset.pattern.permute.xlu0 0
        %6015 = vperm.xlu0 %6014, %v5544
        %v6016 = vpop.permute.xlu0 %6015
        %6017 = vset.pattern.permute.xlu0 0
        %6018 = vperm.xlu0 %6017, %v5545
        %v6019 = vpop.permute.xlu0 %6018
        %6020 = vset.pattern.permute.xlu0 0
        %6021 = vperm.xlu0 %6020, %v5546
        %v6022 = vpop.permute.xlu0 %6021
        %vm6023 = vcmp.eq.s32.totalorder %v5977, %v5550
        %vm6024 = vcmp.eq.s32.totalorder %v5980, %v5550
        %vm6025 = vcmp.eq.s32.totalorder %v5983, %v5550
        %vm6026 = vcmp.eq.s32.totalorder %v5986, %v5550
        %vm6027 = vcmp.eq.s32.totalorder %v5989, %v5550
        %vm6028 = vcmp.eq.s32.totalorder %v5992, %v5550
        %vm6029 = vcmp.eq.s32.totalorder %v5995, %v5550
        %vm6030 = vcmp.eq.s32.totalorder %v5998, %v5550
        %vm6031 = vcmp.eq.s32.totalorder %v6001, %v5550
        %vm6032 = vcmp.eq.s32.totalorder %v6004, %v5550
        %vm6033 = vcmp.eq.s32.totalorder %v6007, %v5550
        %vm6034 = vcmp.eq.s32.totalorder %v6010, %v5550
        %vm6035 = vcmp.eq.s32.totalorder %v6013, %v5550
        %vm6036 = vcmp.eq.s32.totalorder %v6016, %v5550
        %vm6037 = vcmp.eq.s32.totalorder %v6019, %v5550
        %vm6038 = vcmp.eq.s32.totalorder %v6022, %v5550
        %v6039 = vsel %vm6023, 1, 0
        %v6040 = vsel %vm6024, 1, 0
        %v6041 = vsel %vm6025, 1, 0
        %v6042 = vsel %vm6026, 1, 0
        %v6043 = vsel %vm6027, 1, 0
        %v6044 = vsel %vm6028, 1, 0
        %v6045 = vsel %vm6029, 1, 0
        %v6046 = vsel %vm6030, 1, 0
        %v6047 = vsel %vm6031, 1, 0
        %v6048 = vsel %vm6032, 1, 0
        %v6049 = vsel %vm6033, 1, 0
        %v6050 = vsel %vm6034, 1, 0
        %v6051 = vsel %vm6035, 1, 0
        %v6052 = vsel %vm6036, 1, 0
        %v6053 = vsel %vm6037, 1, 0
        %v6054 = vsel %vm6038, 1, 0
        %v6055 = vcvt.s32.f32 %v6039
        %v6056 = vcvt.s32.f32 %v6040
        %v6057 = vcvt.s32.f32 %v6041
        %v6058 = vcvt.s32.f32 %v6042
        %v6059 = vcvt.s32.f32 %v6043
        %v6060 = vcvt.s32.f32 %v6044
        %v6061 = vcvt.s32.f32 %v6045
        %v6062 = vcvt.s32.f32 %v6046
        %v6063 = vcvt.s32.f32 %v6047
        %v6064 = vcvt.s32.f32 %v6048
        %v6065 = vcvt.s32.f32 %v6049
        %v6066 = vcvt.s32.f32 %v6050
        %v6067 = vcvt.s32.f32 %v6051
        %v6068 = vcvt.s32.f32 %v6052
        %v6069 = vcvt.s32.f32 %v6053
        %v6070 = vcvt.s32.f32 %v6054
        %v6071 = vpack.c.bf16 %v6056, %v6055
        %v6072 = vpack.c.bf16 %v6058, %v6057
        %v6073 = vpack.c.bf16 %v6060, %v6059
        %v6074 = vpack.c.bf16 %v6062, %v6061
        %v6075 = vpack.c.bf16 %v6064, %v6063
        %v6076 = vpack.c.bf16 %v6066, %v6065
        %v6077 = vpack.c.bf16 %v6068, %v6067
        %v6078 = vpack.c.bf16 %v6070, %v6069
        %v6080 = vsel %vm5655, %v6071, 0
        %v6083 = vsel %vm5655, %v6072, 0
        %v6086 = vsel %vm5655, %v6073, 0
        %v6089 = vsel %vm5655, %v6074, 0
        %v6092 = vsel %vm5655, %v6075, 0
        %v6095 = vsel %vm5655, %v6076, 0
        %v6098 = vsel %vm5655, %v6077, 0
        %v6101 = vsel %vm5655, %v6078, 0
        %v6104 = vsel %vm5680, %v5548, 0
        %6106 = vmatprep.subr.bf16.mxu0 0
        %6107 = vmatpush1.bf16.msra.mxu0 0
        %6108 = vmatprep.subr.bf16.mxu0 0
        %6109 = vmatpush1.bf16.msra.mxu0 0
        %6110 = vmatprep.subr.bf16.mxu0 0
        %6111 = vmatpush1.bf16.msra.mxu0 0
        %6112 = vmatprep.subr.bf16.mxu0 0
        %6113 = vmatpush1.bf16.msra.mxu0 0
        %6114 = vmatprep.subr.bf16.mxu0 0
        %6115 = vmatpush1.bf16.msra.mxu0 0
        %6116 = vmatprep.subr.bf16.mxu0 0
        %6117 = vmatpush1.bf16.msra.mxu0 0
        %6118 = vmatprep.subr.bf16.mxu0 0
        %6119 = vmatpush1.bf16.msra.mxu0 0
        %6120 = vmatprep.subr.bf16.mxu0 0
        %6121 = vmatpush1.bf16.msra.mxu0 %v6104
        %6122 = vmatprep.subr.bf16.mxu0 0
        %6123 = vmatpush2.bf16.msra.mxu0 0
        %6124 = vmatprep.subr.bf16.mxu0 0
        %6125 = vmatpush2.bf16.msra.mxu0 0
        %6126 = vmatprep.subr.bf16.mxu0 0
        %6127 = vmatpush2.bf16.msra.mxu0 0
        %6128 = vmatprep.subr.bf16.mxu0 0
        %6129 = vmatpush2.bf16.msra.mxu0 0
        %6130 = vmatprep.subr.bf16.mxu0 0
        %6131 = vmatpush2.bf16.msra.mxu0 0
        %6132 = vmatprep.subr.bf16.mxu0 0
        %6133 = vmatpush2.bf16.msra.mxu0 0
        %6134 = vmatprep.subr.bf16.mxu0 0
        %6135 = vmatpush2.bf16.msra.mxu0 0
        %6136 = vmatprep.subr.bf16.mxu0 0
        %6137 = vmatpush2.bf16.msra.mxu0 0
        %6138 = vmatprep.mubr.bf16.mxu0 0
        %6139 = vmatmul.mubr.bf16.gmra.mxu0 %v6080
        %v6140 = vpop.f32.mrf.mxu0
        %v6141 = vadd.f32 0.0, %v6140
        %v6142 = vpop.f32.mrf.mxu0
        %v6143 = vpop.f32.mrf.mxu0
        %v6144 = vadd.f32 0.0, %v6143
        %v6145 = vpop.f32.mrf.mxu0
        %6146 = vmatprep.mubr.bf16.mxu0 0
        %6147 = vmatmul.mubr.bf16.gmra.mxu0 %v6083
        %v6148 = vpop.f32.mrf.mxu0
        %v6149 = vadd.f32 0.0, %v6148
        %v6150 = vpop.f32.mrf.mxu0
        %v6151 = vpop.f32.mrf.mxu0
        %v6152 = vadd.f32 0.0, %v6151
        %v6153 = vpop.f32.mrf.mxu0
        %6154 = vmatprep.mubr.bf16.mxu0 0
        %6155 = vmatmul.mubr.bf16.gmra.mxu0 %v6086
        %v6156 = vpop.f32.mrf.mxu0
        %v6157 = vadd.f32 0.0, %v6156
        %v6158 = vpop.f32.mrf.mxu0
        %v6159 = vpop.f32.mrf.mxu0
        %v6160 = vadd.f32 0.0, %v6159
        %v6161 = vpop.f32.mrf.mxu0
        %6162 = vmatprep.mubr.bf16.mxu0 0
        %6163 = vmatmul.mubr.bf16.gmra.mxu0 %v6089
        %v6164 = vpop.f32.mrf.mxu0
        %v6165 = vadd.f32 0.0, %v6164
        %v6166 = vpop.f32.mrf.mxu0
        %v6167 = vpop.f32.mrf.mxu0
        %v6168 = vadd.f32 0.0, %v6167
        %v6169 = vpop.f32.mrf.mxu0
        %6170 = vmatprep.mubr.bf16.mxu0 0
        %6171 = vmatmul.mubr.bf16.gmra.mxu0 %v6092
        %v6172 = vpop.f32.mrf.mxu0
        %v6173 = vadd.f32 0.0, %v6172
        %v6174 = vpop.f32.mrf.mxu0
        %v6175 = vpop.f32.mrf.mxu0
        %v6176 = vadd.f32 0.0, %v6175
        %v6177 = vpop.f32.mrf.mxu0
        %6178 = vmatprep.mubr.bf16.mxu0 0
        %6179 = vmatmul.mubr.bf16.gmra.mxu0 %v6095
        %v6180 = vpop.f32.mrf.mxu0
        %v6181 = vadd.f32 0.0, %v6180
        %v6182 = vpop.f32.mrf.mxu0
        %v6183 = vpop.f32.mrf.mxu0
        %v6184 = vadd.f32 0.0, %v6183
        %v6185 = vpop.f32.mrf.mxu0
        %6186 = vmatprep.mubr.bf16.mxu0 0
        %6187 = vmatmul.mubr.bf16.gmra.mxu0 %v6098
        %v6188 = vpop.f32.mrf.mxu0
        %v6189 = vadd.f32 0.0, %v6188
        %v6190 = vpop.f32.mrf.mxu0
        %v6191 = vpop.f32.mrf.mxu0
        %v6192 = vadd.f32 0.0, %v6191
        %v6193 = vpop.f32.mrf.mxu0
        %6194 = vmatprep.mubr.bf16.mxu0 0
        %6195 = vmatmul.mubr.bf16.gmra.mxu0 %v6101
        %v6196 = vpop.f32.mrf.mxu0
        %v6197 = vadd.f32 0.0, %v6196
        %v6198 = vpop.f32.mrf.mxu0
        %v6199 = vpop.f32.mrf.mxu0
        %v6200 = vadd.f32 0.0, %v6199
        %v6201 = vpop.f32.mrf.mxu0
        %6202 = vdwg.mxu0
        %v6203 = vmul.f32 %v6141, %v1901
        %v6204 = vmul.f32 %v6144, %v1904
        %v6205 = vmul.f32 %v6149, %v1909
        %v6206 = vmul.f32 %v6152, %v1912
        %v6207 = vmul.f32 %v6157, %v1917
        %v6208 = vmul.f32 %v6160, %v1920
        %v6209 = vmul.f32 %v6165, %v1925
        %v6210 = vmul.f32 %v6168, %v1928
        %v6211 = vmul.f32 %v6173, %v1933
        %v6212 = vmul.f32 %v6176, %v1936
        %v6213 = vmul.f32 %v6181, %v1941
        %v6214 = vmul.f32 %v6184, %v1944
        %v6215 = vmul.f32 %v6189, %v1949
        %v6216 = vmul.f32 %v6192, %v1952
        %v6217 = vmul.f32 %v6197, %v1957
        %v6218 = vmul.f32 %v6200, %v1960
        %6220 = vset.pattern.permute.xlu0 0
        %6221 = vperm.xlu0 %6220, %v5499
        %v6222 = vpop.permute.xlu0 %6221
        %6225 = vset.pattern.permute.xlu0 0
        %6226 = vperm.xlu0 %6225, %v5500
        %v6227 = vpop.permute.xlu0 %6226
        %6230 = vset.pattern.permute.xlu0 0
        %6231 = vperm.xlu0 %6230, %v5501
        %v6232 = vpop.permute.xlu0 %6231
        %6235 = vset.pattern.permute.xlu0 0
        %6236 = vperm.xlu0 %6235, %v5502
        %v6237 = vpop.permute.xlu0 %6236
        %6240 = vset.pattern.permute.xlu0 0
        %6241 = vperm.xlu0 %6240, %v5503
        %v6242 = vpop.permute.xlu0 %6241
        %6245 = vset.pattern.permute.xlu0 0
        %6246 = vperm.xlu0 %6245, %v5504
        %v6247 = vpop.permute.xlu0 %6246
        %6250 = vset.pattern.permute.xlu0 0
        %6251 = vperm.xlu0 %6250, %v5505
        %v6252 = vpop.permute.xlu0 %6251
        %6255 = vset.pattern.permute.xlu0 0
        %6256 = vperm.xlu0 %6255, %v5506
        %v6257 = vpop.permute.xlu0 %6256
        %6260 = vset.pattern.permute.xlu0 0
        %6261 = vperm.xlu0 %6260, %v5507
        %v6262 = vpop.permute.xlu0 %6261
        %6265 = vset.pattern.permute.xlu0 0
        %6266 = vperm.xlu0 %6265, %v5508
        %v6267 = vpop.permute.xlu0 %6266
        %6270 = vset.pattern.permute.xlu0 0
        %6271 = vperm.xlu0 %6270, %v5509
        %v6272 = vpop.permute.xlu0 %6271
        %6275 = vset.pattern.permute.xlu0 0
        %6276 = vperm.xlu0 %6275, %v5510
        %v6277 = vpop.permute.xlu0 %6276
        %6280 = vset.pattern.permute.xlu0 0
        %6281 = vperm.xlu0 %6280, %v5511
        %v6282 = vpop.permute.xlu0 %6281
        %6285 = vset.pattern.permute.xlu0 0
        %6286 = vperm.xlu0 %6285, %v5512
        %v6287 = vpop.permute.xlu0 %6286
        %6290 = vset.pattern.permute.xlu0 0
        %6291 = vperm.xlu0 %6290, %v5513
        %v6292 = vpop.permute.xlu0 %6291
        %6295 = vset.pattern.permute.xlu0 0
        %6296 = vperm.xlu0 %6295, %v5514
        %v6297 = vpop.permute.xlu0 %6296
        %v6299 = vmul.f32 %v6203, %v6222
        %v6300 = vmul.f32 %v6204, %v6227
        %v6301 = vmul.f32 %v6205, %v6232
        %v6302 = vmul.f32 %v6206, %v6237
        %v6303 = vmul.f32 %v6207, %v6242
        %v6304 = vmul.f32 %v6208, %v6247
        %v6305 = vmul.f32 %v6209, %v6252
        %v6306 = vmul.f32 %v6210, %v6257
        %v6307 = vmul.f32 %v6211, %v6262
        %v6308 = vmul.f32 %v6212, %v6267
        %v6309 = vmul.f32 %v6213, %v6272
        %v6310 = vmul.f32 %v6214, %v6277
        %v6311 = vmul.f32 %v6215, %v6282
        %v6312 = vmul.f32 %v6216, %v6287
        %v6313 = vmul.f32 %v6217, %v6292
        %v6314 = vmul.f32 %v6218, %v6297
        %v6315 = vld [vmem:[#allocation2 + $0x8] sm:$0xff]
        %v6316 = vadd.f32 %v6299, %v6300
        %v6317 = vrot.slane %v6316, 4
        %v6318 = vadd.f32 %v6316, %v6317
        %v6319 = vrot.slane %v6318, 2
        %v6320 = vadd.f32 %v6318, %v6319
        %v6321 = vrot.slane %v6320, 1
        %v6322 = vadd.f32 %v6320, %v6321
        %v6323 = vadd.f32 %v6301, %v6302
        %v6324 = vrot.slane %v6323, 4
        %v6325 = vadd.f32 %v6323, %v6324
        %v6326 = vrot.slane %v6325, 2
        %v6327 = vadd.f32 %v6325, %v6326
        %v6328 = vrot.slane %v6327, 1
        %v6329 = vadd.f32 %v6327, %v6328
        %v6330 = vadd.f32 %v6303, %v6304
        %v6331 = vrot.slane %v6330, 4
        %v6332 = vadd.f32 %v6330, %v6331
        %v6333 = vrot.slane %v6332, 2
        %v6334 = vadd.f32 %v6332, %v6333
        %v6335 = vrot.slane %v6334, 1
        %v6336 = vadd.f32 %v6334, %v6335
        %v6337 = vadd.f32 %v6305, %v6306
        %v6338 = vrot.slane %v6337, 4
        %v6339 = vadd.f32 %v6337, %v6338
        %v6340 = vrot.slane %v6339, 2
        %v6341 = vadd.f32 %v6339, %v6340
        %v6342 = vrot.slane %v6341, 1
        %v6343 = vadd.f32 %v6341, %v6342
        %v6344 = vadd.f32 %v6307, %v6308
        %v6345 = vrot.slane %v6344, 4
        %v6346 = vadd.f32 %v6344, %v6345
        %v6347 = vrot.slane %v6346, 2
        %v6348 = vadd.f32 %v6346, %v6347
        %v6349 = vrot.slane %v6348, 1
        %v6350 = vadd.f32 %v6348, %v6349
        %v6351 = vadd.f32 %v6309, %v6310
        %v6352 = vrot.slane %v6351, 4
        %v6353 = vadd.f32 %v6351, %v6352
        %v6354 = vrot.slane %v6353, 2
        %v6355 = vadd.f32 %v6353, %v6354
        %v6356 = vrot.slane %v6355, 1
        %v6357 = vadd.f32 %v6355, %v6356
        %v6358 = vadd.f32 %v6311, %v6312
        %v6359 = vrot.slane %v6358, 4
        %v6360 = vadd.f32 %v6358, %v6359
        %v6361 = vrot.slane %v6360, 2
        %v6362 = vadd.f32 %v6360, %v6361
        %v6363 = vrot.slane %v6362, 1
        %v6364 = vadd.f32 %v6362, %v6363
        %v6365 = vadd.f32 %v6313, %v6314
        %v6366 = vrot.slane %v6365, 4
        %v6367 = vadd.f32 %v6365, %v6366
        %v6368 = vrot.slane %v6367, 2
        %v6369 = vadd.f32 %v6367, %v6368
        %v6370 = vrot.slane %v6369, 1
        %v6371 = vadd.f32 %v6369, %v6370
        %v6380 = vsel %vm5958, %v6329, %v6322
        %v6381 = vsel %vm5960, %v6336, %v6380
        %v6382 = vsel %vm5962, %v6343, %v6381
        %v6383 = vsel %vm5964, %v6350, %v6382
        %v6384 = vsel %vm5966, %v6357, %v6383
        %v6385 = vsel %vm5968, %v6364, %v6384
        %v6386 = vsel %vm5970, %v6371, %v6385
        %v6388 = vadd.f32 %v6315, %v6386
        %6389 = vst [vmem:[#allocation2 + $0x8] sm:$0xff] %v6388
        // Predicated region
        $region81: #{tpu_custom_call.1} parent=75 // pred_check
          %p6390 = pneg %p646
        $region82: #{tpu_custom_call.1} parent=75 // pred_check_branch
          %6392 = sbr.rel (%p6390) target = $region84
        $region83: #{tpu_custom_call.1} parent=75 // pred_region
          %v6393 = vld [vmem:[#allocation2] sm:$0xff]
          %v6394 = vld [vmem:[#allocation2 + $0x8] sm:$0xff]
          %v6395 = vpack.c.bf16 %v6394, %v6393
          %v6396 = vld [vmem:[%s10] sm:$0xf]
          %v6397 = vld [vmem:[%s10 + $0x4] sm:$0xf]
          %v6398 = vld [vmem:[%s10 + $0x8] sm:$0xf]
          %v6399 = vld [vmem:[%s10 + $0xc] sm:$0xf]
          %v6400 = vld [vmem:[%s10 + $0x10] sm:$0xf]
          %v6401 = vld [vmem:[%s10 + $0x14] sm:$0xf]
          %v6402 = vld [vmem:[%s10 + $0x18] sm:$0xf]
          %v6403 = vld [vmem:[%s10 + $0x1c] sm:$0xf]
          %v6404 = vld [vmem:[%s10 + $0x20] sm:$0xf]
          %v6405 = vld [vmem:[%s10 + $0x24] sm:$0xf]
          %v6406 = vld [vmem:[%s10 + $0x28] sm:$0xf]
          %v6407 = vld [vmem:[%s10 + $0x2c] sm:$0xf]
          %v6408 = vld [vmem:[%s10 + $0x30] sm:$0xf]
          %v6409 = vld [vmem:[%s10 + $0x34] sm:$0xf]
          %v6410 = vld [vmem:[%s10 + $0x38] sm:$0xf]
          %v6411 = vld [vmem:[%s10 + $0x3c] sm:$0xf]
          %v6412 = vld [vmem:[%s11] sm:$0x1]
          %v6414 = vlaneseq
          %v6415 = vshrl.u32 %v6414, 7
          %v6416 = vsub.s32 0, %v6415
          %v6417 = vrot.slane %v6412, %v6416
          %v6435 = vunpack.c.l.b16 %v6396
          %v6436 = vunpack.c.l.b16 %v6397
          %v6437 = vunpack.c.l.b16 %v6398
          %v6438 = vunpack.c.l.b16 %v6399
          %v6439 = vunpack.c.l.b16 %v6400
          %v6440 = vunpack.c.l.b16 %v6401
          %v6441 = vunpack.c.l.b16 %v6402
          %v6442 = vunpack.c.l.b16 %v6403
          %v6443 = vunpack.c.l.b16 %v6404
          %v6444 = vunpack.c.l.b16 %v6405
          %v6445 = vunpack.c.l.b16 %v6406
          %v6446 = vunpack.c.l.b16 %v6407
          %v6447 = vunpack.c.l.b16 %v6408
          %v6448 = vunpack.c.l.b16 %v6409
          %v6449 = vunpack.c.l.b16 %v6410
          %v6450 = vunpack.c.l.b16 %v6411
          %v6451 = vpack.c.b16 %v6436, %v6435
          %v6452 = vpack.c.b16 %v6438, %v6437
          %v6453 = vpack.c.b16 %v6440, %v6439
          %v6454 = vpack.c.b16 %v6442, %v6441
          %v6455 = vpack.c.b16 %v6444, %v6443
          %v6456 = vpack.c.b16 %v6446, %v6445
          %v6457 = vpack.c.b16 %v6448, %v6447
          %v6458 = vpack.c.b16 %v6450, %v6449
          %6467 = vmatprep.subr.bf16.mxu0 0
          %6468 = vmatpush1.bf16.msra.mxu0 %v6458
          %6469 = vmatprep.subr.bf16.mxu0 0
          %6470 = vmatpush1.bf16.msra.mxu0 %v6457
          %6471 = vmatprep.subr.bf16.mxu0 0
          %6472 = vmatpush1.bf16.msra.mxu0 %v6456
          %6473 = vmatprep.subr.bf16.mxu0 0
          %6474 = vmatpush1.bf16.msra.mxu0 %v6455
          %6475 = vmatprep.subr.bf16.mxu0 0
          %6476 = vmatpush1.bf16.msra.mxu0 %v6454
          %6477 = vmatprep.subr.bf16.mxu0 0
          %6478 = vmatpush1.bf16.msra.mxu0 %v6453
          %6479 = vmatprep.subr.bf16.mxu0 0
          %6480 = vmatpush1.bf16.msra.mxu0 %v6452
          %6481 = vmatprep.subr.bf16.mxu0 0
          %6482 = vmatpush1.bf16.msra.mxu0 %v6451
          %6483 = vmatprep.subr.bf16.mxu0 0
          %6484 = vmatpush2.bf16.msra.mxu0 0
          %6485 = vmatprep.subr.bf16.mxu0 0
          %6486 = vmatpush2.bf16.msra.mxu0 0
          %6487 = vmatprep.subr.bf16.mxu0 0
          %6488 = vmatpush2.bf16.msra.mxu0 0
          %6489 = vmatprep.subr.bf16.mxu0 0
          %6490 = vmatpush2.bf16.msra.mxu0 0
          %6491 = vmatprep.subr.bf16.mxu0 0
          %6492 = vmatpush2.bf16.msra.mxu0 0
          %6493 = vmatprep.subr.bf16.mxu0 0
          %6494 = vmatpush2.bf16.msra.mxu0 0
          %6495 = vmatprep.subr.bf16.mxu0 0
          %6496 = vmatpush2.bf16.msra.mxu0 0
          %6497 = vmatprep.subr.bf16.mxu0 0
          %6498 = vmatpush2.bf16.msra.mxu0 0
          %6499 = vmatprep.mubr.bf16.mxu0 0
          %6500 = vmatmul.mubr.bf16.gmra.mxu0 %v6395
          %v6501 = vpop.f32.mrf.mxu0
          %v6502 = vadd.f32 %v6417, %v6501
          %v6503 = vpop.f32.mrf.mxu0
          %v6504 = vpop.f32.mrf.mxu0
          %v6505 = vadd.f32 %v6417, %v6504
          %v6506 = vpop.f32.mrf.mxu0
          %6507 = vdwg.mxu0
          %v6508 = vmax.f32 %v6502, 0.0
          %v6509 = vmax.f32 %v6505, 0.0
          %vm6510 = vcmp.ne.f32.partialorder %v6502, %v6502
          %vm6511 = vcmp.ne.f32.partialorder %v6505, %v6505
          %v6512 = vadd.f32 %v6502, 0.0
          %v6513 = vadd.f32 %v6505, 0.0
          %v6514 = vand.u32 2147483647, %v6502
          %v6515 = vand.u32 2147483647, %v6505
          %v6516 = vsub.f32 0.0, %v6514
          %v6517 = vsub.f32 0.0, %v6515
          %v6518 = vmul.f32 %v6516, 1.442695
          %v6519 = vpow.pop %v6518
          %v6520 = vmul.f32 %v6517, 1.442695
          %v6521 = vpow.pop %v6520
          %v6522 = vadd.f32 %v6519, 1.0
          %v6523 = vlog2.pop %v6522
          %v6524 = vmul.f32 %v6523, 0.6931472
          %v6525 = vmul.f32 -0.5, %v6519
          %v6526 = vadd.f32 %v6525, 1.0
          %v6527 = vmul.f32 %v6526, %v6519
          %v6528 = vand.u32 2147483647, %v6519
          %vm6529 = vcmp.lt.f32.partialorder %v6528, 0.0004427343
          %v6530 = vsel %vm6529, %v6527, %v6524
          %v6531 = vadd.f32 %v6521, 1.0
          %v6532 = vlog2.pop %v6531
          %v6533 = vmul.f32 %v6532, 0.6931472
          %v6534 = vmul.f32 -0.5, %v6521
          %v6535 = vadd.f32 %v6534, 1.0
          %v6536 = vmul.f32 %v6535, %v6521
          %v6537 = vand.u32 2147483647, %v6521
          %vm6538 = vcmp.lt.f32.partialorder %v6537, 0.0004427343
          %v6539 = vsel %vm6538, %v6536, %v6533
          %v6540 = vadd.f32 %v6508, %v6530
          %v6541 = vadd.f32 %v6509, %v6539
          %v6542 = vsel %vm6510, %v6512, %v6540
          %v6543 = vsel %vm6511, %v6513, %v6541
          %v6544 = vsub.f32 %v6542, 0.6931472
          %v6545 = vsub.f32 %v6543, 0.6931472
          %v6546 = vpack.c.bf16 %v6545, %v6544
          %v6547 = vld [vmem:[%s12] sm:$0xf]
          %v6548 = vld [vmem:[%s12 + $0x4] sm:$0xf]
          %v6549 = vld [vmem:[%s12 + $0x8] sm:$0xf]
          %v6550 = vld [vmem:[%s12 + $0xc] sm:$0xf]
          %v6551 = vld [vmem:[%s12 + $0x10] sm:$0xf]
          %v6552 = vld [vmem:[%s12 + $0x14] sm:$0xf]
          %v6553 = vld [vmem:[%s12 + $0x18] sm:$0xf]
          %v6554 = vld [vmem:[%s12 + $0x1c] sm:$0xf]
          %v6555 = vld [vmem:[%s12 + $0x20] sm:$0xf]
          %v6556 = vld [vmem:[%s12 + $0x24] sm:$0xf]
          %v6557 = vld [vmem:[%s12 + $0x28] sm:$0xf]
          %v6558 = vld [vmem:[%s12 + $0x2c] sm:$0xf]
          %v6559 = vld [vmem:[%s12 + $0x30] sm:$0xf]
          %v6560 = vld [vmem:[%s12 + $0x34] sm:$0xf]
          %v6561 = vld [vmem:[%s12 + $0x38] sm:$0xf]
          %v6562 = vld [vmem:[%s12 + $0x3c] sm:$0xf]
          %v6563 = vld [vmem:[%s13] sm:$0x1]
          %v6565 = vlaneseq
          %v6566 = vshrl.u32 %v6565, 7
          %v6567 = vsub.s32 0, %v6566
          %v6568 = vrot.slane %v6563, %v6567
          %v6586 = vunpack.c.l.b16 %v6547
          %v6587 = vunpack.c.l.b16 %v6548
          %v6588 = vunpack.c.l.b16 %v6549
          %v6589 = vunpack.c.l.b16 %v6550
          %v6590 = vunpack.c.l.b16 %v6551
          %v6591 = vunpack.c.l.b16 %v6552
          %v6592 = vunpack.c.l.b16 %v6553
          %v6593 = vunpack.c.l.b16 %v6554
          %v6594 = vunpack.c.l.b16 %v6555
          %v6595 = vunpack.c.l.b16 %v6556
          %v6596 = vunpack.c.l.b16 %v6557
          %v6597 = vunpack.c.l.b16 %v6558
          %v6598 = vunpack.c.l.b16 %v6559
          %v6599 = vunpack.c.l.b16 %v6560
          %v6600 = vunpack.c.l.b16 %v6561
          %v6601 = vunpack.c.l.b16 %v6562
          %v6602 = vpack.c.b16 %v6587, %v6586
          %v6603 = vpack.c.b16 %v6589, %v6588
          %v6604 = vpack.c.b16 %v6591, %v6590
          %v6605 = vpack.c.b16 %v6593, %v6592
          %v6606 = vpack.c.b16 %v6595, %v6594
          %v6607 = vpack.c.b16 %v6597, %v6596
          %v6608 = vpack.c.b16 %v6599, %v6598
          %v6609 = vpack.c.b16 %v6601, %v6600
          %6618 = vmatprep.subr.bf16.mxu0 0
          %6619 = vmatpush1.bf16.msra.mxu0 %v6609
          %6620 = vmatprep.subr.bf16.mxu0 0
          %6621 = vmatpush1.bf16.msra.mxu0 %v6608
          %6622 = vmatprep.subr.bf16.mxu0 0
          %6623 = vmatpush1.bf16.msra.mxu0 %v6607
          %6624 = vmatprep.subr.bf16.mxu0 0
          %6625 = vmatpush1.bf16.msra.mxu0 %v6606
          %6626 = vmatprep.subr.bf16.mxu0 0
          %6627 = vmatpush1.bf16.msra.mxu0 %v6605
          %6628 = vmatprep.subr.bf16.mxu0 0
          %6629 = vmatpush1.bf16.msra.mxu0 %v6604
          %6630 = vmatprep.subr.bf16.mxu0 0
          %6631 = vmatpush1.bf16.msra.mxu0 %v6603
          %6632 = vmatprep.subr.bf16.mxu0 0
          %6633 = vmatpush1.bf16.msra.mxu0 %v6602
          %6634 = vmatprep.subr.bf16.mxu0 0
          %6635 = vmatpush2.bf16.msra.mxu0 0
          %6636 = vmatprep.subr.bf16.mxu0 0
          %6637 = vmatpush2.bf16.msra.mxu0 0
          %6638 = vmatprep.subr.bf16.mxu0 0
          %6639 = vmatpush2.bf16.msra.mxu0 0
          %6640 = vmatprep.subr.bf16.mxu0 0
          %6641 = vmatpush2.bf16.msra.mxu0 0
          %6642 = vmatprep.subr.bf16.mxu0 0
          %6643 = vmatpush2.bf16.msra.mxu0 0
          %6644 = vmatprep.subr.bf16.mxu0 0
          %6645 = vmatpush2.bf16.msra.mxu0 0
          %6646 = vmatprep.subr.bf16.mxu0 0
          %6647 = vmatpush2.bf16.msra.mxu0 0
          %6648 = vmatprep.subr.bf16.mxu0 0
          %6649 = vmatpush2.bf16.msra.mxu0 0
          %6650 = vmatprep.mubr.bf16.mxu0 0
          %6651 = vmatmul.mubr.bf16.gmra.mxu0 %v6546
          %v6652 = vpop.f32.mrf.mxu0
          %v6653 = vadd.f32 %v6568, %v6652
          %v6654 = vpop.f32.mrf.mxu0
          %v6655 = vpop.f32.mrf.mxu0
          %v6656 = vadd.f32 %v6568, %v6655
          %v6657 = vpop.f32.mrf.mxu0
          %6658 = vdwg.mxu0
          %v6659 = vld [vmem:[%s594] sm:$0xff]
          %v6660 = vld [vmem:[%s594 + $0x8] sm:$0xff]
          %v6661 = vadd.f32 %v6659, %v6653
          %v6662 = vadd.f32 %v6660, %v6656
          %6663 = vst [vmem:[%s589] sm:$0xff] %v6661
          %6664 = vst [vmem:[%s589 + $0x8] sm:$0xff] %v6662
        $region84: #{tpu_custom_call.1} parent=75 // pred_fallthru
          _
        %s6665 = sand.u32 %s375, 1
        %s6666 = scalar_lea.sflag [#allocation5], %s6665
        %s6667 = sand.u32 %s375, 1
        %s6668 = smul.addr %s6667, 16
        %s6669 = scalar_lea.vmem [#allocation4], %s6668
        // Predicated region
        $region85: #{tpu_custom_call.1} parent=75 // pred_check
          %p6670 = pneg %p385
        $region86: #{tpu_custom_call.1} parent=75 // pred_check_branch
          %6672 = sbr.rel (%p6670) target = $region88
        $region87: #{tpu_custom_call.1} parent=75 // pred_region
          %s6673 = smul.u32 2, %s32
          %s6675 = ssub.s32 256, 256
          %6676 = vsyncadd %s6666, %s6675
          %s6677 = smul.addr %s6673, 128
          %s6678 = scalar_lea.hbm %s14, %s6677
          %s6679 = sshll.u32 %s6669, 4
          %s6680 = int_to_ptr.vmem [resolvable:$true] %s6679
          %6685 = dma.vmem_to_hbm [thread:$0]  %s6680, 256, %s6678, %s6666, 128, 128, 8
        $region88: #{tpu_custom_call.1} parent=75 // pred_fallthru
          _
      $region76: #{tpu_custom_call.1} parent=5 // pred_fallthru
        _
      %p6686 = scmp.le.s32.totalorder 2, %s23
      // Predicated region
      $region89: #{tpu_custom_call.1} parent=5 // pred_check
        %p6687 = pneg %p6686
      $region90: #{tpu_custom_call.1} parent=5 // pred_check_branch
        %6689 = sbr.rel (%p6687) target = $region92
      $region91: #{tpu_custom_call.1} parent=5 // pred_region
        %s6690 = ssub.s32 %s23, 2
        // Predicated region
        $region93: #{tpu_custom_call.1} parent=91 // pred_check
          %p6691 = pneg %p391
        $region94: #{tpu_custom_call.1} parent=91 // pred_check_branch
          %6693 = sbr.rel (%p6691) target = $region96
        $region95: #{tpu_custom_call.1} parent=91 // pred_region
          %s6694 = sand.u32 %s376, 1
          %s6695 = scalar_lea.sflag [#allocation5], %s6694
          %s6696 = sand.u32 %s376, 1
          %s6697 = smul.addr %s6696, 16
          %s6698 = scalar_lea.vmem [#allocation4], %s6697
          %6699 = dma.done %s6695, 256
        $region96: #{tpu_custom_call.1} parent=91 // pred_fallthru
          _
      $region92: #{tpu_custom_call.1} parent=5 // pred_fallthru
        _
    $region6: #{tpu_custom_call.1} parent=1 // loop_footer
      %s27 = sadd.s32 1, %s23
    $region7: #{tpu_custom_call.1} parent=1 // loop_footer_branch
      %22 = sbr.rel target = $region3
    $region8: #{tpu_custom_call.1} parent=1 // loop_exit
      _
    %6700 = vsyncpa [#allocation5], 1
    %s6701 = scalar_lea.sflag [#allocation5], 1
    %6702 = vsyncpa %s6701, 1

</llo_original>
